<compile_context>
chip_gen: v6e
topology: v6e:2x2x1
jax: 0.10.0
libtpu: 0.0.40
codegen_flags: <defaults>
</compile_context>

<pallas_src>
import math
import functools

import jax
import jax.numpy as jnp
from jax import lax
from jax.experimental import pallas as pl
from jax.experimental.pallas import tpu as pltpu


LANE = 128


def _round_up(x, m):
    return (x + m - 1) // m * m


def _choose_tm(mp):
    """M-tile size: large for HBM bandwidth, >=2 tiles when possible (v7x)."""
    m128 = _round_up(mp, LANE)
    if m128 <= LANE:
        return LANE
    if m128 <= 8 * LANE:
        return max(LANE, _round_up(m128 // 2, LANE))   # split into ~2 tiles
    return 4 * LANE                                     # fixed 512-wide tiles


# ----------------------------------------------------------------------------
# Pallas kernel: fused (sum over taps) GEMM + bias + (residual) + (ReLU)
# ----------------------------------------------------------------------------
def _conv_kernel(w_ref, b_ref, cur_ref, *rest, taps, tm, relu, has_res,
                 needs_next):
    rest = list(rest)
    nxt_ref = rest.pop(0) if needs_next else None
    res_ref = rest.pop(0) if has_res else None
    o_ref = rest.pop(0)

    # Hoist per-phase loads; build the halo-extended tile only where needed.
    phases = sorted({p for p, _ in taps})
    cur = {p: cur_ref[p] for p in phases}                     # [Cin, tm] bf16
    ext = {}
    for p in phases:
        if any(sh > 0 for pp, sh in taps if pp == p):
            ext[p] = jnp.concatenate([cur[p], nxt_ref[p]], axis=-1)

    acc = None
    for t, (p, sh) in enumerate(taps):                        # static loop
        a = cur[p] if sh == 0 else ext[p][:, sh:sh + tm]      # lane shift
        d = jnp.dot(w_ref[t], a, preferred_element_type=jnp.float32)
        acc = d if acc is None else acc + d
    acc = acc + b_ref[...]                                    # (Cout,1) bcast
    if has_res:
        acc = acc + res_ref[...].astype(jnp.float32)          # FPN top-down
    if relu:
        acc = jnp.maximum(acc, 0.0)
    o_ref[...] = acc.astype(o_ref.dtype)


# ----------------------------------------------------------------------------
# Conv2d on CNHW activations: phase split (XLA) + one fused Pallas call
# ----------------------------------------------------------------------------
def conv2d_cm(x, w, b, *, stride=1, padding=0, relu=False, residual=None,
              out_dtype=jnp.bfloat16):
    """x:[Cin,N,H,W], w:[Cout,Cin,kh,kw], b:[Cout] -> [Cout,N,Ho,Wo]."""
    Cin, N, H, W = x.shape
    Cout, Cin2, kh, kw = w.shape
    assert Cin == Cin2
    s = stride
    Ho = (H + 2 * padding - kh) // s + 1
    Wo = (W + 2 * padding - kw) // s + 1
    Hs = Ho + (kh - 1) // s            # phase-space extent (output + tap halo)
    Ws = Wo + (kw - 1) // s
    P = s * s
    Mp = N * Hs * Ws

    # --- XLA-side prep (~1x activation bytes, bf16): pad + phase split ------
    xp = jnp.pad(x.astype(jnp.bfloat16),
                 ((0, 0), (0, 0), (padding, padding), (padding, padding)))
    phase_list = []
    for a in range(s):
        for c in range(s):
            ph = xp[:, :, a::s, c::s][:, :, :Hs, :Ws]
            if ph.shape[2] < Hs or ph.shape[3] < Ws:
                ph = jnp.pad(ph, ((0, 0), (0, 0),
                                  (0, Hs - ph.shape[2]), (0, Ws - ph.shape[3])))
            phase_list.append(ph)
    A = jnp.stack(phase_list, axis=0).reshape(P, Cin, Mp)

    # tap table: (phase index, constant lane shift) for each (ki, kj)
    taps = tuple(((ki % s) * s + (kj % s), (ki // s) * Ws + (kj // s))
                 for ki in range(kh) for kj in range(kw))
    shift_max = max(sh for _, sh in taps)
    needs_next = shift_max > 0

    tm = max(_choose_tm(Mp), _round_up(max(shift_max, 1), LANE))
    ntiles = pl.cdiv(Mp, tm)
    lout = ntiles * tm
    if needs_next:
        th = next(t for t in range(LANE, tm + 1, LANE)
                  if t >= shift_max and tm % t == 0)
        lin = lout + tm                       # room for the last halo block
    else:
        th = 0
        lin = lout
    A = jnp.pad(A, ((0, 0), (0, 0), (0, lin - Mp)))

    wt = jnp.transpose(w, (2, 3, 0, 1)).reshape(kh * kw, Cout, Cin)
    wt = wt.astype(jnp.bfloat16)
    b2 = b.reshape(Cout, 1).astype(jnp.float32)

    in_specs = [
        pl.BlockSpec((kh * kw, Cout, Cin), lambda i: (0, 0, 0)),
        pl.BlockSpec((Cout, 1), lambda i: (0, 0)),
        pl.BlockSpec((P, Cin, tm), lambda i: (0, 0, i)),
    ]
    args = [wt, b2, A]
    if needs_next:
        step = tm // th
        in_specs.append(pl.BlockSpec((P, Cin, th),
                                     lambda i: (0, 0, (i + 1) * step)))
        args.append(A)       # same array: just the leading halo of tile i+1
    has_res = residual is not None
    r = None
    if has_res:
        assert (Hs, Ws) == (Ho, Wo), "residual fusion only for 1x1 stride-1"
        r = jnp.pad(residual.reshape(Cout, Mp).astype(jnp.bfloat16),
                    ((0, 0), (0, lout - Mp)))
        in_specs.append(pl.BlockSpec((Cout, tm), lambda i: (0, i)))
        args.append(r)

    out_bytes = Cout * lout * jnp.dtype(out_dtype).itemsize
    bytes_accessed = int(P * Cin * (lout + ntiles * th) * 2 + wt.size * 2
                         + b2.size * 4 + (r.size * 2 if has_res else 0)
                         + out_bytes)
    flops = 2 * Cout * kh * kw * Cin * lout

    out = pl.pallas_call(
        functools.partial(_conv_kernel, taps=taps, tm=tm, relu=relu,
                          has_res=has_res, needs_next=needs_next),
        out_shape=jax.ShapeDtypeStruct((Cout, lout), out_dtype),
        grid=(ntiles,),
        in_specs=in_specs,
        out_specs=pl.BlockSpec((Cout, tm), lambda i: (0, i)),
        compiler_params=pltpu.CompilerParams(
            dimension_semantics=("parallel",),
            vmem_limit_bytes=32 * 1024 * 1024),
        cost_estimate=pl.CostEstimate(flops=flops, transcendentals=0,
                                      bytes_accessed=bytes_accessed),
    )(*args)

    # Crop from phase coordinates back to [Cout, N, Ho, Wo] (fuses with the
    # next layer's pad/phase-split in XLA).
    out = out[:, :Mp].reshape(Cout, N, Hs, Ws)
    if (Hs, Ws) != (Ho, Wo):
        out = out[:, :, :Ho, :Wo]
    return out


def upsample_nearest_cm(x, size):
    """PyTorch F.interpolate(mode='nearest') on CNHW to target (Ho, Wo)."""
    C, N, H, W = x.shape
    Ho, Wo = size
    if Ho % H == 0 and Wo % W == 0:           # integer factor: free broadcast
        fh, fw = Ho // H, Wo // W
        y = jnp.broadcast_to(x[:, :, :, None, :, None], (C, N, H, fh, W, fw))
        return y.reshape(C, N, Ho, Wo)
    rows = (jnp.arange(Ho) * H) // Ho         # general fallback (floor index)
    cols = (jnp.arange(Wo) * W) // Wo
    return x[:, :, rows, :][:, :, :, cols]


# ----------------------------------------------------------------------------
# Backbone_FPN parameters + forward
# ----------------------------------------------------------------------------
def init_conv(key, cout, cin, kh, kw):
    kw_, kb_ = jax.random.split(key)
    fan_in = cin * kh * kw
    w = jax.random.normal(kw_, (cout, cin, kh, kw), jnp.float32) / math.sqrt(fan_in)
    b = 0.01 * jax.random.normal(kb_, (cout,), jnp.float32)
    return w, b


def init_params(key, in_ch=4, backbone_ch=(8, 16, 32), fpn_out=8):
    keys = jax.random.split(key, 3 * len(backbone_ch))
    params = {"backbone": [], "fpn_inner": [], "fpn_layer": []}
    c_prev = in_ch
    k = 0
    for c in backbone_ch:
        params["backbone"].append(init_conv(keys[k], c, c_prev, 3, 3)); k += 1
        c_prev = c
    for c in backbone_ch:
        params["fpn_inner"].append(init_conv(keys[k], fpn_out, c, 1, 1)); k += 1
    for _ in backbone_ch:
        params["fpn_layer"].append(init_conv(keys[k], fpn_out, fpn_out, 3, 3)); k += 1
    return params


def backbone_fpn_forward(x_nchw, params):
    # One boundary transpose NCHW -> CNHW; activations stay CNHW (bf16).
    h = jnp.transpose(x_nchw, (1, 0, 2, 3))

    # --- backbone: stride-2 3x3 convs with fused ReLU, bf16 intermediates ---
    feats = []
    for (w, b) in params["backbone"]:
        h = conv2d_cm(h, w, b, stride=2, padding=1, relu=True)
        feats.append(h)

    # --- FPN (torchvision FeaturePyramidNetwork semantics) ---
    inner_w = params["fpn_inner"]
    layer_w = params["fpn_layer"]

    last_inner = conv2d_cm(feats[-1], inner_w[-1][0], inner_w[-1][1])
    results = [conv2d_cm(last_inner, layer_w[-1][0], layer_w[-1][1],
                         padding=1, out_dtype=jnp.float32)]
    for idx in range(len(feats) - 2, -1, -1):
        feat = feats[idx]
        top_down = upsample_nearest_cm(last_inner, feat.shape[-2:])
        # lateral 1x1 conv with the top-down merge fused into its epilogue
        last_inner = conv2d_cm(feat, inner_w[idx][0], inner_w[idx][1],
                               residual=top_down)
        results.insert(
            0, conv2d_cm(last_inner, layer_w[idx][0], layer_w[idx][1],
                         padding=1, out_dtype=jnp.float32))

    # Boundary transpose CNHW -> NCHW to match the PyTorch module's output.
    return {str(i): jnp.transpose(r, (1, 0, 2, 3)) for i, r in enumerate(results)}


# ----------------------------------------------------------------------------
# Pure-JAX reference (mimics the kernel's bf16 mixed precision) for checking
# ----------------------------------------------------------------------------
def _ref_conv(x, w, b, stride, padding, relu=False, residual=None):
    y = lax.conv_general_dilated(
        x.astype(jnp.bfloat16), w.astype(jnp.bfloat16),
        window_strides=(stride, stride),
        padding=[(padding, padding), (padding, padding)],
        dimension_numbers=("NCHW", "OIHW", "NCHW"),
        preferred_element_type=jnp.float32)
    y = y + b.reshape(1, -1, 1, 1)
    if residual is not None:
        y = y + residual.astype(jnp.float32)
    if relu:
        y = jnp.maximum(y, 0.0)
    return y


def _ref_forward(x, params):
    q = lambda t: t.astype(jnp.bfloat16)      # bf16 intermediate storage
    feats, h = [], x
    for (w, b) in params["backbone"]:
        h = q(_ref_conv(h, w, b, 2, 1, relu=True))
        feats.append(h)
    inner_w, layer_w = params["fpn_inner"], params["fpn_layer"]
    last_inner = q(_ref_conv(feats[-1], *inner_w[-1], 1, 0))
    results = [_ref_conv(last_inner, *layer_w[-1], 1, 1)]
    for idx in range(len(feats) - 2, -1, -1):
        N, C, Hh, Ww = feats[idx].shape
        hs, ws = last_inner.shape[2], last_inner.shape[3]
        fh, fw = Hh // hs, Ww // ws
        td = jnp.broadcast_to(last_inner[:, :, :, None, :, None],
                              (N, last_inner.shape[1], hs, fh, ws, fw)
                              ).reshape(N, last_inner.shape[1], Hh, Ww)
        last_inner = q(_ref_conv(feats[idx], *inner_w[idx], 1, 0, residual=td))
        results.insert(0, _ref_conv(last_inner, *layer_w[idx], 1, 1))
    return {str(i): r for i, r in enumerate(results)}


if __name__ == "__main__":
    key = jax.random.PRNGKey(0)
    kx, kp = jax.random.split(key)
    x = jax.random.normal(kx, (2, 4, 16, 16), jnp.float32)    # NCHW like PyTorch
    params = init_params(kp)

    fwd = jax.jit(backbone_fpn_forward)
    out = fwd(x, params)
    out = jax.tree_util.tree_map(jax.block_until_ready, out)

    expected = {"0": (2, 8, 8, 8), "1": (2, 8, 4, 4), "2": (2, 8, 2, 2)}
    for k_, shape in expected.items():
        assert out[k_].shape == shape, (k_, out[k_].shape)
        assert bool(jnp.all(jnp.isfinite(out[k_])))

    # numerical check against a pure-JAX reference (same bf16 mixed precision)
    ref = jax.jit(_ref_forward)(x, params)
    ref = jax.tree_util.tree_map(jax.block_until_ready, ref)
    for k_ in expected:
        diff = float(jnp.max(jnp.abs(out[k_] - ref[k_])))
        assert diff < 5e-2, (k_, diff)

    print("KERNEL_OK")
</pallas_src>

<mosaic_0001>
module attributes {stable_mosaic.version = 11 : i64} {
  func.func @_conv_kernel(%arg0: i32, %arg1: memref<9x8x4xbf16, #tpu.memory_space<vmem>>, %arg2: memref<8x1xf32, #tpu.memory_space<vmem>>, %arg3: memref<4x4x128xbf16, #tpu.memory_space<vmem>>, %arg4: memref<4x4x128xbf16, #tpu.memory_space<vmem>>, %arg5: memref<8x128xbf16, #tpu.memory_space<vmem>>) attributes {dimension_semantics = [#tpu.dimension_semantics<parallel>], iteration_bounds = array<i64: 2>, scalar_prefetch = 0 : i64, scratch_operands = 0 : i64, tpu.core_type = #tpu.core_type<tc>, window_params = [{pipeline_mode = #tpu.pipeline_mode<synchronous>, transform_indices = @transform_0, window_bounds = array<i64: 9, 8, 4>}, {pipeline_mode = #tpu.pipeline_mode<synchronous>, transform_indices = @transform_1, window_bounds = array<i64: 8, 1>}, {transform_indices = @transform_2, window_bounds = array<i64: 4, 4, 128>}, {transform_indices = @transform_3, window_bounds = array<i64: 4, 4, 128>}, {transform_indices = @transform_4, window_bounds = array<i64: 8, 128>}]} {
    %c0 = arith.constant 0 : index
    %c0_0 = arith.constant 0 : index
    %c0_1 = arith.constant 0 : index
    %0 = vector.load %arg3[%c0, %c0_0, %c0_1] : memref<4x4x128xbf16, #tpu.memory_space<vmem>>, vector<1x4x128xbf16>
    %1 = vector.shape_cast %0 : vector<1x4x128xbf16> to vector<4x128xbf16>
    %c1 = arith.constant 1 : index
    %c0_2 = arith.constant 0 : index
    %c0_3 = arith.constant 0 : index
    %2 = vector.load %arg3[%c1, %c0_2, %c0_3] : memref<4x4x128xbf16, #tpu.memory_space<vmem>>, vector<1x4x128xbf16>
    %3 = vector.shape_cast %2 : vector<1x4x128xbf16> to vector<4x128xbf16>
    %c2 = arith.constant 2 : index
    %c0_4 = arith.constant 0 : index
    %c0_5 = arith.constant 0 : index
    %4 = vector.load %arg3[%c2, %c0_4, %c0_5] : memref<4x4x128xbf16, #tpu.memory_space<vmem>>, vector<1x4x128xbf16>
    %5 = vector.shape_cast %4 : vector<1x4x128xbf16> to vector<4x128xbf16>
    %c3 = arith.constant 3 : index
    %c0_6 = arith.constant 0 : index
    %c0_7 = arith.constant 0 : index
    %6 = vector.load %arg3[%c3, %c0_6, %c0_7] : memref<4x4x128xbf16, #tpu.memory_space<vmem>>, vector<1x4x128xbf16>
    %7 = vector.shape_cast %6 : vector<1x4x128xbf16> to vector<4x128xbf16>
    %c0_8 = arith.constant 0 : index
    %c0_9 = arith.constant 0 : index
    %c0_10 = arith.constant 0 : index
    %8 = vector.load %arg4[%c0_8, %c0_9, %c0_10] : memref<4x4x128xbf16, #tpu.memory_space<vmem>>, vector<1x4x128xbf16>
    %9 = vector.shape_cast %8 : vector<1x4x128xbf16> to vector<4x128xbf16>
    %10 = tpu.concatenate %1, %9 in 1 : vector<4x128xbf16>, vector<4x128xbf16> -> vector<4x256xbf16>
    %c1_11 = arith.constant 1 : index
    %c0_12 = arith.constant 0 : index
    %c0_13 = arith.constant 0 : index
    %11 = vector.load %arg4[%c1_11, %c0_12, %c0_13] : memref<4x4x128xbf16, #tpu.memory_space<vmem>>, vector<1x4x128xbf16>
    %12 = vector.shape_cast %11 : vector<1x4x128xbf16> to vector<4x128xbf16>
    %13 = tpu.concatenate %3, %12 in 1 : vector<4x128xbf16>, vector<4x128xbf16> -> vector<4x256xbf16>
    %c2_14 = arith.constant 2 : index
    %c0_15 = arith.constant 0 : index
    %c0_16 = arith.constant 0 : index
    %14 = vector.load %arg4[%c2_14, %c0_15, %c0_16] : memref<4x4x128xbf16, #tpu.memory_space<vmem>>, vector<1x4x128xbf16>
    %15 = vector.shape_cast %14 : vector<1x4x128xbf16> to vector<4x128xbf16>
    %16 = tpu.concatenate %5, %15 in 1 : vector<4x128xbf16>, vector<4x128xbf16> -> vector<4x256xbf16>
    %c0_17 = arith.constant 0 : index
    %c0_18 = arith.constant 0 : index
    %c0_19 = arith.constant 0 : index
    %17 = vector.load %arg1[%c0_17, %c0_18, %c0_19] : memref<9x8x4xbf16, #tpu.memory_space<vmem>>, vector<1x8x4xbf16>
    %18 = vector.shape_cast %17 : vector<1x8x4xbf16> to vector<8x4xbf16>
    %cst = arith.constant dense<0.000000e+00> : vector<8x128xf32>
    %19 = tpu.matmul %18, %1, %cst {dimension_numbers = #tpu.dot_dimension_numbers<[1], [0], [0], [1], [0, 0, 1, 1], [], []>} : vector<8x4xbf16>, vector<4x128xbf16>, vector<8x128xf32> -> vector<8x128xf32>
    %c1_20 = arith.constant 1 : index
    %c0_21 = arith.constant 0 : index
    %c0_22 = arith.constant 0 : index
    %20 = vector.load %arg1[%c1_20, %c0_21, %c0_22] : memref<9x8x4xbf16, #tpu.memory_space<vmem>>, vector<1x8x4xbf16>
    %21 = vector.shape_cast %20 : vector<1x8x4xbf16> to vector<8x4xbf16>
    %cst_23 = arith.constant dense<0.000000e+00> : vector<8x128xf32>
    %22 = tpu.matmul %21, %3, %cst_23 {dimension_numbers = #tpu.dot_dimension_numbers<[1], [0], [0], [1], [0, 0, 1, 1], [], []>} : vector<8x4xbf16>, vector<4x128xbf16>, vector<8x128xf32> -> vector<8x128xf32>
    %23 = arith.addf %19, %22 : vector<8x128xf32>
    %24 = vector.extract_strided_slice %10 {offsets = [0, 1], sizes = [4, 128], strides = [1, 1]} : vector<4x256xbf16> to vector<4x128xbf16>
    %c2_24 = arith.constant 2 : index
    %c0_25 = arith.constant 0 : index
    %c0_26 = arith.constant 0 : index
    %25 = vector.load %arg1[%c2_24, %c0_25, %c0_26] : memref<9x8x4xbf16, #tpu.memory_space<vmem>>, vector<1x8x4xbf16>
    %26 = vector.shape_cast %25 : vector<1x8x4xbf16> to vector<8x4xbf16>
    %cst_27 = arith.constant dense<0.000000e+00> : vector<8x128xf32>
    %27 = tpu.matmul %26, %24, %cst_27 {dimension_numbers = #tpu.dot_dimension_numbers<[1], [0], [0], [1], [0, 0, 1, 1], [], []>} : vector<8x4xbf16>, vector<4x128xbf16>, vector<8x128xf32> -> vector<8x128xf32>
    %28 = arith.addf %23, %27 : vector<8x128xf32>
    %c3_28 = arith.constant 3 : index
    %c0_29 = arith.constant 0 : index
    %c0_30 = arith.constant 0 : index
    %29 = vector.load %arg1[%c3_28, %c0_29, %c0_30] : memref<9x8x4xbf16, #tpu.memory_space<vmem>>, vector<1x8x4xbf16>
    %30 = vector.shape_cast %29 : vector<1x8x4xbf16> to vector<8x4xbf16>
    %cst_31 = arith.constant dense<0.000000e+00> : vector<8x128xf32>
    %31 = tpu.matmul %30, %5, %cst_31 {dimension_numbers = #tpu.dot_dimension_numbers<[1], [0], [0], [1], [0, 0, 1, 1], [], []>} : vector<8x4xbf16>, vector<4x128xbf16>, vector<8x128xf32> -> vector<8x128xf32>
    %32 = arith.addf %28, %31 : vector<8x128xf32>
    %c4 = arith.constant 4 : index
    %c0_32 = arith.constant 0 : index
    %c0_33 = arith.constant 0 : index
    %33 = vector.load %arg1[%c4, %c0_32, %c0_33] : memref<9x8x4xbf16, #tpu.memory_space<vmem>>, vector<1x8x4xbf16>
    %34 = vector.shape_cast %33 : vector<1x8x4xbf16> to vector<8x4xbf16>
    %cst_34 = arith.constant dense<0.000000e+00> : vector<8x128xf32>
    %35 = tpu.matmul %34, %7, %cst_34 {dimension_numbers = #tpu.dot_dimension_numbers<[1], [0], [0], [1], [0, 0, 1, 1], [], []>} : vector<8x4xbf16>, vector<4x128xbf16>, vector<8x128xf32> -> vector<8x128xf32>
    %36 = arith.addf %32, %35 : vector<8x128xf32>
    %37 = vector.extract_strided_slice %16 {offsets = [0, 1], sizes = [4, 128], strides = [1, 1]} : vector<4x256xbf16> to vector<4x128xbf16>
    %c5 = arith.constant 5 : index
    %c0_35 = arith.constant 0 : index
    %c0_36 = arith.constant 0 : index
    %38 = vector.load %arg1[%c5, %c0_35, %c0_36] : memref<9x8x4xbf16, #tpu.memory_space<vmem>>, vector<1x8x4xbf16>
    %39 = vector.shape_cast %38 : vector<1x8x4xbf16> to vector<8x4xbf16>
    %cst_37 = arith.constant dense<0.000000e+00> : vector<8x128xf32>
    %40 = tpu.matmul %39, %37, %cst_37 {dimension_numbers = #tpu.dot_dimension_numbers<[1], [0], [0], [1], [0, 0, 1, 1], [], []>} : vector<8x4xbf16>, vector<4x128xbf16>, vector<8x128xf32> -> vector<8x128xf32>
    %41 = arith.addf %36, %40 : vector<8x128xf32>
    %42 = vector.extract_strided_slice %10 {offsets = [0, 9], sizes = [4, 128], strides = [1, 1]} : vector<4x256xbf16> to vector<4x128xbf16>
    %c6 = arith.constant 6 : index
    %c0_38 = arith.constant 0 : index
    %c0_39 = arith.constant 0 : index
    %43 = vector.load %arg1[%c6, %c0_38, %c0_39] : memref<9x8x4xbf16, #tpu.memory_space<vmem>>, vector<1x8x4xbf16>
    %44 = vector.shape_cast %43 : vector<1x8x4xbf16> to vector<8x4xbf16>
    %cst_40 = arith.constant dense<0.000000e+00> : vector<8x128xf32>
    %45 = tpu.matmul %44, %42, %cst_40 {dimension_numbers = #tpu.dot_dimension_numbers<[1], [0], [0], [1], [0, 0, 1, 1], [], []>} : vector<8x4xbf16>, vector<4x128xbf16>, vector<8x128xf32> -> vector<8x128xf32>
    %46 = arith.addf %41, %45 : vector<8x128xf32>
    %47 = vector.extract_strided_slice %13 {offsets = [0, 9], sizes = [4, 128], strides = [1, 1]} : vector<4x256xbf16> to vector<4x128xbf16>
    %c7 = arith.constant 7 : index
    %c0_41 = arith.constant 0 : index
    %c0_42 = arith.constant 0 : index
    %48 = vector.load %arg1[%c7, %c0_41, %c0_42] : memref<9x8x4xbf16, #tpu.memory_space<vmem>>, vector<1x8x4xbf16>
    %49 = vector.shape_cast %48 : vector<1x8x4xbf16> to vector<8x4xbf16>
    %cst_43 = arith.constant dense<0.000000e+00> : vector<8x128xf32>
    %50 = tpu.matmul %49, %47, %cst_43 {dimension_numbers = #tpu.dot_dimension_numbers<[1], [0], [0], [1], [0, 0, 1, 1], [], []>} : vector<8x4xbf16>, vector<4x128xbf16>, vector<8x128xf32> -> vector<8x128xf32>
    %51 = arith.addf %46, %50 : vector<8x128xf32>
    %52 = vector.extract_strided_slice %10 {offsets = [0, 10], sizes = [4, 128], strides = [1, 1]} : vector<4x256xbf16> to vector<4x128xbf16>
    %c8 = arith.constant 8 : index
    %c0_44 = arith.constant 0 : index
    %c0_45 = arith.constant 0 : index
    %53 = vector.load %arg1[%c8, %c0_44, %c0_45] : memref<9x8x4xbf16, #tpu.memory_space<vmem>>, vector<1x8x4xbf16>
    %54 = vector.shape_cast %53 : vector<1x8x4xbf16> to vector<8x4xbf16>
    %cst_46 = arith.constant dense<0.000000e+00> : vector<8x128xf32>
    %55 = tpu.matmul %54, %52, %cst_46 {dimension_numbers = #tpu.dot_dimension_numbers<[1], [0], [0], [1], [0, 0, 1, 1], [], []>} : vector<8x4xbf16>, vector<4x128xbf16>, vector<8x128xf32> -> vector<8x128xf32>
    %56 = arith.addf %51, %55 : vector<8x128xf32>
    %c0_47 = arith.constant 0 : index
    %c0_48 = arith.constant 0 : index
    %57 = vector.load %arg2[%c0_47, %c0_48] : memref<8x1xf32, #tpu.memory_space<vmem>>, vector<8x1xf32>
    %58 = vector.broadcast %57 : vector<8x1xf32> to vector<8x128xf32>
    %59 = arith.addf %56, %58 : vector<8x128xf32>
    %cst_49 = arith.constant 0.000000e+00 : f32
    %60 = vector.broadcast %cst_49 : f32 to vector<8x128xf32>
    %61 = arith.maximumf %59, %60 : vector<8x128xf32>
    %62 = arith.truncf %61 : vector<8x128xf32> to vector<8x128xbf16>
    %c0_50 = arith.constant 0 : index
    %c0_51 = arith.constant 0 : index
    %63 = vector.load %arg5[%c0_50, %c0_51] : memref<8x128xbf16, #tpu.memory_space<vmem>>, vector<8x128xbf16>
    tpu.vector_store %arg5[%c0_50, %c0_51], %62 {strides = array<i32>} : memref<8x128xbf16, #tpu.memory_space<vmem>>, vector<8x128xbf16>,
    return
  }
  func.func @transform_0(%arg0: i32) -> (i32, i32, i32) {
    %c0_i32 = arith.constant 0 : i32
    %c0_i32_0 = arith.constant 0 : i32
    %c0_i32_1 = arith.constant 0 : i32
    %c0_i32_2 = arith.constant 0 : i32
    return %c0_i32, %c0_i32_0, %c0_i32_1 : i32, i32, i32
  }
  func.func @transform_1(%arg0: i32) -> (i32, i32) {
    %c0_i32 = arith.constant 0 : i32
    %c0_i32_0 = arith.constant 0 : i32
    %c0_i32_1 = arith.constant 0 : i32
    return %c0_i32, %c0_i32_0 : i32, i32
  }
  func.func @transform_2(%arg0: i32) -> (i32, i32, i32) {
    %c0_i32 = arith.constant 0 : i32
    %c0_i32_0 = arith.constant 0 : i32
    %c0_i32_1 = arith.constant 0 : i32
    return %c0_i32, %c0_i32_0, %arg0 : i32, i32, i32
  }
  func.func @transform_3(%arg0: i32) -> (i32, i32, i32) {
    %c1_i32 = arith.constant 1 : i32
    %0 = arith.addi %arg0, %c1_i32 : i32
    %c1_i32_0 = arith.constant 1 : i32
    %1 = arith.muli %0, %c1_i32_0 : i32
    %c0_i32 = arith.constant 0 : i32
    %c0_i32_1 = arith.constant 0 : i32
    %c0_i32_2 = arith.constant 0 : i32
    return %c0_i32, %c0_i32_1, %1 : i32, i32, i32
  }
  func.func @transform_4(%arg0: i32) -> (i32, i32) {
    %c0_i32 = arith.constant 0 : i32
    %c0_i32_0 = arith.constant 0 : i32
    return %c0_i32, %arg0 : i32, i32
  }
}

module attributes {stable_mosaic.version = 11 : i64} {
  func.func @_conv_kernel(%arg0: i32, %arg1: memref<9x16x8xbf16, #tpu.memory_space<vmem>>, %arg2: memref<16x1xf32, #tpu.memory_space<vmem>>, %arg3: memref<4x8x128xbf16, #tpu.memory_space<vmem>>, %arg4: memref<4x8x128xbf16, #tpu.memory_space<vmem>>, %arg5: memref<16x128xbf16, #tpu.memory_space<vmem>>) attributes {dimension_semantics = [#tpu.dimension_semantics<parallel>], iteration_bounds = array<i64: 1>, scalar_prefetch = 0 : i64, scratch_operands = 0 : i64, tpu.core_type = #tpu.core_type<tc>, window_params = [{pipeline_mode = #tpu.pipeline_mode<synchronous>, transform_indices = @transform_0, window_bounds = array<i64: 9, 16, 8>}, {pipeline_mode = #tpu.pipeline_mode<synchronous>, transform_indices = @transform_1, window_bounds = array<i64: 16, 1>}, {transform_indices = @transform_2, window_bounds = array<i64: 4, 8, 128>}, {transform_indices = @transform_3, window_bounds = array<i64: 4, 8, 128>}, {transform_indices = @transform_4, window_bounds = array<i64: 16, 128>}]} {
    %c0 = arith.constant 0 : index
    %c0_0 = arith.constant 0 : index
    %c0_1 = arith.constant 0 : index
    %0 = vector.load %arg3[%c0, %c0_0, %c0_1] : memref<4x8x128xbf16, #tpu.memory_space<vmem>>, vector<1x8x128xbf16>
    %1 = vector.shape_cast %0 : vector<1x8x128xbf16> to vector<8x128xbf16>
    %c1 = arith.constant 1 : index
    %c0_2 = arith.constant 0 : index
    %c0_3 = arith.constant 0 : index
    %2 = vector.load %arg3[%c1, %c0_2, %c0_3] : memref<4x8x128xbf16, #tpu.memory_space<vmem>>, vector<1x8x128xbf16>
    %3 = vector.shape_cast %2 : vector<1x8x128xbf16> to vector<8x128xbf16>
    %c2 = arith.constant 2 : index
    %c0_4 = arith.constant 0 : index
    %c0_5 = arith.constant 0 : index
    %4 = vector.load %arg3[%c2, %c0_4, %c0_5] : memref<4x8x128xbf16, #tpu.memory_space<vmem>>, vector<1x8x128xbf16>
    %5 = vector.shape_cast %4 : vector<1x8x128xbf16> to vector<8x128xbf16>
    %c3 = arith.constant 3 : index
    %c0_6 = arith.constant 0 : index
    %c0_7 = arith.constant 0 : index
    %6 = vector.load %arg3[%c3, %c0_6, %c0_7] : memref<4x8x128xbf16, #tpu.memory_space<vmem>>, vector<1x8x128xbf16>
    %7 = vector.shape_cast %6 : vector<1x8x128xbf16> to vector<8x128xbf16>
    %c0_8 = arith.constant 0 : index
    %c0_9 = arith.constant 0 : index
    %c0_10 = arith.constant 0 : index
    %8 = vector.load %arg4[%c0_8, %c0_9, %c0_10] : memref<4x8x128xbf16, #tpu.memory_space<vmem>>, vector<1x8x128xbf16>
    %9 = vector.shape_cast %8 : vector<1x8x128xbf16> to vector<8x128xbf16>
    %10 = tpu.concatenate %1, %9 in 1 : vector<8x128xbf16>, vector<8x128xbf16> -> vector<8x256xbf16>
    %c1_11 = arith.constant 1 : index
    %c0_12 = arith.constant 0 : index
    %c0_13 = arith.constant 0 : index
    %11 = vector.load %arg4[%c1_11, %c0_12, %c0_13] : memref<4x8x128xbf16, #tpu.memory_space<vmem>>, vector<1x8x128xbf16>
    %12 = vector.shape_cast %11 : vector<1x8x128xbf16> to vector<8x128xbf16>
    %13 = tpu.concatenate %3, %12 in 1 : vector<8x128xbf16>, vector<8x128xbf16> -> vector<8x256xbf16>
    %c2_14 = arith.constant 2 : index
    %c0_15 = arith.constant 0 : index
    %c0_16 = arith.constant 0 : index
    %14 = vector.load %arg4[%c2_14, %c0_15, %c0_16] : memref<4x8x128xbf16, #tpu.memory_space<vmem>>, vector<1x8x128xbf16>
    %15 = vector.shape_cast %14 : vector<1x8x128xbf16> to vector<8x128xbf16>
    %16 = tpu.concatenate %5, %15 in 1 : vector<8x128xbf16>, vector<8x128xbf16> -> vector<8x256xbf16>
    %c0_17 = arith.constant 0 : index
    %c0_18 = arith.constant 0 : index
    %c0_19 = arith.constant 0 : index
    %17 = vector.load %arg1[%c0_17, %c0_18, %c0_19] : memref<9x16x8xbf16, #tpu.memory_space<vmem>>, vector<1x16x8xbf16>
    %18 = vector.shape_cast %17 : vector<1x16x8xbf16> to vector<16x8xbf16>
    %cst = arith.constant dense<0.000000e+00> : vector<16x128xf32>
    %19 = tpu.matmul %18, %1, %cst {dimension_numbers = #tpu.dot_dimension_numbers<[1], [0], [0], [1], [0, 0, 1, 1], [], []>} : vector<16x8xbf16>, vector<8x128xbf16>, vector<16x128xf32> -> vector<16x128xf32>
    %c1_20 = arith.constant 1 : index
    %c0_21 = arith.constant 0 : index
    %c0_22 = arith.constant 0 : index
    %20 = vector.load %arg1[%c1_20, %c0_21, %c0_22] : memref<9x16x8xbf16, #tpu.memory_space<vmem>>, vector<1x16x8xbf16>
    %21 = vector.shape_cast %20 : vector<1x16x8xbf16> to vector<16x8xbf16>
    %cst_23 = arith.constant dense<0.000000e+00> : vector<16x128xf32>
    %22 = tpu.matmul %21, %3, %cst_23 {dimension_numbers = #tpu.dot_dimension_numbers<[1], [0], [0], [1], [0, 0, 1, 1], [], []>} : vector<16x8xbf16>, vector<8x128xbf16>, vector<16x128xf32> -> vector<16x128xf32>
    %23 = arith.addf %19, %22 : vector<16x128xf32>
    %24 = vector.extract_strided_slice %10 {offsets = [0, 1], sizes = [8, 128], strides = [1, 1]} : vector<8x256xbf16> to vector<8x128xbf16>
    %c2_24 = arith.constant 2 : index
    %c0_25 = arith.constant 0 : index
    %c0_26 = arith.constant 0 : index
    %25 = vector.load %arg1[%c2_24, %c0_25, %c0_26] : memref<9x16x8xbf16, #tpu.memory_space<vmem>>, vector<1x16x8xbf16>
    %26 = vector.shape_cast %25 : vector<1x16x8xbf16> to vector<16x8xbf16>
    %cst_27 = arith.constant dense<0.000000e+00> : vector<16x128xf32>
    %27 = tpu.matmul %26, %24, %cst_27 {dimension_numbers = #tpu.dot_dimension_numbers<[1], [0], [0], [1], [0, 0, 1, 1], [], []>} : vector<16x8xbf16>, vector<8x128xbf16>, vector<16x128xf32> -> vector<16x128xf32>
    %28 = arith.addf %23, %27 : vector<16x128xf32>
    %c3_28 = arith.constant 3 : index
    %c0_29 = arith.constant 0 : index
    %c0_30 = arith.constant 0 : index
    %29 = vector.load %arg1[%c3_28, %c0_29, %c0_30] : memref<9x16x8xbf16, #tpu.memory_space<vmem>>, vector<1x16x8xbf16>
    %30 = vector.shape_cast %29 : vector<1x16x8xbf16> to vector<16x8xbf16>
    %cst_31 = arith.constant dense<0.000000e+00> : vector<16x128xf32>
    %31 = tpu.matmul %30, %5, %cst_31 {dimension_numbers = #tpu.dot_dimension_numbers<[1], [0], [0], [1], [0, 0, 1, 1], [], []>} : vector<16x8xbf16>, vector<8x128xbf16>, vector<16x128xf32> -> vector<16x128xf32>
    %32 = arith.addf %28, %31 : vector<16x128xf32>
    %c4 = arith.constant 4 : index
    %c0_32 = arith.constant 0 : index
    %c0_33 = arith.constant 0 : index
    %33 = vector.load %arg1[%c4, %c0_32, %c0_33] : memref<9x16x8xbf16, #tpu.memory_space<vmem>>, vector<1x16x8xbf16>
    %34 = vector.shape_cast %33 : vector<1x16x8xbf16> to vector<16x8xbf16>
    %cst_34 = arith.constant dense<0.000000e+00> : vector<16x128xf32>
    %35 = tpu.matmul %34, %7, %cst_34 {dimension_numbers = #tpu.dot_dimension_numbers<[1], [0], [0], [1], [0, 0, 1, 1], [], []>} : vector<16x8xbf16>, vector<8x128xbf16>, vector<16x128xf32> -> vector<16x128xf32>
    %36 = arith.addf %32, %35 : vector<16x128xf32>
    %37 = vector.extract_strided_slice %16 {offsets = [0, 1], sizes = [8, 128], strides = [1, 1]} : vector<8x256xbf16> to vector<8x128xbf16>
    %c5 = arith.constant 5 : index
    %c0_35 = arith.constant 0 : index
    %c0_36 = arith.constant 0 : index
    %38 = vector.load %arg1[%c5, %c0_35, %c0_36] : memref<9x16x8xbf16, #tpu.memory_space<vmem>>, vector<1x16x8xbf16>
    %39 = vector.shape_cast %38 : vector<1x16x8xbf16> to vector<16x8xbf16>
    %cst_37 = arith.constant dense<0.000000e+00> : vector<16x128xf32>
    %40 = tpu.matmul %39, %37, %cst_37 {dimension_numbers = #tpu.dot_dimension_numbers<[1], [0], [0], [1], [0, 0, 1, 1], [], []>} : vector<16x8xbf16>, vector<8x128xbf16>, vector<16x128xf32> -> vector<16x128xf32>
    %41 = arith.addf %36, %40 : vector<16x128xf32>
    %42 = vector.extract_strided_slice %10 {offsets = [0, 5], sizes = [8, 128], strides = [1, 1]} : vector<8x256xbf16> to vector<8x128xbf16>
    %c6 = arith.constant 6 : index
    %c0_38 = arith.constant 0 : index
    %c0_39 = arith.constant 0 : index
    %43 = vector.load %arg1[%c6, %c0_38, %c0_39] : memref<9x16x8xbf16, #tpu.memory_space<vmem>>, vector<1x16x8xbf16>
    %44 = vector.shape_cast %43 : vector<1x16x8xbf16> to vector<16x8xbf16>
    %cst_40 = arith.constant dense<0.000000e+00> : vector<16x128xf32>
    %45 = tpu.matmul %44, %42, %cst_40 {dimension_numbers = #tpu.dot_dimension_numbers<[1], [0], [0], [1], [0, 0, 1, 1], [], []>} : vector<16x8xbf16>, vector<8x128xbf16>, vector<16x128xf32> -> vector<16x128xf32>
    %46 = arith.addf %41, %45 : vector<16x128xf32>
    %47 = vector.extract_strided_slice %13 {offsets = [0, 5], sizes = [8, 128], strides = [1, 1]} : vector<8x256xbf16> to vector<8x128xbf16>
    %c7 = arith.constant 7 : index
    %c0_41 = arith.constant 0 : index
    %c0_42 = arith.constant 0 : index
    %48 = vector.load %arg1[%c7, %c0_41, %c0_42] : memref<9x16x8xbf16, #tpu.memory_space<vmem>>, vector<1x16x8xbf16>
    %49 = vector.shape_cast %48 : vector<1x16x8xbf16> to vector<16x8xbf16>
    %cst_43 = arith.constant dense<0.000000e+00> : vector<16x128xf32>
    %50 = tpu.matmul %49, %47, %cst_43 {dimension_numbers = #tpu.dot_dimension_numbers<[1], [0], [0], [1], [0, 0, 1, 1], [], []>} : vector<16x8xbf16>, vector<8x128xbf16>, vector<16x128xf32> -> vector<16x128xf32>
    %51 = arith.addf %46, %50 : vector<16x128xf32>
    %52 = vector.extract_strided_slice %10 {offsets = [0, 6], sizes = [8, 128], strides = [1, 1]} : vector<8x256xbf16> to vector<8x128xbf16>
    %c8 = arith.constant 8 : index
    %c0_44 = arith.constant 0 : index
    %c0_45 = arith.constant 0 : index
    %53 = vector.load %arg1[%c8, %c0_44, %c0_45] : memref<9x16x8xbf16, #tpu.memory_space<vmem>>, vector<1x16x8xbf16>
    %54 = vector.shape_cast %53 : vector<1x16x8xbf16> to vector<16x8xbf16>
    %cst_46 = arith.constant dense<0.000000e+00> : vector<16x128xf32>
    %55 = tpu.matmul %54, %52, %cst_46 {dimension_numbers = #tpu.dot_dimension_numbers<[1], [0], [0], [1], [0, 0, 1, 1], [], []>} : vector<16x8xbf16>, vector<8x128xbf16>, vector<16x128xf32> -> vector<16x128xf32>
    %56 = arith.addf %51, %55 : vector<16x128xf32>
    %c0_47 = arith.constant 0 : index
    %c0_48 = arith.constant 0 : index
    %57 = vector.load %arg2[%c0_47, %c0_48] : memref<16x1xf32, #tpu.memory_space<vmem>>, vector<16x1xf32>
    %58 = vector.broadcast %57 : vector<16x1xf32> to vector<16x128xf32>
    %59 = arith.addf %56, %58 : vector<16x128xf32>
    %cst_49 = arith.constant 0.000000e+00 : f32
    %60 = vector.broadcast %cst_49 : f32 to vector<16x128xf32>
    %61 = arith.maximumf %59, %60 : vector<16x128xf32>
    %62 = arith.truncf %61 : vector<16x128xf32> to vector<16x128xbf16>
    %c0_50 = arith.constant 0 : index
    %c0_51 = arith.constant 0 : index
    %63 = vector.load %arg5[%c0_50, %c0_51] : memref<16x128xbf16, #tpu.memory_space<vmem>>, vector<16x128xbf16>
    tpu.vector_store %arg5[%c0_50, %c0_51], %62 {strides = array<i32>} : memref<16x128xbf16, #tpu.memory_space<vmem>>, vector<16x128xbf16>,
    return
  }
  func.func @transform_0(%arg0: i32) -> (i32, i32, i32) {
    %c0_i32 = arith.constant 0 : i32
    %c0_i32_0 = arith.constant 0 : i32
    %c0_i32_1 = arith.constant 0 : i32
    %c0_i32_2 = arith.constant 0 : i32
    return %c0_i32, %c0_i32_0, %c0_i32_1 : i32, i32, i32
  }
  func.func @transform_1(%arg0: i32) -> (i32, i32) {
    %c0_i32 = arith.constant 0 : i32
    %c0_i32_0 = arith.constant 0 : i32
    %c0_i32_1 = arith.constant 0 : i32
    return %c0_i32, %c0_i32_0 : i32, i32
  }
  func.func @transform_2(%arg0: i32) -> (i32, i32, i32) {
    %c0_i32 = arith.constant 0 : i32
    %c0_i32_0 = arith.constant 0 : i32
    %c0_i32_1 = arith.constant 0 : i32
    return %c0_i32, %c0_i32_0, %arg0 : i32, i32, i32
  }
  func.func @transform_3(%arg0: i32) -> (i32, i32, i32) {
    %c1_i32 = arith.constant 1 : i32
    %0 = arith.addi %arg0, %c1_i32 : i32
    %c1_i32_0 = arith.constant 1 : i32
    %1 = arith.muli %0, %c1_i32_0 : i32
    %c0_i32 = arith.constant 0 : i32
    %c0_i32_1 = arith.constant 0 : i32
    %c0_i32_2 = arith.constant 0 : i32
    return %c0_i32, %c0_i32_1, %1 : i32, i32, i32
  }
  func.func @transform_4(%arg0: i32) -> (i32, i32) {
    %c0_i32 = arith.constant 0 : i32
    %c0_i32_0 = arith.constant 0 : i32
    return %c0_i32, %arg0 : i32, i32
  }
}

module attributes {stable_mosaic.version = 11 : i64} {
  func.func @_conv_kernel(%arg0: i32, %arg1: memref<9x32x16xbf16, #tpu.memory_space<vmem>>, %arg2: memref<32x1xf32, #tpu.memory_space<vmem>>, %arg3: memref<4x16x128xbf16, #tpu.memory_space<vmem>>, %arg4: memref<4x16x128xbf16, #tpu.memory_space<vmem>>, %arg5: memref<32x128xbf16, #tpu.memory_space<vmem>>) attributes {dimension_semantics = [#tpu.dimension_semantics<parallel>], iteration_bounds = array<i64: 1>, scalar_prefetch = 0 : i64, scratch_operands = 0 : i64, tpu.core_type = #tpu.core_type<tc>, window_params = [{pipeline_mode = #tpu.pipeline_mode<synchronous>, transform_indices = @transform_0, window_bounds = array<i64: 9, 32, 16>}, {pipeline_mode = #tpu.pipeline_mode<synchronous>, transform_indices = @transform_1, window_bounds = array<i64: 32, 1>}, {transform_indices = @transform_2, window_bounds = array<i64: 4, 16, 128>}, {transform_indices = @transform_3, window_bounds = array<i64: 4, 16, 128>}, {transform_indices = @transform_4, window_bounds = array<i64: 32, 128>}]} {
    %c0 = arith.constant 0 : index
    %c0_0 = arith.constant 0 : index
    %c0_1 = arith.constant 0 : index
    %0 = vector.load %arg3[%c0, %c0_0, %c0_1] : memref<4x16x128xbf16, #tpu.memory_space<vmem>>, vector<1x16x128xbf16>
    %1 = vector.shape_cast %0 : vector<1x16x128xbf16> to vector<16x128xbf16>
    %c1 = arith.constant 1 : index
    %c0_2 = arith.constant 0 : index
    %c0_3 = arith.constant 0 : index
    %2 = vector.load %arg3[%c1, %c0_2, %c0_3] : memref<4x16x128xbf16, #tpu.memory_space<vmem>>, vector<1x16x128xbf16>
    %3 = vector.shape_cast %2 : vector<1x16x128xbf16> to vector<16x128xbf16>
    %c2 = arith.constant 2 : index
    %c0_4 = arith.constant 0 : index
    %c0_5 = arith.constant 0 : index
    %4 = vector.load %arg3[%c2, %c0_4, %c0_5] : memref<4x16x128xbf16, #tpu.memory_space<vmem>>, vector<1x16x128xbf16>
    %5 = vector.shape_cast %4 : vector<1x16x128xbf16> to vector<16x128xbf16>
    %c3 = arith.constant 3 : index
    %c0_6 = arith.constant 0 : index
    %c0_7 = arith.constant 0 : index
    %6 = vector.load %arg3[%c3, %c0_6, %c0_7] : memref<4x16x128xbf16, #tpu.memory_space<vmem>>, vector<1x16x128xbf16>
    %7 = vector.shape_cast %6 : vector<1x16x128xbf16> to vector<16x128xbf16>
    %c0_8 = arith.constant 0 : index
    %c0_9 = arith.constant 0 : index
    %c0_10 = arith.constant 0 : index
    %8 = vector.load %arg4[%c0_8, %c0_9, %c0_10] : memref<4x16x128xbf16, #tpu.memory_space<vmem>>, vector<1x16x128xbf16>
    %9 = vector.shape_cast %8 : vector<1x16x128xbf16> to vector<16x128xbf16>
    %10 = tpu.concatenate %1, %9 in 1 : vector<16x128xbf16>, vector<16x128xbf16> -> vector<16x256xbf16>
    %c1_11 = arith.constant 1 : index
    %c0_12 = arith.constant 0 : index
    %c0_13 = arith.constant 0 : index
    %11 = vector.load %arg4[%c1_11, %c0_12, %c0_13] : memref<4x16x128xbf16, #tpu.memory_space<vmem>>, vector<1x16x128xbf16>
    %12 = vector.shape_cast %11 : vector<1x16x128xbf16> to vector<16x128xbf16>
    %13 = tpu.concatenate %3, %12 in 1 : vector<16x128xbf16>, vector<16x128xbf16> -> vector<16x256xbf16>
    %c2_14 = arith.constant 2 : index
    %c0_15 = arith.constant 0 : index
    %c0_16 = arith.constant 0 : index
    %14 = vector.load %arg4[%c2_14, %c0_15, %c0_16] : memref<4x16x128xbf16, #tpu.memory_space<vmem>>, vector<1x16x128xbf16>
    %15 = vector.shape_cast %14 : vector<1x16x128xbf16> to vector<16x128xbf16>
    %16 = tpu.concatenate %5, %15 in 1 : vector<16x128xbf16>, vector<16x128xbf16> -> vector<16x256xbf16>
    %c0_17 = arith.constant 0 : index
    %c0_18 = arith.constant 0 : index
    %c0_19 = arith.constant 0 : index
    %17 = vector.load %arg1[%c0_17, %c0_18, %c0_19] : memref<9x32x16xbf16, #tpu.memory_space<vmem>>, vector<1x32x16xbf16>
    %18 = vector.shape_cast %17 : vector<1x32x16xbf16> to vector<32x16xbf16>
    %cst = arith.constant dense<0.000000e+00> : vector<32x128xf32>
    %19 = tpu.matmul %18, %1, %cst {dimension_numbers = #tpu.dot_dimension_numbers<[1], [0], [0], [1], [0, 0, 1, 1], [], []>} : vector<32x16xbf16>, vector<16x128xbf16>, vector<32x128xf32> -> vector<32x128xf32>
    %c1_20 = arith.constant 1 : index
    %c0_21 = arith.constant 0 : index
    %c0_22 = arith.constant 0 : index
    %20 = vector.load %arg1[%c1_20, %c0_21, %c0_22] : memref<9x32x16xbf16, #tpu.memory_space<vmem>>, vector<1x32x16xbf16>
    %21 = vector.shape_cast %20 : vector<1x32x16xbf16> to vector<32x16xbf16>
    %cst_23 = arith.constant dense<0.000000e+00> : vector<32x128xf32>
    %22 = tpu.matmul %21, %3, %cst_23 {dimension_numbers = #tpu.dot_dimension_numbers<[1], [0], [0], [1], [0, 0, 1, 1], [], []>} : vector<32x16xbf16>, vector<16x128xbf16>, vector<32x128xf32> -> vector<32x128xf32>
    %23 = arith.addf %19, %22 : vector<32x128xf32>
    %24 = vector.extract_strided_slice %10 {offsets = [0, 1], sizes = [16, 128], strides = [1, 1]} : vector<16x256xbf16> to vector<16x128xbf16>
    %c2_24 = arith.constant 2 : index
    %c0_25 = arith.constant 0 : index
    %c0_26 = arith.constant 0 : index
    %25 = vector.load %arg1[%c2_24, %c0_25, %c0_26] : memref<9x32x16xbf16, #tpu.memory_space<vmem>>, vector<1x32x16xbf16>
    %26 = vector.shape_cast %25 : vector<1x32x16xbf16> to vector<32x16xbf16>
    %cst_27 = arith.constant dense<0.000000e+00> : vector<32x128xf32>
    %27 = tpu.matmul %26, %24, %cst_27 {dimension_numbers = #tpu.dot_dimension_numbers<[1], [0], [0], [1], [0, 0, 1, 1], [], []>} : vector<32x16xbf16>, vector<16x128xbf16>, vector<32x128xf32> -> vector<32x128xf32>
    %28 = arith.addf %23, %27 : vector<32x128xf32>
    %c3_28 = arith.constant 3 : index
    %c0_29 = arith.constant 0 : index
    %c0_30 = arith.constant 0 : index
    %29 = vector.load %arg1[%c3_28, %c0_29, %c0_30] : memref<9x32x16xbf16, #tpu.memory_space<vmem>>, vector<1x32x16xbf16>
    %30 = vector.shape_cast %29 : vector<1x32x16xbf16> to vector<32x16xbf16>
    %cst_31 = arith.constant dense<0.000000e+00> : vector<32x128xf32>
    %31 = tpu.matmul %30, %5, %cst_31 {dimension_numbers = #tpu.dot_dimension_numbers<[1], [0], [0], [1], [0, 0, 1, 1], [], []>} : vector<32x16xbf16>, vector<16x128xbf16>, vector<32x128xf32> -> vector<32x128xf32>
    %32 = arith.addf %28, %31 : vector<32x128xf32>
    %c4 = arith.constant 4 : index
    %c0_32 = arith.constant 0 : index
    %c0_33 = arith.constant 0 : index
    %33 = vector.load %arg1[%c4, %c0_32, %c0_33] : memref<9x32x16xbf16, #tpu.memory_space<vmem>>, vector<1x32x16xbf16>
    %34 = vector.shape_cast %33 : vector<1x32x16xbf16> to vector<32x16xbf16>
    %cst_34 = arith.constant dense<0.000000e+00> : vector<32x128xf32>
    %35 = tpu.matmul %34, %7, %cst_34 {dimension_numbers = #tpu.dot_dimension_numbers<[1], [0], [0], [1], [0, 0, 1, 1], [], []>} : vector<32x16xbf16>, vector<16x128xbf16>, vector<32x128xf32> -> vector<32x128xf32>
    %36 = arith.addf %32, %35 : vector<32x128xf32>
    %37 = vector.extract_strided_slice %16 {offsets = [0, 1], sizes = [16, 128], strides = [1, 1]} : vector<16x256xbf16> to vector<16x128xbf16>
    %c5 = arith.constant 5 : index
    %c0_35 = arith.constant 0 : index
    %c0_36 = arith.constant 0 : index
    %38 = vector.load %arg1[%c5, %c0_35, %c0_36] : memref<9x32x16xbf16, #tpu.memory_space<vmem>>, vector<1x32x16xbf16>
    %39 = vector.shape_cast %38 : vector<1x32x16xbf16> to vector<32x16xbf16>
    %cst_37 = arith.constant dense<0.000000e+00> : vector<32x128xf32>
    %40 = tpu.matmul %39, %37, %cst_37 {dimension_numbers = #tpu.dot_dimension_numbers<[1], [0], [0], [1], [0, 0, 1, 1], [], []>} : vector<32x16xbf16>, vector<16x128xbf16>, vector<32x128xf32> -> vector<32x128xf32>
    %41 = arith.addf %36, %40 : vector<32x128xf32>
    %42 = vector.extract_strided_slice %10 {offsets = [0, 3], sizes = [16, 128], strides = [1, 1]} : vector<16x256xbf16> to vector<16x128xbf16>
    %c6 = arith.constant 6 : index
    %c0_38 = arith.constant 0 : index
    %c0_39 = arith.constant 0 : index
    %43 = vector.load %arg1[%c6, %c0_38, %c0_39] : memref<9x32x16xbf16, #tpu.memory_space<vmem>>, vector<1x32x16xbf16>
    %44 = vector.shape_cast %43 : vector<1x32x16xbf16> to vector<32x16xbf16>
    %cst_40 = arith.constant dense<0.000000e+00> : vector<32x128xf32>
    %45 = tpu.matmul %44, %42, %cst_40 {dimension_numbers = #tpu.dot_dimension_numbers<[1], [0], [0], [1], [0, 0, 1, 1], [], []>} : vector<32x16xbf16>, vector<16x128xbf16>, vector<32x128xf32> -> vector<32x128xf32>
    %46 = arith.addf %41, %45 : vector<32x128xf32>
    %47 = vector.extract_strided_slice %13 {offsets = [0, 3], sizes = [16, 128], strides = [1, 1]} : vector<16x256xbf16> to vector<16x128xbf16>
    %c7 = arith.constant 7 : index
    %c0_41 = arith.constant 0 : index
    %c0_42 = arith.constant 0 : index
    %48 = vector.load %arg1[%c7, %c0_41, %c0_42] : memref<9x32x16xbf16, #tpu.memory_space<vmem>>, vector<1x32x16xbf16>
    %49 = vector.shape_cast %48 : vector<1x32x16xbf16> to vector<32x16xbf16>
    %cst_43 = arith.constant dense<0.000000e+00> : vector<32x128xf32>
    %50 = tpu.matmul %49, %47, %cst_43 {dimension_numbers = #tpu.dot_dimension_numbers<[1], [0], [0], [1], [0, 0, 1, 1], [], []>} : vector<32x16xbf16>, vector<16x128xbf16>, vector<32x128xf32> -> vector<32x128xf32>
    %51 = arith.addf %46, %50 : vector<32x128xf32>
    %52 = vector.extract_strided_slice %10 {offsets = [0, 4], sizes = [16, 128], strides = [1, 1]} : vector<16x256xbf16> to vector<16x128xbf16>
    %c8 = arith.constant 8 : index
    %c0_44 = arith.constant 0 : index
    %c0_45 = arith.constant 0 : index
    %53 = vector.load %arg1[%c8, %c0_44, %c0_45] : memref<9x32x16xbf16, #tpu.memory_space<vmem>>, vector<1x32x16xbf16>
    %54 = vector.shape_cast %53 : vector<1x32x16xbf16> to vector<32x16xbf16>
    %cst_46 = arith.constant dense<0.000000e+00> : vector<32x128xf32>
    %55 = tpu.matmul %54, %52, %cst_46 {dimension_numbers = #tpu.dot_dimension_numbers<[1], [0], [0], [1], [0, 0, 1, 1], [], []>} : vector<32x16xbf16>, vector<16x128xbf16>, vector<32x128xf32> -> vector<32x128xf32>
    %56 = arith.addf %51, %55 : vector<32x128xf32>
    %c0_47 = arith.constant 0 : index
    %c0_48 = arith.constant 0 : index
    %57 = vector.load %arg2[%c0_47, %c0_48] : memref<32x1xf32, #tpu.memory_space<vmem>>, vector<32x1xf32>
    %58 = vector.broadcast %57 : vector<32x1xf32> to vector<32x128xf32>
    %59 = arith.addf %56, %58 : vector<32x128xf32>
    %cst_49 = arith.constant 0.000000e+00 : f32
    %60 = vector.broadcast %cst_49 : f32 to vector<32x128xf32>
    %61 = arith.maximumf %59, %60 : vector<32x128xf32>
    %62 = arith.truncf %61 : vector<32x128xf32> to vector<32x128xbf16>
    %c0_50 = arith.constant 0 : index
    %c0_51 = arith.constant 0 : index
    %63 = vector.load %arg5[%c0_50, %c0_51] : memref<32x128xbf16, #tpu.memory_space<vmem>>, vector<32x128xbf16>
    tpu.vector_store %arg5[%c0_50, %c0_51], %62 {strides = array<i32>} : memref<32x128xbf16, #tpu.memory_space<vmem>>, vector<32x128xbf16>,
    return
  }
  func.func @transform_0(%arg0: i32) -> (i32, i32, i32) {
    %c0_i32 = arith.constant 0 : i32
    %c0_i32_0 = arith.constant 0 : i32
    %c0_i32_1 = arith.constant 0 : i32
    %c0_i32_2 = arith.constant 0 : i32
    return %c0_i32, %c0_i32_0, %c0_i32_1 : i32, i32, i32
  }
  func.func @transform_1(%arg0: i32) -> (i32, i32) {
    %c0_i32 = arith.constant 0 : i32
    %c0_i32_0 = arith.constant 0 : i32
    %c0_i32_1 = arith.constant 0 : i32
    return %c0_i32, %c0_i32_0 : i32, i32
  }
  func.func @transform_2(%arg0: i32) -> (i32, i32, i32) {
    %c0_i32 = arith.constant 0 : i32
    %c0_i32_0 = arith.constant 0 : i32
    %c0_i32_1 = arith.constant 0 : i32
    return %c0_i32, %c0_i32_0, %arg0 : i32, i32, i32
  }
  func.func @transform_3(%arg0: i32) -> (i32, i32, i32) {
    %c1_i32 = arith.constant 1 : i32
    %0 = arith.addi %arg0, %c1_i32 : i32
    %c1_i32_0 = arith.constant 1 : i32
    %1 = arith.muli %0, %c1_i32_0 : i32
    %c0_i32 = arith.constant 0 : i32
    %c0_i32_1 = arith.constant 0 : i32
    %c0_i32_2 = arith.constant 0 : i32
    return %c0_i32, %c0_i32_1, %1 : i32, i32, i32
  }
  func.func @transform_4(%arg0: i32) -> (i32, i32) {
    %c0_i32 = arith.constant 0 : i32
    %c0_i32_0 = arith.constant 0 : i32
    return %c0_i32, %arg0 : i32, i32
  }
}

module attributes {stable_mosaic.version = 11 : i64} {
  func.func @_conv_kernel(%arg0: i32, %arg1: memref<1x8x32xbf16, #tpu.memory_space<vmem>>, %arg2: memref<8x1xf32, #tpu.memory_space<vmem>>, %arg3: memref<1x32x128xbf16, #tpu.memory_space<vmem>>, %arg4: memref<8x128xbf16, #tpu.memory_space<vmem>>) attributes {dimension_semantics = [#tpu.dimension_semantics<parallel>], iteration_bounds = array<i64: 1>, scalar_prefetch = 0 : i64, scratch_operands = 0 : i64, tpu.core_type = #tpu.core_type<tc>, window_params = [{pipeline_mode = #tpu.pipeline_mode<synchronous>, transform_indices = @transform_0, window_bounds = array<i64: 1, 8, 32>}, {pipeline_mode = #tpu.pipeline_mode<synchronous>, transform_indices = @transform_1, window_bounds = array<i64: 8, 1>}, {transform_indices = @transform_2, window_bounds = array<i64: 1, 32, 128>}, {transform_indices = @transform_3, window_bounds = array<i64: 8, 128>}]} {
    %c0 = arith.constant 0 : index
    %c0_0 = arith.constant 0 : index
    %c0_1 = arith.constant 0 : index
    %0 = vector.load %arg3[%c0, %c0_0, %c0_1] : memref<1x32x128xbf16, #tpu.memory_space<vmem>>, vector<1x32x128xbf16>
    %1 = vector.shape_cast %0 : vector<1x32x128xbf16> to vector<32x128xbf16>
    %c0_2 = arith.constant 0 : index
    %c0_3 = arith.constant 0 : index
    %c0_4 = arith.constant 0 : index
    %2 = vector.load %arg1[%c0_2, %c0_3, %c0_4] : memref<1x8x32xbf16, #tpu.memory_space<vmem>>, vector<1x8x32xbf16>
    %3 = vector.shape_cast %2 : vector<1x8x32xbf16> to vector<8x32xbf16>
    %cst = arith.constant dense<0.000000e+00> : vector<8x128xf32>
    %4 = tpu.matmul %3, %1, %cst {dimension_numbers = #tpu.dot_dimension_numbers<[1], [0], [0], [1], [0, 0, 1, 1], [], []>} : vector<8x32xbf16>, vector<32x128xbf16>, vector<8x128xf32> -> vector<8x128xf32>
    %c0_5 = arith.constant 0 : index
    %c0_6 = arith.constant 0 : index
    %5 = vector.load %arg2[%c0_5, %c0_6] : memref<8x1xf32, #tpu.memory_space<vmem>>, vector<8x1xf32>
    %6 = vector.broadcast %5 : vector<8x1xf32> to vector<8x128xf32>
    %7 = arith.addf %4, %6 : vector<8x128xf32>
    %8 = arith.truncf %7 : vector<8x128xf32> to vector<8x128xbf16>
    %c0_7 = arith.constant 0 : index
    %c0_8 = arith.constant 0 : index
    %9 = vector.load %arg4[%c0_7, %c0_8] : memref<8x128xbf16, #tpu.memory_space<vmem>>, vector<8x128xbf16>
    tpu.vector_store %arg4[%c0_7, %c0_8], %8 {strides = array<i32>} : memref<8x128xbf16, #tpu.memory_space<vmem>>, vector<8x128xbf16>,
    return
  }
  func.func @transform_0(%arg0: i32) -> (i32, i32, i32) {
    %c0_i32 = arith.constant 0 : i32
    %c0_i32_0 = arith.constant 0 : i32
    %c0_i32_1 = arith.constant 0 : i32
    %c0_i32_2 = arith.constant 0 : i32
    return %c0_i32, %c0_i32_0, %c0_i32_1 : i32, i32, i32
  }
  func.func @transform_1(%arg0: i32) -> (i32, i32) {
    %c0_i32 = arith.constant 0 : i32
    %c0_i32_0 = arith.constant 0 : i32
    %c0_i32_1 = arith.constant 0 : i32
    return %c0_i32, %c0_i32_0 : i32, i32
  }
  func.func @transform_2(%arg0: i32) -> (i32, i32, i32) {
    %c0_i32 = arith.constant 0 : i32
    %c0_i32_0 = arith.constant 0 : i32
    %c0_i32_1 = arith.constant 0 : i32
    return %c0_i32, %c0_i32_0, %arg0 : i32, i32, i32
  }
  func.func @transform_3(%arg0: i32) -> (i32, i32) {
    %c0_i32 = arith.constant 0 : i32
    %c0_i32_0 = arith.constant 0 : i32
    return %c0_i32, %arg0 : i32, i32
  }
}

module attributes {stable_mosaic.version = 11 : i64} {
  func.func @_conv_kernel(%arg0: i32, %arg1: memref<1x8x16xbf16, #tpu.memory_space<vmem>>, %arg2: memref<8x1xf32, #tpu.memory_space<vmem>>, %arg3: memref<1x16x128xbf16, #tpu.memory_space<vmem>>, %arg4: memref<8x128xbf16, #tpu.memory_space<vmem>>, %arg5: memref<8x128xbf16, #tpu.memory_space<vmem>>) attributes {dimension_semantics = [#tpu.dimension_semantics<parallel>], iteration_bounds = array<i64: 1>, scalar_prefetch = 0 : i64, scratch_operands = 0 : i64, tpu.core_type = #tpu.core_type<tc>, window_params = [{pipeline_mode = #tpu.pipeline_mode<synchronous>, transform_indices = @transform_0, window_bounds = array<i64: 1, 8, 16>}, {pipeline_mode = #tpu.pipeline_mode<synchronous>, transform_indices = @transform_1, window_bounds = array<i64: 8, 1>}, {transform_indices = @transform_2, window_bounds = array<i64: 1, 16, 128>}, {transform_indices = @transform_3, window_bounds = array<i64: 8, 128>}, {transform_indices = @transform_4, window_bounds = array<i64: 8, 128>}]} {
    %c0 = arith.constant 0 : index
    %c0_0 = arith.constant 0 : index
    %c0_1 = arith.constant 0 : index
    %0 = vector.load %arg3[%c0, %c0_0, %c0_1] : memref<1x16x128xbf16, #tpu.memory_space<vmem>>, vector<1x16x128xbf16>
    %1 = vector.shape_cast %0 : vector<1x16x128xbf16> to vector<16x128xbf16>
    %c0_2 = arith.constant 0 : index
    %c0_3 = arith.constant 0 : index
    %c0_4 = arith.constant 0 : index
    %2 = vector.load %arg1[%c0_2, %c0_3, %c0_4] : memref<1x8x16xbf16, #tpu.memory_space<vmem>>, vector<1x8x16xbf16>
    %3 = vector.shape_cast %2 : vector<1x8x16xbf16> to vector<8x16xbf16>
    %cst = arith.constant dense<0.000000e+00> : vector<8x128xf32>
    %4 = tpu.matmul %3, %1, %cst {dimension_numbers = #tpu.dot_dimension_numbers<[1], [0], [0], [1], [0, 0, 1, 1], [], []>} : vector<8x16xbf16>, vector<16x128xbf16>, vector<8x128xf32> -> vector<8x128xf32>
    %c0_5 = arith.constant 0 : index
    %c0_6 = arith.constant 0 : index
    %5 = vector.load %arg2[%c0_5, %c0_6] : memref<8x1xf32, #tpu.memory_space<vmem>>, vector<8x1xf32>
    %6 = vector.broadcast %5 : vector<8x1xf32> to vector<8x128xf32>
    %7 = arith.addf %4, %6 : vector<8x128xf32>
    %c0_7 = arith.constant 0 : index
    %c0_8 = arith.constant 0 : index
    %8 = vector.load %arg4[%c0_7, %c0_8] : memref<8x128xbf16, #tpu.memory_space<vmem>>, vector<8x128xbf16>
    %9 = arith.extf %8 : vector<8x128xbf16> to vector<8x128xf32>
    %10 = arith.addf %7, %9 : vector<8x128xf32>
    %11 = arith.truncf %10 : vector<8x128xf32> to vector<8x128xbf16>
    %c0_9 = arith.constant 0 : index
    %c0_10 = arith.constant 0 : index
    %12 = vector.load %arg5[%c0_9, %c0_10] : memref<8x128xbf16, #tpu.memory_space<vmem>>, vector<8x128xbf16>
    tpu.vector_store %arg5[%c0_9, %c0_10], %11 {strides = array<i32>} : memref<8x128xbf16, #tpu.memory_space<vmem>>, vector<8x128xbf16>,
    return
  }
  func.func @transform_0(%arg0: i32) -> (i32, i32, i32) {
    %c0_i32 = arith.constant 0 : i32
    %c0_i32_0 = arith.constant 0 : i32
    %c0_i32_1 = arith.constant 0 : i32
    %c0_i32_2 = arith.constant 0 : i32
    return %c0_i32, %c0_i32_0, %c0_i32_1 : i32, i32, i32
  }
  func.func @transform_1(%arg0: i32) -> (i32, i32) {
    %c0_i32 = arith.constant 0 : i32
    %c0_i32_0 = arith.constant 0 : i32
    %c0_i32_1 = arith.constant 0 : i32
    return %c0_i32, %c0_i32_0 : i32, i32
  }
  func.func @transform_2(%arg0: i32) -> (i32, i32, i32) {
    %c0_i32 = arith.constant 0 : i32
    %c0_i32_0 = arith.constant 0 : i32
    %c0_i32_1 = arith.constant 0 : i32
    return %c0_i32, %c0_i32_0, %arg0 : i32, i32, i32
  }
  func.func @transform_3(%arg0: i32) -> (i32, i32) {
    %c0_i32 = arith.constant 0 : i32
    %c0_i32_0 = arith.constant 0 : i32
    return %c0_i32, %arg0 : i32, i32
  }
  func.func @transform_4(%arg0: i32) -> (i32, i32) {
    %c0_i32 = arith.constant 0 : i32
    %c0_i32_0 = arith.constant 0 : i32
    return %c0_i32, %arg0 : i32, i32
  }
}

module attributes {stable_mosaic.version = 11 : i64} {
  func.func @_conv_kernel(%arg0: i32, %arg1: memref<1x8x8xbf16, #tpu.memory_space<vmem>>, %arg2: memref<8x1xf32, #tpu.memory_space<vmem>>, %arg3: memref<1x8x128xbf16, #tpu.memory_space<vmem>>, %arg4: memref<8x128xbf16, #tpu.memory_space<vmem>>, %arg5: memref<8x128xbf16, #tpu.memory_space<vmem>>) attributes {dimension_semantics = [#tpu.dimension_semantics<parallel>], iteration_bounds = array<i64: 1>, scalar_prefetch = 0 : i64, scratch_operands = 0 : i64, tpu.core_type = #tpu.core_type<tc>, window_params = [{pipeline_mode = #tpu.pipeline_mode<synchronous>, transform_indices = @transform_0, window_bounds = array<i64: 1, 8, 8>}, {pipeline_mode = #tpu.pipeline_mode<synchronous>, transform_indices = @transform_1, window_bounds = array<i64: 8, 1>}, {transform_indices = @transform_2, window_bounds = array<i64: 1, 8, 128>}, {transform_indices = @transform_3, window_bounds = array<i64: 8, 128>}, {transform_indices = @transform_4, window_bounds = array<i64: 8, 128>}]} {
    %c0 = arith.constant 0 : index
    %c0_0 = arith.constant 0 : index
    %c0_1 = arith.constant 0 : index
    %0 = vector.load %arg3[%c0, %c0_0, %c0_1] : memref<1x8x128xbf16, #tpu.memory_space<vmem>>, vector<1x8x128xbf16>
    %1 = vector.shape_cast %0 : vector<1x8x128xbf16> to vector<8x128xbf16>
    %c0_2 = arith.constant 0 : index
    %c0_3 = arith.constant 0 : index
    %c0_4 = arith.constant 0 : index
    %2 = vector.load %arg1[%c0_2, %c0_3, %c0_4] : memref<1x8x8xbf16, #tpu.memory_space<vmem>>, vector<1x8x8xbf16>
    %3 = vector.shape_cast %2 : vector<1x8x8xbf16> to vector<8x8xbf16>
    %cst = arith.constant dense<0.000000e+00> : vector<8x128xf32>
    %4 = tpu.matmul %3, %1, %cst {dimension_numbers = #tpu.dot_dimension_numbers<[1], [0], [0], [1], [0, 0, 1, 1], [], []>} : vector<8x8xbf16>, vector<8x128xbf16>, vector<8x128xf32> -> vector<8x128xf32>
    %c0_5 = arith.constant 0 : index
    %c0_6 = arith.constant 0 : index
    %5 = vector.load %arg2[%c0_5, %c0_6] : memref<8x1xf32, #tpu.memory_space<vmem>>, vector<8x1xf32>
    %6 = vector.broadcast %5 : vector<8x1xf32> to vector<8x128xf32>
    %7 = arith.addf %4, %6 : vector<8x128xf32>
    %c0_7 = arith.constant 0 : index
    %c0_8 = arith.constant 0 : index
    %8 = vector.load %arg4[%c0_7, %c0_8] : memref<8x128xbf16, #tpu.memory_space<vmem>>, vector<8x128xbf16>
    %9 = arith.extf %8 : vector<8x128xbf16> to vector<8x128xf32>
    %10 = arith.addf %7, %9 : vector<8x128xf32>
    %11 = arith.truncf %10 : vector<8x128xf32> to vector<8x128xbf16>
    %c0_9 = arith.constant 0 : index
    %c0_10 = arith.constant 0 : index
    %12 = vector.load %arg5[%c0_9, %c0_10] : memref<8x128xbf16, #tpu.memory_space<vmem>>, vector<8x128xbf16>
    tpu.vector_store %arg5[%c0_9, %c0_10], %11 {strides = array<i32>} : memref<8x128xbf16, #tpu.memory_space<vmem>>, vector<8x128xbf16>,
    return
  }
  func.func @transform_0(%arg0: i32) -> (i32, i32, i32) {
    %c0_i32 = arith.constant 0 : i32
    %c0_i32_0 = arith.constant 0 : i32
    %c0_i32_1 = arith.constant 0 : i32
    %c0_i32_2 = arith.constant 0 : i32
    return %c0_i32, %c0_i32_0, %c0_i32_1 : i32, i32, i32
  }
  func.func @transform_1(%arg0: i32) -> (i32, i32) {
    %c0_i32 = arith.constant 0 : i32
    %c0_i32_0 = arith.constant 0 : i32
    %c0_i32_1 = arith.constant 0 : i32
    return %c0_i32, %c0_i32_0 : i32, i32
  }
  func.func @transform_2(%arg0: i32) -> (i32, i32, i32) {
    %c0_i32 = arith.constant 0 : i32
    %c0_i32_0 = arith.constant 0 : i32
    %c0_i32_1 = arith.constant 0 : i32
    return %c0_i32, %c0_i32_0, %arg0 : i32, i32, i32
  }
  func.func @transform_3(%arg0: i32) -> (i32, i32) {
    %c0_i32 = arith.constant 0 : i32
    %c0_i32_0 = arith.constant 0 : i32
    return %c0_i32, %arg0 : i32, i32
  }
  func.func @transform_4(%arg0: i32) -> (i32, i32) {
    %c0_i32 = arith.constant 0 : i32
    %c0_i32_0 = arith.constant 0 : i32
    return %c0_i32, %arg0 : i32, i32
  }
}

module attributes {stable_mosaic.version = 11 : i64} {
  func.func @_conv_kernel(%arg0: i32, %arg1: memref<9x8x8xbf16, #tpu.memory_space<vmem>>, %arg2: memref<8x1xf32, #tpu.memory_space<vmem>>, %arg3: memref<1x8x128xbf16, #tpu.memory_space<vmem>>, %arg4: memref<1x8x128xbf16, #tpu.memory_space<vmem>>, %arg5: memref<8x128xf32, #tpu.memory_space<vmem>>) attributes {dimension_semantics = [#tpu.dimension_semantics<parallel>], iteration_bounds = array<i64: 2>, scalar_prefetch = 0 : i64, scratch_operands = 0 : i64, tpu.core_type = #tpu.core_type<tc>, window_params = [{pipeline_mode = #tpu.pipeline_mode<synchronous>, transform_indices = @transform_0, window_bounds = array<i64: 9, 8, 8>}, {pipeline_mode = #tpu.pipeline_mode<synchronous>, transform_indices = @transform_1, window_bounds = array<i64: 8, 1>}, {transform_indices = @transform_2, window_bounds = array<i64: 1, 8, 128>}, {transform_indices = @transform_3, window_bounds = array<i64: 1, 8, 128>}, {transform_indices = @transform_4, window_bounds = array<i64: 8, 128>}]} {
    %c0 = arith.constant 0 : index
    %c0_0 = arith.constant 0 : index
    %c0_1 = arith.constant 0 : index
    %0 = vector.load %arg3[%c0, %c0_0, %c0_1] : memref<1x8x128xbf16, #tpu.memory_space<vmem>>, vector<1x8x128xbf16>
    %1 = vector.shape_cast %0 : vector<1x8x128xbf16> to vector<8x128xbf16>
    %c0_2 = arith.constant 0 : index
    %c0_3 = arith.constant 0 : index
    %c0_4 = arith.constant 0 : index
    %2 = vector.load %arg4[%c0_2, %c0_3, %c0_4] : memref<1x8x128xbf16, #tpu.memory_space<vmem>>, vector<1x8x128xbf16>
    %3 = vector.shape_cast %2 : vector<1x8x128xbf16> to vector<8x128xbf16>
    %4 = tpu.concatenate %1, %3 in 1 : vector<8x128xbf16>, vector<8x128xbf16> -> vector<8x256xbf16>
    %c0_5 = arith.constant 0 : index
    %c0_6 = arith.constant 0 : index
    %c0_7 = arith.constant 0 : index
    %5 = vector.load %arg1[%c0_5, %c0_6, %c0_7] : memref<9x8x8xbf16, #tpu.memory_space<vmem>>, vector<1x8x8xbf16>
    %6 = vector.shape_cast %5 : vector<1x8x8xbf16> to vector<8x8xbf16>
    %cst = arith.constant dense<0.000000e+00> : vector<8x128xf32>
    %7 = tpu.matmul %6, %1, %cst {dimension_numbers = #tpu.dot_dimension_numbers<[1], [0], [0], [1], [0, 0, 1, 1], [], []>} : vector<8x8xbf16>, vector<8x128xbf16>, vector<8x128xf32> -> vector<8x128xf32>
    %8 = vector.extract_strided_slice %4 {offsets = [0, 1], sizes = [8, 128], strides = [1, 1]} : vector<8x256xbf16> to vector<8x128xbf16>
    %c1 = arith.constant 1 : index
    %c0_8 = arith.constant 0 : index
    %c0_9 = arith.constant 0 : index
    %9 = vector.load %arg1[%c1, %c0_8, %c0_9] : memref<9x8x8xbf16, #tpu.memory_space<vmem>>, vector<1x8x8xbf16>
    %10 = vector.shape_cast %9 : vector<1x8x8xbf16> to vector<8x8xbf16>
    %cst_10 = arith.constant dense<0.000000e+00> : vector<8x128xf32>
    %11 = tpu.matmul %10, %8, %cst_10 {dimension_numbers = #tpu.dot_dimension_numbers<[1], [0], [0], [1], [0, 0, 1, 1], [], []>} : vector<8x8xbf16>, vector<8x128xbf16>, vector<8x128xf32> -> vector<8x128xf32>
    %12 = arith.addf %7, %11 : vector<8x128xf32>
    %13 = vector.extract_strided_slice %4 {offsets = [0, 2], sizes = [8, 128], strides = [1, 1]} : vector<8x256xbf16> to vector<8x128xbf16>
    %c2 = arith.constant 2 : index
    %c0_11 = arith.constant 0 : index
    %c0_12 = arith.constant 0 : index
    %14 = vector.load %arg1[%c2, %c0_11, %c0_12] : memref<9x8x8xbf16, #tpu.memory_space<vmem>>, vector<1x8x8xbf16>
    %15 = vector.shape_cast %14 : vector<1x8x8xbf16> to vector<8x8xbf16>
    %cst_13 = arith.constant dense<0.000000e+00> : vector<8x128xf32>
    %16 = tpu.matmul %15, %13, %cst_13 {dimension_numbers = #tpu.dot_dimension_numbers<[1], [0], [0], [1], [0, 0, 1, 1], [], []>} : vector<8x8xbf16>, vector<8x128xbf16>, vector<8x128xf32> -> vector<8x128xf32>
    %17 = arith.addf %12, %16 : vector<8x128xf32>
    %18 = vector.extract_strided_slice %4 {offsets = [0, 10], sizes = [8, 128], strides = [1, 1]} : vector<8x256xbf16> to vector<8x128xbf16>
    %c3 = arith.constant 3 : index
    %c0_14 = arith.constant 0 : index
    %c0_15 = arith.constant 0 : index
    %19 = vector.load %arg1[%c3, %c0_14, %c0_15] : memref<9x8x8xbf16, #tpu.memory_space<vmem>>, vector<1x8x8xbf16>
    %20 = vector.shape_cast %19 : vector<1x8x8xbf16> to vector<8x8xbf16>
    %cst_16 = arith.constant dense<0.000000e+00> : vector<8x128xf32>
    %21 = tpu.matmul %20, %18, %cst_16 {dimension_numbers = #tpu.dot_dimension_numbers<[1], [0], [0], [1], [0, 0, 1, 1], [], []>} : vector<8x8xbf16>, vector<8x128xbf16>, vector<8x128xf32> -> vector<8x128xf32>
    %22 = arith.addf %17, %21 : vector<8x128xf32>
    %23 = vector.extract_strided_slice %4 {offsets = [0, 11], sizes = [8, 128], strides = [1, 1]} : vector<8x256xbf16> to vector<8x128xbf16>
    %c4 = arith.constant 4 : index
    %c0_17 = arith.constant 0 : index
    %c0_18 = arith.constant 0 : index
    %24 = vector.load %arg1[%c4, %c0_17, %c0_18] : memref<9x8x8xbf16, #tpu.memory_space<vmem>>, vector<1x8x8xbf16>
    %25 = vector.shape_cast %24 : vector<1x8x8xbf16> to vector<8x8xbf16>
    %cst_19 = arith.constant dense<0.000000e+00> : vector<8x128xf32>
    %26 = tpu.matmul %25, %23, %cst_19 {dimension_numbers = #tpu.dot_dimension_numbers<[1], [0], [0], [1], [0, 0, 1, 1], [], []>} : vector<8x8xbf16>, vector<8x128xbf16>, vector<8x128xf32> -> vector<8x128xf32>
    %27 = arith.addf %22, %26 : vector<8x128xf32>
    %28 = vector.extract_strided_slice %4 {offsets = [0, 12], sizes = [8, 128], strides = [1, 1]} : vector<8x256xbf16> to vector<8x128xbf16>
    %c5 = arith.constant 5 : index
    %c0_20 = arith.constant 0 : index
    %c0_21 = arith.constant 0 : index
    %29 = vector.load %arg1[%c5, %c0_20, %c0_21] : memref<9x8x8xbf16, #tpu.memory_space<vmem>>, vector<1x8x8xbf16>
    %30 = vector.shape_cast %29 : vector<1x8x8xbf16> to vector<8x8xbf16>
    %cst_22 = arith.constant dense<0.000000e+00> : vector<8x128xf32>
    %31 = tpu.matmul %30, %28, %cst_22 {dimension_numbers = #tpu.dot_dimension_numbers<[1], [0], [0], [1], [0, 0, 1, 1], [], []>} : vector<8x8xbf16>, vector<8x128xbf16>, vector<8x128xf32> -> vector<8x128xf32>
    %32 = arith.addf %27, %31 : vector<8x128xf32>
    %33 = vector.extract_strided_slice %4 {offsets = [0, 20], sizes = [8, 128], strides = [1, 1]} : vector<8x256xbf16> to vector<8x128xbf16>
    %c6 = arith.constant 6 : index
    %c0_23 = arith.constant 0 : index
    %c0_24 = arith.constant 0 : index
    %34 = vector.load %arg1[%c6, %c0_23, %c0_24] : memref<9x8x8xbf16, #tpu.memory_space<vmem>>, vector<1x8x8xbf16>
    %35 = vector.shape_cast %34 : vector<1x8x8xbf16> to vector<8x8xbf16>
    %cst_25 = arith.constant dense<0.000000e+00> : vector<8x128xf32>
    %36 = tpu.matmul %35, %33, %cst_25 {dimension_numbers = #tpu.dot_dimension_numbers<[1], [0], [0], [1], [0, 0, 1, 1], [], []>} : vector<8x8xbf16>, vector<8x128xbf16>, vector<8x128xf32> -> vector<8x128xf32>
    %37 = arith.addf %32, %36 : vector<8x128xf32>
    %38 = vector.extract_strided_slice %4 {offsets = [0, 21], sizes = [8, 128], strides = [1, 1]} : vector<8x256xbf16> to vector<8x128xbf16>
    %c7 = arith.constant 7 : index
    %c0_26 = arith.constant 0 : index
    %c0_27 = arith.constant 0 : index
    %39 = vector.load %arg1[%c7, %c0_26, %c0_27] : memref<9x8x8xbf16, #tpu.memory_space<vmem>>, vector<1x8x8xbf16>
    %40 = vector.shape_cast %39 : vector<1x8x8xbf16> to vector<8x8xbf16>
    %cst_28 = arith.constant dense<0.000000e+00> : vector<8x128xf32>
    %41 = tpu.matmul %40, %38, %cst_28 {dimension_numbers = #tpu.dot_dimension_numbers<[1], [0], [0], [1], [0, 0, 1, 1], [], []>} : vector<8x8xbf16>, vector<8x128xbf16>, vector<8x128xf32> -> vector<8x128xf32>
    %42 = arith.addf %37, %41 : vector<8x128xf32>
    %43 = vector.extract_strided_slice %4 {offsets = [0, 22], sizes = [8, 128], strides = [1, 1]} : vector<8x256xbf16> to vector<8x128xbf16>
    %c8 = arith.constant 8 : index
    %c0_29 = arith.constant 0 : index
    %c0_30 = arith.constant 0 : index
    %44 = vector.load %arg1[%c8, %c0_29, %c0_30] : memref<9x8x8xbf16, #tpu.memory_space<vmem>>, vector<1x8x8xbf16>
    %45 = vector.shape_cast %44 : vector<1x8x8xbf16> to vector<8x8xbf16>
    %cst_31 = arith.constant dense<0.000000e+00> : vector<8x128xf32>
    %46 = tpu.matmul %45, %43, %cst_31 {dimension_numbers = #tpu.dot_dimension_numbers<[1], [0], [0], [1], [0, 0, 1, 1], [], []>} : vector<8x8xbf16>, vector<8x128xbf16>, vector<8x128xf32> -> vector<8x128xf32>
    %47 = arith.addf %42, %46 : vector<8x128xf32>
    %c0_32 = arith.constant 0 : index
    %c0_33 = arith.constant 0 : index
    %48 = vector.load %arg2[%c0_32, %c0_33] : memref<8x1xf32, #tpu.memory_space<vmem>>, vector<8x1xf32>
    %49 = vector.broadcast %48 : vector<8x1xf32> to vector<8x128xf32>
    %50 = arith.addf %47, %49 : vector<8x128xf32>
    %c0_34 = arith.constant 0 : index
    %c0_35 = arith.constant 0 : index
    %51 = vector.load %arg5[%c0_34, %c0_35] : memref<8x128xf32, #tpu.memory_space<vmem>>, vector<8x128xf32>
    tpu.vector_store %arg5[%c0_34, %c0_35], %50 {strides = array<i32>} : memref<8x128xf32, #tpu.memory_space<vmem>>, vector<8x128xf32>,
    return
  }
  func.func @transform_0(%arg0: i32) -> (i32, i32, i32) {
    %c0_i32 = arith.constant 0 : i32
    %c0_i32_0 = arith.constant 0 : i32
    %c0_i32_1 = arith.constant 0 : i32
    %c0_i32_2 = arith.constant 0 : i32
    return %c0_i32, %c0_i32_0, %c0_i32_1 : i32, i32, i32
  }
  func.func @transform_1(%arg0: i32) -> (i32, i32) {
    %c0_i32 = arith.constant 0 : i32
    %c0_i32_0 = arith.constant 0 : i32
    %c0_i32_1 = arith.constant 0 : i32
    return %c0_i32, %c0_i32_0 : i32, i32
  }
  func.func @transform_2(%arg0: i32) -> (i32, i32, i32) {
    %c0_i32 = arith.constant 0 : i32
    %c0_i32_0 = arith.constant 0 : i32
    %c0_i32_1 = arith.constant 0 : i32
    return %c0_i32, %c0_i32_0, %arg0 : i32, i32, i32
  }
  func.func @transform_3(%arg0: i32) -> (i32, i32, i32) {
    %c1_i32 = arith.constant 1 : i32
    %0 = arith.addi %arg0, %c1_i32 : i32
    %c1_i32_0 = arith.constant 1 : i32
    %1 = arith.muli %0, %c1_i32_0 : i32
    %c0_i32 = arith.constant 0 : i32
    %c0_i32_1 = arith.constant 0 : i32
    %c0_i32_2 = arith.constant 0 : i32
    return %c0_i32, %c0_i32_1, %1 : i32, i32, i32
  }
  func.func @transform_4(%arg0: i32) -> (i32, i32) {
    %c0_i32 = arith.constant 0 : i32
    %c0_i32_0 = arith.constant 0 : i32
    return %c0_i32, %arg0 : i32, i32
  }
}

module attributes {stable_mosaic.version = 11 : i64} {
  func.func @_conv_kernel(%arg0: i32, %arg1: memref<9x8x8xbf16, #tpu.memory_space<vmem>>, %arg2: memref<8x1xf32, #tpu.memory_space<vmem>>, %arg3: memref<1x8x128xbf16, #tpu.memory_space<vmem>>, %arg4: memref<1x8x128xbf16, #tpu.memory_space<vmem>>, %arg5: memref<8x128xf32, #tpu.memory_space<vmem>>) attributes {dimension_semantics = [#tpu.dimension_semantics<parallel>], iteration_bounds = array<i64: 1>, scalar_prefetch = 0 : i64, scratch_operands = 0 : i64, tpu.core_type = #tpu.core_type<tc>, window_params = [{pipeline_mode = #tpu.pipeline_mode<synchronous>, transform_indices = @transform_0, window_bounds = array<i64: 9, 8, 8>}, {pipeline_mode = #tpu.pipeline_mode<synchronous>, transform_indices = @transform_1, window_bounds = array<i64: 8, 1>}, {transform_indices = @transform_2, window_bounds = array<i64: 1, 8, 128>}, {transform_indices = @transform_3, window_bounds = array<i64: 1, 8, 128>}, {transform_indices = @transform_4, window_bounds = array<i64: 8, 128>}]} {
    %c0 = arith.constant 0 : index
    %c0_0 = arith.constant 0 : index
    %c0_1 = arith.constant 0 : index
    %0 = vector.load %arg3[%c0, %c0_0, %c0_1] : memref<1x8x128xbf16, #tpu.memory_space<vmem>>, vector<1x8x128xbf16>
    %1 = vector.shape_cast %0 : vector<1x8x128xbf16> to vector<8x128xbf16>
    %c0_2 = arith.constant 0 : index
    %c0_3 = arith.constant 0 : index
    %c0_4 = arith.constant 0 : index
    %2 = vector.load %arg4[%c0_2, %c0_3, %c0_4] : memref<1x8x128xbf16, #tpu.memory_space<vmem>>, vector<1x8x128xbf16>
    %3 = vector.shape_cast %2 : vector<1x8x128xbf16> to vector<8x128xbf16>
    %4 = tpu.concatenate %1, %3 in 1 : vector<8x128xbf16>, vector<8x128xbf16> -> vector<8x256xbf16>
    %c0_5 = arith.constant 0 : index
    %c0_6 = arith.constant 0 : index
    %c0_7 = arith.constant 0 : index
    %5 = vector.load %arg1[%c0_5, %c0_6, %c0_7] : memref<9x8x8xbf16, #tpu.memory_space<vmem>>, vector<1x8x8xbf16>
    %6 = vector.shape_cast %5 : vector<1x8x8xbf16> to vector<8x8xbf16>
    %cst = arith.constant dense<0.000000e+00> : vector<8x128xf32>
    %7 = tpu.matmul %6, %1, %cst {dimension_numbers = #tpu.dot_dimension_numbers<[1], [0], [0], [1], [0, 0, 1, 1], [], []>} : vector<8x8xbf16>, vector<8x128xbf16>, vector<8x128xf32> -> vector<8x128xf32>
    %8 = vector.extract_strided_slice %4 {offsets = [0, 1], sizes = [8, 128], strides = [1, 1]} : vector<8x256xbf16> to vector<8x128xbf16>
    %c1 = arith.constant 1 : index
    %c0_8 = arith.constant 0 : index
    %c0_9 = arith.constant 0 : index
    %9 = vector.load %arg1[%c1, %c0_8, %c0_9] : memref<9x8x8xbf16, #tpu.memory_space<vmem>>, vector<1x8x8xbf16>
    %10 = vector.shape_cast %9 : vector<1x8x8xbf16> to vector<8x8xbf16>
    %cst_10 = arith.constant dense<0.000000e+00> : vector<8x128xf32>
    %11 = tpu.matmul %10, %8, %cst_10 {dimension_numbers = #tpu.dot_dimension_numbers<[1], [0], [0], [1], [0, 0, 1, 1], [], []>} : vector<8x8xbf16>, vector<8x128xbf16>, vector<8x128xf32> -> vector<8x128xf32>
    %12 = arith.addf %7, %11 : vector<8x128xf32>
    %13 = vector.extract_strided_slice %4 {offsets = [0, 2], sizes = [8, 128], strides = [1, 1]} : vector<8x256xbf16> to vector<8x128xbf16>
    %c2 = arith.constant 2 : index
    %c0_11 = arith.constant 0 : index
    %c0_12 = arith.constant 0 : index
    %14 = vector.load %arg1[%c2, %c0_11, %c0_12] : memref<9x8x8xbf16, #tpu.memory_space<vmem>>, vector<1x8x8xbf16>
    %15 = vector.shape_cast %14 : vector<1x8x8xbf16> to vector<8x8xbf16>
    %cst_13 = arith.constant dense<0.000000e+00> : vector<8x128xf32>
    %16 = tpu.matmul %15, %13, %cst_13 {dimension_numbers = #tpu.dot_dimension_numbers<[1], [0], [0], [1], [0, 0, 1, 1], [], []>} : vector<8x8xbf16>, vector<8x128xbf16>, vector<8x128xf32> -> vector<8x128xf32>
    %17 = arith.addf %12, %16 : vector<8x128xf32>
    %18 = vector.extract_strided_slice %4 {offsets = [0, 6], sizes = [8, 128], strides = [1, 1]} : vector<8x256xbf16> to vector<8x128xbf16>
    %c3 = arith.constant 3 : index
    %c0_14 = arith.constant 0 : index
    %c0_15 = arith.constant 0 : index
    %19 = vector.load %arg1[%c3, %c0_14, %c0_15] : memref<9x8x8xbf16, #tpu.memory_space<vmem>>, vector<1x8x8xbf16>
    %20 = vector.shape_cast %19 : vector<1x8x8xbf16> to vector<8x8xbf16>
    %cst_16 = arith.constant dense<0.000000e+00> : vector<8x128xf32>
    %21 = tpu.matmul %20, %18, %cst_16 {dimension_numbers = #tpu.dot_dimension_numbers<[1], [0], [0], [1], [0, 0, 1, 1], [], []>} : vector<8x8xbf16>, vector<8x128xbf16>, vector<8x128xf32> -> vector<8x128xf32>
    %22 = arith.addf %17, %21 : vector<8x128xf32>
    %23 = vector.extract_strided_slice %4 {offsets = [0, 7], sizes = [8, 128], strides = [1, 1]} : vector<8x256xbf16> to vector<8x128xbf16>
    %c4 = arith.constant 4 : index
    %c0_17 = arith.constant 0 : index
    %c0_18 = arith.constant 0 : index
    %24 = vector.load %arg1[%c4, %c0_17, %c0_18] : memref<9x8x8xbf16, #tpu.memory_space<vmem>>, vector<1x8x8xbf16>
    %25 = vector.shape_cast %24 : vector<1x8x8xbf16> to vector<8x8xbf16>
    %cst_19 = arith.constant dense<0.000000e+00> : vector<8x128xf32>
    %26 = tpu.matmul %25, %23, %cst_19 {dimension_numbers = #tpu.dot_dimension_numbers<[1], [0], [0], [1], [0, 0, 1, 1], [], []>} : vector<8x8xbf16>, vector<8x128xbf16>, vector<8x128xf32> -> vector<8x128xf32>
    %27 = arith.addf %22, %26 : vector<8x128xf32>
    %28 = vector.extract_strided_slice %4 {offsets = [0, 8], sizes = [8, 128], strides = [1, 1]} : vector<8x256xbf16> to vector<8x128xbf16>
    %c5 = arith.constant 5 : index
    %c0_20 = arith.constant 0 : index
    %c0_21 = arith.constant 0 : index
    %29 = vector.load %arg1[%c5, %c0_20, %c0_21] : memref<9x8x8xbf16, #tpu.memory_space<vmem>>, vector<1x8x8xbf16>
    %30 = vector.shape_cast %29 : vector<1x8x8xbf16> to vector<8x8xbf16>
    %cst_22 = arith.constant dense<0.000000e+00> : vector<8x128xf32>
    %31 = tpu.matmul %30, %28, %cst_22 {dimension_numbers = #tpu.dot_dimension_numbers<[1], [0], [0], [1], [0, 0, 1, 1], [], []>} : vector<8x8xbf16>, vector<8x128xbf16>, vector<8x128xf32> -> vector<8x128xf32>
    %32 = arith.addf %27, %31 : vector<8x128xf32>
    %33 = vector.extract_strided_slice %4 {offsets = [0, 12], sizes = [8, 128], strides = [1, 1]} : vector<8x256xbf16> to vector<8x128xbf16>
    %c6 = arith.constant 6 : index
    %c0_23 = arith.constant 0 : index
    %c0_24 = arith.constant 0 : index
    %34 = vector.load %arg1[%c6, %c0_23, %c0_24] : memref<9x8x8xbf16, #tpu.memory_space<vmem>>, vector<1x8x8xbf16>
    %35 = vector.shape_cast %34 : vector<1x8x8xbf16> to vector<8x8xbf16>
    %cst_25 = arith.constant dense<0.000000e+00> : vector<8x128xf32>
    %36 = tpu.matmul %35, %33, %cst_25 {dimension_numbers = #tpu.dot_dimension_numbers<[1], [0], [0], [1], [0, 0, 1, 1], [], []>} : vector<8x8xbf16>, vector<8x128xbf16>, vector<8x128xf32> -> vector<8x128xf32>
    %37 = arith.addf %32, %36 : vector<8x128xf32>
    %38 = vector.extract_strided_slice %4 {offsets = [0, 13], sizes = [8, 128], strides = [1, 1]} : vector<8x256xbf16> to vector<8x128xbf16>
    %c7 = arith.constant 7 : index
    %c0_26 = arith.constant 0 : index
    %c0_27 = arith.constant 0 : index
    %39 = vector.load %arg1[%c7, %c0_26, %c0_27] : memref<9x8x8xbf16, #tpu.memory_space<vmem>>, vector<1x8x8xbf16>
    %40 = vector.shape_cast %39 : vector<1x8x8xbf16> to vector<8x8xbf16>
    %cst_28 = arith.constant dense<0.000000e+00> : vector<8x128xf32>
    %41 = tpu.matmul %40, %38, %cst_28 {dimension_numbers = #tpu.dot_dimension_numbers<[1], [0], [0], [1], [0, 0, 1, 1], [], []>} : vector<8x8xbf16>, vector<8x128xbf16>, vector<8x128xf32> -> vector<8x128xf32>
    %42 = arith.addf %37, %41 : vector<8x128xf32>
    %43 = vector.extract_strided_slice %4 {offsets = [0, 14], sizes = [8, 128], strides = [1, 1]} : vector<8x256xbf16> to vector<8x128xbf16>
    %c8 = arith.constant 8 : index
    %c0_29 = arith.constant 0 : index
    %c0_30 = arith.constant 0 : index
    %44 = vector.load %arg1[%c8, %c0_29, %c0_30] : memref<9x8x8xbf16, #tpu.memory_space<vmem>>, vector<1x8x8xbf16>
    %45 = vector.shape_cast %44 : vector<1x8x8xbf16> to vector<8x8xbf16>
    %cst_31 = arith.constant dense<0.000000e+00> : vector<8x128xf32>
    %46 = tpu.matmul %45, %43, %cst_31 {dimension_numbers = #tpu.dot_dimension_numbers<[1], [0], [0], [1], [0, 0, 1, 1], [], []>} : vector<8x8xbf16>, vector<8x128xbf16>, vector<8x128xf32> -> vector<8x128xf32>
    %47 = arith.addf %42, %46 : vector<8x128xf32>
    %c0_32 = arith.constant 0 : index
    %c0_33 = arith.constant 0 : index
    %48 = vector.load %arg2[%c0_32, %c0_33] : memref<8x1xf32, #tpu.memory_space<vmem>>, vector<8x1xf32>
    %49 = vector.broadcast %48 : vector<8x1xf32> to vector<8x128xf32>
    %50 = arith.addf %47, %49 : vector<8x128xf32>
    %c0_34 = arith.constant 0 : index
    %c0_35 = arith.constant 0 : index
    %51 = vector.load %arg5[%c0_34, %c0_35] : memref<8x128xf32, #tpu.memory_space<vmem>>, vector<8x128xf32>
    tpu.vector_store %arg5[%c0_34, %c0_35], %50 {strides = array<i32>} : memref<8x128xf32, #tpu.memory_space<vmem>>, vector<8x128xf32>,
    return
  }
  func.func @transform_0(%arg0: i32) -> (i32, i32, i32) {
    %c0_i32 = arith.constant 0 : i32
    %c0_i32_0 = arith.constant 0 : i32
    %c0_i32_1 = arith.constant 0 : i32
    %c0_i32_2 = arith.constant 0 : i32
    return %c0_i32, %c0_i32_0, %c0_i32_1 : i32, i32, i32
  }
  func.func @transform_1(%arg0: i32) -> (i32, i32) {
    %c0_i32 = arith.constant 0 : i32
    %c0_i32_0 = arith.constant 0 : i32
    %c0_i32_1 = arith.constant 0 : i32
    return %c0_i32, %c0_i32_0 : i32, i32
  }
  func.func @transform_2(%arg0: i32) -> (i32, i32, i32) {
    %c0_i32 = arith.constant 0 : i32
    %c0_i32_0 = arith.constant 0 : i32
    %c0_i32_1 = arith.constant 0 : i32
    return %c0_i32, %c0_i32_0, %arg0 : i32, i32, i32
  }
  func.func @transform_3(%arg0: i32) -> (i32, i32, i32) {
    %c1_i32 = arith.constant 1 : i32
    %0 = arith.addi %arg0, %c1_i32 : i32
    %c1_i32_0 = arith.constant 1 : i32
    %1 = arith.muli %0, %c1_i32_0 : i32
    %c0_i32 = arith.constant 0 : i32
    %c0_i32_1 = arith.constant 0 : i32
    %c0_i32_2 = arith.constant 0 : i32
    return %c0_i32, %c0_i32_1, %1 : i32, i32, i32
  }
  func.func @transform_4(%arg0: i32) -> (i32, i32) {
    %c0_i32 = arith.constant 0 : i32
    %c0_i32_0 = arith.constant 0 : i32
    return %c0_i32, %arg0 : i32, i32
  }
}

module attributes {stable_mosaic.version = 11 : i64} {
  func.func @_conv_kernel(%arg0: i32, %arg1: memref<9x8x8xbf16, #tpu.memory_space<vmem>>, %arg2: memref<8x1xf32, #tpu.memory_space<vmem>>, %arg3: memref<1x8x128xbf16, #tpu.memory_space<vmem>>, %arg4: memref<1x8x128xbf16, #tpu.memory_space<vmem>>, %arg5: memref<8x128xf32, #tpu.memory_space<vmem>>) attributes {dimension_semantics = [#tpu.dimension_semantics<parallel>], iteration_bounds = array<i64: 1>, scalar_prefetch = 0 : i64, scratch_operands = 0 : i64, tpu.core_type = #tpu.core_type<tc>, window_params = [{pipeline_mode = #tpu.pipeline_mode<synchronous>, transform_indices = @transform_0, window_bounds = array<i64: 9, 8, 8>}, {pipeline_mode = #tpu.pipeline_mode<synchronous>, transform_indices = @transform_1, window_bounds = array<i64: 8, 1>}, {transform_indices = @transform_2, window_bounds = array<i64: 1, 8, 128>}, {transform_indices = @transform_3, window_bounds = array<i64: 1, 8, 128>}, {transform_indices = @transform_4, window_bounds = array<i64: 8, 128>}]} {
    %c0 = arith.constant 0 : index
    %c0_0 = arith.constant 0 : index
    %c0_1 = arith.constant 0 : index
    %0 = vector.load %arg3[%c0, %c0_0, %c0_1] : memref<1x8x128xbf16, #tpu.memory_space<vmem>>, vector<1x8x128xbf16>
    %1 = vector.shape_cast %0 : vector<1x8x128xbf16> to vector<8x128xbf16>
    %c0_2 = arith.constant 0 : index
    %c0_3 = arith.constant 0 : index
    %c0_4 = arith.constant 0 : index
    %2 = vector.load %arg4[%c0_2, %c0_3, %c0_4] : memref<1x8x128xbf16, #tpu.memory_space<vmem>>, vector<1x8x128xbf16>
    %3 = vector.shape_cast %2 : vector<1x8x128xbf16> to vector<8x128xbf16>
    %4 = tpu.concatenate %1, %3 in 1 : vector<8x128xbf16>, vector<8x128xbf16> -> vector<8x256xbf16>
    %c0_5 = arith.constant 0 : index
    %c0_6 = arith.constant 0 : index
    %c0_7 = arith.constant 0 : index
    %5 = vector.load %arg1[%c0_5, %c0_6, %c0_7] : memref<9x8x8xbf16, #tpu.memory_space<vmem>>, vector<1x8x8xbf16>
    %6 = vector.shape_cast %5 : vector<1x8x8xbf16> to vector<8x8xbf16>
    %cst = arith.constant dense<0.000000e+00> : vector<8x128xf32>
    %7 = tpu.matmul %6, %1, %cst {dimension_numbers = #tpu.dot_dimension_numbers<[1], [0], [0], [1], [0, 0, 1, 1], [], []>} : vector<8x8xbf16>, vector<8x128xbf16>, vector<8x128xf32> -> vector<8x128xf32>
    %8 = vector.extract_strided_slice %4 {offsets = [0, 1], sizes = [8, 128], strides = [1, 1]} : vector<8x256xbf16> to vector<8x128xbf16>
    %c1 = arith.constant 1 : index
    %c0_8 = arith.constant 0 : index
    %c0_9 = arith.constant 0 : index
    %9 = vector.load %arg1[%c1, %c0_8, %c0_9] : memref<9x8x8xbf16, #tpu.memory_space<vmem>>, vector<1x8x8xbf16>
    %10 = vector.shape_cast %9 : vector<1x8x8xbf16> to vector<8x8xbf16>
    %cst_10 = arith.constant dense<0.000000e+00> : vector<8x128xf32>
    %11 = tpu.matmul %10, %8, %cst_10 {dimension_numbers = #tpu.dot_dimension_numbers<[1], [0], [0], [1], [0, 0, 1, 1], [], []>} : vector<8x8xbf16>, vector<8x128xbf16>, vector<8x128xf32> -> vector<8x128xf32>
    %12 = arith.addf %7, %11 : vector<8x128xf32>
    %13 = vector.extract_strided_slice %4 {offsets = [0, 2], sizes = [8, 128], strides = [1, 1]} : vector<8x256xbf16> to vector<8x128xbf16>
    %c2 = arith.constant 2 : index
    %c0_11 = arith.constant 0 : index
    %c0_12 = arith.constant 0 : index
    %14 = vector.load %arg1[%c2, %c0_11, %c0_12] : memref<9x8x8xbf16, #tpu.memory_space<vmem>>, vector<1x8x8xbf16>
    %15 = vector.shape_cast %14 : vector<1x8x8xbf16> to vector<8x8xbf16>
    %cst_13 = arith.constant dense<0.000000e+00> : vector<8x128xf32>
    %16 = tpu.matmul %15, %13, %cst_13 {dimension_numbers = #tpu.dot_dimension_numbers<[1], [0], [0], [1], [0, 0, 1, 1], [], []>} : vector<8x8xbf16>, vector<8x128xbf16>, vector<8x128xf32> -> vector<8x128xf32>
    %17 = arith.addf %12, %16 : vector<8x128xf32>
    %18 = vector.extract_strided_slice %4 {offsets = [0, 4], sizes = [8, 128], strides = [1, 1]} : vector<8x256xbf16> to vector<8x128xbf16>
    %c3 = arith.constant 3 : index
    %c0_14 = arith.constant 0 : index
    %c0_15 = arith.constant 0 : index
    %19 = vector.load %arg1[%c3, %c0_14, %c0_15] : memref<9x8x8xbf16, #tpu.memory_space<vmem>>, vector<1x8x8xbf16>
    %20 = vector.shape_cast %19 : vector<1x8x8xbf16> to vector<8x8xbf16>
    %cst_16 = arith.constant dense<0.000000e+00> : vector<8x128xf32>
    %21 = tpu.matmul %20, %18, %cst_16 {dimension_numbers = #tpu.dot_dimension_numbers<[1], [0], [0], [1], [0, 0, 1, 1], [], []>} : vector<8x8xbf16>, vector<8x128xbf16>, vector<8x128xf32> -> vector<8x128xf32>
    %22 = arith.addf %17, %21 : vector<8x128xf32>
    %23 = vector.extract_strided_slice %4 {offsets = [0, 5], sizes = [8, 128], strides = [1, 1]} : vector<8x256xbf16> to vector<8x128xbf16>
    %c4 = arith.constant 4 : index
    %c0_17 = arith.constant 0 : index
    %c0_18 = arith.constant 0 : index
    %24 = vector.load %arg1[%c4, %c0_17, %c0_18] : memref<9x8x8xbf16, #tpu.memory_space<vmem>>, vector<1x8x8xbf16>
    %25 = vector.shape_cast %24 : vector<1x8x8xbf16> to vector<8x8xbf16>
    %cst_19 = arith.constant dense<0.000000e+00> : vector<8x128xf32>
    %26 = tpu.matmul %25, %23, %cst_19 {dimension_numbers = #tpu.dot_dimension_numbers<[1], [0], [0], [1], [0, 0, 1, 1], [], []>} : vector<8x8xbf16>, vector<8x128xbf16>, vector<8x128xf32> -> vector<8x128xf32>
    %27 = arith.addf %22, %26 : vector<8x128xf32>
    %28 = vector.extract_strided_slice %4 {offsets = [0, 6], sizes = [8, 128], strides = [1, 1]} : vector<8x256xbf16> to vector<8x128xbf16>
    %c5 = arith.constant 5 : index
    %c0_20 = arith.constant 0 : index
    %c0_21 = arith.constant 0 : index
    %29 = vector.load %arg1[%c5, %c0_20, %c0_21] : memref<9x8x8xbf16, #tpu.memory_space<vmem>>, vector<1x8x8xbf16>
    %30 = vector.shape_cast %29 : vector<1x8x8xbf16> to vector<8x8xbf16>
    %cst_22 = arith.constant dense<0.000000e+00> : vector<8x128xf32>
    %31 = tpu.matmul %30, %28, %cst_22 {dimension_numbers = #tpu.dot_dimension_numbers<[1], [0], [0], [1], [0, 0, 1, 1], [], []>} : vector<8x8xbf16>, vector<8x128xbf16>, vector<8x128xf32> -> vector<8x128xf32>
    %32 = arith.addf %27, %31 : vector<8x128xf32>
    %33 = vector.extract_strided_slice %4 {offsets = [0, 8], sizes = [8, 128], strides = [1, 1]} : vector<8x256xbf16> to vector<8x128xbf16>
    %c6 = arith.constant 6 : index
    %c0_23 = arith.constant 0 : index
    %c0_24 = arith.constant 0 : index
    %34 = vector.load %arg1[%c6, %c0_23, %c0_24] : memref<9x8x8xbf16, #tpu.memory_space<vmem>>, vector<1x8x8xbf16>
    %35 = vector.shape_cast %34 : vector<1x8x8xbf16> to vector<8x8xbf16>
    %cst_25 = arith.constant dense<0.000000e+00> : vector<8x128xf32>
    %36 = tpu.matmul %35, %33, %cst_25 {dimension_numbers = #tpu.dot_dimension_numbers<[1], [0], [0], [1], [0, 0, 1, 1], [], []>} : vector<8x8xbf16>, vector<8x128xbf16>, vector<8x128xf32> -> vector<8x128xf32>
    %37 = arith.addf %32, %36 : vector<8x128xf32>
    %38 = vector.extract_strided_slice %4 {offsets = [0, 9], sizes = [8, 128], strides = [1, 1]} : vector<8x256xbf16> to vector<8x128xbf16>
    %c7 = arith.constant 7 : index
    %c0_26 = arith.constant 0 : index
    %c0_27 = arith.constant 0 : index
    %39 = vector.load %arg1[%c7, %c0_26, %c0_27] : memref<9x8x8xbf16, #tpu.memory_space<vmem>>, vector<1x8x8xbf16>
    %40 = vector.shape_cast %39 : vector<1x8x8xbf16> to vector<8x8xbf16>
    %cst_28 = arith.constant dense<0.000000e+00> : vector<8x128xf32>
    %41 = tpu.matmul %40, %38, %cst_28 {dimension_numbers = #tpu.dot_dimension_numbers<[1], [0], [0], [1], [0, 0, 1, 1], [], []>} : vector<8x8xbf16>, vector<8x128xbf16>, vector<8x128xf32> -> vector<8x128xf32>
    %42 = arith.addf %37, %41 : vector<8x128xf32>
    %43 = vector.extract_strided_slice %4 {offsets = [0, 10], sizes = [8, 128], strides = [1, 1]} : vector<8x256xbf16> to vector<8x128xbf16>
    %c8 = arith.constant 8 : index
    %c0_29 = arith.constant 0 : index
    %c0_30 = arith.constant 0 : index
    %44 = vector.load %arg1[%c8, %c0_29, %c0_30] : memref<9x8x8xbf16, #tpu.memory_space<vmem>>, vector<1x8x8xbf16>
    %45 = vector.shape_cast %44 : vector<1x8x8xbf16> to vector<8x8xbf16>
    %cst_31 = arith.constant dense<0.000000e+00> : vector<8x128xf32>
    %46 = tpu.matmul %45, %43, %cst_31 {dimension_numbers = #tpu.dot_dimension_numbers<[1], [0], [0], [1], [0, 0, 1, 1], [], []>} : vector<8x8xbf16>, vector<8x128xbf16>, vector<8x128xf32> -> vector<8x128xf32>
    %47 = arith.addf %42, %46 : vector<8x128xf32>
    %c0_32 = arith.constant 0 : index
    %c0_33 = arith.constant 0 : index
    %48 = vector.load %arg2[%c0_32, %c0_33] : memref<8x1xf32, #tpu.memory_space<vmem>>, vector<8x1xf32>
    %49 = vector.broadcast %48 : vector<8x1xf32> to vector<8x128xf32>
    %50 = arith.addf %47, %49 : vector<8x128xf32>
    %c0_34 = arith.constant 0 : index
    %c0_35 = arith.constant 0 : index
    %51 = vector.load %arg5[%c0_34, %c0_35] : memref<8x128xf32, #tpu.memory_space<vmem>>, vector<8x128xf32>
    tpu.vector_store %arg5[%c0_34, %c0_35], %50 {strides = array<i32>} : memref<8x128xf32, #tpu.memory_space<vmem>>, vector<8x128xf32>,
    return
  }
  func.func @transform_0(%arg0: i32) -> (i32, i32, i32) {
    %c0_i32 = arith.constant 0 : i32
    %c0_i32_0 = arith.constant 0 : i32
    %c0_i32_1 = arith.constant 0 : i32
    %c0_i32_2 = arith.constant 0 : i32
    return %c0_i32, %c0_i32_0, %c0_i32_1 : i32, i32, i32
  }
  func.func @transform_1(%arg0: i32) -> (i32, i32) {
    %c0_i32 = arith.constant 0 : i32
    %c0_i32_0 = arith.constant 0 : i32
    %c0_i32_1 = arith.constant 0 : i32
    return %c0_i32, %c0_i32_0 : i32, i32
  }
  func.func @transform_2(%arg0: i32) -> (i32, i32, i32) {
    %c0_i32 = arith.constant 0 : i32
    %c0_i32_0 = arith.constant 0 : i32
    %c0_i32_1 = arith.constant 0 : i32
    return %c0_i32, %c0_i32_0, %arg0 : i32, i32, i32
  }
  func.func @transform_3(%arg0: i32) -> (i32, i32, i32) {
    %c1_i32 = arith.constant 1 : i32
    %0 = arith.addi %arg0, %c1_i32 : i32
    %c1_i32_0 = arith.constant 1 : i32
    %1 = arith.muli %0, %c1_i32_0 : i32
    %c0_i32 = arith.constant 0 : i32
    %c0_i32_1 = arith.constant 0 : i32
    %c0_i32_2 = arith.constant 0 : i32
    return %c0_i32, %c0_i32_1, %1 : i32, i32, i32
  }
  func.func @transform_4(%arg0: i32) -> (i32, i32) {
    %c0_i32 = arith.constant 0 : i32
    %c0_i32_0 = arith.constant 0 : i32
    return %c0_i32, %arg0 : i32, i32
  }
}

</mosaic_0001>

<llo_original>
// kernel: backbone_fpn_forward.9
$region0: #{backbone_fpn_forward.9}
  #allocation0 [shape = 'u32[]', space=smem, size = 0x4, offset = 0x4, fixed_abs, tag = 'smem constant byte address 0x4 - core index']
  #allocation1 [shape = 'u32[144,128]{1,0:T(1,128)}', space=vmem, size = 0x12000, scoped, tag = 'internal scratch']
  %s0 = inlined_call_operand.vmem [shape: bf16[9,8,4], index: 0, kind: input, shape index: {}]
  %s1 = inlined_call_operand.vmem [shape: f32[8,1], index: 1, kind: input, shape index: {}]
  %s2 = inlined_call_operand.vmem [shape: bf16[4,4,384], index: 2, kind: input, shape index: {}, may-alias: {2,3}]
  %s3 = inlined_call_operand.vmem [shape: bf16[4,4,384], index: 3, kind: input, shape index: {}, may-alias: {2,3}]
  %s4 = inlined_call_operand.vmem [shape: bf16[8,256], index: 4, kind: output, shape index: {}]
  %s5 = sld [smem:[#allocation0]]
  $region131: #{backbone_fpn_forward.9} parent=0
    _
  %s7 = ssub.s32 1, %s5
  %s8 = scalar_select 0, %s7, %s5
  $region1: #{backbone_fpn_forward.9} parent=0
    #allocation2 [shape = 'u8[8192]{0}', space=vmem, size = 0x2000, scoped, tag = 'input window, operand 2']
    #allocation3 [shape = 'u8[8192]{0}', space=vmem, size = 0x2000, scoped, tag = 'input window, operand 3']
    loop: start=0, step=1, limit=4
    $region2: #{backbone_fpn_forward.9} parent=1 // loop_pre_header
      _
    $region3: #{backbone_fpn_forward.9} parent=1 // loop_header
      %s10 = sphi 0, %s14
      %p11 = scmp.ge.s32.totalorder %s10, 4
      %s18 = sphi 0, %s18
      %s20 = sphi 0, %s18
      %s21 = sphi 0, %s20
      %s35 = sphi 0, %s21
      %s39 = sphi 0, %s39
      %s41 = sphi 0, %s39
      %s42 = sphi 0, %s41
      %s56 = sphi 0, %s42
      %s62 = sphi 0, %s64
      %s65 = sphi 0, %s62
      %s66 = sphi 0, %s65
      %s82 = sphi 0, %s66
      %s90 = sphi 0, %s92
      %s93 = sphi 0, %s90
      %s94 = sphi 0, %s93
      %s110 = sphi 0, %s94
      %s116 = sphi 0, %s118
      %s119 = sphi 0, %s116
      %s120 = sphi 0, %s119
      %s136 = sphi 0, %s120
    $region4: #{backbone_fpn_forward.9} parent=1 // loop_header_branch
      %13 = sbr.rel (%p11) target = $region8
    $region5: #{backbone_fpn_forward.9} parent=1 // loop_body
      %s15 = ssub.s32 %s10, 1
      %s16 = ssub.s32 %s10, 2
      %s17 = sadd.s32 %s10, 1
      %s19 = sadd.s32 %s18, 1
      %p22 = scmp.eq.s32.totalorder %s10, 1
      %p23 = scmp.ne.s32.totalorder %s18, %s20
      %p24 = scmp.eq.s32.totalorder %s10, 0
      %p25 = por %p23, %p24
      %p26 = scmp.ne.s32.totalorder %s18, %s20
      %p27 = scmp.eq.s32.totalorder %s15, 1
      %p28 = por %p26, %p27
      %p29 = scmp.ne.s32.totalorder %s20, %s21
      %p30 = scmp.eq.s32.totalorder %s15, 0
      %p31 = por %p29, %p30
      %p32 = scmp.ne.s32.totalorder %s20, %s21
      %p33 = scmp.eq.s32.totalorder %s16, 1
      %p34 = por %p32, %p33
      %p36 = scmp.ne.s32.totalorder %s21, %s35
      %p37 = scmp.eq.s32.totalorder %s16, 0
      %p38 = por %p36, %p37
      %s40 = sadd.s32 %s39, 1
      %p43 = scmp.eq.s32.totalorder %s10, 1
      %p44 = scmp.ne.s32.totalorder %s39, %s41
      %p45 = scmp.eq.s32.totalorder %s10, 0
      %p46 = por %p44, %p45
      %p47 = scmp.ne.s32.totalorder %s39, %s41
      %p48 = scmp.eq.s32.totalorder %s15, 1
      %p49 = por %p47, %p48
      %p50 = scmp.ne.s32.totalorder %s41, %s42
      %p51 = scmp.eq.s32.totalorder %s15, 0
      %p52 = por %p50, %p51
      %p53 = scmp.ne.s32.totalorder %s41, %s42
      %p54 = scmp.eq.s32.totalorder %s16, 1
      %p55 = por %p53, %p54
      %p57 = scmp.ne.s32.totalorder %s42, %s56
      %p58 = scmp.eq.s32.totalorder %s16, 0
      %p59 = por %p57, %p58
      %s60 = ssub.s32 %s10, %s17
      %p61 = scmp.eq.s32.totalorder %s60, 0
      %s63 = sadd.s32 %s62, 1
      %s64 = scalar_select %p61, %s62, %s63
      %p67 = pneg %p61
      %p68 = scmp.eq.s32.totalorder %s10, 1
      %p69 = por %p67, %p68
      %p70 = scmp.ne.s32.totalorder %s62, %s65
      %p71 = scmp.eq.s32.totalorder %s10, 0
      %p72 = por %p70, %p71
      %p73 = scmp.ne.s32.totalorder %s62, %s65
      %p74 = scmp.eq.s32.totalorder %s15, 1
      %p75 = por %p73, %p74
      %p76 = scmp.ne.s32.totalorder %s65, %s66
      %p77 = scmp.eq.s32.totalorder %s15, 0
      %p78 = por %p76, %p77
      %p79 = scmp.ne.s32.totalorder %s65, %s66
      %p80 = scmp.eq.s32.totalorder %s16, 1
      %p81 = por %p79, %p80
      %p83 = scmp.ne.s32.totalorder %s66, %s82
      %p84 = scmp.eq.s32.totalorder %s16, 0
      %p85 = por %p83, %p84
      %s86 = sadd.s32 %s10, 1
      %s87 = sadd.s32 %s17, 1
      %s88 = ssub.s32 %s86, %s87
      %p89 = scmp.eq.s32.totalorder %s88, 0
      %s91 = sadd.s32 %s90, 1
      %s92 = scalar_select %p89, %s90, %s91
      %p95 = pneg %p89
      %p96 = scmp.eq.s32.totalorder %s10, 1
      %p97 = por %p95, %p96
      %p98 = scmp.ne.s32.totalorder %s90, %s93
      %p99 = scmp.eq.s32.totalorder %s10, 0
      %p100 = por %p98, %p99
      %p101 = scmp.ne.s32.totalorder %s90, %s93
      %p102 = scmp.eq.s32.totalorder %s15, 1
      %p103 = por %p101, %p102
      %p104 = scmp.ne.s32.totalorder %s93, %s94
      %p105 = scmp.eq.s32.totalorder %s15, 0
      %p106 = por %p104, %p105
      %p107 = scmp.ne.s32.totalorder %s93, %s94
      %p108 = scmp.eq.s32.totalorder %s16, 1
      %p109 = por %p107, %p108
      %p111 = scmp.ne.s32.totalorder %s94, %s110
      %p112 = scmp.eq.s32.totalorder %s16, 0
      %p113 = por %p111, %p112
      %s114 = ssub.s32 %s10, %s17
      %p115 = scmp.eq.s32.totalorder %s114, 0
      %s117 = sadd.s32 %s116, 1
      %s118 = scalar_select %p115, %s116, %s117
      %p121 = pneg %p115
      %p122 = scmp.eq.s32.totalorder %s10, 1
      %p123 = por %p121, %p122
      %p124 = scmp.ne.s32.totalorder %s116, %s119
      %p125 = scmp.eq.s32.totalorder %s10, 0
      %p126 = por %p124, %p125
      %p127 = scmp.ne.s32.totalorder %s116, %s119
      %p128 = scmp.eq.s32.totalorder %s15, 1
      %p129 = por %p127, %p128
      %p130 = scmp.ne.s32.totalorder %s119, %s120
      %p131 = scmp.eq.s32.totalorder %s15, 0
      %p132 = por %p130, %p131
      %p133 = scmp.ne.s32.totalorder %s119, %s120
      %p134 = scmp.eq.s32.totalorder %s16, 1
      %p135 = por %p133, %p134
      %p137 = scmp.ne.s32.totalorder %s120, %s136
      %p138 = scmp.eq.s32.totalorder %s16, 0
      %p139 = por %p137, %p138
      %p140 = scmp.le.s32.totalorder 1, %s10
      %p141 = scmp.lt.s32.totalorder %s10, 3
      %p142 = pnand %p140, %p141
      %p143 = pneg %p142
      // Predicated region
      $region9: #{backbone_fpn_forward.9} parent=5 // pred_check
        _
      $region10: #{backbone_fpn_forward.9} parent=5 // pred_check_branch
        %145 = sbr.rel (%p142) target = $region12
      $region11: #{backbone_fpn_forward.9} parent=5 // pred_region
        %s146 = ssub.s32 %s10, 1
        // Predicated region
        $region13: #{backbone_fpn_forward.9} parent=11 // pred_check
          %p147 = pneg %p31
        $region14: #{backbone_fpn_forward.9} parent=11 // pred_check_branch
          %149 = sbr.rel (%p147) target = $region16
        $region15: #{backbone_fpn_forward.9} parent=11 // pred_region
          _
        $region16: #{backbone_fpn_forward.9} parent=11 // pred_fallthru
          _
        // Predicated region
        $region17: #{backbone_fpn_forward.9} parent=11 // pred_check
          %p150 = pneg %p52
        $region18: #{backbone_fpn_forward.9} parent=11 // pred_check_branch
          %152 = sbr.rel (%p150) target = $region20
        $region19: #{backbone_fpn_forward.9} parent=11 // pred_region
          _
        $region20: #{backbone_fpn_forward.9} parent=11 // pred_fallthru
          _
      $region12: #{backbone_fpn_forward.9} parent=5 // pred_fallthru
        _
      %p153 = scmp.lt.s32.totalorder %s10, 2
      // Predicated region
      $region21: #{backbone_fpn_forward.9} parent=5 // pred_check
        %p154 = pneg %p153
      $region22: #{backbone_fpn_forward.9} parent=5 // pred_check_branch
        %156 = sbr.rel (%p154) target = $region24
      $region23: #{backbone_fpn_forward.9} parent=5 // pred_region
        // Predicated region
        $region25: #{backbone_fpn_forward.9} parent=23 // pred_check
          %p157 = pneg %p72
        $region26: #{backbone_fpn_forward.9} parent=23 // pred_check_branch
          %159 = sbr.rel (%p157) target = $region28
        $region27: #{backbone_fpn_forward.9} parent=23 // pred_region
          %s160 = sand.u32 %s62, 1
          %s161 = sand.u32 %s62, 1
          %s162 = smul.addr %s161, 8
          %s163 = scalar_lea.vmem [#allocation2], %s162
          %s164 = smul.addr %s10, 2
          %s165 = scalar_lea.vmem %s2, %s164
          // Predicated region
          $region29: #{backbone_fpn_forward.9} parent=27 // pred_check
            _
          $region30: #{backbone_fpn_forward.9} parent=27 // pred_check_branch
            %167 = sbr.rel (0) target = $region32
          $region31: #{backbone_fpn_forward.9} parent=27 // pred_region
            // Predicated region
            $region33: #{backbone_fpn_forward.9} parent=31 // pred_check
              _
            $region34: #{backbone_fpn_forward.9} parent=31 // pred_check_branch
              %169 = sbr.rel target = $region36
            $region35: #{backbone_fpn_forward.9} parent=31 // pred_region
              // Predicated region
              $region48: #{backbone_fpn_forward.9} parent=35 // pred_check
                _
              $region49: #{backbone_fpn_forward.9} parent=35 // pred_check_branch
                %191 = sbr.rel (0) target = $region51
              $region50: #{backbone_fpn_forward.9} parent=35 // pred_region
                loop: start=0, step=1, limit=1
                $region52: #{backbone_fpn_forward.9} parent=50 // loop_pre_header
                  _
                $region53: #{backbone_fpn_forward.9} parent=50 // loop_header
                  %s193 = sphi 0, %s197
                  %p194 = scmp.ge.s32.totalorder %s193, 1
                  %s198 = sphi %s165, %s165
                  %s199 = sphi %s163, %s163
                $region54: #{backbone_fpn_forward.9} parent=50 // loop_header_branch
                  %196 = sbr.rel (%p194) target = $region58
                $region55: #{backbone_fpn_forward.9} parent=50 // loop_body
                  _
                $region56: #{backbone_fpn_forward.9} parent=50 // loop_footer
                  %s197 = sadd.s32 1, %s193
                $region57: #{backbone_fpn_forward.9} parent=50 // loop_footer_branch
                  %192 = sbr.rel target = $region53
                $region58: #{backbone_fpn_forward.9} parent=50 // loop_exit
                  _
                %s201 = ssub.s32 4, 1
                loop: start=0, step=1, limit=1
                $region59: #{backbone_fpn_forward.9} parent=50 // loop_pre_header
                  _
                $region60: #{backbone_fpn_forward.9} parent=50 // loop_header
                  %s203 = sphi 0, %s207
                  %p204 = scmp.ge.s32.totalorder %s203, 1
                  %s208 = sphi %s165, %s165
                  %s209 = sphi %s163, %s163
                $region61: #{backbone_fpn_forward.9} parent=50 // loop_header_branch
                  %206 = sbr.rel (%p204) target = $region65
                $region62: #{backbone_fpn_forward.9} parent=50 // loop_body
                  %v210 = vld [vmem:[%s208] sm:%s201]
                  %211 = vst [vmem:[%s209] sm:%s201] %v210
                  %v212 = vld [vmem:[%s208 + $0x6] sm:%s201]
                  %213 = vst [vmem:[%s209 + $0x2] sm:%s201] %v212
                  %v214 = vld [vmem:[%s208 + $0xc] sm:%s201]
                  %215 = vst [vmem:[%s209 + $0x4] sm:%s201] %v214
                  %v216 = vld [vmem:[%s208 + $0x12] sm:%s201]
                  %217 = vst [vmem:[%s209 + $0x6] sm:%s201] %v216
                $region63: #{backbone_fpn_forward.9} parent=50 // loop_footer
                  %s207 = sadd.s32 1, %s203
                $region64: #{backbone_fpn_forward.9} parent=50 // loop_footer_branch
                  %202 = sbr.rel target = $region60
                $region65: #{backbone_fpn_forward.9} parent=50 // loop_exit
                  _
              $region51: #{backbone_fpn_forward.9} parent=35 // pred_fallthru
                _
            $region36: #{backbone_fpn_forward.9} parent=31 // pred_fallthru
              _
            // Predicated region
            $region37: #{backbone_fpn_forward.9} parent=31 // pred_check
              _
            $region38: #{backbone_fpn_forward.9} parent=31 // pred_check_branch
              %171 = sbr.rel (0) target = $region40
            $region39: #{backbone_fpn_forward.9} parent=31 // pred_region
              %s173 = ssub.s32 4, 1
              loop: start=0, step=1, limit=1
              $region41: #{backbone_fpn_forward.9} parent=39 // loop_pre_header
                _
              $region42: #{backbone_fpn_forward.9} parent=39 // loop_header
                %s175 = sphi 0, %s179
                %p176 = scmp.ge.s32.totalorder %s175, 1
                %s180 = sphi %s165, %s165
                %s181 = sphi %s163, %s163
              $region43: #{backbone_fpn_forward.9} parent=39 // loop_header_branch
                %178 = sbr.rel (%p176) target = $region47
              $region44: #{backbone_fpn_forward.9} parent=39 // loop_body
                %v182 = vld [vmem:[%s180] sm:%s173]
                %183 = vst [vmem:[%s181] sm:%s173] %v182
                %v184 = vld [vmem:[%s180 + $0x6] sm:%s173]
                %185 = vst [vmem:[%s181 + $0x2] sm:%s173] %v184
                %v186 = vld [vmem:[%s180 + $0xc] sm:%s173]
                %187 = vst [vmem:[%s181 + $0x4] sm:%s173] %v186
                %v188 = vld [vmem:[%s180 + $0x12] sm:%s173]
                %189 = vst [vmem:[%s181 + $0x6] sm:%s173] %v188
              $region45: #{backbone_fpn_forward.9} parent=39 // loop_footer
                %s179 = sadd.s32 1, %s175
              $region46: #{backbone_fpn_forward.9} parent=39 // loop_footer_branch
                %174 = sbr.rel target = $region42
              $region47: #{backbone_fpn_forward.9} parent=39 // loop_exit
                _
            $region40: #{backbone_fpn_forward.9} parent=31 // pred_fallthru
              _
          $region32: #{backbone_fpn_forward.9} parent=27 // pred_fallthru
            _
          %218 = vnop
        $region28: #{backbone_fpn_forward.9} parent=23 // pred_fallthru
          _
        // Predicated region
        $region66: #{backbone_fpn_forward.9} parent=23 // pred_check
          %p219 = pneg %p100
        $region67: #{backbone_fpn_forward.9} parent=23 // pred_check_branch
          %221 = sbr.rel (%p219) target = $region69
        $region68: #{backbone_fpn_forward.9} parent=23 // pred_region
          %s222 = sand.u32 %s90, 1
          %s223 = sand.u32 %s90, 1
          %s224 = smul.addr %s223, 8
          %s225 = scalar_lea.vmem [#allocation3], %s224
          %s226 = sadd.s32 %s10, 1
          %s227 = smul.addr %s226, 2
          %s228 = scalar_lea.vmem %s3, %s227
          // Predicated region
          $region70: #{backbone_fpn_forward.9} parent=68 // pred_check
            _
          $region71: #{backbone_fpn_forward.9} parent=68 // pred_check_branch
            %230 = sbr.rel (0) target = $region73
          $region72: #{backbone_fpn_forward.9} parent=68 // pred_region
            // Predicated region
            $region74: #{backbone_fpn_forward.9} parent=72 // pred_check
              _
            $region75: #{backbone_fpn_forward.9} parent=72 // pred_check_branch
              %232 = sbr.rel target = $region77
            $region76: #{backbone_fpn_forward.9} parent=72 // pred_region
              // Predicated region
              $region89: #{backbone_fpn_forward.9} parent=76 // pred_check
                _
              $region90: #{backbone_fpn_forward.9} parent=76 // pred_check_branch
                %254 = sbr.rel (0) target = $region92
              $region91: #{backbone_fpn_forward.9} parent=76 // pred_region
                loop: start=0, step=1, limit=1
                $region93: #{backbone_fpn_forward.9} parent=91 // loop_pre_header
                  _
                $region94: #{backbone_fpn_forward.9} parent=91 // loop_header
                  %s256 = sphi 0, %s260
                  %p257 = scmp.ge.s32.totalorder %s256, 1
                  %s261 = sphi %s228, %s228
                  %s262 = sphi %s225, %s225
                $region95: #{backbone_fpn_forward.9} parent=91 // loop_header_branch
                  %259 = sbr.rel (%p257) target = $region99
                $region96: #{backbone_fpn_forward.9} parent=91 // loop_body
                  _
                $region97: #{backbone_fpn_forward.9} parent=91 // loop_footer
                  %s260 = sadd.s32 1, %s256
                $region98: #{backbone_fpn_forward.9} parent=91 // loop_footer_branch
                  %255 = sbr.rel target = $region94
                $region99: #{backbone_fpn_forward.9} parent=91 // loop_exit
                  _
                %s264 = ssub.s32 4, 1
                loop: start=0, step=1, limit=1
                $region100: #{backbone_fpn_forward.9} parent=91 // loop_pre_header
                  _
                $region101: #{backbone_fpn_forward.9} parent=91 // loop_header
                  %s266 = sphi 0, %s270
                  %p267 = scmp.ge.s32.totalorder %s266, 1
                  %s271 = sphi %s228, %s228
                  %s272 = sphi %s225, %s225
                $region102: #{backbone_fpn_forward.9} parent=91 // loop_header_branch
                  %269 = sbr.rel (%p267) target = $region106
                $region103: #{backbone_fpn_forward.9} parent=91 // loop_body
                  %v273 = vld [vmem:[%s271] sm:%s264]
                  %274 = vst [vmem:[%s272] sm:%s264] %v273
                  %v275 = vld [vmem:[%s271 + $0x6] sm:%s264]
                  %276 = vst [vmem:[%s272 + $0x2] sm:%s264] %v275
                  %v277 = vld [vmem:[%s271 + $0xc] sm:%s264]
                  %278 = vst [vmem:[%s272 + $0x4] sm:%s264] %v277
                  %v279 = vld [vmem:[%s271 + $0x12] sm:%s264]
                  %280 = vst [vmem:[%s272 + $0x6] sm:%s264] %v279
                $region104: #{backbone_fpn_forward.9} parent=91 // loop_footer
                  %s270 = sadd.s32 1, %s266
                $region105: #{backbone_fpn_forward.9} parent=91 // loop_footer_branch
                  %265 = sbr.rel target = $region101
                $region106: #{backbone_fpn_forward.9} parent=91 // loop_exit
                  _
              $region92: #{backbone_fpn_forward.9} parent=76 // pred_fallthru
                _
            $region77: #{backbone_fpn_forward.9} parent=72 // pred_fallthru
              _
            // Predicated region
            $region78: #{backbone_fpn_forward.9} parent=72 // pred_check
              _
            $region79: #{backbone_fpn_forward.9} parent=72 // pred_check_branch
              %234 = sbr.rel (0) target = $region81
            $region80: #{backbone_fpn_forward.9} parent=72 // pred_region
              %s236 = ssub.s32 4, 1
              loop: start=0, step=1, limit=1
              $region82: #{backbone_fpn_forward.9} parent=80 // loop_pre_header
                _
              $region83: #{backbone_fpn_forward.9} parent=80 // loop_header
                %s238 = sphi 0, %s242
                %p239 = scmp.ge.s32.totalorder %s238, 1
                %s243 = sphi %s228, %s228
                %s244 = sphi %s225, %s225
              $region84: #{backbone_fpn_forward.9} parent=80 // loop_header_branch
                %241 = sbr.rel (%p239) target = $region88
              $region85: #{backbone_fpn_forward.9} parent=80 // loop_body
                %v245 = vld [vmem:[%s243] sm:%s236]
                %246 = vst [vmem:[%s244] sm:%s236] %v245
                %v247 = vld [vmem:[%s243 + $0x6] sm:%s236]
                %248 = vst [vmem:[%s244 + $0x2] sm:%s236] %v247
                %v249 = vld [vmem:[%s243 + $0xc] sm:%s236]
                %250 = vst [vmem:[%s244 + $0x4] sm:%s236] %v249
                %v251 = vld [vmem:[%s243 + $0x12] sm:%s236]
                %252 = vst [vmem:[%s244 + $0x6] sm:%s236] %v251
              $region86: #{backbone_fpn_forward.9} parent=80 // loop_footer
                %s242 = sadd.s32 1, %s238
              $region87: #{backbone_fpn_forward.9} parent=80 // loop_footer_branch
                %237 = sbr.rel target = $region83
              $region88: #{backbone_fpn_forward.9} parent=80 // loop_exit
                _
            $region81: #{backbone_fpn_forward.9} parent=72 // pred_fallthru
              _
          $region73: #{backbone_fpn_forward.9} parent=68 // pred_fallthru
            _
          %281 = vnop
        $region69: #{backbone_fpn_forward.9} parent=23 // pred_fallthru
          _
      $region24: #{backbone_fpn_forward.9} parent=5 // pred_fallthru
        _
      %p282 = scmp.le.s32.totalorder 1, %s10
      %p283 = scmp.lt.s32.totalorder %s10, 3
      %p284 = pnand %p282, %p283
      %p285 = pneg %p284
      // Predicated region
      $region107: #{backbone_fpn_forward.9} parent=5 // pred_check
        _
      $region108: #{backbone_fpn_forward.9} parent=5 // pred_check_branch
        %287 = sbr.rel (%p284) target = $region110
      $region109: #{backbone_fpn_forward.9} parent=5 // pred_region
        %s288 = ssub.s32 %s10, 1
        %s289 = sand.u32 %s65, 1
        %s290 = sand.u32 %s65, 1
        %s291 = smul.addr %s290, 8
        %s292 = scalar_lea.vmem [#allocation2], %s291
        // Predicated region
        $region111: #{backbone_fpn_forward.9} parent=109 // pred_check
          %p293 = pneg %p78
        $region112: #{backbone_fpn_forward.9} parent=109 // pred_check_branch
          %295 = sbr.rel (%p293) target = $region114
        $region113: #{backbone_fpn_forward.9} parent=109 // pred_region
          _
        $region114: #{backbone_fpn_forward.9} parent=109 // pred_fallthru
          _
        %s296 = sand.u32 %s93, 1
        %s297 = sand.u32 %s93, 1
        %s298 = smul.addr %s297, 8
        %s299 = scalar_lea.vmem [#allocation3], %s298
        // Predicated region
        $region115: #{backbone_fpn_forward.9} parent=109 // pred_check
          %p300 = pneg %p106
        $region116: #{backbone_fpn_forward.9} parent=109 // pred_check_branch
          %302 = sbr.rel (%p300) target = $region118
        $region117: #{backbone_fpn_forward.9} parent=109 // pred_region
          _
        $region118: #{backbone_fpn_forward.9} parent=109 // pred_fallthru
          _
        %p303 = pneg %p31
        %p304 = pneg %p28
        %p305 = pneg %p52
        %p306 = pneg %p49
        %s307 = sand.u32 %s65, 1
        %s308 = sand.u32 %s65, 1
        %s309 = smul.addr %s308, 8
        %s310 = scalar_lea.vmem [#allocation2], %s309
        %p311 = pneg %p78
        %p312 = pneg %p75
        %s313 = sand.u32 %s93, 1
        %s314 = sand.u32 %s93, 1
        %s315 = smul.addr %s314, 8
        %s316 = scalar_lea.vmem [#allocation3], %s315
        %p317 = pneg %p106
        %p318 = pneg %p103
        %p319 = pneg %p132
        %p320 = pneg %p129
        %p321 = scmp.lt.s32.totalorder %s15, 1
        %s322 = scalar_select %p321, %s15, 1
        %s323 = smul.addr %s322, 4
        %s324 = scalar_lea.vmem %s4, %s323
        %s325 = sadd.s32 %s15, 1
        %p326 = scmp.lt.s32.totalorder %s15, 1
        %s327 = scalar_select %p326, %s15, 1
        %s328 = smul.addr %s327, 4
        %s329 = scalar_lea.vmem %s4, %s328
        %v331 = vld [vmem:[%s292] sm:$0x3]
        %s332 = scalar_lea.vmem %s292, 2 [#allocation2]
        %v333 = vld [vmem:[%s332] sm:$0x3]
        %s334 = scalar_lea.vmem %s292, 4 [#allocation2]
        %v335 = vld [vmem:[%s334] sm:$0x3]
        %s336 = scalar_lea.vmem %s292, 6 [#allocation2]
        %v337 = vld [vmem:[%s336] sm:$0x3]
        %v338 = vld [vmem:[%s299] sm:$0x3]
        %s339 = scalar_lea.vmem %s299, 2 [#allocation3]
        %v340 = vld [vmem:[%s339] sm:$0x3]
        %s341 = scalar_lea.vmem %s299, 4 [#allocation3]
        %v342 = vld [vmem:[%s341] sm:$0x3]
        %v343 = vld [vmem:[%s0] sm:$0xf]
        %s344 = scalar_lea.vmem %s0, 4
        %v345 = vld [vmem:[%s344] sm:$0xf]
        %vm346 = vcmask 31744
        %v348 = vsel %vm346, %v345, 0
        %vm350 = vcmask 1041408
        %v352 = vsel %vm350, %v333, 0
        %354 = vmatprep.subr.bf16.mxu0 0
        %355 = vmatpush1.bf16.msra.mxu0 0
        %356 = vmatprep.subr.bf16.mxu0 0
        %357 = vmatpush1.bf16.msra.mxu0 0
        %358 = vmatprep.subr.bf16.mxu0 0
        %359 = vmatpush1.bf16.msra.mxu0 0
        %360 = vmatprep.subr.bf16.mxu0 0
        %361 = vmatpush1.bf16.msra.mxu0 0
        %362 = vmatprep.subr.bf16.mxu0 0
        %363 = vmatpush1.bf16.msra.mxu0 0
        %364 = vmatprep.subr.bf16.mxu0 0
        %365 = vmatpush1.bf16.msra.mxu0 0
        %366 = vmatprep.subr.bf16.mxu0 0
        %367 = vmatpush1.bf16.msra.mxu0 0
        %368 = vmatprep.subr.bf16.mxu0 0
        %369 = vmatpush1.bf16.msra.mxu0 %v352
        %370 = vmatprep.subr.bf16.mxu0 0
        %371 = vmatpush2.bf16.msra.mxu0 0
        %372 = vmatprep.subr.bf16.mxu0 0
        %373 = vmatpush2.bf16.msra.mxu0 0
        %374 = vmatprep.subr.bf16.mxu0 0
        %375 = vmatpush2.bf16.msra.mxu0 0
        %376 = vmatprep.subr.bf16.mxu0 0
        %377 = vmatpush2.bf16.msra.mxu0 0
        %378 = vmatprep.subr.bf16.mxu0 0
        %379 = vmatpush2.bf16.msra.mxu0 0
        %380 = vmatprep.subr.bf16.mxu0 0
        %381 = vmatpush2.bf16.msra.mxu0 0
        %382 = vmatprep.subr.bf16.mxu0 0
        %383 = vmatpush2.bf16.msra.mxu0 0
        %384 = vmatprep.subr.bf16.mxu0 0
        %385 = vmatpush2.bf16.msra.mxu0 0
        %386 = vmatprep.mubr.bf16.mxu0 0
        %387 = vmatmul.mubr.bf16.gmra.mxu0 %v348
        %v388 = vpop.f32.mrf.mxu0
        %v389 = vadd.f32 0.0, %v388
        %v390 = vpop.f32.mrf.mxu0
        %v391 = vpop.f32.mrf.mxu0
        %v392 = vpop.f32.mrf.mxu0
        %393 = vdwg.mxu0
        %v395 = vsel %vm346, %v343, 0
        %v398 = vsel %vm350, %v331, 0
        %400 = vmatprep.subr.bf16.mxu0 0
        %401 = vmatpush1.bf16.msra.mxu0 0
        %402 = vmatprep.subr.bf16.mxu0 0
        %403 = vmatpush1.bf16.msra.mxu0 0
        %404 = vmatprep.subr.bf16.mxu0 0
        %405 = vmatpush1.bf16.msra.mxu0 0
        %406 = vmatprep.subr.bf16.mxu0 0
        %407 = vmatpush1.bf16.msra.mxu0 0
        %408 = vmatprep.subr.bf16.mxu0 0
        %409 = vmatpush1.bf16.msra.mxu0 0
        %410 = vmatprep.subr.bf16.mxu0 0
        %411 = vmatpush1.bf16.msra.mxu0 0
        %412 = vmatprep.subr.bf16.mxu0 0
        %413 = vmatpush1.bf16.msra.mxu0 0
        %414 = vmatprep.subr.bf16.mxu0 0
        %415 = vmatpush1.bf16.msra.mxu0 %v398
        %416 = vmatprep.subr.bf16.mxu0 0
        %417 = vmatpush2.bf16.msra.mxu0 0
        %418 = vmatprep.subr.bf16.mxu0 0
        %419 = vmatpush2.bf16.msra.mxu0 0
        %420 = vmatprep.subr.bf16.mxu0 0
        %421 = vmatpush2.bf16.msra.mxu0 0
        %422 = vmatprep.subr.bf16.mxu0 0
        %423 = vmatpush2.bf16.msra.mxu0 0
        %424 = vmatprep.subr.bf16.mxu0 0
        %425 = vmatpush2.bf16.msra.mxu0 0
        %426 = vmatprep.subr.bf16.mxu0 0
        %427 = vmatpush2.bf16.msra.mxu0 0
        %428 = vmatprep.subr.bf16.mxu0 0
        %429 = vmatpush2.bf16.msra.mxu0 0
        %430 = vmatprep.subr.bf16.mxu0 0
        %431 = vmatpush2.bf16.msra.mxu0 0
        %432 = vmatprep.mubr.bf16.mxu0 0
        %433 = vmatmul.mubr.bf16.gmra.mxu0 %v395
        %v434 = vpop.f32.mrf.mxu0
        %v435 = vadd.f32 %v389, %v434
        %v436 = vpop.f32.mrf.mxu0
        %v437 = vpop.f32.mrf.mxu0
        %v438 = vpop.f32.mrf.mxu0
        %439 = vdwg.mxu0
        %s440 = scalar_lea.vmem %s0, 8
        %v441 = vld [vmem:[%s440] sm:$0xf]
        %444 = vrot.lane.b32.xlu0 %v331, 127
        %v445 = vpop.permute.xlu0 %444
        %446 = vrot.lane.b32.xlu0 %v338, 127
        %v447 = vpop.permute.xlu0 %446
        %vm448 = vcmask 1039360
        %v449 = vsel %vm448, %v445, %v447
        %v451 = vsel %vm346, %v441, 0
        %v454 = vsel %vm350, %v449, 0
        %456 = vmatprep.subr.bf16.mxu0 0
        %457 = vmatpush1.bf16.msra.mxu0 0
        %458 = vmatprep.subr.bf16.mxu0 0
        %459 = vmatpush1.bf16.msra.mxu0 0
        %460 = vmatprep.subr.bf16.mxu0 0
        %461 = vmatpush1.bf16.msra.mxu0 0
        %462 = vmatprep.subr.bf16.mxu0 0
        %463 = vmatpush1.bf16.msra.mxu0 0
        %464 = vmatprep.subr.bf16.mxu0 0
        %465 = vmatpush1.bf16.msra.mxu0 0
        %466 = vmatprep.subr.bf16.mxu0 0
        %467 = vmatpush1.bf16.msra.mxu0 0
        %468 = vmatprep.subr.bf16.mxu0 0
        %469 = vmatpush1.bf16.msra.mxu0 0
        %470 = vmatprep.subr.bf16.mxu0 0
        %471 = vmatpush1.bf16.msra.mxu0 %v454
        %472 = vmatprep.subr.bf16.mxu0 0
        %473 = vmatpush2.bf16.msra.mxu0 0
        %474 = vmatprep.subr.bf16.mxu0 0
        %475 = vmatpush2.bf16.msra.mxu0 0
        %476 = vmatprep.subr.bf16.mxu0 0
        %477 = vmatpush2.bf16.msra.mxu0 0
        %478 = vmatprep.subr.bf16.mxu0 0
        %479 = vmatpush2.bf16.msra.mxu0 0
        %480 = vmatprep.subr.bf16.mxu0 0
        %481 = vmatpush2.bf16.msra.mxu0 0
        %482 = vmatprep.subr.bf16.mxu0 0
        %483 = vmatpush2.bf16.msra.mxu0 0
        %484 = vmatprep.subr.bf16.mxu0 0
        %485 = vmatpush2.bf16.msra.mxu0 0
        %486 = vmatprep.subr.bf16.mxu0 0
        %487 = vmatpush2.bf16.msra.mxu0 0
        %488 = vmatprep.mubr.bf16.mxu0 0
        %489 = vmatmul.mubr.bf16.gmra.mxu0 %v451
        %v490 = vpop.f32.mrf.mxu0
        %v491 = vadd.f32 0.0, %v490
        %v492 = vpop.f32.mrf.mxu0
        %v493 = vpop.f32.mrf.mxu0
        %v494 = vpop.f32.mrf.mxu0
        %495 = vdwg.mxu0
        %v496 = vadd.f32 %v435, %v491
        %s497 = scalar_lea.vmem %s0, 12
        %v498 = vld [vmem:[%s497] sm:$0xf]
        %v500 = vsel %vm346, %v498, 0
        %v503 = vsel %vm350, %v335, 0
        %505 = vmatprep.subr.bf16.mxu0 0
        %506 = vmatpush1.bf16.msra.mxu0 0
        %507 = vmatprep.subr.bf16.mxu0 0
        %508 = vmatpush1.bf16.msra.mxu0 0
        %509 = vmatprep.subr.bf16.mxu0 0
        %510 = vmatpush1.bf16.msra.mxu0 0
        %511 = vmatprep.subr.bf16.mxu0 0
        %512 = vmatpush1.bf16.msra.mxu0 0
        %513 = vmatprep.subr.bf16.mxu0 0
        %514 = vmatpush1.bf16.msra.mxu0 0
        %515 = vmatprep.subr.bf16.mxu0 0
        %516 = vmatpush1.bf16.msra.mxu0 0
        %517 = vmatprep.subr.bf16.mxu0 0
        %518 = vmatpush1.bf16.msra.mxu0 0
        %519 = vmatprep.subr.bf16.mxu0 0
        %520 = vmatpush1.bf16.msra.mxu0 %v503
        %521 = vmatprep.subr.bf16.mxu0 0
        %522 = vmatpush2.bf16.msra.mxu0 0
        %523 = vmatprep.subr.bf16.mxu0 0
        %524 = vmatpush2.bf16.msra.mxu0 0
        %525 = vmatprep.subr.bf16.mxu0 0
        %526 = vmatpush2.bf16.msra.mxu0 0
        %527 = vmatprep.subr.bf16.mxu0 0
        %528 = vmatpush2.bf16.msra.mxu0 0
        %529 = vmatprep.subr.bf16.mxu0 0
        %530 = vmatpush2.bf16.msra.mxu0 0
        %531 = vmatprep.subr.bf16.mxu0 0
        %532 = vmatpush2.bf16.msra.mxu0 0
        %533 = vmatprep.subr.bf16.mxu0 0
        %534 = vmatpush2.bf16.msra.mxu0 0
        %535 = vmatprep.subr.bf16.mxu0 0
        %536 = vmatpush2.bf16.msra.mxu0 0
        %537 = vmatprep.mubr.bf16.mxu0 0
        %538 = vmatmul.mubr.bf16.gmra.mxu0 %v500
        %v539 = vpop.f32.mrf.mxu0
        %v540 = vadd.f32 0.0, %v539
        %v541 = vpop.f32.mrf.mxu0
        %v542 = vpop.f32.mrf.mxu0
        %v543 = vpop.f32.mrf.mxu0
        %544 = vdwg.mxu0
        %v545 = vadd.f32 %v496, %v540
        %s546 = scalar_lea.vmem %s0, 16
        %v547 = vld [vmem:[%s546] sm:$0xf]
        %v549 = vsel %vm346, %v547, 0
        %v552 = vsel %vm350, %v337, 0
        %554 = vmatprep.subr.bf16.mxu0 0
        %555 = vmatpush1.bf16.msra.mxu0 0
        %556 = vmatprep.subr.bf16.mxu0 0
        %557 = vmatpush1.bf16.msra.mxu0 0
        %558 = vmatprep.subr.bf16.mxu0 0
        %559 = vmatpush1.bf16.msra.mxu0 0
        %560 = vmatprep.subr.bf16.mxu0 0
        %561 = vmatpush1.bf16.msra.mxu0 0
        %562 = vmatprep.subr.bf16.mxu0 0
        %563 = vmatpush1.bf16.msra.mxu0 0
        %564 = vmatprep.subr.bf16.mxu0 0
        %565 = vmatpush1.bf16.msra.mxu0 0
        %566 = vmatprep.subr.bf16.mxu0 0
        %567 = vmatpush1.bf16.msra.mxu0 0
        %568 = vmatprep.subr.bf16.mxu0 0
        %569 = vmatpush1.bf16.msra.mxu0 %v552
        %570 = vmatprep.subr.bf16.mxu0 0
        %571 = vmatpush2.bf16.msra.mxu0 0
        %572 = vmatprep.subr.bf16.mxu0 0
        %573 = vmatpush2.bf16.msra.mxu0 0
        %574 = vmatprep.subr.bf16.mxu0 0
        %575 = vmatpush2.bf16.msra.mxu0 0
        %576 = vmatprep.subr.bf16.mxu0 0
        %577 = vmatpush2.bf16.msra.mxu0 0
        %578 = vmatprep.subr.bf16.mxu0 0
        %579 = vmatpush2.bf16.msra.mxu0 0
        %580 = vmatprep.subr.bf16.mxu0 0
        %581 = vmatpush2.bf16.msra.mxu0 0
        %582 = vmatprep.subr.bf16.mxu0 0
        %583 = vmatpush2.bf16.msra.mxu0 0
        %584 = vmatprep.subr.bf16.mxu0 0
        %585 = vmatpush2.bf16.msra.mxu0 0
        %586 = vmatprep.mubr.bf16.mxu0 0
        %587 = vmatmul.mubr.bf16.gmra.mxu0 %v549
        %v588 = vpop.f32.mrf.mxu0
        %v589 = vadd.f32 0.0, %v588
        %v590 = vpop.f32.mrf.mxu0
        %v591 = vpop.f32.mrf.mxu0
        %v592 = vpop.f32.mrf.mxu0
        %593 = vdwg.mxu0
        %v594 = vadd.f32 %v545, %v589
        %s595 = scalar_lea.vmem %s0, 20
        %v596 = vld [vmem:[%s595] sm:$0xf]
        %599 = vrot.lane.b32.xlu0 %v335, 127
        %v600 = vpop.permute.xlu0 %599
        %601 = vrot.lane.b32.xlu0 %v342, 127
        %v602 = vpop.permute.xlu0 %601
        %v603 = vsel %vm448, %v600, %v602
        %v605 = vsel %vm346, %v596, 0
        %v608 = vsel %vm350, %v603, 0
        %610 = vmatprep.subr.bf16.mxu0 0
        %611 = vmatpush1.bf16.msra.mxu0 0
        %612 = vmatprep.subr.bf16.mxu0 0
        %613 = vmatpush1.bf16.msra.mxu0 0
        %614 = vmatprep.subr.bf16.mxu0 0
        %615 = vmatpush1.bf16.msra.mxu0 0
        %616 = vmatprep.subr.bf16.mxu0 0
        %617 = vmatpush1.bf16.msra.mxu0 0
        %618 = vmatprep.subr.bf16.mxu0 0
        %619 = vmatpush1.bf16.msra.mxu0 0
        %620 = vmatprep.subr.bf16.mxu0 0
        %621 = vmatpush1.bf16.msra.mxu0 0
        %622 = vmatprep.subr.bf16.mxu0 0
        %623 = vmatpush1.bf16.msra.mxu0 0
        %624 = vmatprep.subr.bf16.mxu0 0
        %625 = vmatpush1.bf16.msra.mxu0 %v608
        %626 = vmatprep.subr.bf16.mxu0 0
        %627 = vmatpush2.bf16.msra.mxu0 0
        %628 = vmatprep.subr.bf16.mxu0 0
        %629 = vmatpush2.bf16.msra.mxu0 0
        %630 = vmatprep.subr.bf16.mxu0 0
        %631 = vmatpush2.bf16.msra.mxu0 0
        %632 = vmatprep.subr.bf16.mxu0 0
        %633 = vmatpush2.bf16.msra.mxu0 0
        %634 = vmatprep.subr.bf16.mxu0 0
        %635 = vmatpush2.bf16.msra.mxu0 0
        %636 = vmatprep.subr.bf16.mxu0 0
        %637 = vmatpush2.bf16.msra.mxu0 0
        %638 = vmatprep.subr.bf16.mxu0 0
        %639 = vmatpush2.bf16.msra.mxu0 0
        %640 = vmatprep.subr.bf16.mxu0 0
        %641 = vmatpush2.bf16.msra.mxu0 0
        %642 = vmatprep.mubr.bf16.mxu0 0
        %643 = vmatmul.mubr.bf16.gmra.mxu0 %v605
        %v644 = vpop.f32.mrf.mxu0
        %v645 = vadd.f32 0.0, %v644
        %v646 = vpop.f32.mrf.mxu0
        %v647 = vpop.f32.mrf.mxu0
        %v648 = vpop.f32.mrf.mxu0
        %649 = vdwg.mxu0
        %v650 = vadd.f32 %v594, %v645
        %s651 = scalar_lea.vmem %s0, 24
        %v652 = vld [vmem:[%s651] sm:$0xf]
        %653 = vrot.lane.b32.xlu0 %v331, 119
        %v654 = vpop.permute.xlu0 %653
        %655 = vrot.lane.b32.xlu0 %v338, 119
        %v656 = vpop.permute.xlu0 %655
        %vm657 = vcmask 973824
        %v658 = vsel %vm657, %v654, %v656
        %v660 = vsel %vm346, %v652, 0
        %v663 = vsel %vm350, %v658, 0
        %665 = vmatprep.subr.bf16.mxu0 0
        %666 = vmatpush1.bf16.msra.mxu0 0
        %667 = vmatprep.subr.bf16.mxu0 0
        %668 = vmatpush1.bf16.msra.mxu0 0
        %669 = vmatprep.subr.bf16.mxu0 0
        %670 = vmatpush1.bf16.msra.mxu0 0
        %671 = vmatprep.subr.bf16.mxu0 0
        %672 = vmatpush1.bf16.msra.mxu0 0
        %673 = vmatprep.subr.bf16.mxu0 0
        %674 = vmatpush1.bf16.msra.mxu0 0
        %675 = vmatprep.subr.bf16.mxu0 0
        %676 = vmatpush1.bf16.msra.mxu0 0
        %677 = vmatprep.subr.bf16.mxu0 0
        %678 = vmatpush1.bf16.msra.mxu0 0
        %679 = vmatprep.subr.bf16.mxu0 0
        %680 = vmatpush1.bf16.msra.mxu0 %v663
        %681 = vmatprep.subr.bf16.mxu0 0
        %682 = vmatpush2.bf16.msra.mxu0 0
        %683 = vmatprep.subr.bf16.mxu0 0
        %684 = vmatpush2.bf16.msra.mxu0 0
        %685 = vmatprep.subr.bf16.mxu0 0
        %686 = vmatpush2.bf16.msra.mxu0 0
        %687 = vmatprep.subr.bf16.mxu0 0
        %688 = vmatpush2.bf16.msra.mxu0 0
        %689 = vmatprep.subr.bf16.mxu0 0
        %690 = vmatpush2.bf16.msra.mxu0 0
        %691 = vmatprep.subr.bf16.mxu0 0
        %692 = vmatpush2.bf16.msra.mxu0 0
        %693 = vmatprep.subr.bf16.mxu0 0
        %694 = vmatpush2.bf16.msra.mxu0 0
        %695 = vmatprep.subr.bf16.mxu0 0
        %696 = vmatpush2.bf16.msra.mxu0 0
        %697 = vmatprep.mubr.bf16.mxu0 0
        %698 = vmatmul.mubr.bf16.gmra.mxu0 %v660
        %v699 = vpop.f32.mrf.mxu0
        %v700 = vadd.f32 0.0, %v699
        %v701 = vpop.f32.mrf.mxu0
        %v702 = vpop.f32.mrf.mxu0
        %v703 = vpop.f32.mrf.mxu0
        %704 = vdwg.mxu0
        %v705 = vadd.f32 %v650, %v700
        %s706 = scalar_lea.vmem %s0, 28
        %v707 = vld [vmem:[%s706] sm:$0xf]
        %710 = vrot.lane.b32.xlu0 %v333, 119
        %v711 = vpop.permute.xlu0 %710
        %712 = vrot.lane.b32.xlu0 %v340, 119
        %v713 = vpop.permute.xlu0 %712
        %v714 = vsel %vm657, %v711, %v713
        %v716 = vsel %vm346, %v707, 0
        %v719 = vsel %vm350, %v714, 0
        %721 = vmatprep.subr.bf16.mxu0 0
        %722 = vmatpush1.bf16.msra.mxu0 0
        %723 = vmatprep.subr.bf16.mxu0 0
        %724 = vmatpush1.bf16.msra.mxu0 0
        %725 = vmatprep.subr.bf16.mxu0 0
        %726 = vmatpush1.bf16.msra.mxu0 0
        %727 = vmatprep.subr.bf16.mxu0 0
        %728 = vmatpush1.bf16.msra.mxu0 0
        %729 = vmatprep.subr.bf16.mxu0 0
        %730 = vmatpush1.bf16.msra.mxu0 0
        %731 = vmatprep.subr.bf16.mxu0 0
        %732 = vmatpush1.bf16.msra.mxu0 0
        %733 = vmatprep.subr.bf16.mxu0 0
        %734 = vmatpush1.bf16.msra.mxu0 0
        %735 = vmatprep.subr.bf16.mxu0 0
        %736 = vmatpush1.bf16.msra.mxu0 %v719
        %737 = vmatprep.subr.bf16.mxu0 0
        %738 = vmatpush2.bf16.msra.mxu0 0
        %739 = vmatprep.subr.bf16.mxu0 0
        %740 = vmatpush2.bf16.msra.mxu0 0
        %741 = vmatprep.subr.bf16.mxu0 0
        %742 = vmatpush2.bf16.msra.mxu0 0
        %743 = vmatprep.subr.bf16.mxu0 0
        %744 = vmatpush2.bf16.msra.mxu0 0
        %745 = vmatprep.subr.bf16.mxu0 0
        %746 = vmatpush2.bf16.msra.mxu0 0
        %747 = vmatprep.subr.bf16.mxu0 0
        %748 = vmatpush2.bf16.msra.mxu0 0
        %749 = vmatprep.subr.bf16.mxu0 0
        %750 = vmatpush2.bf16.msra.mxu0 0
        %751 = vmatprep.subr.bf16.mxu0 0
        %752 = vmatpush2.bf16.msra.mxu0 0
        %753 = vmatprep.mubr.bf16.mxu0 0
        %754 = vmatmul.mubr.bf16.gmra.mxu0 %v716
        %v755 = vpop.f32.mrf.mxu0
        %v756 = vadd.f32 0.0, %v755
        %v757 = vpop.f32.mrf.mxu0
        %v758 = vpop.f32.mrf.mxu0
        %v759 = vpop.f32.mrf.mxu0
        %760 = vdwg.mxu0
        %v761 = vadd.f32 %v705, %v756
        %s762 = scalar_lea.vmem %s0, 32
        %v763 = vld [vmem:[%s762] sm:$0xf]
        %764 = vrot.lane.b32.xlu0 %v331, 118
        %v765 = vpop.permute.xlu0 %764
        %766 = vrot.lane.b32.xlu0 %v338, 118
        %v767 = vpop.permute.xlu0 %766
        %vm768 = vcmask 965632
        %v769 = vsel %vm768, %v765, %v767
        %v771 = vsel %vm346, %v763, 0
        %v774 = vsel %vm350, %v769, 0
        %776 = vmatprep.subr.bf16.mxu0 0
        %777 = vmatpush1.bf16.msra.mxu0 0
        %778 = vmatprep.subr.bf16.mxu0 0
        %779 = vmatpush1.bf16.msra.mxu0 0
        %780 = vmatprep.subr.bf16.mxu0 0
        %781 = vmatpush1.bf16.msra.mxu0 0
        %782 = vmatprep.subr.bf16.mxu0 0
        %783 = vmatpush1.bf16.msra.mxu0 0
        %784 = vmatprep.subr.bf16.mxu0 0
        %785 = vmatpush1.bf16.msra.mxu0 0
        %786 = vmatprep.subr.bf16.mxu0 0
        %787 = vmatpush1.bf16.msra.mxu0 0
        %788 = vmatprep.subr.bf16.mxu0 0
        %789 = vmatpush1.bf16.msra.mxu0 0
        %790 = vmatprep.subr.bf16.mxu0 0
        %791 = vmatpush1.bf16.msra.mxu0 %v774
        %792 = vmatprep.subr.bf16.mxu0 0
        %793 = vmatpush2.bf16.msra.mxu0 0
        %794 = vmatprep.subr.bf16.mxu0 0
        %795 = vmatpush2.bf16.msra.mxu0 0
        %796 = vmatprep.subr.bf16.mxu0 0
        %797 = vmatpush2.bf16.msra.mxu0 0
        %798 = vmatprep.subr.bf16.mxu0 0
        %799 = vmatpush2.bf16.msra.mxu0 0
        %800 = vmatprep.subr.bf16.mxu0 0
        %801 = vmatpush2.bf16.msra.mxu0 0
        %802 = vmatprep.subr.bf16.mxu0 0
        %803 = vmatpush2.bf16.msra.mxu0 0
        %804 = vmatprep.subr.bf16.mxu0 0
        %805 = vmatpush2.bf16.msra.mxu0 0
        %806 = vmatprep.subr.bf16.mxu0 0
        %807 = vmatpush2.bf16.msra.mxu0 0
        %808 = vmatprep.mubr.bf16.mxu0 0
        %809 = vmatmul.mubr.bf16.gmra.mxu0 %v771
        %v810 = vpop.f32.mrf.mxu0
        %v811 = vadd.f32 0.0, %v810
        %v812 = vpop.f32.mrf.mxu0
        %v813 = vpop.f32.mrf.mxu0
        %v814 = vpop.f32.mrf.mxu0
        %815 = vdwg.mxu0
        %v816 = vadd.f32 %v761, %v811
        %v817 = vld [vmem:[%s1] sm:$0xff]
        %819 = vset.pattern.permute.xlu0 0
        %820 = vperm.xlu0 %819, %v817
        %v821 = vpop.permute.xlu0 %820
        %v823 = vadd.f32 %v816, %v821
        %v824 = vmax.f32 %v823, 0.0
        %v825 = vpack.c.bf16 %v824, %v824
        %826 = vst [vmem:[%s329] sm:$0xf] %v825
        %p827 = scmp.lt.s32.totalorder %s15, 1
        %s828 = scalar_select %p827, %s15, 1
        %s829 = smul.addr %s828, 4
        %s830 = scalar_lea.vmem %s4, %s829
        // Predicated region
        $region119: #{backbone_fpn_forward.9} parent=109 // pred_check
          %p831 = pneg %p129
        $region120: #{backbone_fpn_forward.9} parent=109 // pred_check_branch
          %833 = sbr.rel (%p831) target = $region122
        $region121: #{backbone_fpn_forward.9} parent=109 // pred_region
          _
        $region122: #{backbone_fpn_forward.9} parent=109 // pred_fallthru
          _
      $region110: #{backbone_fpn_forward.9} parent=5 // pred_fallthru
        _
      %p834 = scmp.le.s32.totalorder 2, %s10
      // Predicated region
      $region123: #{backbone_fpn_forward.9} parent=5 // pred_check
        %p835 = pneg %p834
      $region124: #{backbone_fpn_forward.9} parent=5 // pred_check_branch
        %837 = sbr.rel (%p835) target = $region126
      $region125: #{backbone_fpn_forward.9} parent=5 // pred_region
        %s838 = ssub.s32 %s10, 2
        // Predicated region
        $region127: #{backbone_fpn_forward.9} parent=125 // pred_check
          %p839 = pneg %p135
        $region128: #{backbone_fpn_forward.9} parent=125 // pred_check_branch
          %841 = sbr.rel (%p839) target = $region130
        $region129: #{backbone_fpn_forward.9} parent=125 // pred_region
          %p842 = scmp.lt.s32.totalorder %s16, 1
          %s843 = scalar_select %p842, %s16, 1
          %s844 = smul.addr %s843, 4
          %s845 = scalar_lea.vmem %s4, %s844
        $region130: #{backbone_fpn_forward.9} parent=125 // pred_fallthru
          _
      $region126: #{backbone_fpn_forward.9} parent=5 // pred_fallthru
        _
    $region6: #{backbone_fpn_forward.9} parent=1 // loop_footer
      %s14 = sadd.s32 1, %s10
    $region7: #{backbone_fpn_forward.9} parent=1 // loop_footer_branch
      %9 = sbr.rel target = $region3
    $region8: #{backbone_fpn_forward.9} parent=1 // loop_exit
      _

// kernel: backbone_fpn_forward.10
$region0: #{backbone_fpn_forward.10}
  #allocation0 [shape = 'u32[]', space=smem, size = 0x4, offset = 0x4, fixed_abs, tag = 'smem constant byte address 0x4 - core index']
  #allocation1 [shape = 'u32[144,128]{1,0:T(1,128)}', space=vmem, size = 0x12000, scoped, tag = 'internal scratch']
  %s0 = inlined_call_operand.vmem [shape: bf16[9,16,8], index: 0, kind: input, shape index: {}]
  %s1 = inlined_call_operand.vmem [shape: f32[16,1], index: 1, kind: input, shape index: {}]
  %s2 = inlined_call_operand.vmem [shape: bf16[4,8,256], index: 2, kind: input, shape index: {}, may-alias: {2,3}]
  %s3 = inlined_call_operand.vmem [shape: bf16[4,8,256], index: 3, kind: input, shape index: {}, may-alias: {2,3}]
  %s4 = inlined_call_operand.vmem [shape: bf16[16,128], index: 4, kind: output, shape index: {}]
  %s5 = sld [smem:[#allocation0]]
  $region108: #{backbone_fpn_forward.10} parent=0
    _
  %s7 = ssub.s32 1, %s5
  %s8 = scalar_select 0, %s7, %s5
  $region1: #{backbone_fpn_forward.10} parent=0
    #allocation2 [shape = 'u8[8192]{0}', space=vmem, size = 0x2000, scoped, tag = 'input window, operand 2, single buffered']
    #allocation3 [shape = 'u8[8192]{0}', space=vmem, size = 0x2000, scoped, tag = 'input window, operand 3, single buffered']
    // Predicated region
    $region2: #{backbone_fpn_forward.10} parent=1 // pred_check
      _
    $region3: #{backbone_fpn_forward.10} parent=1 // pred_check_branch
      %10 = sbr.rel (0) target = $region5
    $region4: #{backbone_fpn_forward.10} parent=1 // pred_region
      _
    $region5: #{backbone_fpn_forward.10} parent=1 // pred_fallthru
      _
    // Predicated region
    $region6: #{backbone_fpn_forward.10} parent=1 // pred_check
      _
    $region7: #{backbone_fpn_forward.10} parent=1 // pred_check_branch
      %12 = sbr.rel (0) target = $region9
    $region8: #{backbone_fpn_forward.10} parent=1 // pred_region
      _
    $region9: #{backbone_fpn_forward.10} parent=1 // pred_fallthru
      _
    // Predicated region
    $region10: #{backbone_fpn_forward.10} parent=1 // pred_check
      _
    $region11: #{backbone_fpn_forward.10} parent=1 // pred_check_branch
      %14 = sbr.rel (0) target = $region13
    $region12: #{backbone_fpn_forward.10} parent=1 // pred_region
      // Predicated region
      $region14: #{backbone_fpn_forward.10} parent=12 // pred_check
        _
      $region15: #{backbone_fpn_forward.10} parent=12 // pred_check_branch
        %16 = sbr.rel (0) target = $region17
      $region16: #{backbone_fpn_forward.10} parent=12 // pred_region
        // Predicated region
        $region18: #{backbone_fpn_forward.10} parent=16 // pred_check
          _
        $region19: #{backbone_fpn_forward.10} parent=16 // pred_check_branch
          %18 = sbr.rel target = $region21
        $region20: #{backbone_fpn_forward.10} parent=16 // pred_region
          // Predicated region
          $region33: #{backbone_fpn_forward.10} parent=20 // pred_check
            _
          $region34: #{backbone_fpn_forward.10} parent=20 // pred_check_branch
            %40 = sbr.rel (0) target = $region36
          $region35: #{backbone_fpn_forward.10} parent=20 // pred_region
            loop: start=0, step=1, limit=1
            $region37: #{backbone_fpn_forward.10} parent=35 // loop_pre_header
              _
            $region38: #{backbone_fpn_forward.10} parent=35 // loop_header
              %s42 = sphi 0, %s46
              %p43 = scmp.ge.s32.totalorder %s42, 1
              %s47 = sphi %s2, %s2
              %s48 = sphi [#allocation2], [#allocation2]
            $region39: #{backbone_fpn_forward.10} parent=35 // loop_header_branch
              %45 = sbr.rel (%p43) target = $region43
            $region40: #{backbone_fpn_forward.10} parent=35 // loop_body
              _
            $region41: #{backbone_fpn_forward.10} parent=35 // loop_footer
              %s46 = sadd.s32 1, %s42
            $region42: #{backbone_fpn_forward.10} parent=35 // loop_footer_branch
              %41 = sbr.rel target = $region38
            $region43: #{backbone_fpn_forward.10} parent=35 // loop_exit
              _
            %s50 = ssub.s32 16, 1
            loop: start=0, step=1, limit=1
            $region44: #{backbone_fpn_forward.10} parent=35 // loop_pre_header
              _
            $region45: #{backbone_fpn_forward.10} parent=35 // loop_header
              %s52 = sphi 0, %s56
              %p53 = scmp.ge.s32.totalorder %s52, 1
              %s57 = sphi %s2, %s2
              %s58 = sphi [#allocation2], [#allocation2]
            $region46: #{backbone_fpn_forward.10} parent=35 // loop_header_branch
              %55 = sbr.rel (%p53) target = $region50
            $region47: #{backbone_fpn_forward.10} parent=35 // loop_body
              %v59 = vld [vmem:[%s57] sm:%s50]
              %60 = vst [vmem:[%s58] sm:%s50] %v59
              %v61 = vld [vmem:[%s57 + $0x8] sm:%s50]
              %62 = vst [vmem:[%s58 + $0x4] sm:%s50] %v61
              %v63 = vld [vmem:[%s57 + $0x10] sm:%s50]
              %64 = vst [vmem:[%s58 + $0x8] sm:%s50] %v63
              %v65 = vld [vmem:[%s57 + $0x18] sm:%s50]
              %66 = vst [vmem:[%s58 + $0xc] sm:%s50] %v65
            $region48: #{backbone_fpn_forward.10} parent=35 // loop_footer
              %s56 = sadd.s32 1, %s52
            $region49: #{backbone_fpn_forward.10} parent=35 // loop_footer_branch
              %51 = sbr.rel target = $region45
            $region50: #{backbone_fpn_forward.10} parent=35 // loop_exit
              _
          $region36: #{backbone_fpn_forward.10} parent=20 // pred_fallthru
            _
        $region21: #{backbone_fpn_forward.10} parent=16 // pred_fallthru
          _
        // Predicated region
        $region22: #{backbone_fpn_forward.10} parent=16 // pred_check
          _
        $region23: #{backbone_fpn_forward.10} parent=16 // pred_check_branch
          %20 = sbr.rel (0) target = $region25
        $region24: #{backbone_fpn_forward.10} parent=16 // pred_region
          %s22 = ssub.s32 16, 1
          loop: start=0, step=1, limit=1
          $region26: #{backbone_fpn_forward.10} parent=24 // loop_pre_header
            _
          $region27: #{backbone_fpn_forward.10} parent=24 // loop_header
            %s24 = sphi 0, %s28
            %p25 = scmp.ge.s32.totalorder %s24, 1
            %s29 = sphi %s2, %s2
            %s30 = sphi [#allocation2], [#allocation2]
          $region28: #{backbone_fpn_forward.10} parent=24 // loop_header_branch
            %27 = sbr.rel (%p25) target = $region32
          $region29: #{backbone_fpn_forward.10} parent=24 // loop_body
            %v31 = vld [vmem:[%s29] sm:%s22]
            %32 = vst [vmem:[%s30] sm:%s22] %v31
            %v33 = vld [vmem:[%s29 + $0x8] sm:%s22]
            %34 = vst [vmem:[%s30 + $0x4] sm:%s22] %v33
            %v35 = vld [vmem:[%s29 + $0x10] sm:%s22]
            %36 = vst [vmem:[%s30 + $0x8] sm:%s22] %v35
            %v37 = vld [vmem:[%s29 + $0x18] sm:%s22]
            %38 = vst [vmem:[%s30 + $0xc] sm:%s22] %v37
          $region30: #{backbone_fpn_forward.10} parent=24 // loop_footer
            %s28 = sadd.s32 1, %s24
          $region31: #{backbone_fpn_forward.10} parent=24 // loop_footer_branch
            %23 = sbr.rel target = $region27
          $region32: #{backbone_fpn_forward.10} parent=24 // loop_exit
            _
        $region25: #{backbone_fpn_forward.10} parent=16 // pred_fallthru
          _
      $region17: #{backbone_fpn_forward.10} parent=12 // pred_fallthru
        _
      %67 = vnop
    $region13: #{backbone_fpn_forward.10} parent=1 // pred_fallthru
      _
    // Predicated region
    $region51: #{backbone_fpn_forward.10} parent=1 // pred_check
      _
    $region52: #{backbone_fpn_forward.10} parent=1 // pred_check_branch
      %69 = sbr.rel (0) target = $region54
    $region53: #{backbone_fpn_forward.10} parent=1 // pred_region
      %s70 = sadd.s32 0, 1
      %s71 = smul.addr %s70, 4
      %s72 = scalar_lea.vmem %s3, %s71
      // Predicated region
      $region55: #{backbone_fpn_forward.10} parent=53 // pred_check
        _
      $region56: #{backbone_fpn_forward.10} parent=53 // pred_check_branch
        %74 = sbr.rel (0) target = $region58
      $region57: #{backbone_fpn_forward.10} parent=53 // pred_region
        // Predicated region
        $region59: #{backbone_fpn_forward.10} parent=57 // pred_check
          _
        $region60: #{backbone_fpn_forward.10} parent=57 // pred_check_branch
          %76 = sbr.rel target = $region62
        $region61: #{backbone_fpn_forward.10} parent=57 // pred_region
          // Predicated region
          $region74: #{backbone_fpn_forward.10} parent=61 // pred_check
            _
          $region75: #{backbone_fpn_forward.10} parent=61 // pred_check_branch
            %98 = sbr.rel (0) target = $region77
          $region76: #{backbone_fpn_forward.10} parent=61 // pred_region
            loop: start=0, step=1, limit=1
            $region78: #{backbone_fpn_forward.10} parent=76 // loop_pre_header
              _
            $region79: #{backbone_fpn_forward.10} parent=76 // loop_header
              %s100 = sphi 0, %s104
              %p101 = scmp.ge.s32.totalorder %s100, 1
              %s105 = sphi %s72, %s72
              %s106 = sphi [#allocation3], [#allocation3]
            $region80: #{backbone_fpn_forward.10} parent=76 // loop_header_branch
              %103 = sbr.rel (%p101) target = $region84
            $region81: #{backbone_fpn_forward.10} parent=76 // loop_body
              _
            $region82: #{backbone_fpn_forward.10} parent=76 // loop_footer
              %s104 = sadd.s32 1, %s100
            $region83: #{backbone_fpn_forward.10} parent=76 // loop_footer_branch
              %99 = sbr.rel target = $region79
            $region84: #{backbone_fpn_forward.10} parent=76 // loop_exit
              _
            %s108 = ssub.s32 16, 1
            loop: start=0, step=1, limit=1
            $region85: #{backbone_fpn_forward.10} parent=76 // loop_pre_header
              _
            $region86: #{backbone_fpn_forward.10} parent=76 // loop_header
              %s110 = sphi 0, %s114
              %p111 = scmp.ge.s32.totalorder %s110, 1
              %s115 = sphi %s72, %s72
              %s116 = sphi [#allocation3], [#allocation3]
            $region87: #{backbone_fpn_forward.10} parent=76 // loop_header_branch
              %113 = sbr.rel (%p111) target = $region91
            $region88: #{backbone_fpn_forward.10} parent=76 // loop_body
              %v117 = vld [vmem:[%s115] sm:%s108]
              %118 = vst [vmem:[%s116] sm:%s108] %v117
              %v119 = vld [vmem:[%s115 + $0x8] sm:%s108]
              %120 = vst [vmem:[%s116 + $0x4] sm:%s108] %v119
              %v121 = vld [vmem:[%s115 + $0x10] sm:%s108]
              %122 = vst [vmem:[%s116 + $0x8] sm:%s108] %v121
              %v123 = vld [vmem:[%s115 + $0x18] sm:%s108]
              %124 = vst [vmem:[%s116 + $0xc] sm:%s108] %v123
            $region89: #{backbone_fpn_forward.10} parent=76 // loop_footer
              %s114 = sadd.s32 1, %s110
            $region90: #{backbone_fpn_forward.10} parent=76 // loop_footer_branch
              %109 = sbr.rel target = $region86
            $region91: #{backbone_fpn_forward.10} parent=76 // loop_exit
              _
          $region77: #{backbone_fpn_forward.10} parent=61 // pred_fallthru
            _
        $region62: #{backbone_fpn_forward.10} parent=57 // pred_fallthru
          _
        // Predicated region
        $region63: #{backbone_fpn_forward.10} parent=57 // pred_check
          _
        $region64: #{backbone_fpn_forward.10} parent=57 // pred_check_branch
          %78 = sbr.rel (0) target = $region66
        $region65: #{backbone_fpn_forward.10} parent=57 // pred_region
          %s80 = ssub.s32 16, 1
          loop: start=0, step=1, limit=1
          $region67: #{backbone_fpn_forward.10} parent=65 // loop_pre_header
            _
          $region68: #{backbone_fpn_forward.10} parent=65 // loop_header
            %s82 = sphi 0, %s86
            %p83 = scmp.ge.s32.totalorder %s82, 1
            %s87 = sphi %s72, %s72
            %s88 = sphi [#allocation3], [#allocation3]
          $region69: #{backbone_fpn_forward.10} parent=65 // loop_header_branch
            %85 = sbr.rel (%p83) target = $region73
          $region70: #{backbone_fpn_forward.10} parent=65 // loop_body
            %v89 = vld [vmem:[%s87] sm:%s80]
            %90 = vst [vmem:[%s88] sm:%s80] %v89
            %v91 = vld [vmem:[%s87 + $0x8] sm:%s80]
            %92 = vst [vmem:[%s88 + $0x4] sm:%s80] %v91
            %v93 = vld [vmem:[%s87 + $0x10] sm:%s80]
            %94 = vst [vmem:[%s88 + $0x8] sm:%s80] %v93
            %v95 = vld [vmem:[%s87 + $0x18] sm:%s80]
            %96 = vst [vmem:[%s88 + $0xc] sm:%s80] %v95
          $region71: #{backbone_fpn_forward.10} parent=65 // loop_footer
            %s86 = sadd.s32 1, %s82
          $region72: #{backbone_fpn_forward.10} parent=65 // loop_footer_branch
            %81 = sbr.rel target = $region68
          $region73: #{backbone_fpn_forward.10} parent=65 // loop_exit
            _
        $region66: #{backbone_fpn_forward.10} parent=57 // pred_fallthru
          _
      $region58: #{backbone_fpn_forward.10} parent=53 // pred_fallthru
        _
      %125 = vnop
    $region54: #{backbone_fpn_forward.10} parent=1 // pred_fallthru
      _
    // Predicated region
    $region92: #{backbone_fpn_forward.10} parent=1 // pred_check
      _
    $region93: #{backbone_fpn_forward.10} parent=1 // pred_check_branch
      %127 = sbr.rel (0) target = $region95
    $region94: #{backbone_fpn_forward.10} parent=1 // pred_region
      _
    $region95: #{backbone_fpn_forward.10} parent=1 // pred_fallthru
      _
    // Predicated region
    $region96: #{backbone_fpn_forward.10} parent=1 // pred_check
      _
    $region97: #{backbone_fpn_forward.10} parent=1 // pred_check_branch
      %129 = sbr.rel (0) target = $region99
    $region98: #{backbone_fpn_forward.10} parent=1 // pred_region
      _
    $region99: #{backbone_fpn_forward.10} parent=1 // pred_fallthru
      _
    %s130 = sadd.s32 0, 1
    %v132 = vld [vmem:[#allocation2] sm:$0xf]
    %s133 = scalar_lea.vmem [#allocation2], 4
    %v134 = vld [vmem:[%s133] sm:$0xf]
    %s135 = scalar_lea.vmem [#allocation2], 8
    %v136 = vld [vmem:[%s135] sm:$0xf]
    %s137 = scalar_lea.vmem [#allocation2], 12
    %v138 = vld [vmem:[%s137] sm:$0xf]
    %v139 = vld [vmem:[#allocation3] sm:$0xf]
    %s140 = scalar_lea.vmem [#allocation3], 4
    %v141 = vld [vmem:[%s140] sm:$0xf]
    %s142 = scalar_lea.vmem [#allocation3], 8
    %v143 = vld [vmem:[%s142] sm:$0xf]
    %v144 = vld [vmem:[%s0] sm:$0xf]
    %v145 = vld [vmem:[%s0 + $0x4] sm:$0xf]
    %s146 = scalar_lea.vmem %s0, 8
    %v147 = vld [vmem:[%s146] sm:$0xf]
    %v148 = vld [vmem:[%s146 + $0x4] sm:$0xf]
    %v151 = vunpack.c.l.b16 %v147
    %v152 = vunpack.c.l.b16 %v148
    %v153 = vpack.c.b16 %v152, %v151
    %vm154 = vcmask 64512
    %v156 = vsel %vm154, %v153, 0
    %vm158 = vcmask 1043456
    %v160 = vsel %vm158, %v134, 0
    %162 = vmatprep.subr.bf16.mxu0 0
    %163 = vmatpush1.bf16.msra.mxu0 0
    %164 = vmatprep.subr.bf16.mxu0 0
    %165 = vmatpush1.bf16.msra.mxu0 0
    %166 = vmatprep.subr.bf16.mxu0 0
    %167 = vmatpush1.bf16.msra.mxu0 0
    %168 = vmatprep.subr.bf16.mxu0 0
    %169 = vmatpush1.bf16.msra.mxu0 0
    %170 = vmatprep.subr.bf16.mxu0 0
    %171 = vmatpush1.bf16.msra.mxu0 0
    %172 = vmatprep.subr.bf16.mxu0 0
    %173 = vmatpush1.bf16.msra.mxu0 0
    %174 = vmatprep.subr.bf16.mxu0 0
    %175 = vmatpush1.bf16.msra.mxu0 0
    %176 = vmatprep.subr.bf16.mxu0 0
    %177 = vmatpush1.bf16.msra.mxu0 %v160
    %178 = vmatprep.subr.bf16.mxu0 0
    %179 = vmatpush2.bf16.msra.mxu0 0
    %180 = vmatprep.subr.bf16.mxu0 0
    %181 = vmatpush2.bf16.msra.mxu0 0
    %182 = vmatprep.subr.bf16.mxu0 0
    %183 = vmatpush2.bf16.msra.mxu0 0
    %184 = vmatprep.subr.bf16.mxu0 0
    %185 = vmatpush2.bf16.msra.mxu0 0
    %186 = vmatprep.subr.bf16.mxu0 0
    %187 = vmatpush2.bf16.msra.mxu0 0
    %188 = vmatprep.subr.bf16.mxu0 0
    %189 = vmatpush2.bf16.msra.mxu0 0
    %190 = vmatprep.subr.bf16.mxu0 0
    %191 = vmatpush2.bf16.msra.mxu0 0
    %192 = vmatprep.subr.bf16.mxu0 0
    %193 = vmatpush2.bf16.msra.mxu0 0
    %194 = vmatprep.mubr.bf16.mxu0 0
    %195 = vmatmul.mubr.bf16.gmra.mxu0 %v156
    %v196 = vpop.f32.mrf.mxu0
    %v197 = vadd.f32 0.0, %v196
    %v198 = vpop.f32.mrf.mxu0
    %v199 = vpop.f32.mrf.mxu0
    %v200 = vadd.f32 0.0, %v199
    %v201 = vpop.f32.mrf.mxu0
    %202 = vdwg.mxu0
    %v205 = vunpack.c.l.b16 %v144
    %v206 = vunpack.c.l.b16 %v145
    %v207 = vpack.c.b16 %v206, %v205
    %v209 = vsel %vm154, %v207, 0
    %v212 = vsel %vm158, %v132, 0
    %214 = vmatprep.subr.bf16.mxu0 0
    %215 = vmatpush1.bf16.msra.mxu0 0
    %216 = vmatprep.subr.bf16.mxu0 0
    %217 = vmatpush1.bf16.msra.mxu0 0
    %218 = vmatprep.subr.bf16.mxu0 0
    %219 = vmatpush1.bf16.msra.mxu0 0
    %220 = vmatprep.subr.bf16.mxu0 0
    %221 = vmatpush1.bf16.msra.mxu0 0
    %222 = vmatprep.subr.bf16.mxu0 0
    %223 = vmatpush1.bf16.msra.mxu0 0
    %224 = vmatprep.subr.bf16.mxu0 0
    %225 = vmatpush1.bf16.msra.mxu0 0
    %226 = vmatprep.subr.bf16.mxu0 0
    %227 = vmatpush1.bf16.msra.mxu0 0
    %228 = vmatprep.subr.bf16.mxu0 0
    %229 = vmatpush1.bf16.msra.mxu0 %v212
    %230 = vmatprep.subr.bf16.mxu0 0
    %231 = vmatpush2.bf16.msra.mxu0 0
    %232 = vmatprep.subr.bf16.mxu0 0
    %233 = vmatpush2.bf16.msra.mxu0 0
    %234 = vmatprep.subr.bf16.mxu0 0
    %235 = vmatpush2.bf16.msra.mxu0 0
    %236 = vmatprep.subr.bf16.mxu0 0
    %237 = vmatpush2.bf16.msra.mxu0 0
    %238 = vmatprep.subr.bf16.mxu0 0
    %239 = vmatpush2.bf16.msra.mxu0 0
    %240 = vmatprep.subr.bf16.mxu0 0
    %241 = vmatpush2.bf16.msra.mxu0 0
    %242 = vmatprep.subr.bf16.mxu0 0
    %243 = vmatpush2.bf16.msra.mxu0 0
    %244 = vmatprep.subr.bf16.mxu0 0
    %245 = vmatpush2.bf16.msra.mxu0 0
    %246 = vmatprep.mubr.bf16.mxu0 0
    %247 = vmatmul.mubr.bf16.gmra.mxu0 %v209
    %v248 = vpop.f32.mrf.mxu0
    %v249 = vadd.f32 %v197, %v248
    %v250 = vpop.f32.mrf.mxu0
    %v251 = vpop.f32.mrf.mxu0
    %v252 = vadd.f32 %v200, %v251
    %v253 = vpop.f32.mrf.mxu0
    %254 = vdwg.mxu0
    %s255 = scalar_lea.vmem %s0, 16
    %v256 = vld [vmem:[%s255] sm:$0xf]
    %v257 = vld [vmem:[%s255 + $0x4] sm:$0xf]
    %v260 = vunpack.c.l.b16 %v256
    %v261 = vunpack.c.l.b16 %v257
    %v262 = vpack.c.b16 %v261, %v260
    %265 = vrot.lane.b32.xlu0 %v132, 127
    %v266 = vpop.permute.xlu0 %265
    %267 = vrot.lane.b32.xlu0 %v139, 127
    %v268 = vpop.permute.xlu0 %267
    %vm269 = vcmask 1039360
    %v270 = vsel %vm269, %v266, %v268
    %v272 = vsel %vm154, %v262, 0
    %v275 = vsel %vm158, %v270, 0
    %277 = vmatprep.subr.bf16.mxu0 0
    %278 = vmatpush1.bf16.msra.mxu0 0
    %279 = vmatprep.subr.bf16.mxu0 0
    %280 = vmatpush1.bf16.msra.mxu0 0
    %281 = vmatprep.subr.bf16.mxu0 0
    %282 = vmatpush1.bf16.msra.mxu0 0
    %283 = vmatprep.subr.bf16.mxu0 0
    %284 = vmatpush1.bf16.msra.mxu0 0
    %285 = vmatprep.subr.bf16.mxu0 0
    %286 = vmatpush1.bf16.msra.mxu0 0
    %287 = vmatprep.subr.bf16.mxu0 0
    %288 = vmatpush1.bf16.msra.mxu0 0
    %289 = vmatprep.subr.bf16.mxu0 0
    %290 = vmatpush1.bf16.msra.mxu0 0
    %291 = vmatprep.subr.bf16.mxu0 0
    %292 = vmatpush1.bf16.msra.mxu0 %v275
    %293 = vmatprep.subr.bf16.mxu0 0
    %294 = vmatpush2.bf16.msra.mxu0 0
    %295 = vmatprep.subr.bf16.mxu0 0
    %296 = vmatpush2.bf16.msra.mxu0 0
    %297 = vmatprep.subr.bf16.mxu0 0
    %298 = vmatpush2.bf16.msra.mxu0 0
    %299 = vmatprep.subr.bf16.mxu0 0
    %300 = vmatpush2.bf16.msra.mxu0 0
    %301 = vmatprep.subr.bf16.mxu0 0
    %302 = vmatpush2.bf16.msra.mxu0 0
    %303 = vmatprep.subr.bf16.mxu0 0
    %304 = vmatpush2.bf16.msra.mxu0 0
    %305 = vmatprep.subr.bf16.mxu0 0
    %306 = vmatpush2.bf16.msra.mxu0 0
    %307 = vmatprep.subr.bf16.mxu0 0
    %308 = vmatpush2.bf16.msra.mxu0 0
    %309 = vmatprep.mubr.bf16.mxu0 0
    %310 = vmatmul.mubr.bf16.gmra.mxu0 %v272
    %v311 = vpop.f32.mrf.mxu0
    %v312 = vadd.f32 0.0, %v311
    %v313 = vpop.f32.mrf.mxu0
    %v314 = vpop.f32.mrf.mxu0
    %v315 = vadd.f32 0.0, %v314
    %v316 = vpop.f32.mrf.mxu0
    %317 = vdwg.mxu0
    %v318 = vadd.f32 %v249, %v312
    %v319 = vadd.f32 %v252, %v315
    %s320 = scalar_lea.vmem %s0, 24
    %v321 = vld [vmem:[%s320] sm:$0xf]
    %v322 = vld [vmem:[%s320 + $0x4] sm:$0xf]
    %v325 = vunpack.c.l.b16 %v321
    %v326 = vunpack.c.l.b16 %v322
    %v327 = vpack.c.b16 %v326, %v325
    %v329 = vsel %vm154, %v327, 0
    %v332 = vsel %vm158, %v136, 0
    %334 = vmatprep.subr.bf16.mxu0 0
    %335 = vmatpush1.bf16.msra.mxu0 0
    %336 = vmatprep.subr.bf16.mxu0 0
    %337 = vmatpush1.bf16.msra.mxu0 0
    %338 = vmatprep.subr.bf16.mxu0 0
    %339 = vmatpush1.bf16.msra.mxu0 0
    %340 = vmatprep.subr.bf16.mxu0 0
    %341 = vmatpush1.bf16.msra.mxu0 0
    %342 = vmatprep.subr.bf16.mxu0 0
    %343 = vmatpush1.bf16.msra.mxu0 0
    %344 = vmatprep.subr.bf16.mxu0 0
    %345 = vmatpush1.bf16.msra.mxu0 0
    %346 = vmatprep.subr.bf16.mxu0 0
    %347 = vmatpush1.bf16.msra.mxu0 0
    %348 = vmatprep.subr.bf16.mxu0 0
    %349 = vmatpush1.bf16.msra.mxu0 %v332
    %350 = vmatprep.subr.bf16.mxu0 0
    %351 = vmatpush2.bf16.msra.mxu0 0
    %352 = vmatprep.subr.bf16.mxu0 0
    %353 = vmatpush2.bf16.msra.mxu0 0
    %354 = vmatprep.subr.bf16.mxu0 0
    %355 = vmatpush2.bf16.msra.mxu0 0
    %356 = vmatprep.subr.bf16.mxu0 0
    %357 = vmatpush2.bf16.msra.mxu0 0
    %358 = vmatprep.subr.bf16.mxu0 0
    %359 = vmatpush2.bf16.msra.mxu0 0
    %360 = vmatprep.subr.bf16.mxu0 0
    %361 = vmatpush2.bf16.msra.mxu0 0
    %362 = vmatprep.subr.bf16.mxu0 0
    %363 = vmatpush2.bf16.msra.mxu0 0
    %364 = vmatprep.subr.bf16.mxu0 0
    %365 = vmatpush2.bf16.msra.mxu0 0
    %366 = vmatprep.mubr.bf16.mxu0 0
    %367 = vmatmul.mubr.bf16.gmra.mxu0 %v329
    %v368 = vpop.f32.mrf.mxu0
    %v369 = vadd.f32 0.0, %v368
    %v370 = vpop.f32.mrf.mxu0
    %v371 = vpop.f32.mrf.mxu0
    %v372 = vadd.f32 0.0, %v371
    %v373 = vpop.f32.mrf.mxu0
    %374 = vdwg.mxu0
    %v375 = vadd.f32 %v318, %v369
    %v376 = vadd.f32 %v319, %v372
    %s377 = scalar_lea.vmem %s0, 32
    %v378 = vld [vmem:[%s377] sm:$0xf]
    %v379 = vld [vmem:[%s377 + $0x4] sm:$0xf]
    %v382 = vunpack.c.l.b16 %v378
    %v383 = vunpack.c.l.b16 %v379
    %v384 = vpack.c.b16 %v383, %v382
    %v386 = vsel %vm154, %v384, 0
    %v389 = vsel %vm158, %v138, 0
    %391 = vmatprep.subr.bf16.mxu0 0
    %392 = vmatpush1.bf16.msra.mxu0 0
    %393 = vmatprep.subr.bf16.mxu0 0
    %394 = vmatpush1.bf16.msra.mxu0 0
    %395 = vmatprep.subr.bf16.mxu0 0
    %396 = vmatpush1.bf16.msra.mxu0 0
    %397 = vmatprep.subr.bf16.mxu0 0
    %398 = vmatpush1.bf16.msra.mxu0 0
    %399 = vmatprep.subr.bf16.mxu0 0
    %400 = vmatpush1.bf16.msra.mxu0 0
    %401 = vmatprep.subr.bf16.mxu0 0
    %402 = vmatpush1.bf16.msra.mxu0 0
    %403 = vmatprep.subr.bf16.mxu0 0
    %404 = vmatpush1.bf16.msra.mxu0 0
    %405 = vmatprep.subr.bf16.mxu0 0
    %406 = vmatpush1.bf16.msra.mxu0 %v389
    %407 = vmatprep.subr.bf16.mxu0 0
    %408 = vmatpush2.bf16.msra.mxu0 0
    %409 = vmatprep.subr.bf16.mxu0 0
    %410 = vmatpush2.bf16.msra.mxu0 0
    %411 = vmatprep.subr.bf16.mxu0 0
    %412 = vmatpush2.bf16.msra.mxu0 0
    %413 = vmatprep.subr.bf16.mxu0 0
    %414 = vmatpush2.bf16.msra.mxu0 0
    %415 = vmatprep.subr.bf16.mxu0 0
    %416 = vmatpush2.bf16.msra.mxu0 0
    %417 = vmatprep.subr.bf16.mxu0 0
    %418 = vmatpush2.bf16.msra.mxu0 0
    %419 = vmatprep.subr.bf16.mxu0 0
    %420 = vmatpush2.bf16.msra.mxu0 0
    %421 = vmatprep.subr.bf16.mxu0 0
    %422 = vmatpush2.bf16.msra.mxu0 0
    %423 = vmatprep.mubr.bf16.mxu0 0
    %424 = vmatmul.mubr.bf16.gmra.mxu0 %v386
    %v425 = vpop.f32.mrf.mxu0
    %v426 = vadd.f32 0.0, %v425
    %v427 = vpop.f32.mrf.mxu0
    %v428 = vpop.f32.mrf.mxu0
    %v429 = vadd.f32 0.0, %v428
    %v430 = vpop.f32.mrf.mxu0
    %431 = vdwg.mxu0
    %v432 = vadd.f32 %v375, %v426
    %v433 = vadd.f32 %v376, %v429
    %s434 = scalar_lea.vmem %s0, 40
    %v435 = vld [vmem:[%s434] sm:$0xf]
    %v436 = vld [vmem:[%s434 + $0x4] sm:$0xf]
    %v439 = vunpack.c.l.b16 %v435
    %v440 = vunpack.c.l.b16 %v436
    %v441 = vpack.c.b16 %v440, %v439
    %444 = vrot.lane.b32.xlu0 %v136, 127
    %v445 = vpop.permute.xlu0 %444
    %446 = vrot.lane.b32.xlu0 %v143, 127
    %v447 = vpop.permute.xlu0 %446
    %v448 = vsel %vm269, %v445, %v447
    %v450 = vsel %vm154, %v441, 0
    %v453 = vsel %vm158, %v448, 0
    %455 = vmatprep.subr.bf16.mxu0 0
    %456 = vmatpush1.bf16.msra.mxu0 0
    %457 = vmatprep.subr.bf16.mxu0 0
    %458 = vmatpush1.bf16.msra.mxu0 0
    %459 = vmatprep.subr.bf16.mxu0 0
    %460 = vmatpush1.bf16.msra.mxu0 0
    %461 = vmatprep.subr.bf16.mxu0 0
    %462 = vmatpush1.bf16.msra.mxu0 0
    %463 = vmatprep.subr.bf16.mxu0 0
    %464 = vmatpush1.bf16.msra.mxu0 0
    %465 = vmatprep.subr.bf16.mxu0 0
    %466 = vmatpush1.bf16.msra.mxu0 0
    %467 = vmatprep.subr.bf16.mxu0 0
    %468 = vmatpush1.bf16.msra.mxu0 0
    %469 = vmatprep.subr.bf16.mxu0 0
    %470 = vmatpush1.bf16.msra.mxu0 %v453
    %471 = vmatprep.subr.bf16.mxu0 0
    %472 = vmatpush2.bf16.msra.mxu0 0
    %473 = vmatprep.subr.bf16.mxu0 0
    %474 = vmatpush2.bf16.msra.mxu0 0
    %475 = vmatprep.subr.bf16.mxu0 0
    %476 = vmatpush2.bf16.msra.mxu0 0
    %477 = vmatprep.subr.bf16.mxu0 0
    %478 = vmatpush2.bf16.msra.mxu0 0
    %479 = vmatprep.subr.bf16.mxu0 0
    %480 = vmatpush2.bf16.msra.mxu0 0
    %481 = vmatprep.subr.bf16.mxu0 0
    %482 = vmatpush2.bf16.msra.mxu0 0
    %483 = vmatprep.subr.bf16.mxu0 0
    %484 = vmatpush2.bf16.msra.mxu0 0
    %485 = vmatprep.subr.bf16.mxu0 0
    %486 = vmatpush2.bf16.msra.mxu0 0
    %487 = vmatprep.mubr.bf16.mxu0 0
    %488 = vmatmul.mubr.bf16.gmra.mxu0 %v450
    %v489 = vpop.f32.mrf.mxu0
    %v490 = vadd.f32 0.0, %v489
    %v491 = vpop.f32.mrf.mxu0
    %v492 = vpop.f32.mrf.mxu0
    %v493 = vadd.f32 0.0, %v492
    %v494 = vpop.f32.mrf.mxu0
    %495 = vdwg.mxu0
    %v496 = vadd.f32 %v432, %v490
    %v497 = vadd.f32 %v433, %v493
    %s498 = scalar_lea.vmem %s0, 48
    %v499 = vld [vmem:[%s498] sm:$0xf]
    %v500 = vld [vmem:[%s498 + $0x4] sm:$0xf]
    %v503 = vunpack.c.l.b16 %v499
    %v504 = vunpack.c.l.b16 %v500
    %v505 = vpack.c.b16 %v504, %v503
    %506 = vrot.lane.b32.xlu0 %v132, 123
    %v507 = vpop.permute.xlu0 %506
    %508 = vrot.lane.b32.xlu0 %v139, 123
    %v509 = vpop.permute.xlu0 %508
    %vm510 = vcmask 1006592
    %v511 = vsel %vm510, %v507, %v509
    %v513 = vsel %vm154, %v505, 0
    %v516 = vsel %vm158, %v511, 0
    %518 = vmatprep.subr.bf16.mxu0 0
    %519 = vmatpush1.bf16.msra.mxu0 0
    %520 = vmatprep.subr.bf16.mxu0 0
    %521 = vmatpush1.bf16.msra.mxu0 0
    %522 = vmatprep.subr.bf16.mxu0 0
    %523 = vmatpush1.bf16.msra.mxu0 0
    %524 = vmatprep.subr.bf16.mxu0 0
    %525 = vmatpush1.bf16.msra.mxu0 0
    %526 = vmatprep.subr.bf16.mxu0 0
    %527 = vmatpush1.bf16.msra.mxu0 0
    %528 = vmatprep.subr.bf16.mxu0 0
    %529 = vmatpush1.bf16.msra.mxu0 0
    %530 = vmatprep.subr.bf16.mxu0 0
    %531 = vmatpush1.bf16.msra.mxu0 0
    %532 = vmatprep.subr.bf16.mxu0 0
    %533 = vmatpush1.bf16.msra.mxu0 %v516
    %534 = vmatprep.subr.bf16.mxu0 0
    %535 = vmatpush2.bf16.msra.mxu0 0
    %536 = vmatprep.subr.bf16.mxu0 0
    %537 = vmatpush2.bf16.msra.mxu0 0
    %538 = vmatprep.subr.bf16.mxu0 0
    %539 = vmatpush2.bf16.msra.mxu0 0
    %540 = vmatprep.subr.bf16.mxu0 0
    %541 = vmatpush2.bf16.msra.mxu0 0
    %542 = vmatprep.subr.bf16.mxu0 0
    %543 = vmatpush2.bf16.msra.mxu0 0
    %544 = vmatprep.subr.bf16.mxu0 0
    %545 = vmatpush2.bf16.msra.mxu0 0
    %546 = vmatprep.subr.bf16.mxu0 0
    %547 = vmatpush2.bf16.msra.mxu0 0
    %548 = vmatprep.subr.bf16.mxu0 0
    %549 = vmatpush2.bf16.msra.mxu0 0
    %550 = vmatprep.mubr.bf16.mxu0 0
    %551 = vmatmul.mubr.bf16.gmra.mxu0 %v513
    %v552 = vpop.f32.mrf.mxu0
    %v553 = vadd.f32 0.0, %v552
    %v554 = vpop.f32.mrf.mxu0
    %v555 = vpop.f32.mrf.mxu0
    %v556 = vadd.f32 0.0, %v555
    %v557 = vpop.f32.mrf.mxu0
    %558 = vdwg.mxu0
    %v559 = vadd.f32 %v496, %v553
    %v560 = vadd.f32 %v497, %v556
    %s561 = scalar_lea.vmem %s0, 56
    %v562 = vld [vmem:[%s561] sm:$0xf]
    %v563 = vld [vmem:[%s561 + $0x4] sm:$0xf]
    %v566 = vunpack.c.l.b16 %v562
    %v567 = vunpack.c.l.b16 %v563
    %v568 = vpack.c.b16 %v567, %v566
    %571 = vrot.lane.b32.xlu0 %v134, 123
    %v572 = vpop.permute.xlu0 %571
    %573 = vrot.lane.b32.xlu0 %v141, 123
    %v574 = vpop.permute.xlu0 %573
    %v575 = vsel %vm510, %v572, %v574
    %v577 = vsel %vm154, %v568, 0
    %v580 = vsel %vm158, %v575, 0
    %582 = vmatprep.subr.bf16.mxu0 0
    %583 = vmatpush1.bf16.msra.mxu0 0
    %584 = vmatprep.subr.bf16.mxu0 0
    %585 = vmatpush1.bf16.msra.mxu0 0
    %586 = vmatprep.subr.bf16.mxu0 0
    %587 = vmatpush1.bf16.msra.mxu0 0
    %588 = vmatprep.subr.bf16.mxu0 0
    %589 = vmatpush1.bf16.msra.mxu0 0
    %590 = vmatprep.subr.bf16.mxu0 0
    %591 = vmatpush1.bf16.msra.mxu0 0
    %592 = vmatprep.subr.bf16.mxu0 0
    %593 = vmatpush1.bf16.msra.mxu0 0
    %594 = vmatprep.subr.bf16.mxu0 0
    %595 = vmatpush1.bf16.msra.mxu0 0
    %596 = vmatprep.subr.bf16.mxu0 0
    %597 = vmatpush1.bf16.msra.mxu0 %v580
    %598 = vmatprep.subr.bf16.mxu0 0
    %599 = vmatpush2.bf16.msra.mxu0 0
    %600 = vmatprep.subr.bf16.mxu0 0
    %601 = vmatpush2.bf16.msra.mxu0 0
    %602 = vmatprep.subr.bf16.mxu0 0
    %603 = vmatpush2.bf16.msra.mxu0 0
    %604 = vmatprep.subr.bf16.mxu0 0
    %605 = vmatpush2.bf16.msra.mxu0 0
    %606 = vmatprep.subr.bf16.mxu0 0
    %607 = vmatpush2.bf16.msra.mxu0 0
    %608 = vmatprep.subr.bf16.mxu0 0
    %609 = vmatpush2.bf16.msra.mxu0 0
    %610 = vmatprep.subr.bf16.mxu0 0
    %611 = vmatpush2.bf16.msra.mxu0 0
    %612 = vmatprep.subr.bf16.mxu0 0
    %613 = vmatpush2.bf16.msra.mxu0 0
    %614 = vmatprep.mubr.bf16.mxu0 0
    %615 = vmatmul.mubr.bf16.gmra.mxu0 %v577
    %v616 = vpop.f32.mrf.mxu0
    %v617 = vadd.f32 0.0, %v616
    %v618 = vpop.f32.mrf.mxu0
    %v619 = vpop.f32.mrf.mxu0
    %v620 = vadd.f32 0.0, %v619
    %v621 = vpop.f32.mrf.mxu0
    %622 = vdwg.mxu0
    %v623 = vadd.f32 %v559, %v617
    %v624 = vadd.f32 %v560, %v620
    %s625 = scalar_lea.vmem %s0, 64
    %v626 = vld [vmem:[%s625] sm:$0xf]
    %v627 = vld [vmem:[%s625 + $0x4] sm:$0xf]
    %v630 = vunpack.c.l.b16 %v626
    %v631 = vunpack.c.l.b16 %v627
    %v632 = vpack.c.b16 %v631, %v630
    %633 = vrot.lane.b32.xlu0 %v132, 122
    %v634 = vpop.permute.xlu0 %633
    %635 = vrot.lane.b32.xlu0 %v139, 122
    %v636 = vpop.permute.xlu0 %635
    %vm637 = vcmask 998400
    %v638 = vsel %vm637, %v634, %v636
    %v640 = vsel %vm154, %v632, 0
    %v643 = vsel %vm158, %v638, 0
    %645 = vmatprep.subr.bf16.mxu0 0
    %646 = vmatpush1.bf16.msra.mxu0 0
    %647 = vmatprep.subr.bf16.mxu0 0
    %648 = vmatpush1.bf16.msra.mxu0 0
    %649 = vmatprep.subr.bf16.mxu0 0
    %650 = vmatpush1.bf16.msra.mxu0 0
    %651 = vmatprep.subr.bf16.mxu0 0
    %652 = vmatpush1.bf16.msra.mxu0 0
    %653 = vmatprep.subr.bf16.mxu0 0
    %654 = vmatpush1.bf16.msra.mxu0 0
    %655 = vmatprep.subr.bf16.mxu0 0
    %656 = vmatpush1.bf16.msra.mxu0 0
    %657 = vmatprep.subr.bf16.mxu0 0
    %658 = vmatpush1.bf16.msra.mxu0 0
    %659 = vmatprep.subr.bf16.mxu0 0
    %660 = vmatpush1.bf16.msra.mxu0 %v643
    %661 = vmatprep.subr.bf16.mxu0 0
    %662 = vmatpush2.bf16.msra.mxu0 0
    %663 = vmatprep.subr.bf16.mxu0 0
    %664 = vmatpush2.bf16.msra.mxu0 0
    %665 = vmatprep.subr.bf16.mxu0 0
    %666 = vmatpush2.bf16.msra.mxu0 0
    %667 = vmatprep.subr.bf16.mxu0 0
    %668 = vmatpush2.bf16.msra.mxu0 0
    %669 = vmatprep.subr.bf16.mxu0 0
    %670 = vmatpush2.bf16.msra.mxu0 0
    %671 = vmatprep.subr.bf16.mxu0 0
    %672 = vmatpush2.bf16.msra.mxu0 0
    %673 = vmatprep.subr.bf16.mxu0 0
    %674 = vmatpush2.bf16.msra.mxu0 0
    %675 = vmatprep.subr.bf16.mxu0 0
    %676 = vmatpush2.bf16.msra.mxu0 0
    %677 = vmatprep.mubr.bf16.mxu0 0
    %678 = vmatmul.mubr.bf16.gmra.mxu0 %v640
    %v679 = vpop.f32.mrf.mxu0
    %v680 = vadd.f32 0.0, %v679
    %v681 = vpop.f32.mrf.mxu0
    %v682 = vpop.f32.mrf.mxu0
    %v683 = vadd.f32 0.0, %v682
    %v684 = vpop.f32.mrf.mxu0
    %685 = vdwg.mxu0
    %v686 = vadd.f32 %v623, %v680
    %v687 = vadd.f32 %v624, %v683
    %v688 = vld [vmem:[%s1] sm:$0xff]
    %v689 = vld [vmem:[%s1 + $0x8] sm:$0xff]
    %691 = vset.pattern.permute.xlu0 0
    %692 = vperm.xlu0 %691, %v688
    %v693 = vpop.permute.xlu0 %692
    %696 = vset.pattern.permute.xlu0 0
    %697 = vperm.xlu0 %696, %v689
    %v698 = vpop.permute.xlu0 %697
    %v700 = vadd.f32 %v686, %v693
    %v701 = vadd.f32 %v687, %v698
    %v702 = vmax.f32 %v700, 0.0
    %v703 = vmax.f32 %v701, 0.0
    %v704 = vpack.c.bf16 %v703, %v702
    %v706 = vunpack.c.l.b16 %v704
    %v707 = vunpack.c.h.b16 %v704
    %v708 = vpack.c.b16 %v706, %v706
    %v709 = vpack.c.b16 %v707, %v707
    %712 = vst [vmem:[%s4] sm:$0xf] %v708
    %713 = vst [vmem:[%s4 + $0x4] sm:$0xf] %v709
    // Predicated region
    $region100: #{backbone_fpn_forward.10} parent=1 // pred_check
      _
    $region101: #{backbone_fpn_forward.10} parent=1 // pred_check_branch
      %715 = sbr.rel (0) target = $region103
    $region102: #{backbone_fpn_forward.10} parent=1 // pred_region
      _
    $region103: #{backbone_fpn_forward.10} parent=1 // pred_fallthru
      _
    // Predicated region
    $region104: #{backbone_fpn_forward.10} parent=1 // pred_check
      _
    $region105: #{backbone_fpn_forward.10} parent=1 // pred_check_branch
      %717 = sbr.rel (0) target = $region107
    $region106: #{backbone_fpn_forward.10} parent=1 // pred_region
      _
    $region107: #{backbone_fpn_forward.10} parent=1 // pred_fallthru
      _

// kernel: backbone_fpn_forward.12
$region0: #{backbone_fpn_forward.12}
  #allocation0 [shape = 'u32[]', space=smem, size = 0x4, offset = 0x4, fixed_abs, tag = 'smem constant byte address 0x4 - core index']
  #allocation1 [shape = 'u32[144,128]{1,0:T(1,128)}', space=vmem, size = 0x12000, scoped, tag = 'internal scratch']
  %s0 = inlined_call_operand.vmem [shape: bf16[1,8,32], index: 0, kind: input, shape index: {}]
  %s1 = inlined_call_operand.vmem [shape: f32[8,1], index: 1, kind: input, shape index: {}]
  %s2 = inlined_call_operand.vmem [shape: bf16[1,32,128], index: 2, kind: input, shape index: {}]
  %s3 = inlined_call_operand.vmem [shape: bf16[8,128], index: 3, kind: output, shape index: {}]
  %s4 = sld [smem:[#allocation0]]
  $region22: #{backbone_fpn_forward.12} parent=0
    _
  %s6 = ssub.s32 1, %s4
  %s7 = scalar_select 0, %s6, %s4
  // Predicated region
  $region2: #{backbone_fpn_forward.12} parent=0 // pred_check
    _
  $region3: #{backbone_fpn_forward.12} parent=0 // pred_check_branch
    %9 = sbr.rel (0) target = $region5
  $region4: #{backbone_fpn_forward.12} parent=0 // pred_region
    _
  $region5: #{backbone_fpn_forward.12} parent=0 // pred_fallthru
    _
  // Predicated region
  $region6: #{backbone_fpn_forward.12} parent=0 // pred_check
    _
  $region7: #{backbone_fpn_forward.12} parent=0 // pred_check_branch
    %11 = sbr.rel (0) target = $region9
  $region8: #{backbone_fpn_forward.12} parent=0 // pred_region
    _
  $region9: #{backbone_fpn_forward.12} parent=0 // pred_fallthru
    _
  // Predicated region
  $region10: #{backbone_fpn_forward.12} parent=0 // pred_check
    _
  $region11: #{backbone_fpn_forward.12} parent=0 // pred_check_branch
    %13 = sbr.rel (0) target = $region13
  $region12: #{backbone_fpn_forward.12} parent=0 // pred_region
    _
  $region13: #{backbone_fpn_forward.12} parent=0 // pred_fallthru
    _
  %v15 = vld [vmem:[%s2] sm:$0xf]
  %v16 = vld [vmem:[%s2 + $0x4] sm:$0xf]
  %v17 = vld [vmem:[%s2 + $0x8] sm:$0xf]
  %v18 = vld [vmem:[%s2 + $0xc] sm:$0xf]
  %v19 = vld [vmem:[%s0] sm:$0xf]
  %v20 = vld [vmem:[%s1] sm:$0xff]
  %22 = vset.pattern.permute.xlu0 0
  %23 = vperm.xlu0 %22, %v20
  %v24 = vpop.permute.xlu0 %23
  %v30 = vunpack.c.l.b16 %v15
  %v31 = vunpack.c.l.b16 %v16
  %v32 = vunpack.c.l.b16 %v17
  %v33 = vunpack.c.l.b16 %v18
  %v34 = vpack.c.b16 %v31, %v30
  %v35 = vpack.c.b16 %v33, %v32
  %vm38 = vcmask 261120
  %v40 = vsel %vm38, %v19, 0
  %42 = vmatprep.subr.bf16.mxu0 0
  %43 = vmatpush1.bf16.msra.mxu0 0
  %44 = vmatprep.subr.bf16.mxu0 0
  %45 = vmatpush1.bf16.msra.mxu0 0
  %46 = vmatprep.subr.bf16.mxu0 0
  %47 = vmatpush1.bf16.msra.mxu0 0
  %48 = vmatprep.subr.bf16.mxu0 0
  %49 = vmatpush1.bf16.msra.mxu0 0
  %50 = vmatprep.subr.bf16.mxu0 0
  %51 = vmatpush1.bf16.msra.mxu0 0
  %52 = vmatprep.subr.bf16.mxu0 0
  %53 = vmatpush1.bf16.msra.mxu0 0
  %54 = vmatprep.subr.bf16.mxu0 0
  %55 = vmatpush1.bf16.msra.mxu0 %v35
  %56 = vmatprep.subr.bf16.mxu0 0
  %57 = vmatpush1.bf16.msra.mxu0 %v34
  %58 = vmatprep.subr.bf16.mxu0 0
  %59 = vmatpush2.bf16.msra.mxu0 0
  %60 = vmatprep.subr.bf16.mxu0 0
  %61 = vmatpush2.bf16.msra.mxu0 0
  %62 = vmatprep.subr.bf16.mxu0 0
  %63 = vmatpush2.bf16.msra.mxu0 0
  %64 = vmatprep.subr.bf16.mxu0 0
  %65 = vmatpush2.bf16.msra.mxu0 0
  %66 = vmatprep.subr.bf16.mxu0 0
  %67 = vmatpush2.bf16.msra.mxu0 0
  %68 = vmatprep.subr.bf16.mxu0 0
  %69 = vmatpush2.bf16.msra.mxu0 0
  %70 = vmatprep.subr.bf16.mxu0 0
  %71 = vmatpush2.bf16.msra.mxu0 0
  %72 = vmatprep.subr.bf16.mxu0 0
  %73 = vmatpush2.bf16.msra.mxu0 0
  %74 = vmatprep.mubr.bf16.mxu0 0
  %75 = vmatmul.mubr.bf16.gmra.mxu0 %v40
  %v76 = vpop.f32.mrf.mxu0
  %v77 = vadd.f32 %v24, %v76
  %v78 = vpop.f32.mrf.mxu0
  %v79 = vpop.f32.mrf.mxu0
  %v80 = vpop.f32.mrf.mxu0
  %81 = vdwg.mxu0
  %v82 = vpack.c.bf16 %v77, %v77
  %83 = vst [vmem:[%s3] sm:$0xf] %v82
  // Predicated region
  $region14: #{backbone_fpn_forward.12} parent=0 // pred_check
    _
  $region15: #{backbone_fpn_forward.12} parent=0 // pred_check_branch
    %85 = sbr.rel (0) target = $region17
  $region16: #{backbone_fpn_forward.12} parent=0 // pred_region
    _
  $region17: #{backbone_fpn_forward.12} parent=0 // pred_fallthru
    _
  // Predicated region
  $region18: #{backbone_fpn_forward.12} parent=0 // pred_check
    _
  $region19: #{backbone_fpn_forward.12} parent=0 // pred_check_branch
    %87 = sbr.rel (0) target = $region21
  $region20: #{backbone_fpn_forward.12} parent=0 // pred_region
    _
  $region21: #{backbone_fpn_forward.12} parent=0 // pred_fallthru
    _

// kernel: backbone_fpn_forward.11
$region0: #{backbone_fpn_forward.11}
  #allocation0 [shape = 'u32[]', space=smem, size = 0x4, offset = 0x4, fixed_abs, tag = 'smem constant byte address 0x4 - core index']
  #allocation1 [shape = 'u32[144,128]{1,0:T(1,128)}', space=vmem, size = 0x12000, scoped, tag = 'internal scratch']
  %s0 = inlined_call_operand.vmem [shape: bf16[9,32,16], index: 0, kind: input, shape index: {}]
  %s1 = inlined_call_operand.vmem [shape: f32[32,1], index: 1, kind: input, shape index: {}]
  %s2 = inlined_call_operand.vmem [shape: bf16[4,16,256], index: 2, kind: input, shape index: {}, may-alias: {2,3}]
  %s3 = inlined_call_operand.vmem [shape: bf16[4,16,256], index: 3, kind: input, shape index: {}, may-alias: {2,3}]
  %s4 = inlined_call_operand.vmem [shape: bf16[32,128], index: 4, kind: output, shape index: {}]
  %s5 = sld [smem:[#allocation0]]
  $region108: #{backbone_fpn_forward.11} parent=0
    _
  %s7 = ssub.s32 1, %s5
  %s8 = scalar_select 0, %s7, %s5
  $region1: #{backbone_fpn_forward.11} parent=0
    #allocation2 [shape = 'u8[16384]{0}', space=vmem, size = 0x4000, scoped, tag = 'input window, operand 2, single buffered']
    #allocation3 [shape = 'u8[16384]{0}', space=vmem, size = 0x4000, scoped, tag = 'input window, operand 3, single buffered']
    // Predicated region
    $region2: #{backbone_fpn_forward.11} parent=1 // pred_check
      _
    $region3: #{backbone_fpn_forward.11} parent=1 // pred_check_branch
      %10 = sbr.rel (0) target = $region5
    $region4: #{backbone_fpn_forward.11} parent=1 // pred_region
      _
    $region5: #{backbone_fpn_forward.11} parent=1 // pred_fallthru
      _
    // Predicated region
    $region6: #{backbone_fpn_forward.11} parent=1 // pred_check
      _
    $region7: #{backbone_fpn_forward.11} parent=1 // pred_check_branch
      %12 = sbr.rel (0) target = $region9
    $region8: #{backbone_fpn_forward.11} parent=1 // pred_region
      _
    $region9: #{backbone_fpn_forward.11} parent=1 // pred_fallthru
      _
    // Predicated region
    $region10: #{backbone_fpn_forward.11} parent=1 // pred_check
      _
    $region11: #{backbone_fpn_forward.11} parent=1 // pred_check_branch
      %14 = sbr.rel (0) target = $region13
    $region12: #{backbone_fpn_forward.11} parent=1 // pred_region
      // Predicated region
      $region14: #{backbone_fpn_forward.11} parent=12 // pred_check
        _
      $region15: #{backbone_fpn_forward.11} parent=12 // pred_check_branch
        %16 = sbr.rel (0) target = $region17
      $region16: #{backbone_fpn_forward.11} parent=12 // pred_region
        // Predicated region
        $region18: #{backbone_fpn_forward.11} parent=16 // pred_check
          _
        $region19: #{backbone_fpn_forward.11} parent=16 // pred_check_branch
          %18 = sbr.rel target = $region21
        $region20: #{backbone_fpn_forward.11} parent=16 // pred_region
          // Predicated region
          $region33: #{backbone_fpn_forward.11} parent=20 // pred_check
            _
          $region34: #{backbone_fpn_forward.11} parent=20 // pred_check_branch
            %48 = sbr.rel (0) target = $region36
          $region35: #{backbone_fpn_forward.11} parent=20 // pred_region
            loop: start=0, step=1, limit=1
            $region37: #{backbone_fpn_forward.11} parent=35 // loop_pre_header
              _
            $region38: #{backbone_fpn_forward.11} parent=35 // loop_header
              %s50 = sphi 0, %s54
              %p51 = scmp.ge.s32.totalorder %s50, 1
              %s55 = sphi %s2, %s2
              %s56 = sphi [#allocation2], [#allocation2]
            $region39: #{backbone_fpn_forward.11} parent=35 // loop_header_branch
              %53 = sbr.rel (%p51) target = $region43
            $region40: #{backbone_fpn_forward.11} parent=35 // loop_body
              _
            $region41: #{backbone_fpn_forward.11} parent=35 // loop_footer
              %s54 = sadd.s32 1, %s50
            $region42: #{backbone_fpn_forward.11} parent=35 // loop_footer_branch
              %49 = sbr.rel target = $region38
            $region43: #{backbone_fpn_forward.11} parent=35 // loop_exit
              _
            %s58 = ssub.s32 16, 1
            loop: start=0, step=1, limit=1
            $region44: #{backbone_fpn_forward.11} parent=35 // loop_pre_header
              _
            $region45: #{backbone_fpn_forward.11} parent=35 // loop_header
              %s60 = sphi 0, %s64
              %p61 = scmp.ge.s32.totalorder %s60, 1
              %s65 = sphi %s2, %s2
              %s66 = sphi [#allocation2], [#allocation2]
            $region46: #{backbone_fpn_forward.11} parent=35 // loop_header_branch
              %63 = sbr.rel (%p61) target = $region50
            $region47: #{backbone_fpn_forward.11} parent=35 // loop_body
              %v67 = vld [vmem:[%s65] sm:%s58]
              %68 = vst [vmem:[%s66] sm:%s58] %v67
              %v69 = vld [vmem:[%s65 + $0x8] sm:%s58]
              %70 = vst [vmem:[%s66 + $0x4] sm:%s58] %v69
              %v71 = vld [vmem:[%s65 + $0x10] sm:%s58]
              %72 = vst [vmem:[%s66 + $0x8] sm:%s58] %v71
              %v73 = vld [vmem:[%s65 + $0x18] sm:%s58]
              %74 = vst [vmem:[%s66 + $0xc] sm:%s58] %v73
              %v75 = vld [vmem:[%s65 + $0x20] sm:%s58]
              %76 = vst [vmem:[%s66 + $0x10] sm:%s58] %v75
              %v77 = vld [vmem:[%s65 + $0x28] sm:%s58]
              %78 = vst [vmem:[%s66 + $0x14] sm:%s58] %v77
              %v79 = vld [vmem:[%s65 + $0x30] sm:%s58]
              %80 = vst [vmem:[%s66 + $0x18] sm:%s58] %v79
              %v81 = vld [vmem:[%s65 + $0x38] sm:%s58]
              %82 = vst [vmem:[%s66 + $0x1c] sm:%s58] %v81
            $region48: #{backbone_fpn_forward.11} parent=35 // loop_footer
              %s64 = sadd.s32 1, %s60
            $region49: #{backbone_fpn_forward.11} parent=35 // loop_footer_branch
              %59 = sbr.rel target = $region45
            $region50: #{backbone_fpn_forward.11} parent=35 // loop_exit
              _
          $region36: #{backbone_fpn_forward.11} parent=20 // pred_fallthru
            _
        $region21: #{backbone_fpn_forward.11} parent=16 // pred_fallthru
          _
        // Predicated region
        $region22: #{backbone_fpn_forward.11} parent=16 // pred_check
          _
        $region23: #{backbone_fpn_forward.11} parent=16 // pred_check_branch
          %20 = sbr.rel (0) target = $region25
        $region24: #{backbone_fpn_forward.11} parent=16 // pred_region
          %s22 = ssub.s32 16, 1
          loop: start=0, step=1, limit=1
          $region26: #{backbone_fpn_forward.11} parent=24 // loop_pre_header
            _
          $region27: #{backbone_fpn_forward.11} parent=24 // loop_header
            %s24 = sphi 0, %s28
            %p25 = scmp.ge.s32.totalorder %s24, 1
            %s29 = sphi %s2, %s2
            %s30 = sphi [#allocation2], [#allocation2]
          $region28: #{backbone_fpn_forward.11} parent=24 // loop_header_branch
            %27 = sbr.rel (%p25) target = $region32
          $region29: #{backbone_fpn_forward.11} parent=24 // loop_body
            %v31 = vld [vmem:[%s29] sm:%s22]
            %32 = vst [vmem:[%s30] sm:%s22] %v31
            %v33 = vld [vmem:[%s29 + $0x8] sm:%s22]
            %34 = vst [vmem:[%s30 + $0x4] sm:%s22] %v33
            %v35 = vld [vmem:[%s29 + $0x10] sm:%s22]
            %36 = vst [vmem:[%s30 + $0x8] sm:%s22] %v35
            %v37 = vld [vmem:[%s29 + $0x18] sm:%s22]
            %38 = vst [vmem:[%s30 + $0xc] sm:%s22] %v37
            %v39 = vld [vmem:[%s29 + $0x20] sm:%s22]
            %40 = vst [vmem:[%s30 + $0x10] sm:%s22] %v39
            %v41 = vld [vmem:[%s29 + $0x28] sm:%s22]
            %42 = vst [vmem:[%s30 + $0x14] sm:%s22] %v41
            %v43 = vld [vmem:[%s29 + $0x30] sm:%s22]
            %44 = vst [vmem:[%s30 + $0x18] sm:%s22] %v43
            %v45 = vld [vmem:[%s29 + $0x38] sm:%s22]
            %46 = vst [vmem:[%s30 + $0x1c] sm:%s22] %v45
          $region30: #{backbone_fpn_forward.11} parent=24 // loop_footer
            %s28 = sadd.s32 1, %s24
          $region31: #{backbone_fpn_forward.11} parent=24 // loop_footer_branch
            %23 = sbr.rel target = $region27
          $region32: #{backbone_fpn_forward.11} parent=24 // loop_exit
            _
        $region25: #{backbone_fpn_forward.11} parent=16 // pred_fallthru
          _
      $region17: #{backbone_fpn_forward.11} parent=12 // pred_fallthru
        _
      %83 = vnop
    $region13: #{backbone_fpn_forward.11} parent=1 // pred_fallthru
      _
    // Predicated region
    $region51: #{backbone_fpn_forward.11} parent=1 // pred_check
      _
    $region52: #{backbone_fpn_forward.11} parent=1 // pred_check_branch
      %85 = sbr.rel (0) target = $region54
    $region53: #{backbone_fpn_forward.11} parent=1 // pred_region
      %s86 = sadd.s32 0, 1
      %s87 = smul.addr %s86, 4
      %s88 = scalar_lea.vmem %s3, %s87
      // Predicated region
      $region55: #{backbone_fpn_forward.11} parent=53 // pred_check
        _
      $region56: #{backbone_fpn_forward.11} parent=53 // pred_check_branch
        %90 = sbr.rel (0) target = $region58
      $region57: #{backbone_fpn_forward.11} parent=53 // pred_region
        // Predicated region
        $region59: #{backbone_fpn_forward.11} parent=57 // pred_check
          _
        $region60: #{backbone_fpn_forward.11} parent=57 // pred_check_branch
          %92 = sbr.rel target = $region62
        $region61: #{backbone_fpn_forward.11} parent=57 // pred_region
          // Predicated region
          $region74: #{backbone_fpn_forward.11} parent=61 // pred_check
            _
          $region75: #{backbone_fpn_forward.11} parent=61 // pred_check_branch
            %122 = sbr.rel (0) target = $region77
          $region76: #{backbone_fpn_forward.11} parent=61 // pred_region
            loop: start=0, step=1, limit=1
            $region78: #{backbone_fpn_forward.11} parent=76 // loop_pre_header
              _
            $region79: #{backbone_fpn_forward.11} parent=76 // loop_header
              %s124 = sphi 0, %s128
              %p125 = scmp.ge.s32.totalorder %s124, 1
              %s129 = sphi %s88, %s88
              %s130 = sphi [#allocation3], [#allocation3]
            $region80: #{backbone_fpn_forward.11} parent=76 // loop_header_branch
              %127 = sbr.rel (%p125) target = $region84
            $region81: #{backbone_fpn_forward.11} parent=76 // loop_body
              _
            $region82: #{backbone_fpn_forward.11} parent=76 // loop_footer
              %s128 = sadd.s32 1, %s124
            $region83: #{backbone_fpn_forward.11} parent=76 // loop_footer_branch
              %123 = sbr.rel target = $region79
            $region84: #{backbone_fpn_forward.11} parent=76 // loop_exit
              _
            %s132 = ssub.s32 16, 1
            loop: start=0, step=1, limit=1
            $region85: #{backbone_fpn_forward.11} parent=76 // loop_pre_header
              _
            $region86: #{backbone_fpn_forward.11} parent=76 // loop_header
              %s134 = sphi 0, %s138
              %p135 = scmp.ge.s32.totalorder %s134, 1
              %s139 = sphi %s88, %s88
              %s140 = sphi [#allocation3], [#allocation3]
            $region87: #{backbone_fpn_forward.11} parent=76 // loop_header_branch
              %137 = sbr.rel (%p135) target = $region91
            $region88: #{backbone_fpn_forward.11} parent=76 // loop_body
              %v141 = vld [vmem:[%s139] sm:%s132]
              %142 = vst [vmem:[%s140] sm:%s132] %v141
              %v143 = vld [vmem:[%s139 + $0x8] sm:%s132]
              %144 = vst [vmem:[%s140 + $0x4] sm:%s132] %v143
              %v145 = vld [vmem:[%s139 + $0x10] sm:%s132]
              %146 = vst [vmem:[%s140 + $0x8] sm:%s132] %v145
              %v147 = vld [vmem:[%s139 + $0x18] sm:%s132]
              %148 = vst [vmem:[%s140 + $0xc] sm:%s132] %v147
              %v149 = vld [vmem:[%s139 + $0x20] sm:%s132]
              %150 = vst [vmem:[%s140 + $0x10] sm:%s132] %v149
              %v151 = vld [vmem:[%s139 + $0x28] sm:%s132]
              %152 = vst [vmem:[%s140 + $0x14] sm:%s132] %v151
              %v153 = vld [vmem:[%s139 + $0x30] sm:%s132]
              %154 = vst [vmem:[%s140 + $0x18] sm:%s132] %v153
              %v155 = vld [vmem:[%s139 + $0x38] sm:%s132]
              %156 = vst [vmem:[%s140 + $0x1c] sm:%s132] %v155
            $region89: #{backbone_fpn_forward.11} parent=76 // loop_footer
              %s138 = sadd.s32 1, %s134
            $region90: #{backbone_fpn_forward.11} parent=76 // loop_footer_branch
              %133 = sbr.rel target = $region86
            $region91: #{backbone_fpn_forward.11} parent=76 // loop_exit
              _
          $region77: #{backbone_fpn_forward.11} parent=61 // pred_fallthru
            _
        $region62: #{backbone_fpn_forward.11} parent=57 // pred_fallthru
          _
        // Predicated region
        $region63: #{backbone_fpn_forward.11} parent=57 // pred_check
          _
        $region64: #{backbone_fpn_forward.11} parent=57 // pred_check_branch
          %94 = sbr.rel (0) target = $region66
        $region65: #{backbone_fpn_forward.11} parent=57 // pred_region
          %s96 = ssub.s32 16, 1
          loop: start=0, step=1, limit=1
          $region67: #{backbone_fpn_forward.11} parent=65 // loop_pre_header
            _
          $region68: #{backbone_fpn_forward.11} parent=65 // loop_header
            %s98 = sphi 0, %s102
            %p99 = scmp.ge.s32.totalorder %s98, 1
            %s103 = sphi %s88, %s88
            %s104 = sphi [#allocation3], [#allocation3]
          $region69: #{backbone_fpn_forward.11} parent=65 // loop_header_branch
            %101 = sbr.rel (%p99) target = $region73
          $region70: #{backbone_fpn_forward.11} parent=65 // loop_body
            %v105 = vld [vmem:[%s103] sm:%s96]
            %106 = vst [vmem:[%s104] sm:%s96] %v105
            %v107 = vld [vmem:[%s103 + $0x8] sm:%s96]
            %108 = vst [vmem:[%s104 + $0x4] sm:%s96] %v107
            %v109 = vld [vmem:[%s103 + $0x10] sm:%s96]
            %110 = vst [vmem:[%s104 + $0x8] sm:%s96] %v109
            %v111 = vld [vmem:[%s103 + $0x18] sm:%s96]
            %112 = vst [vmem:[%s104 + $0xc] sm:%s96] %v111
            %v113 = vld [vmem:[%s103 + $0x20] sm:%s96]
            %114 = vst [vmem:[%s104 + $0x10] sm:%s96] %v113
            %v115 = vld [vmem:[%s103 + $0x28] sm:%s96]
            %116 = vst [vmem:[%s104 + $0x14] sm:%s96] %v115
            %v117 = vld [vmem:[%s103 + $0x30] sm:%s96]
            %118 = vst [vmem:[%s104 + $0x18] sm:%s96] %v117
            %v119 = vld [vmem:[%s103 + $0x38] sm:%s96]
            %120 = vst [vmem:[%s104 + $0x1c] sm:%s96] %v119
          $region71: #{backbone_fpn_forward.11} parent=65 // loop_footer
            %s102 = sadd.s32 1, %s98
          $region72: #{backbone_fpn_forward.11} parent=65 // loop_footer_branch
            %97 = sbr.rel target = $region68
          $region73: #{backbone_fpn_forward.11} parent=65 // loop_exit
            _
        $region66: #{backbone_fpn_forward.11} parent=57 // pred_fallthru
          _
      $region58: #{backbone_fpn_forward.11} parent=53 // pred_fallthru
        _
      %157 = vnop
    $region54: #{backbone_fpn_forward.11} parent=1 // pred_fallthru
      _
    // Predicated region
    $region92: #{backbone_fpn_forward.11} parent=1 // pred_check
      _
    $region93: #{backbone_fpn_forward.11} parent=1 // pred_check_branch
      %159 = sbr.rel (0) target = $region95
    $region94: #{backbone_fpn_forward.11} parent=1 // pred_region
      _
    $region95: #{backbone_fpn_forward.11} parent=1 // pred_fallthru
      _
    // Predicated region
    $region96: #{backbone_fpn_forward.11} parent=1 // pred_check
      _
    $region97: #{backbone_fpn_forward.11} parent=1 // pred_check_branch
      %161 = sbr.rel (0) target = $region99
    $region98: #{backbone_fpn_forward.11} parent=1 // pred_region
      _
    $region99: #{backbone_fpn_forward.11} parent=1 // pred_fallthru
      _
    %s162 = sadd.s32 0, 1
    %v164 = vld [vmem:[#allocation2] sm:$0xf]
    %v165 = vld [vmem:[#allocation2 + $0x4] sm:$0xf]
    %s166 = scalar_lea.vmem [#allocation2], 8
    %v167 = vld [vmem:[%s166] sm:$0xf]
    %v168 = vld [vmem:[%s166 + $0x4] sm:$0xf]
    %s169 = scalar_lea.vmem [#allocation2], 16
    %v170 = vld [vmem:[%s169] sm:$0xf]
    %v171 = vld [vmem:[%s169 + $0x4] sm:$0xf]
    %s172 = scalar_lea.vmem [#allocation2], 24
    %v173 = vld [vmem:[%s172] sm:$0xf]
    %v174 = vld [vmem:[%s172 + $0x4] sm:$0xf]
    %v175 = vld [vmem:[#allocation3] sm:$0xf]
    %v176 = vld [vmem:[#allocation3 + $0x4] sm:$0xf]
    %v179 = vunpack.c.l.b16 %v164
    %v180 = vunpack.c.l.b16 %v165
    %v181 = vpack.c.b16 %v180, %v179
    %v184 = vunpack.c.l.b16 %v175
    %v185 = vunpack.c.l.b16 %v176
    %v186 = vpack.c.b16 %v185, %v184
    %s187 = scalar_lea.vmem [#allocation3], 8
    %v188 = vld [vmem:[%s187] sm:$0xf]
    %v189 = vld [vmem:[%s187 + $0x4] sm:$0xf]
    %v192 = vunpack.c.l.b16 %v167
    %v193 = vunpack.c.l.b16 %v168
    %v194 = vpack.c.b16 %v193, %v192
    %v197 = vunpack.c.l.b16 %v188
    %v198 = vunpack.c.l.b16 %v189
    %v199 = vpack.c.b16 %v198, %v197
    %s200 = scalar_lea.vmem [#allocation3], 16
    %v201 = vld [vmem:[%s200] sm:$0xf]
    %v202 = vld [vmem:[%s200 + $0x4] sm:$0xf]
    %v205 = vunpack.c.l.b16 %v170
    %v206 = vunpack.c.l.b16 %v171
    %v207 = vpack.c.b16 %v206, %v205
    %v210 = vunpack.c.l.b16 %v201
    %v211 = vunpack.c.l.b16 %v202
    %v212 = vpack.c.b16 %v211, %v210
    %v213 = vld [vmem:[%s0] sm:$0xf]
    %v214 = vld [vmem:[%s0 + $0x4] sm:$0xf]
    %v215 = vld [vmem:[%s0 + $0x8] sm:$0xf]
    %v216 = vld [vmem:[%s0 + $0xc] sm:$0xf]
    %s217 = scalar_lea.vmem %s0, 16
    %v218 = vld [vmem:[%s217] sm:$0xf]
    %v219 = vld [vmem:[%s217 + $0x4] sm:$0xf]
    %v220 = vld [vmem:[%s217 + $0x8] sm:$0xf]
    %v221 = vld [vmem:[%s217 + $0xc] sm:$0xf]
    %v226 = vunpack.c.l.b16 %v218
    %v227 = vunpack.c.l.b16 %v219
    %v228 = vunpack.c.l.b16 %v220
    %v229 = vunpack.c.l.b16 %v221
    %v230 = vpack.c.b16 %v227, %v226
    %v231 = vpack.c.b16 %v229, %v228
    %vm233 = vcmask 130048
    %v235 = vsel %vm233, %v230, 0
    %v238 = vsel %vm233, %v231, 0
    %240 = vmatprep.subr.bf16.mxu0 0
    %241 = vmatpush1.bf16.msra.mxu0 0
    %242 = vmatprep.subr.bf16.mxu0 0
    %243 = vmatpush1.bf16.msra.mxu0 0
    %244 = vmatprep.subr.bf16.mxu0 0
    %245 = vmatpush1.bf16.msra.mxu0 0
    %246 = vmatprep.subr.bf16.mxu0 0
    %247 = vmatpush1.bf16.msra.mxu0 0
    %248 = vmatprep.subr.bf16.mxu0 0
    %249 = vmatpush1.bf16.msra.mxu0 0
    %250 = vmatprep.subr.bf16.mxu0 0
    %251 = vmatpush1.bf16.msra.mxu0 0
    %252 = vmatprep.subr.bf16.mxu0 0
    %253 = vmatpush1.bf16.msra.mxu0 0
    %254 = vmatprep.subr.bf16.mxu0 0
    %255 = vmatpush1.bf16.msra.mxu0 %v194
    %256 = vmatprep.subr.bf16.mxu0 0
    %257 = vmatpush2.bf16.msra.mxu0 0
    %258 = vmatprep.subr.bf16.mxu0 0
    %259 = vmatpush2.bf16.msra.mxu0 0
    %260 = vmatprep.subr.bf16.mxu0 0
    %261 = vmatpush2.bf16.msra.mxu0 0
    %262 = vmatprep.subr.bf16.mxu0 0
    %263 = vmatpush2.bf16.msra.mxu0 0
    %264 = vmatprep.subr.bf16.mxu0 0
    %265 = vmatpush2.bf16.msra.mxu0 0
    %266 = vmatprep.subr.bf16.mxu0 0
    %267 = vmatpush2.bf16.msra.mxu0 0
    %268 = vmatprep.subr.bf16.mxu0 0
    %269 = vmatpush2.bf16.msra.mxu0 0
    %270 = vmatprep.subr.bf16.mxu0 0
    %271 = vmatpush2.bf16.msra.mxu0 0
    %272 = vmatprep.mubr.bf16.mxu0 0
    %273 = vmatmul.mubr.bf16.gmra.mxu0 %v235
    %v274 = vpop.f32.mrf.mxu0
    %v275 = vadd.f32 0.0, %v274
    %v276 = vpop.f32.mrf.mxu0
    %v277 = vpop.f32.mrf.mxu0
    %v278 = vadd.f32 0.0, %v277
    %v279 = vpop.f32.mrf.mxu0
    %280 = vmatprep.mubr.bf16.mxu0 0
    %281 = vmatmul.mubr.bf16.gmra.mxu0 %v238
    %v282 = vpop.f32.mrf.mxu0
    %v283 = vadd.f32 0.0, %v282
    %v284 = vpop.f32.mrf.mxu0
    %v285 = vpop.f32.mrf.mxu0
    %v286 = vadd.f32 0.0, %v285
    %v287 = vpop.f32.mrf.mxu0
    %288 = vdwg.mxu0
    %v293 = vunpack.c.l.b16 %v213
    %v294 = vunpack.c.l.b16 %v214
    %v295 = vunpack.c.l.b16 %v215
    %v296 = vunpack.c.l.b16 %v216
    %v297 = vpack.c.b16 %v294, %v293
    %v298 = vpack.c.b16 %v296, %v295
    %v301 = vsel %vm233, %v297, 0
    %v304 = vsel %vm233, %v298, 0
    %306 = vmatprep.subr.bf16.mxu0 0
    %307 = vmatpush1.bf16.msra.mxu0 0
    %308 = vmatprep.subr.bf16.mxu0 0
    %309 = vmatpush1.bf16.msra.mxu0 0
    %310 = vmatprep.subr.bf16.mxu0 0
    %311 = vmatpush1.bf16.msra.mxu0 0
    %312 = vmatprep.subr.bf16.mxu0 0
    %313 = vmatpush1.bf16.msra.mxu0 0
    %314 = vmatprep.subr.bf16.mxu0 0
    %315 = vmatpush1.bf16.msra.mxu0 0
    %316 = vmatprep.subr.bf16.mxu0 0
    %317 = vmatpush1.bf16.msra.mxu0 0
    %318 = vmatprep.subr.bf16.mxu0 0
    %319 = vmatpush1.bf16.msra.mxu0 0
    %320 = vmatprep.subr.bf16.mxu0 0
    %321 = vmatpush1.bf16.msra.mxu0 %v181
    %322 = vmatprep.subr.bf16.mxu0 0
    %323 = vmatpush2.bf16.msra.mxu0 0
    %324 = vmatprep.subr.bf16.mxu0 0
    %325 = vmatpush2.bf16.msra.mxu0 0
    %326 = vmatprep.subr.bf16.mxu0 0
    %327 = vmatpush2.bf16.msra.mxu0 0
    %328 = vmatprep.subr.bf16.mxu0 0
    %329 = vmatpush2.bf16.msra.mxu0 0
    %330 = vmatprep.subr.bf16.mxu0 0
    %331 = vmatpush2.bf16.msra.mxu0 0
    %332 = vmatprep.subr.bf16.mxu0 0
    %333 = vmatpush2.bf16.msra.mxu0 0
    %334 = vmatprep.subr.bf16.mxu0 0
    %335 = vmatpush2.bf16.msra.mxu0 0
    %336 = vmatprep.subr.bf16.mxu0 0
    %337 = vmatpush2.bf16.msra.mxu0 0
    %338 = vmatprep.mubr.bf16.mxu0 0
    %339 = vmatmul.mubr.bf16.gmra.mxu0 %v301
    %v340 = vpop.f32.mrf.mxu0
    %v341 = vadd.f32 %v275, %v340
    %v342 = vpop.f32.mrf.mxu0
    %v343 = vpop.f32.mrf.mxu0
    %v344 = vadd.f32 %v278, %v343
    %v345 = vpop.f32.mrf.mxu0
    %346 = vmatprep.mubr.bf16.mxu0 0
    %347 = vmatmul.mubr.bf16.gmra.mxu0 %v304
    %v348 = vpop.f32.mrf.mxu0
    %v349 = vadd.f32 %v283, %v348
    %v350 = vpop.f32.mrf.mxu0
    %v351 = vpop.f32.mrf.mxu0
    %v352 = vadd.f32 %v286, %v351
    %v353 = vpop.f32.mrf.mxu0
    %354 = vdwg.mxu0
    %s355 = scalar_lea.vmem %s0, 32
    %v356 = vld [vmem:[%s355] sm:$0xf]
    %v357 = vld [vmem:[%s355 + $0x4] sm:$0xf]
    %v358 = vld [vmem:[%s355 + $0x8] sm:$0xf]
    %v359 = vld [vmem:[%s355 + $0xc] sm:$0xf]
    %v364 = vunpack.c.l.b16 %v356
    %v365 = vunpack.c.l.b16 %v357
    %v366 = vunpack.c.l.b16 %v358
    %v367 = vunpack.c.l.b16 %v359
    %v368 = vpack.c.b16 %v365, %v364
    %v369 = vpack.c.b16 %v367, %v366
    %370 = vrot.lane.b32.xlu0 %v181, 127
    %v371 = vpop.permute.xlu0 %370
    %372 = vrot.lane.b32.xlu0 %v186, 127
    %v373 = vpop.permute.xlu0 %372
    %vm374 = vcmask 1039360
    %v375 = vsel %vm374, %v371, %v373
    %v378 = vsel %vm233, %v368, 0
    %v381 = vsel %vm233, %v369, 0
    %383 = vmatprep.subr.bf16.mxu0 0
    %384 = vmatpush1.bf16.msra.mxu0 0
    %385 = vmatprep.subr.bf16.mxu0 0
    %386 = vmatpush1.bf16.msra.mxu0 0
    %387 = vmatprep.subr.bf16.mxu0 0
    %388 = vmatpush1.bf16.msra.mxu0 0
    %389 = vmatprep.subr.bf16.mxu0 0
    %390 = vmatpush1.bf16.msra.mxu0 0
    %391 = vmatprep.subr.bf16.mxu0 0
    %392 = vmatpush1.bf16.msra.mxu0 0
    %393 = vmatprep.subr.bf16.mxu0 0
    %394 = vmatpush1.bf16.msra.mxu0 0
    %395 = vmatprep.subr.bf16.mxu0 0
    %396 = vmatpush1.bf16.msra.mxu0 0
    %397 = vmatprep.subr.bf16.mxu0 0
    %398 = vmatpush1.bf16.msra.mxu0 %v375
    %399 = vmatprep.subr.bf16.mxu0 0
    %400 = vmatpush2.bf16.msra.mxu0 0
    %401 = vmatprep.subr.bf16.mxu0 0
    %402 = vmatpush2.bf16.msra.mxu0 0
    %403 = vmatprep.subr.bf16.mxu0 0
    %404 = vmatpush2.bf16.msra.mxu0 0
    %405 = vmatprep.subr.bf16.mxu0 0
    %406 = vmatpush2.bf16.msra.mxu0 0
    %407 = vmatprep.subr.bf16.mxu0 0
    %408 = vmatpush2.bf16.msra.mxu0 0
    %409 = vmatprep.subr.bf16.mxu0 0
    %410 = vmatpush2.bf16.msra.mxu0 0
    %411 = vmatprep.subr.bf16.mxu0 0
    %412 = vmatpush2.bf16.msra.mxu0 0
    %413 = vmatprep.subr.bf16.mxu0 0
    %414 = vmatpush2.bf16.msra.mxu0 0
    %415 = vmatprep.mubr.bf16.mxu0 0
    %416 = vmatmul.mubr.bf16.gmra.mxu0 %v378
    %v417 = vpop.f32.mrf.mxu0
    %v418 = vadd.f32 0.0, %v417
    %v419 = vpop.f32.mrf.mxu0
    %v420 = vpop.f32.mrf.mxu0
    %v421 = vadd.f32 0.0, %v420
    %v422 = vpop.f32.mrf.mxu0
    %423 = vmatprep.mubr.bf16.mxu0 0
    %424 = vmatmul.mubr.bf16.gmra.mxu0 %v381
    %v425 = vpop.f32.mrf.mxu0
    %v426 = vadd.f32 0.0, %v425
    %v427 = vpop.f32.mrf.mxu0
    %v428 = vpop.f32.mrf.mxu0
    %v429 = vadd.f32 0.0, %v428
    %v430 = vpop.f32.mrf.mxu0
    %431 = vdwg.mxu0
    %v432 = vadd.f32 %v341, %v418
    %v433 = vadd.f32 %v344, %v421
    %v434 = vadd.f32 %v349, %v426
    %v435 = vadd.f32 %v352, %v429
    %s436 = scalar_lea.vmem %s0, 48
    %v437 = vld [vmem:[%s436] sm:$0xf]
    %v438 = vld [vmem:[%s436 + $0x4] sm:$0xf]
    %v439 = vld [vmem:[%s436 + $0x8] sm:$0xf]
    %v440 = vld [vmem:[%s436 + $0xc] sm:$0xf]
    %v445 = vunpack.c.l.b16 %v437
    %v446 = vunpack.c.l.b16 %v438
    %v447 = vunpack.c.l.b16 %v439
    %v448 = vunpack.c.l.b16 %v440
    %v449 = vpack.c.b16 %v446, %v445
    %v450 = vpack.c.b16 %v448, %v447
    %v453 = vsel %vm233, %v449, 0
    %v456 = vsel %vm233, %v450, 0
    %458 = vmatprep.subr.bf16.mxu0 0
    %459 = vmatpush1.bf16.msra.mxu0 0
    %460 = vmatprep.subr.bf16.mxu0 0
    %461 = vmatpush1.bf16.msra.mxu0 0
    %462 = vmatprep.subr.bf16.mxu0 0
    %463 = vmatpush1.bf16.msra.mxu0 0
    %464 = vmatprep.subr.bf16.mxu0 0
    %465 = vmatpush1.bf16.msra.mxu0 0
    %466 = vmatprep.subr.bf16.mxu0 0
    %467 = vmatpush1.bf16.msra.mxu0 0
    %468 = vmatprep.subr.bf16.mxu0 0
    %469 = vmatpush1.bf16.msra.mxu0 0
    %470 = vmatprep.subr.bf16.mxu0 0
    %471 = vmatpush1.bf16.msra.mxu0 0
    %472 = vmatprep.subr.bf16.mxu0 0
    %473 = vmatpush1.bf16.msra.mxu0 %v207
    %474 = vmatprep.subr.bf16.mxu0 0
    %475 = vmatpush2.bf16.msra.mxu0 0
    %476 = vmatprep.subr.bf16.mxu0 0
    %477 = vmatpush2.bf16.msra.mxu0 0
    %478 = vmatprep.subr.bf16.mxu0 0
    %479 = vmatpush2.bf16.msra.mxu0 0
    %480 = vmatprep.subr.bf16.mxu0 0
    %481 = vmatpush2.bf16.msra.mxu0 0
    %482 = vmatprep.subr.bf16.mxu0 0
    %483 = vmatpush2.bf16.msra.mxu0 0
    %484 = vmatprep.subr.bf16.mxu0 0
    %485 = vmatpush2.bf16.msra.mxu0 0
    %486 = vmatprep.subr.bf16.mxu0 0
    %487 = vmatpush2.bf16.msra.mxu0 0
    %488 = vmatprep.subr.bf16.mxu0 0
    %489 = vmatpush2.bf16.msra.mxu0 0
    %490 = vmatprep.mubr.bf16.mxu0 0
    %491 = vmatmul.mubr.bf16.gmra.mxu0 %v453
    %v492 = vpop.f32.mrf.mxu0
    %v493 = vadd.f32 0.0, %v492
    %v494 = vpop.f32.mrf.mxu0
    %v495 = vpop.f32.mrf.mxu0
    %v496 = vadd.f32 0.0, %v495
    %v497 = vpop.f32.mrf.mxu0
    %498 = vmatprep.mubr.bf16.mxu0 0
    %499 = vmatmul.mubr.bf16.gmra.mxu0 %v456
    %v500 = vpop.f32.mrf.mxu0
    %v501 = vadd.f32 0.0, %v500
    %v502 = vpop.f32.mrf.mxu0
    %v503 = vpop.f32.mrf.mxu0
    %v504 = vadd.f32 0.0, %v503
    %v505 = vpop.f32.mrf.mxu0
    %506 = vdwg.mxu0
    %v507 = vadd.f32 %v432, %v493
    %v508 = vadd.f32 %v433, %v496
    %v509 = vadd.f32 %v434, %v501
    %v510 = vadd.f32 %v435, %v504
    %s511 = scalar_lea.vmem %s0, 64
    %v512 = vld [vmem:[%s511] sm:$0xf]
    %v513 = vld [vmem:[%s511 + $0x4] sm:$0xf]
    %v514 = vld [vmem:[%s511 + $0x8] sm:$0xf]
    %v515 = vld [vmem:[%s511 + $0xc] sm:$0xf]
    %v520 = vunpack.c.l.b16 %v512
    %v521 = vunpack.c.l.b16 %v513
    %v522 = vunpack.c.l.b16 %v514
    %v523 = vunpack.c.l.b16 %v515
    %v524 = vpack.c.b16 %v521, %v520
    %v525 = vpack.c.b16 %v523, %v522
    %v528 = vunpack.c.l.b16 %v173
    %v529 = vunpack.c.l.b16 %v174
    %v530 = vpack.c.b16 %v529, %v528
    %v533 = vsel %vm233, %v524, 0
    %v536 = vsel %vm233, %v525, 0
    %538 = vmatprep.subr.bf16.mxu0 0
    %539 = vmatpush1.bf16.msra.mxu0 0
    %540 = vmatprep.subr.bf16.mxu0 0
    %541 = vmatpush1.bf16.msra.mxu0 0
    %542 = vmatprep.subr.bf16.mxu0 0
    %543 = vmatpush1.bf16.msra.mxu0 0
    %544 = vmatprep.subr.bf16.mxu0 0
    %545 = vmatpush1.bf16.msra.mxu0 0
    %546 = vmatprep.subr.bf16.mxu0 0
    %547 = vmatpush1.bf16.msra.mxu0 0
    %548 = vmatprep.subr.bf16.mxu0 0
    %549 = vmatpush1.bf16.msra.mxu0 0
    %550 = vmatprep.subr.bf16.mxu0 0
    %551 = vmatpush1.bf16.msra.mxu0 0
    %552 = vmatprep.subr.bf16.mxu0 0
    %553 = vmatpush1.bf16.msra.mxu0 %v530
    %554 = vmatprep.subr.bf16.mxu0 0
    %555 = vmatpush2.bf16.msra.mxu0 0
    %556 = vmatprep.subr.bf16.mxu0 0
    %557 = vmatpush2.bf16.msra.mxu0 0
    %558 = vmatprep.subr.bf16.mxu0 0
    %559 = vmatpush2.bf16.msra.mxu0 0
    %560 = vmatprep.subr.bf16.mxu0 0
    %561 = vmatpush2.bf16.msra.mxu0 0
    %562 = vmatprep.subr.bf16.mxu0 0
    %563 = vmatpush2.bf16.msra.mxu0 0
    %564 = vmatprep.subr.bf16.mxu0 0
    %565 = vmatpush2.bf16.msra.mxu0 0
    %566 = vmatprep.subr.bf16.mxu0 0
    %567 = vmatpush2.bf16.msra.mxu0 0
    %568 = vmatprep.subr.bf16.mxu0 0
    %569 = vmatpush2.bf16.msra.mxu0 0
    %570 = vmatprep.mubr.bf16.mxu0 0
    %571 = vmatmul.mubr.bf16.gmra.mxu0 %v533
    %v572 = vpop.f32.mrf.mxu0
    %v573 = vadd.f32 0.0, %v572
    %v574 = vpop.f32.mrf.mxu0
    %v575 = vpop.f32.mrf.mxu0
    %v576 = vadd.f32 0.0, %v575
    %v577 = vpop.f32.mrf.mxu0
    %578 = vmatprep.mubr.bf16.mxu0 0
    %579 = vmatmul.mubr.bf16.gmra.mxu0 %v536
    %v580 = vpop.f32.mrf.mxu0
    %v581 = vadd.f32 0.0, %v580
    %v582 = vpop.f32.mrf.mxu0
    %v583 = vpop.f32.mrf.mxu0
    %v584 = vadd.f32 0.0, %v583
    %v585 = vpop.f32.mrf.mxu0
    %586 = vdwg.mxu0
    %v587 = vadd.f32 %v507, %v573
    %v588 = vadd.f32 %v508, %v576
    %v589 = vadd.f32 %v509, %v581
    %v590 = vadd.f32 %v510, %v584
    %s591 = scalar_lea.vmem %s0, 80
    %v592 = vld [vmem:[%s591] sm:$0xf]
    %v593 = vld [vmem:[%s591 + $0x4] sm:$0xf]
    %v594 = vld [vmem:[%s591 + $0x8] sm:$0xf]
    %v595 = vld [vmem:[%s591 + $0xc] sm:$0xf]
    %v600 = vunpack.c.l.b16 %v592
    %v601 = vunpack.c.l.b16 %v593
    %v602 = vunpack.c.l.b16 %v594
    %v603 = vunpack.c.l.b16 %v595
    %v604 = vpack.c.b16 %v601, %v600
    %v605 = vpack.c.b16 %v603, %v602
    %606 = vrot.lane.b32.xlu0 %v207, 127
    %v607 = vpop.permute.xlu0 %606
    %608 = vrot.lane.b32.xlu0 %v212, 127
    %v609 = vpop.permute.xlu0 %608
    %v610 = vsel %vm374, %v607, %v609
    %v613 = vsel %vm233, %v604, 0
    %v616 = vsel %vm233, %v605, 0
    %618 = vmatprep.subr.bf16.mxu0 0
    %619 = vmatpush1.bf16.msra.mxu0 0
    %620 = vmatprep.subr.bf16.mxu0 0
    %621 = vmatpush1.bf16.msra.mxu0 0
    %622 = vmatprep.subr.bf16.mxu0 0
    %623 = vmatpush1.bf16.msra.mxu0 0
    %624 = vmatprep.subr.bf16.mxu0 0
    %625 = vmatpush1.bf16.msra.mxu0 0
    %626 = vmatprep.subr.bf16.mxu0 0
    %627 = vmatpush1.bf16.msra.mxu0 0
    %628 = vmatprep.subr.bf16.mxu0 0
    %629 = vmatpush1.bf16.msra.mxu0 0
    %630 = vmatprep.subr.bf16.mxu0 0
    %631 = vmatpush1.bf16.msra.mxu0 0
    %632 = vmatprep.subr.bf16.mxu0 0
    %633 = vmatpush1.bf16.msra.mxu0 %v610
    %634 = vmatprep.subr.bf16.mxu0 0
    %635 = vmatpush2.bf16.msra.mxu0 0
    %636 = vmatprep.subr.bf16.mxu0 0
    %637 = vmatpush2.bf16.msra.mxu0 0
    %638 = vmatprep.subr.bf16.mxu0 0
    %639 = vmatpush2.bf16.msra.mxu0 0
    %640 = vmatprep.subr.bf16.mxu0 0
    %641 = vmatpush2.bf16.msra.mxu0 0
    %642 = vmatprep.subr.bf16.mxu0 0
    %643 = vmatpush2.bf16.msra.mxu0 0
    %644 = vmatprep.subr.bf16.mxu0 0
    %645 = vmatpush2.bf16.msra.mxu0 0
    %646 = vmatprep.subr.bf16.mxu0 0
    %647 = vmatpush2.bf16.msra.mxu0 0
    %648 = vmatprep.subr.bf16.mxu0 0
    %649 = vmatpush2.bf16.msra.mxu0 0
    %650 = vmatprep.mubr.bf16.mxu0 0
    %651 = vmatmul.mubr.bf16.gmra.mxu0 %v613
    %v652 = vpop.f32.mrf.mxu0
    %v653 = vadd.f32 0.0, %v652
    %v654 = vpop.f32.mrf.mxu0
    %v655 = vpop.f32.mrf.mxu0
    %v656 = vadd.f32 0.0, %v655
    %v657 = vpop.f32.mrf.mxu0
    %658 = vmatprep.mubr.bf16.mxu0 0
    %659 = vmatmul.mubr.bf16.gmra.mxu0 %v616
    %v660 = vpop.f32.mrf.mxu0
    %v661 = vadd.f32 0.0, %v660
    %v662 = vpop.f32.mrf.mxu0
    %v663 = vpop.f32.mrf.mxu0
    %v664 = vadd.f32 0.0, %v663
    %v665 = vpop.f32.mrf.mxu0
    %666 = vdwg.mxu0
    %v667 = vadd.f32 %v587, %v653
    %v668 = vadd.f32 %v588, %v656
    %v669 = vadd.f32 %v589, %v661
    %v670 = vadd.f32 %v590, %v664
    %s671 = scalar_lea.vmem %s0, 96
    %v672 = vld [vmem:[%s671] sm:$0xf]
    %v673 = vld [vmem:[%s671 + $0x4] sm:$0xf]
    %v674 = vld [vmem:[%s671 + $0x8] sm:$0xf]
    %v675 = vld [vmem:[%s671 + $0xc] sm:$0xf]
    %v680 = vunpack.c.l.b16 %v672
    %v681 = vunpack.c.l.b16 %v673
    %v682 = vunpack.c.l.b16 %v674
    %v683 = vunpack.c.l.b16 %v675
    %v684 = vpack.c.b16 %v681, %v680
    %v685 = vpack.c.b16 %v683, %v682
    %686 = vrot.lane.b32.xlu0 %v181, 125
    %v687 = vpop.permute.xlu0 %686
    %688 = vrot.lane.b32.xlu0 %v186, 125
    %v689 = vpop.permute.xlu0 %688
    %vm690 = vcmask 1022976
    %v691 = vsel %vm690, %v687, %v689
    %v694 = vsel %vm233, %v684, 0
    %v697 = vsel %vm233, %v685, 0
    %699 = vmatprep.subr.bf16.mxu0 0
    %700 = vmatpush1.bf16.msra.mxu0 0
    %701 = vmatprep.subr.bf16.mxu0 0
    %702 = vmatpush1.bf16.msra.mxu0 0
    %703 = vmatprep.subr.bf16.mxu0 0
    %704 = vmatpush1.bf16.msra.mxu0 0
    %705 = vmatprep.subr.bf16.mxu0 0
    %706 = vmatpush1.bf16.msra.mxu0 0
    %707 = vmatprep.subr.bf16.mxu0 0
    %708 = vmatpush1.bf16.msra.mxu0 0
    %709 = vmatprep.subr.bf16.mxu0 0
    %710 = vmatpush1.bf16.msra.mxu0 0
    %711 = vmatprep.subr.bf16.mxu0 0
    %712 = vmatpush1.bf16.msra.mxu0 0
    %713 = vmatprep.subr.bf16.mxu0 0
    %714 = vmatpush1.bf16.msra.mxu0 %v691
    %715 = vmatprep.subr.bf16.mxu0 0
    %716 = vmatpush2.bf16.msra.mxu0 0
    %717 = vmatprep.subr.bf16.mxu0 0
    %718 = vmatpush2.bf16.msra.mxu0 0
    %719 = vmatprep.subr.bf16.mxu0 0
    %720 = vmatpush2.bf16.msra.mxu0 0
    %721 = vmatprep.subr.bf16.mxu0 0
    %722 = vmatpush2.bf16.msra.mxu0 0
    %723 = vmatprep.subr.bf16.mxu0 0
    %724 = vmatpush2.bf16.msra.mxu0 0
    %725 = vmatprep.subr.bf16.mxu0 0
    %726 = vmatpush2.bf16.msra.mxu0 0
    %727 = vmatprep.subr.bf16.mxu0 0
    %728 = vmatpush2.bf16.msra.mxu0 0
    %729 = vmatprep.subr.bf16.mxu0 0
    %730 = vmatpush2.bf16.msra.mxu0 0
    %731 = vmatprep.mubr.bf16.mxu0 0
    %732 = vmatmul.mubr.bf16.gmra.mxu0 %v694
    %v733 = vpop.f32.mrf.mxu0
    %v734 = vadd.f32 0.0, %v733
    %v735 = vpop.f32.mrf.mxu0
    %v736 = vpop.f32.mrf.mxu0
    %v737 = vadd.f32 0.0, %v736
    %v738 = vpop.f32.mrf.mxu0
    %739 = vmatprep.mubr.bf16.mxu0 0
    %740 = vmatmul.mubr.bf16.gmra.mxu0 %v697
    %v741 = vpop.f32.mrf.mxu0
    %v742 = vadd.f32 0.0, %v741
    %v743 = vpop.f32.mrf.mxu0
    %v744 = vpop.f32.mrf.mxu0
    %v745 = vadd.f32 0.0, %v744
    %v746 = vpop.f32.mrf.mxu0
    %747 = vdwg.mxu0
    %v748 = vadd.f32 %v667, %v734
    %v749 = vadd.f32 %v668, %v737
    %v750 = vadd.f32 %v669, %v742
    %v751 = vadd.f32 %v670, %v745
    %s752 = scalar_lea.vmem %s0, 112
    %v753 = vld [vmem:[%s752] sm:$0xf]
    %v754 = vld [vmem:[%s752 + $0x4] sm:$0xf]
    %v755 = vld [vmem:[%s752 + $0x8] sm:$0xf]
    %v756 = vld [vmem:[%s752 + $0xc] sm:$0xf]
    %v761 = vunpack.c.l.b16 %v753
    %v762 = vunpack.c.l.b16 %v754
    %v763 = vunpack.c.l.b16 %v755
    %v764 = vunpack.c.l.b16 %v756
    %v765 = vpack.c.b16 %v762, %v761
    %v766 = vpack.c.b16 %v764, %v763
    %767 = vrot.lane.b32.xlu0 %v194, 125
    %v768 = vpop.permute.xlu0 %767
    %769 = vrot.lane.b32.xlu0 %v199, 125
    %v770 = vpop.permute.xlu0 %769
    %v771 = vsel %vm690, %v768, %v770
    %v774 = vsel %vm233, %v765, 0
    %v777 = vsel %vm233, %v766, 0
    %779 = vmatprep.subr.bf16.mxu0 0
    %780 = vmatpush1.bf16.msra.mxu0 0
    %781 = vmatprep.subr.bf16.mxu0 0
    %782 = vmatpush1.bf16.msra.mxu0 0
    %783 = vmatprep.subr.bf16.mxu0 0
    %784 = vmatpush1.bf16.msra.mxu0 0
    %785 = vmatprep.subr.bf16.mxu0 0
    %786 = vmatpush1.bf16.msra.mxu0 0
    %787 = vmatprep.subr.bf16.mxu0 0
    %788 = vmatpush1.bf16.msra.mxu0 0
    %789 = vmatprep.subr.bf16.mxu0 0
    %790 = vmatpush1.bf16.msra.mxu0 0
    %791 = vmatprep.subr.bf16.mxu0 0
    %792 = vmatpush1.bf16.msra.mxu0 0
    %793 = vmatprep.subr.bf16.mxu0 0
    %794 = vmatpush1.bf16.msra.mxu0 %v771
    %795 = vmatprep.subr.bf16.mxu0 0
    %796 = vmatpush2.bf16.msra.mxu0 0
    %797 = vmatprep.subr.bf16.mxu0 0
    %798 = vmatpush2.bf16.msra.mxu0 0
    %799 = vmatprep.subr.bf16.mxu0 0
    %800 = vmatpush2.bf16.msra.mxu0 0
    %801 = vmatprep.subr.bf16.mxu0 0
    %802 = vmatpush2.bf16.msra.mxu0 0
    %803 = vmatprep.subr.bf16.mxu0 0
    %804 = vmatpush2.bf16.msra.mxu0 0
    %805 = vmatprep.subr.bf16.mxu0 0
    %806 = vmatpush2.bf16.msra.mxu0 0
    %807 = vmatprep.subr.bf16.mxu0 0
    %808 = vmatpush2.bf16.msra.mxu0 0
    %809 = vmatprep.subr.bf16.mxu0 0
    %810 = vmatpush2.bf16.msra.mxu0 0
    %811 = vmatprep.mubr.bf16.mxu0 0
    %812 = vmatmul.mubr.bf16.gmra.mxu0 %v774
    %v813 = vpop.f32.mrf.mxu0
    %v814 = vadd.f32 0.0, %v813
    %v815 = vpop.f32.mrf.mxu0
    %v816 = vpop.f32.mrf.mxu0
    %v817 = vadd.f32 0.0, %v816
    %v818 = vpop.f32.mrf.mxu0
    %819 = vmatprep.mubr.bf16.mxu0 0
    %820 = vmatmul.mubr.bf16.gmra.mxu0 %v777
    %v821 = vpop.f32.mrf.mxu0
    %v822 = vadd.f32 0.0, %v821
    %v823 = vpop.f32.mrf.mxu0
    %v824 = vpop.f32.mrf.mxu0
    %v825 = vadd.f32 0.0, %v824
    %v826 = vpop.f32.mrf.mxu0
    %827 = vdwg.mxu0
    %v828 = vadd.f32 %v748, %v814
    %v829 = vadd.f32 %v749, %v817
    %v830 = vadd.f32 %v750, %v822
    %v831 = vadd.f32 %v751, %v825
    %s832 = scalar_lea.vmem %s0, 128
    %v833 = vld [vmem:[%s832] sm:$0xf]
    %v834 = vld [vmem:[%s832 + $0x4] sm:$0xf]
    %v835 = vld [vmem:[%s832 + $0x8] sm:$0xf]
    %v836 = vld [vmem:[%s832 + $0xc] sm:$0xf]
    %v841 = vunpack.c.l.b16 %v833
    %v842 = vunpack.c.l.b16 %v834
    %v843 = vunpack.c.l.b16 %v835
    %v844 = vunpack.c.l.b16 %v836
    %v845 = vpack.c.b16 %v842, %v841
    %v846 = vpack.c.b16 %v844, %v843
    %847 = vrot.lane.b32.xlu0 %v181, 124
    %v848 = vpop.permute.xlu0 %847
    %849 = vrot.lane.b32.xlu0 %v186, 124
    %v850 = vpop.permute.xlu0 %849
    %vm851 = vcmask 1014784
    %v852 = vsel %vm851, %v848, %v850
    %v855 = vsel %vm233, %v845, 0
    %v858 = vsel %vm233, %v846, 0
    %860 = vmatprep.subr.bf16.mxu0 0
    %861 = vmatpush1.bf16.msra.mxu0 0
    %862 = vmatprep.subr.bf16.mxu0 0
    %863 = vmatpush1.bf16.msra.mxu0 0
    %864 = vmatprep.subr.bf16.mxu0 0
    %865 = vmatpush1.bf16.msra.mxu0 0
    %866 = vmatprep.subr.bf16.mxu0 0
    %867 = vmatpush1.bf16.msra.mxu0 0
    %868 = vmatprep.subr.bf16.mxu0 0
    %869 = vmatpush1.bf16.msra.mxu0 0
    %870 = vmatprep.subr.bf16.mxu0 0
    %871 = vmatpush1.bf16.msra.mxu0 0
    %872 = vmatprep.subr.bf16.mxu0 0
    %873 = vmatpush1.bf16.msra.mxu0 0
    %874 = vmatprep.subr.bf16.mxu0 0
    %875 = vmatpush1.bf16.msra.mxu0 %v852
    %876 = vmatprep.subr.bf16.mxu0 0
    %877 = vmatpush2.bf16.msra.mxu0 0
    %878 = vmatprep.subr.bf16.mxu0 0
    %879 = vmatpush2.bf16.msra.mxu0 0
    %880 = vmatprep.subr.bf16.mxu0 0
    %881 = vmatpush2.bf16.msra.mxu0 0
    %882 = vmatprep.subr.bf16.mxu0 0
    %883 = vmatpush2.bf16.msra.mxu0 0
    %884 = vmatprep.subr.bf16.mxu0 0
    %885 = vmatpush2.bf16.msra.mxu0 0
    %886 = vmatprep.subr.bf16.mxu0 0
    %887 = vmatpush2.bf16.msra.mxu0 0
    %888 = vmatprep.subr.bf16.mxu0 0
    %889 = vmatpush2.bf16.msra.mxu0 0
    %890 = vmatprep.subr.bf16.mxu0 0
    %891 = vmatpush2.bf16.msra.mxu0 0
    %892 = vmatprep.mubr.bf16.mxu0 0
    %893 = vmatmul.mubr.bf16.gmra.mxu0 %v855
    %v894 = vpop.f32.mrf.mxu0
    %v895 = vadd.f32 0.0, %v894
    %v896 = vpop.f32.mrf.mxu0
    %v897 = vpop.f32.mrf.mxu0
    %v898 = vadd.f32 0.0, %v897
    %v899 = vpop.f32.mrf.mxu0
    %900 = vmatprep.mubr.bf16.mxu0 0
    %901 = vmatmul.mubr.bf16.gmra.mxu0 %v858
    %v902 = vpop.f32.mrf.mxu0
    %v903 = vadd.f32 0.0, %v902
    %v904 = vpop.f32.mrf.mxu0
    %v905 = vpop.f32.mrf.mxu0
    %v906 = vadd.f32 0.0, %v905
    %v907 = vpop.f32.mrf.mxu0
    %908 = vdwg.mxu0
    %v909 = vadd.f32 %v828, %v895
    %v910 = vadd.f32 %v829, %v898
    %v911 = vadd.f32 %v830, %v903
    %v912 = vadd.f32 %v831, %v906
    %v913 = vld [vmem:[%s1] sm:$0xff]
    %v914 = vld [vmem:[%s1 + $0x8] sm:$0xff]
    %v915 = vld [vmem:[%s1 + $0x10] sm:$0xff]
    %v916 = vld [vmem:[%s1 + $0x18] sm:$0xff]
    %918 = vset.pattern.permute.xlu0 0
    %919 = vperm.xlu0 %918, %v913
    %v920 = vpop.permute.xlu0 %919
    %923 = vset.pattern.permute.xlu0 0
    %924 = vperm.xlu0 %923, %v914
    %v925 = vpop.permute.xlu0 %924
    %928 = vset.pattern.permute.xlu0 0
    %929 = vperm.xlu0 %928, %v915
    %v930 = vpop.permute.xlu0 %929
    %933 = vset.pattern.permute.xlu0 0
    %934 = vperm.xlu0 %933, %v916
    %v935 = vpop.permute.xlu0 %934
    %v937 = vadd.f32 %v909, %v920
    %v938 = vadd.f32 %v910, %v925
    %v939 = vadd.f32 %v911, %v930
    %v940 = vadd.f32 %v912, %v935
    %v941 = vmax.f32 %v937, 0.0
    %v942 = vmax.f32 %v938, 0.0
    %v943 = vmax.f32 %v939, 0.0
    %v944 = vmax.f32 %v940, 0.0
    %v945 = vpack.c.bf16 %v942, %v941
    %v946 = vpack.c.bf16 %v944, %v943
    %v949 = vunpack.c.l.b16 %v945
    %v950 = vunpack.c.h.b16 %v945
    %v951 = vunpack.c.l.b16 %v946
    %v952 = vunpack.c.h.b16 %v946
    %v953 = vpack.c.b16 %v949, %v949
    %v954 = vpack.c.b16 %v950, %v950
    %v955 = vpack.c.b16 %v951, %v951
    %v956 = vpack.c.b16 %v952, %v952
    %961 = vst [vmem:[%s4] sm:$0xf] %v953
    %962 = vst [vmem:[%s4 + $0x4] sm:$0xf] %v954
    %963 = vst [vmem:[%s4 + $0x8] sm:$0xf] %v955
    %964 = vst [vmem:[%s4 + $0xc] sm:$0xf] %v956
    // Predicated region
    $region100: #{backbone_fpn_forward.11} parent=1 // pred_check
      _
    $region101: #{backbone_fpn_forward.11} parent=1 // pred_check_branch
      %966 = sbr.rel (0) target = $region103
    $region102: #{backbone_fpn_forward.11} parent=1 // pred_region
      _
    $region103: #{backbone_fpn_forward.11} parent=1 // pred_fallthru
      _
    // Predicated region
    $region104: #{backbone_fpn_forward.11} parent=1 // pred_check
      _
    $region105: #{backbone_fpn_forward.11} parent=1 // pred_check_branch
      %968 = sbr.rel (0) target = $region107
    $region106: #{backbone_fpn_forward.11} parent=1 // pred_region
      _
    $region107: #{backbone_fpn_forward.11} parent=1 // pred_fallthru
      _

// kernel: backbone_fpn_forward.14
$region0: #{backbone_fpn_forward.14}
  #allocation0 [shape = 'u32[]', space=smem, size = 0x4, offset = 0x4, fixed_abs, tag = 'smem constant byte address 0x4 - core index']
  #allocation1 [shape = 'u32[144,128]{1,0:T(1,128)}', space=vmem, size = 0x12000, scoped, tag = 'internal scratch']
  %s0 = inlined_call_operand.vmem [shape: bf16[1,8,16], index: 0, kind: input, shape index: {}]
  %s1 = inlined_call_operand.vmem [shape: f32[8,1], index: 1, kind: input, shape index: {}]
  %s2 = inlined_call_operand.vmem [shape: bf16[1,16,128], index: 2, kind: input, shape index: {}]
  %s3 = inlined_call_operand.vmem [shape: bf16[8,128], index: 3, kind: input, shape index: {}]
  %s4 = inlined_call_operand.vmem [shape: bf16[8,128], index: 4, kind: output, shape index: {}]
  %s5 = sld [smem:[#allocation0]]
  $region26: #{backbone_fpn_forward.14} parent=0
    _
  %s7 = ssub.s32 1, %s5
  %s8 = scalar_select 0, %s7, %s5
  // Predicated region
  $region2: #{backbone_fpn_forward.14} parent=0 // pred_check
    _
  $region3: #{backbone_fpn_forward.14} parent=0 // pred_check_branch
    %10 = sbr.rel (0) target = $region5
  $region4: #{backbone_fpn_forward.14} parent=0 // pred_region
    _
  $region5: #{backbone_fpn_forward.14} parent=0 // pred_fallthru
    _
  // Predicated region
  $region6: #{backbone_fpn_forward.14} parent=0 // pred_check
    _
  $region7: #{backbone_fpn_forward.14} parent=0 // pred_check_branch
    %12 = sbr.rel (0) target = $region9
  $region8: #{backbone_fpn_forward.14} parent=0 // pred_region
    _
  $region9: #{backbone_fpn_forward.14} parent=0 // pred_fallthru
    _
  // Predicated region
  $region10: #{backbone_fpn_forward.14} parent=0 // pred_check
    _
  $region11: #{backbone_fpn_forward.14} parent=0 // pred_check_branch
    %14 = sbr.rel (0) target = $region13
  $region12: #{backbone_fpn_forward.14} parent=0 // pred_region
    _
  $region13: #{backbone_fpn_forward.14} parent=0 // pred_fallthru
    _
  // Predicated region
  $region14: #{backbone_fpn_forward.14} parent=0 // pred_check
    _
  $region15: #{backbone_fpn_forward.14} parent=0 // pred_check_branch
    %16 = sbr.rel (0) target = $region17
  $region16: #{backbone_fpn_forward.14} parent=0 // pred_region
    _
  $region17: #{backbone_fpn_forward.14} parent=0 // pred_fallthru
    _
  %v18 = vld [vmem:[%s2] sm:$0xf]
  %v19 = vld [vmem:[%s2 + $0x4] sm:$0xf]
  %v20 = vld [vmem:[%s0] sm:$0xf]
  %v21 = vld [vmem:[%s1] sm:$0xff]
  %23 = vset.pattern.permute.xlu0 0
  %24 = vperm.xlu0 %23, %v21
  %v25 = vpop.permute.xlu0 %24
  %v29 = vunpack.c.l.b16 %v18
  %v30 = vunpack.c.l.b16 %v19
  %v31 = vpack.c.b16 %v30, %v29
  %vm33 = vcmask 130048
  %v35 = vsel %vm33, %v20, 0
  %37 = vmatprep.subr.bf16.mxu0 0
  %38 = vmatpush1.bf16.msra.mxu0 0
  %39 = vmatprep.subr.bf16.mxu0 0
  %40 = vmatpush1.bf16.msra.mxu0 0
  %41 = vmatprep.subr.bf16.mxu0 0
  %42 = vmatpush1.bf16.msra.mxu0 0
  %43 = vmatprep.subr.bf16.mxu0 0
  %44 = vmatpush1.bf16.msra.mxu0 0
  %45 = vmatprep.subr.bf16.mxu0 0
  %46 = vmatpush1.bf16.msra.mxu0 0
  %47 = vmatprep.subr.bf16.mxu0 0
  %48 = vmatpush1.bf16.msra.mxu0 0
  %49 = vmatprep.subr.bf16.mxu0 0
  %50 = vmatpush1.bf16.msra.mxu0 0
  %51 = vmatprep.subr.bf16.mxu0 0
  %52 = vmatpush1.bf16.msra.mxu0 %v31
  %53 = vmatprep.subr.bf16.mxu0 0
  %54 = vmatpush2.bf16.msra.mxu0 0
  %55 = vmatprep.subr.bf16.mxu0 0
  %56 = vmatpush2.bf16.msra.mxu0 0
  %57 = vmatprep.subr.bf16.mxu0 0
  %58 = vmatpush2.bf16.msra.mxu0 0
  %59 = vmatprep.subr.bf16.mxu0 0
  %60 = vmatpush2.bf16.msra.mxu0 0
  %61 = vmatprep.subr.bf16.mxu0 0
  %62 = vmatpush2.bf16.msra.mxu0 0
  %63 = vmatprep.subr.bf16.mxu0 0
  %64 = vmatpush2.bf16.msra.mxu0 0
  %65 = vmatprep.subr.bf16.mxu0 0
  %66 = vmatpush2.bf16.msra.mxu0 0
  %67 = vmatprep.subr.bf16.mxu0 0
  %68 = vmatpush2.bf16.msra.mxu0 0
  %69 = vmatprep.mubr.bf16.mxu0 0
  %70 = vmatmul.mubr.bf16.gmra.mxu0 %v35
  %v71 = vpop.f32.mrf.mxu0
  %v72 = vadd.f32 %v25, %v71
  %v73 = vpop.f32.mrf.mxu0
  %v74 = vpop.f32.mrf.mxu0
  %v75 = vpop.f32.mrf.mxu0
  %76 = vdwg.mxu0
  %v77 = vld [vmem:[%s3] sm:$0xf]
  %v78 = vunpack.c.l.bf16 %v77
  %v79 = vadd.f32 %v72, %v78
  %v80 = vpack.c.bf16 %v79, %v79
  %81 = vst [vmem:[%s4] sm:$0xf] %v80
  // Predicated region
  $region18: #{backbone_fpn_forward.14} parent=0 // pred_check
    _
  $region19: #{backbone_fpn_forward.14} parent=0 // pred_check_branch
    %83 = sbr.rel (0) target = $region21
  $region20: #{backbone_fpn_forward.14} parent=0 // pred_region
    _
  $region21: #{backbone_fpn_forward.14} parent=0 // pred_fallthru
    _
  // Predicated region
  $region22: #{backbone_fpn_forward.14} parent=0 // pred_check
    _
  $region23: #{backbone_fpn_forward.14} parent=0 // pred_check_branch
    %85 = sbr.rel (0) target = $region25
  $region24: #{backbone_fpn_forward.14} parent=0 // pred_region
    _
  $region25: #{backbone_fpn_forward.14} parent=0 // pred_fallthru
    _

// kernel: backbone_fpn_forward.16
$region0: #{backbone_fpn_forward.16}
  #allocation0 [shape = 'u32[]', space=smem, size = 0x4, offset = 0x4, fixed_abs, tag = 'smem constant byte address 0x4 - core index']
  #allocation1 [shape = 'u32[144,128]{1,0:T(1,128)}', space=vmem, size = 0x12000, scoped, tag = 'internal scratch']
  %s0 = inlined_call_operand.vmem [shape: bf16[1,8,8], index: 0, kind: input, shape index: {}]
  %s1 = inlined_call_operand.vmem [shape: f32[8,1], index: 1, kind: input, shape index: {}]
  %s2 = inlined_call_operand.vmem [shape: bf16[1,8,128], index: 2, kind: input, shape index: {}]
  %s3 = inlined_call_operand.vmem [shape: bf16[8,128], index: 3, kind: input, shape index: {}]
  %s4 = inlined_call_operand.vmem [shape: bf16[8,128], index: 4, kind: output, shape index: {}]
  %s5 = sld [smem:[#allocation0]]
  $region26: #{backbone_fpn_forward.16} parent=0
    _
  %s7 = ssub.s32 1, %s5
  %s8 = scalar_select 0, %s7, %s5
  // Predicated region
  $region2: #{backbone_fpn_forward.16} parent=0 // pred_check
    _
  $region3: #{backbone_fpn_forward.16} parent=0 // pred_check_branch
    %10 = sbr.rel (0) target = $region5
  $region4: #{backbone_fpn_forward.16} parent=0 // pred_region
    _
  $region5: #{backbone_fpn_forward.16} parent=0 // pred_fallthru
    _
  // Predicated region
  $region6: #{backbone_fpn_forward.16} parent=0 // pred_check
    _
  $region7: #{backbone_fpn_forward.16} parent=0 // pred_check_branch
    %12 = sbr.rel (0) target = $region9
  $region8: #{backbone_fpn_forward.16} parent=0 // pred_region
    _
  $region9: #{backbone_fpn_forward.16} parent=0 // pred_fallthru
    _
  // Predicated region
  $region10: #{backbone_fpn_forward.16} parent=0 // pred_check
    _
  $region11: #{backbone_fpn_forward.16} parent=0 // pred_check_branch
    %14 = sbr.rel (0) target = $region13
  $region12: #{backbone_fpn_forward.16} parent=0 // pred_region
    _
  $region13: #{backbone_fpn_forward.16} parent=0 // pred_fallthru
    _
  // Predicated region
  $region14: #{backbone_fpn_forward.16} parent=0 // pred_check
    _
  $region15: #{backbone_fpn_forward.16} parent=0 // pred_check_branch
    %16 = sbr.rel (0) target = $region17
  $region16: #{backbone_fpn_forward.16} parent=0 // pred_region
    _
  $region17: #{backbone_fpn_forward.16} parent=0 // pred_fallthru
    _
  %v18 = vld [vmem:[%s2] sm:$0xf]
  %v19 = vld [vmem:[%s0] sm:$0xf]
  %v20 = vld [vmem:[%s1] sm:$0xff]
  %22 = vset.pattern.permute.xlu0 0
  %23 = vperm.xlu0 %22, %v20
  %v24 = vpop.permute.xlu0 %23
  %vm26 = vcmask 64512
  %v28 = vsel %vm26, %v19, 0
  %vm30 = vcmask 1043456
  %v32 = vsel %vm30, %v18, 0
  %34 = vmatprep.subr.bf16.mxu0 0
  %35 = vmatpush1.bf16.msra.mxu0 0
  %36 = vmatprep.subr.bf16.mxu0 0
  %37 = vmatpush1.bf16.msra.mxu0 0
  %38 = vmatprep.subr.bf16.mxu0 0
  %39 = vmatpush1.bf16.msra.mxu0 0
  %40 = vmatprep.subr.bf16.mxu0 0
  %41 = vmatpush1.bf16.msra.mxu0 0
  %42 = vmatprep.subr.bf16.mxu0 0
  %43 = vmatpush1.bf16.msra.mxu0 0
  %44 = vmatprep.subr.bf16.mxu0 0
  %45 = vmatpush1.bf16.msra.mxu0 0
  %46 = vmatprep.subr.bf16.mxu0 0
  %47 = vmatpush1.bf16.msra.mxu0 0
  %48 = vmatprep.subr.bf16.mxu0 0
  %49 = vmatpush1.bf16.msra.mxu0 %v32
  %50 = vmatprep.subr.bf16.mxu0 0
  %51 = vmatpush2.bf16.msra.mxu0 0
  %52 = vmatprep.subr.bf16.mxu0 0
  %53 = vmatpush2.bf16.msra.mxu0 0
  %54 = vmatprep.subr.bf16.mxu0 0
  %55 = vmatpush2.bf16.msra.mxu0 0
  %56 = vmatprep.subr.bf16.mxu0 0
  %57 = vmatpush2.bf16.msra.mxu0 0
  %58 = vmatprep.subr.bf16.mxu0 0
  %59 = vmatpush2.bf16.msra.mxu0 0
  %60 = vmatprep.subr.bf16.mxu0 0
  %61 = vmatpush2.bf16.msra.mxu0 0
  %62 = vmatprep.subr.bf16.mxu0 0
  %63 = vmatpush2.bf16.msra.mxu0 0
  %64 = vmatprep.subr.bf16.mxu0 0
  %65 = vmatpush2.bf16.msra.mxu0 0
  %66 = vmatprep.mubr.bf16.mxu0 0
  %67 = vmatmul.mubr.bf16.gmra.mxu0 %v28
  %v68 = vpop.f32.mrf.mxu0
  %v69 = vadd.f32 %v24, %v68
  %v70 = vpop.f32.mrf.mxu0
  %v71 = vpop.f32.mrf.mxu0
  %v72 = vpop.f32.mrf.mxu0
  %73 = vdwg.mxu0
  %v74 = vld [vmem:[%s3] sm:$0xf]
  %v75 = vunpack.c.l.bf16 %v74
  %v76 = vadd.f32 %v69, %v75
  %v77 = vpack.c.bf16 %v76, %v76
  %78 = vst [vmem:[%s4] sm:$0xf] %v77
  // Predicated region
  $region18: #{backbone_fpn_forward.16} parent=0 // pred_check
    _
  $region19: #{backbone_fpn_forward.16} parent=0 // pred_check_branch
    %80 = sbr.rel (0) target = $region21
  $region20: #{backbone_fpn_forward.16} parent=0 // pred_region
    _
  $region21: #{backbone_fpn_forward.16} parent=0 // pred_fallthru
    _
  // Predicated region
  $region22: #{backbone_fpn_forward.16} parent=0 // pred_check
    _
  $region23: #{backbone_fpn_forward.16} parent=0 // pred_check_branch
    %82 = sbr.rel (0) target = $region25
  $region24: #{backbone_fpn_forward.16} parent=0 // pred_region
    _
  $region25: #{backbone_fpn_forward.16} parent=0 // pred_fallthru
    _

// kernel: backbone_fpn_forward.17
$region0: #{backbone_fpn_forward.17}
  #allocation0 [shape = 'u32[]', space=smem, size = 0x4, offset = 0x4, fixed_abs, tag = 'smem constant byte address 0x4 - core index']
  #allocation1 [shape = 'u32[144,128]{1,0:T(1,128)}', space=vmem, size = 0x12000, scoped, tag = 'internal scratch']
  %s0 = inlined_call_operand.vmem [shape: bf16[9,8,8], index: 0, kind: input, shape index: {}]
  %s1 = inlined_call_operand.vmem [shape: f32[8,1], index: 1, kind: input, shape index: {}]
  %s2 = inlined_call_operand.vmem [shape: bf16[1,8,384], index: 2, kind: input, shape index: {}, may-alias: {2,3}]
  %s3 = inlined_call_operand.vmem [shape: bf16[1,8,384], index: 3, kind: input, shape index: {}, may-alias: {2,3}]
  %s4 = inlined_call_operand.vmem [shape: f32[8,256], index: 4, kind: output, shape index: {}]
  %s5 = sld [smem:[#allocation0]]
  $region49: #{backbone_fpn_forward.17} parent=0
    _
  %s7 = ssub.s32 1, %s5
  %s8 = scalar_select 0, %s7, %s5
  loop: start=0, step=1, limit=4
  $region2: #{backbone_fpn_forward.17} parent=0 // loop_pre_header
    _
  $region3: #{backbone_fpn_forward.17} parent=0 // loop_header
    %s10 = sphi 0, %s14
    %p11 = scmp.ge.s32.totalorder %s10, 4
    %s18 = sphi 0, %s18
    %s20 = sphi 0, %s18
    %s21 = sphi 0, %s20
    %s35 = sphi 0, %s21
    %s39 = sphi 0, %s39
    %s41 = sphi 0, %s39
    %s42 = sphi 0, %s41
    %s56 = sphi 0, %s42
    %s62 = sphi 0, %s64
    %s65 = sphi 0, %s62
    %s66 = sphi 0, %s65
    %s82 = sphi 0, %s66
    %s90 = sphi 0, %s92
    %s93 = sphi 0, %s90
    %s94 = sphi 0, %s93
    %s110 = sphi 0, %s94
    %s116 = sphi 0, %s118
    %s119 = sphi 0, %s116
    %s120 = sphi 0, %s119
    %s136 = sphi 0, %s120
  $region4: #{backbone_fpn_forward.17} parent=0 // loop_header_branch
    %13 = sbr.rel (%p11) target = $region8
  $region5: #{backbone_fpn_forward.17} parent=0 // loop_body
    %s15 = ssub.s32 %s10, 1
    %s16 = ssub.s32 %s10, 2
    %s17 = sadd.s32 %s10, 1
    %s19 = sadd.s32 %s18, 1
    %p22 = scmp.eq.s32.totalorder %s10, 1
    %p23 = scmp.ne.s32.totalorder %s18, %s20
    %p24 = scmp.eq.s32.totalorder %s10, 0
    %p25 = por %p23, %p24
    %p26 = scmp.ne.s32.totalorder %s18, %s20
    %p27 = scmp.eq.s32.totalorder %s15, 1
    %p28 = por %p26, %p27
    %p29 = scmp.ne.s32.totalorder %s20, %s21
    %p30 = scmp.eq.s32.totalorder %s15, 0
    %p31 = por %p29, %p30
    %p32 = scmp.ne.s32.totalorder %s20, %s21
    %p33 = scmp.eq.s32.totalorder %s16, 1
    %p34 = por %p32, %p33
    %p36 = scmp.ne.s32.totalorder %s21, %s35
    %p37 = scmp.eq.s32.totalorder %s16, 0
    %p38 = por %p36, %p37
    %s40 = sadd.s32 %s39, 1
    %p43 = scmp.eq.s32.totalorder %s10, 1
    %p44 = scmp.ne.s32.totalorder %s39, %s41
    %p45 = scmp.eq.s32.totalorder %s10, 0
    %p46 = por %p44, %p45
    %p47 = scmp.ne.s32.totalorder %s39, %s41
    %p48 = scmp.eq.s32.totalorder %s15, 1
    %p49 = por %p47, %p48
    %p50 = scmp.ne.s32.totalorder %s41, %s42
    %p51 = scmp.eq.s32.totalorder %s15, 0
    %p52 = por %p50, %p51
    %p53 = scmp.ne.s32.totalorder %s41, %s42
    %p54 = scmp.eq.s32.totalorder %s16, 1
    %p55 = por %p53, %p54
    %p57 = scmp.ne.s32.totalorder %s42, %s56
    %p58 = scmp.eq.s32.totalorder %s16, 0
    %p59 = por %p57, %p58
    %s60 = ssub.s32 %s10, %s17
    %p61 = scmp.eq.s32.totalorder %s60, 0
    %s63 = sadd.s32 %s62, 1
    %s64 = scalar_select %p61, %s62, %s63
    %p67 = pneg %p61
    %p68 = scmp.eq.s32.totalorder %s10, 1
    %p69 = por %p67, %p68
    %p70 = scmp.ne.s32.totalorder %s62, %s65
    %p71 = scmp.eq.s32.totalorder %s10, 0
    %p72 = por %p70, %p71
    %p73 = scmp.ne.s32.totalorder %s62, %s65
    %p74 = scmp.eq.s32.totalorder %s15, 1
    %p75 = por %p73, %p74
    %p76 = scmp.ne.s32.totalorder %s65, %s66
    %p77 = scmp.eq.s32.totalorder %s15, 0
    %p78 = por %p76, %p77
    %p79 = scmp.ne.s32.totalorder %s65, %s66
    %p80 = scmp.eq.s32.totalorder %s16, 1
    %p81 = por %p79, %p80
    %p83 = scmp.ne.s32.totalorder %s66, %s82
    %p84 = scmp.eq.s32.totalorder %s16, 0
    %p85 = por %p83, %p84
    %s86 = sadd.s32 %s10, 1
    %s87 = sadd.s32 %s17, 1
    %s88 = ssub.s32 %s86, %s87
    %p89 = scmp.eq.s32.totalorder %s88, 0
    %s91 = sadd.s32 %s90, 1
    %s92 = scalar_select %p89, %s90, %s91
    %p95 = pneg %p89
    %p96 = scmp.eq.s32.totalorder %s10, 1
    %p97 = por %p95, %p96
    %p98 = scmp.ne.s32.totalorder %s90, %s93
    %p99 = scmp.eq.s32.totalorder %s10, 0
    %p100 = por %p98, %p99
    %p101 = scmp.ne.s32.totalorder %s90, %s93
    %p102 = scmp.eq.s32.totalorder %s15, 1
    %p103 = por %p101, %p102
    %p104 = scmp.ne.s32.totalorder %s93, %s94
    %p105 = scmp.eq.s32.totalorder %s15, 0
    %p106 = por %p104, %p105
    %p107 = scmp.ne.s32.totalorder %s93, %s94
    %p108 = scmp.eq.s32.totalorder %s16, 1
    %p109 = por %p107, %p108
    %p111 = scmp.ne.s32.totalorder %s94, %s110
    %p112 = scmp.eq.s32.totalorder %s16, 0
    %p113 = por %p111, %p112
    %s114 = ssub.s32 %s10, %s17
    %p115 = scmp.eq.s32.totalorder %s114, 0
    %s117 = sadd.s32 %s116, 1
    %s118 = scalar_select %p115, %s116, %s117
    %p121 = pneg %p115
    %p122 = scmp.eq.s32.totalorder %s10, 1
    %p123 = por %p121, %p122
    %p124 = scmp.ne.s32.totalorder %s116, %s119
    %p125 = scmp.eq.s32.totalorder %s10, 0
    %p126 = por %p124, %p125
    %p127 = scmp.ne.s32.totalorder %s116, %s119
    %p128 = scmp.eq.s32.totalorder %s15, 1
    %p129 = por %p127, %p128
    %p130 = scmp.ne.s32.totalorder %s119, %s120
    %p131 = scmp.eq.s32.totalorder %s15, 0
    %p132 = por %p130, %p131
    %p133 = scmp.ne.s32.totalorder %s119, %s120
    %p134 = scmp.eq.s32.totalorder %s16, 1
    %p135 = por %p133, %p134
    %p137 = scmp.ne.s32.totalorder %s120, %s136
    %p138 = scmp.eq.s32.totalorder %s16, 0
    %p139 = por %p137, %p138
    %p140 = scmp.le.s32.totalorder 1, %s10
    %p141 = scmp.lt.s32.totalorder %s10, 3
    %p142 = pnand %p140, %p141
    %p143 = pneg %p142
    // Predicated region
    $region9: #{backbone_fpn_forward.17} parent=5 // pred_check
      _
    $region10: #{backbone_fpn_forward.17} parent=5 // pred_check_branch
      %145 = sbr.rel (%p142) target = $region12
    $region11: #{backbone_fpn_forward.17} parent=5 // pred_region
      %s146 = ssub.s32 %s10, 1
      // Predicated region
      $region13: #{backbone_fpn_forward.17} parent=11 // pred_check
        %p147 = pneg %p31
      $region14: #{backbone_fpn_forward.17} parent=11 // pred_check_branch
        %149 = sbr.rel (%p147) target = $region16
      $region15: #{backbone_fpn_forward.17} parent=11 // pred_region
        _
      $region16: #{backbone_fpn_forward.17} parent=11 // pred_fallthru
        _
      // Predicated region
      $region17: #{backbone_fpn_forward.17} parent=11 // pred_check
        %p150 = pneg %p52
      $region18: #{backbone_fpn_forward.17} parent=11 // pred_check_branch
        %152 = sbr.rel (%p150) target = $region20
      $region19: #{backbone_fpn_forward.17} parent=11 // pred_region
        _
      $region20: #{backbone_fpn_forward.17} parent=11 // pred_fallthru
        _
    $region12: #{backbone_fpn_forward.17} parent=5 // pred_fallthru
      _
    %p153 = scmp.lt.s32.totalorder %s10, 2
    // Predicated region
    $region21: #{backbone_fpn_forward.17} parent=5 // pred_check
      %p154 = pneg %p153
    $region22: #{backbone_fpn_forward.17} parent=5 // pred_check_branch
      %156 = sbr.rel (%p154) target = $region24
    $region23: #{backbone_fpn_forward.17} parent=5 // pred_region
      // Predicated region
      $region25: #{backbone_fpn_forward.17} parent=23 // pred_check
        %p157 = pneg %p72
      $region26: #{backbone_fpn_forward.17} parent=23 // pred_check_branch
        %159 = sbr.rel (%p157) target = $region28
      $region27: #{backbone_fpn_forward.17} parent=23 // pred_region
        %p160 = scmp.lt.s32.totalorder %s10, 2
        %s161 = scalar_select %p160, %s10, 2
        %s162 = smul.addr %s161, 4
        %s163 = scalar_lea.vmem %s2, %s162
      $region28: #{backbone_fpn_forward.17} parent=23 // pred_fallthru
        _
      // Predicated region
      $region29: #{backbone_fpn_forward.17} parent=23 // pred_check
        %p164 = pneg %p100
      $region30: #{backbone_fpn_forward.17} parent=23 // pred_check_branch
        %166 = sbr.rel (%p164) target = $region32
      $region31: #{backbone_fpn_forward.17} parent=23 // pred_region
        %s167 = sadd.s32 %s10, 1
        %p168 = scmp.lt.s32.totalorder %s167, 2
        %s169 = scalar_select %p168, %s167, 2
        %s170 = smul.addr %s169, 4
        %s171 = scalar_lea.vmem %s3, %s170
        %s172 = sadd.s32 %s10, 1
      $region32: #{backbone_fpn_forward.17} parent=23 // pred_fallthru
        _
    $region24: #{backbone_fpn_forward.17} parent=5 // pred_fallthru
      _
    %p173 = scmp.le.s32.totalorder 1, %s10
    %p174 = scmp.lt.s32.totalorder %s10, 3
    %p175 = pnand %p173, %p174
    %p176 = pneg %p175
    // Predicated region
    $region33: #{backbone_fpn_forward.17} parent=5 // pred_check
      _
    $region34: #{backbone_fpn_forward.17} parent=5 // pred_check_branch
      %178 = sbr.rel (%p175) target = $region36
    $region35: #{backbone_fpn_forward.17} parent=5 // pred_region
      %s179 = ssub.s32 %s10, 1
      %p180 = pneg %p31
      %p181 = pneg %p28
      %p182 = pneg %p52
      %p183 = pneg %p49
      %p184 = scmp.lt.s32.totalorder %s15, 2
      %s185 = scalar_select %p184, %s15, 2
      %s186 = smul.addr %s185, 4
      %s187 = scalar_lea.vmem %s2, %s186
      %p188 = pneg %p78
      %p189 = pneg %p75
      %s190 = sadd.s32 %s15, 1
      %p191 = scmp.lt.s32.totalorder %s190, 2
      %s192 = scalar_select %p191, %s190, 2
      %s193 = smul.addr %s192, 4
      %s194 = scalar_lea.vmem %s3, %s193
      %p195 = pneg %p106
      %p196 = pneg %p103
      %p197 = pneg %p132
      %p198 = pneg %p129
      %p199 = scmp.lt.s32.totalorder %s15, 1
      %s200 = scalar_select %p199, %s15, 1
      %s201 = smul.addr %s200, 8
      %s202 = scalar_lea.vmem %s4, %s201
      %p203 = scmp.lt.s32.totalorder %s15, 2
      %s204 = scalar_select %p203, %s15, 2
      %s205 = smul.addr %s204, 4
      %s206 = scalar_lea.vmem %s2, %s205
      %s207 = sadd.s32 %s15, 1
      %p208 = scmp.lt.s32.totalorder %s207, 2
      %s209 = scalar_select %p208, %s207, 2
      %s210 = smul.addr %s209, 4
      %s211 = scalar_lea.vmem %s3, %s210
      %s212 = sadd.s32 %s15, 1
      %p213 = scmp.lt.s32.totalorder %s15, 1
      %s214 = scalar_select %p213, %s15, 1
      %s215 = smul.addr %s214, 8
      %s216 = scalar_lea.vmem %s4, %s215
      %v218 = vld [vmem:[%s206] sm:$0xf]
      %v219 = vld [vmem:[%s211] sm:$0xf]
      %v220 = vld [vmem:[%s0] sm:$0xf]
      %s221 = scalar_lea.vmem %s0, 4
      %v222 = vld [vmem:[%s221] sm:$0xf]
      %225 = vrot.lane.b32.xlu0 %v218, 127
      %v226 = vpop.permute.xlu0 %225
      %227 = vrot.lane.b32.xlu0 %v219, 127
      %v228 = vpop.permute.xlu0 %227
      %vm229 = vcmask 1039360
      %v230 = vsel %vm229, %v226, %v228
      %vm231 = vcmask 64512
      %v233 = vsel %vm231, %v222, 0
      %vm235 = vcmask 1043456
      %v237 = vsel %vm235, %v230, 0
      %239 = vmatprep.subr.bf16.mxu0 0
      %240 = vmatpush1.bf16.msra.mxu0 0
      %241 = vmatprep.subr.bf16.mxu0 0
      %242 = vmatpush1.bf16.msra.mxu0 0
      %243 = vmatprep.subr.bf16.mxu0 0
      %244 = vmatpush1.bf16.msra.mxu0 0
      %245 = vmatprep.subr.bf16.mxu0 0
      %246 = vmatpush1.bf16.msra.mxu0 0
      %247 = vmatprep.subr.bf16.mxu0 0
      %248 = vmatpush1.bf16.msra.mxu0 0
      %249 = vmatprep.subr.bf16.mxu0 0
      %250 = vmatpush1.bf16.msra.mxu0 0
      %251 = vmatprep.subr.bf16.mxu0 0
      %252 = vmatpush1.bf16.msra.mxu0 0
      %253 = vmatprep.subr.bf16.mxu0 0
      %254 = vmatpush1.bf16.msra.mxu0 %v237
      %255 = vmatprep.subr.bf16.mxu0 0
      %256 = vmatpush2.bf16.msra.mxu0 0
      %257 = vmatprep.subr.bf16.mxu0 0
      %258 = vmatpush2.bf16.msra.mxu0 0
      %259 = vmatprep.subr.bf16.mxu0 0
      %260 = vmatpush2.bf16.msra.mxu0 0
      %261 = vmatprep.subr.bf16.mxu0 0
      %262 = vmatpush2.bf16.msra.mxu0 0
      %263 = vmatprep.subr.bf16.mxu0 0
      %264 = vmatpush2.bf16.msra.mxu0 0
      %265 = vmatprep.subr.bf16.mxu0 0
      %266 = vmatpush2.bf16.msra.mxu0 0
      %267 = vmatprep.subr.bf16.mxu0 0
      %268 = vmatpush2.bf16.msra.mxu0 0
      %269 = vmatprep.subr.bf16.mxu0 0
      %270 = vmatpush2.bf16.msra.mxu0 0
      %271 = vmatprep.mubr.bf16.mxu0 0
      %272 = vmatmul.mubr.bf16.gmra.mxu0 %v233
      %v273 = vpop.f32.mrf.mxu0
      %v274 = vadd.f32 0.0, %v273
      %v275 = vpop.f32.mrf.mxu0
      %v276 = vpop.f32.mrf.mxu0
      %v277 = vpop.f32.mrf.mxu0
      %278 = vdwg.mxu0
      %v280 = vsel %vm231, %v220, 0
      %v283 = vsel %vm235, %v218, 0
      %285 = vmatprep.subr.bf16.mxu0 0
      %286 = vmatpush1.bf16.msra.mxu0 0
      %287 = vmatprep.subr.bf16.mxu0 0
      %288 = vmatpush1.bf16.msra.mxu0 0
      %289 = vmatprep.subr.bf16.mxu0 0
      %290 = vmatpush1.bf16.msra.mxu0 0
      %291 = vmatprep.subr.bf16.mxu0 0
      %292 = vmatpush1.bf16.msra.mxu0 0
      %293 = vmatprep.subr.bf16.mxu0 0
      %294 = vmatpush1.bf16.msra.mxu0 0
      %295 = vmatprep.subr.bf16.mxu0 0
      %296 = vmatpush1.bf16.msra.mxu0 0
      %297 = vmatprep.subr.bf16.mxu0 0
      %298 = vmatpush1.bf16.msra.mxu0 0
      %299 = vmatprep.subr.bf16.mxu0 0
      %300 = vmatpush1.bf16.msra.mxu0 %v283
      %301 = vmatprep.subr.bf16.mxu0 0
      %302 = vmatpush2.bf16.msra.mxu0 0
      %303 = vmatprep.subr.bf16.mxu0 0
      %304 = vmatpush2.bf16.msra.mxu0 0
      %305 = vmatprep.subr.bf16.mxu0 0
      %306 = vmatpush2.bf16.msra.mxu0 0
      %307 = vmatprep.subr.bf16.mxu0 0
      %308 = vmatpush2.bf16.msra.mxu0 0
      %309 = vmatprep.subr.bf16.mxu0 0
      %310 = vmatpush2.bf16.msra.mxu0 0
      %311 = vmatprep.subr.bf16.mxu0 0
      %312 = vmatpush2.bf16.msra.mxu0 0
      %313 = vmatprep.subr.bf16.mxu0 0
      %314 = vmatpush2.bf16.msra.mxu0 0
      %315 = vmatprep.subr.bf16.mxu0 0
      %316 = vmatpush2.bf16.msra.mxu0 0
      %317 = vmatprep.mubr.bf16.mxu0 0
      %318 = vmatmul.mubr.bf16.gmra.mxu0 %v280
      %v319 = vpop.f32.mrf.mxu0
      %v320 = vadd.f32 %v274, %v319
      %v321 = vpop.f32.mrf.mxu0
      %v322 = vpop.f32.mrf.mxu0
      %v323 = vpop.f32.mrf.mxu0
      %324 = vdwg.mxu0
      %s325 = scalar_lea.vmem %s0, 8
      %v326 = vld [vmem:[%s325] sm:$0xf]
      %327 = vrot.lane.b32.xlu0 %v218, 126
      %v328 = vpop.permute.xlu0 %327
      %329 = vrot.lane.b32.xlu0 %v219, 126
      %v330 = vpop.permute.xlu0 %329
      %vm331 = vcmask 1031168
      %v332 = vsel %vm331, %v328, %v330
      %v334 = vsel %vm231, %v326, 0
      %v337 = vsel %vm235, %v332, 0
      %339 = vmatprep.subr.bf16.mxu0 0
      %340 = vmatpush1.bf16.msra.mxu0 0
      %341 = vmatprep.subr.bf16.mxu0 0
      %342 = vmatpush1.bf16.msra.mxu0 0
      %343 = vmatprep.subr.bf16.mxu0 0
      %344 = vmatpush1.bf16.msra.mxu0 0
      %345 = vmatprep.subr.bf16.mxu0 0
      %346 = vmatpush1.bf16.msra.mxu0 0
      %347 = vmatprep.subr.bf16.mxu0 0
      %348 = vmatpush1.bf16.msra.mxu0 0
      %349 = vmatprep.subr.bf16.mxu0 0
      %350 = vmatpush1.bf16.msra.mxu0 0
      %351 = vmatprep.subr.bf16.mxu0 0
      %352 = vmatpush1.bf16.msra.mxu0 0
      %353 = vmatprep.subr.bf16.mxu0 0
      %354 = vmatpush1.bf16.msra.mxu0 %v337
      %355 = vmatprep.subr.bf16.mxu0 0
      %356 = vmatpush2.bf16.msra.mxu0 0
      %357 = vmatprep.subr.bf16.mxu0 0
      %358 = vmatpush2.bf16.msra.mxu0 0
      %359 = vmatprep.subr.bf16.mxu0 0
      %360 = vmatpush2.bf16.msra.mxu0 0
      %361 = vmatprep.subr.bf16.mxu0 0
      %362 = vmatpush2.bf16.msra.mxu0 0
      %363 = vmatprep.subr.bf16.mxu0 0
      %364 = vmatpush2.bf16.msra.mxu0 0
      %365 = vmatprep.subr.bf16.mxu0 0
      %366 = vmatpush2.bf16.msra.mxu0 0
      %367 = vmatprep.subr.bf16.mxu0 0
      %368 = vmatpush2.bf16.msra.mxu0 0
      %369 = vmatprep.subr.bf16.mxu0 0
      %370 = vmatpush2.bf16.msra.mxu0 0
      %371 = vmatprep.mubr.bf16.mxu0 0
      %372 = vmatmul.mubr.bf16.gmra.mxu0 %v334
      %v373 = vpop.f32.mrf.mxu0
      %v374 = vadd.f32 0.0, %v373
      %v375 = vpop.f32.mrf.mxu0
      %v376 = vpop.f32.mrf.mxu0
      %v377 = vpop.f32.mrf.mxu0
      %378 = vdwg.mxu0
      %v379 = vadd.f32 %v320, %v374
      %s380 = scalar_lea.vmem %s0, 12
      %v381 = vld [vmem:[%s380] sm:$0xf]
      %382 = vrot.lane.b32.xlu0 %v218, 118
      %v383 = vpop.permute.xlu0 %382
      %384 = vrot.lane.b32.xlu0 %v219, 118
      %v385 = vpop.permute.xlu0 %384
      %vm386 = vcmask 965632
      %v387 = vsel %vm386, %v383, %v385
      %v389 = vsel %vm231, %v381, 0
      %v392 = vsel %vm235, %v387, 0
      %394 = vmatprep.subr.bf16.mxu0 0
      %395 = vmatpush1.bf16.msra.mxu0 0
      %396 = vmatprep.subr.bf16.mxu0 0
      %397 = vmatpush1.bf16.msra.mxu0 0
      %398 = vmatprep.subr.bf16.mxu0 0
      %399 = vmatpush1.bf16.msra.mxu0 0
      %400 = vmatprep.subr.bf16.mxu0 0
      %401 = vmatpush1.bf16.msra.mxu0 0
      %402 = vmatprep.subr.bf16.mxu0 0
      %403 = vmatpush1.bf16.msra.mxu0 0
      %404 = vmatprep.subr.bf16.mxu0 0
      %405 = vmatpush1.bf16.msra.mxu0 0
      %406 = vmatprep.subr.bf16.mxu0 0
      %407 = vmatpush1.bf16.msra.mxu0 0
      %408 = vmatprep.subr.bf16.mxu0 0
      %409 = vmatpush1.bf16.msra.mxu0 %v392
      %410 = vmatprep.subr.bf16.mxu0 0
      %411 = vmatpush2.bf16.msra.mxu0 0
      %412 = vmatprep.subr.bf16.mxu0 0
      %413 = vmatpush2.bf16.msra.mxu0 0
      %414 = vmatprep.subr.bf16.mxu0 0
      %415 = vmatpush2.bf16.msra.mxu0 0
      %416 = vmatprep.subr.bf16.mxu0 0
      %417 = vmatpush2.bf16.msra.mxu0 0
      %418 = vmatprep.subr.bf16.mxu0 0
      %419 = vmatpush2.bf16.msra.mxu0 0
      %420 = vmatprep.subr.bf16.mxu0 0
      %421 = vmatpush2.bf16.msra.mxu0 0
      %422 = vmatprep.subr.bf16.mxu0 0
      %423 = vmatpush2.bf16.msra.mxu0 0
      %424 = vmatprep.subr.bf16.mxu0 0
      %425 = vmatpush2.bf16.msra.mxu0 0
      %426 = vmatprep.mubr.bf16.mxu0 0
      %427 = vmatmul.mubr.bf16.gmra.mxu0 %v389
      %v428 = vpop.f32.mrf.mxu0
      %v429 = vadd.f32 0.0, %v428
      %v430 = vpop.f32.mrf.mxu0
      %v431 = vpop.f32.mrf.mxu0
      %v432 = vpop.f32.mrf.mxu0
      %433 = vdwg.mxu0
      %v434 = vadd.f32 %v379, %v429
      %s435 = scalar_lea.vmem %s0, 16
      %v436 = vld [vmem:[%s435] sm:$0xf]
      %437 = vrot.lane.b32.xlu0 %v218, 117
      %v438 = vpop.permute.xlu0 %437
      %439 = vrot.lane.b32.xlu0 %v219, 117
      %v440 = vpop.permute.xlu0 %439
      %vm441 = vcmask 957440
      %v442 = vsel %vm441, %v438, %v440
      %v444 = vsel %vm231, %v436, 0
      %v447 = vsel %vm235, %v442, 0
      %449 = vmatprep.subr.bf16.mxu0 0
      %450 = vmatpush1.bf16.msra.mxu0 0
      %451 = vmatprep.subr.bf16.mxu0 0
      %452 = vmatpush1.bf16.msra.mxu0 0
      %453 = vmatprep.subr.bf16.mxu0 0
      %454 = vmatpush1.bf16.msra.mxu0 0
      %455 = vmatprep.subr.bf16.mxu0 0
      %456 = vmatpush1.bf16.msra.mxu0 0
      %457 = vmatprep.subr.bf16.mxu0 0
      %458 = vmatpush1.bf16.msra.mxu0 0
      %459 = vmatprep.subr.bf16.mxu0 0
      %460 = vmatpush1.bf16.msra.mxu0 0
      %461 = vmatprep.subr.bf16.mxu0 0
      %462 = vmatpush1.bf16.msra.mxu0 0
      %463 = vmatprep.subr.bf16.mxu0 0
      %464 = vmatpush1.bf16.msra.mxu0 %v447
      %465 = vmatprep.subr.bf16.mxu0 0
      %466 = vmatpush2.bf16.msra.mxu0 0
      %467 = vmatprep.subr.bf16.mxu0 0
      %468 = vmatpush2.bf16.msra.mxu0 0
      %469 = vmatprep.subr.bf16.mxu0 0
      %470 = vmatpush2.bf16.msra.mxu0 0
      %471 = vmatprep.subr.bf16.mxu0 0
      %472 = vmatpush2.bf16.msra.mxu0 0
      %473 = vmatprep.subr.bf16.mxu0 0
      %474 = vmatpush2.bf16.msra.mxu0 0
      %475 = vmatprep.subr.bf16.mxu0 0
      %476 = vmatpush2.bf16.msra.mxu0 0
      %477 = vmatprep.subr.bf16.mxu0 0
      %478 = vmatpush2.bf16.msra.mxu0 0
      %479 = vmatprep.subr.bf16.mxu0 0
      %480 = vmatpush2.bf16.msra.mxu0 0
      %481 = vmatprep.mubr.bf16.mxu0 0
      %482 = vmatmul.mubr.bf16.gmra.mxu0 %v444
      %v483 = vpop.f32.mrf.mxu0
      %v484 = vadd.f32 0.0, %v483
      %v485 = vpop.f32.mrf.mxu0
      %v486 = vpop.f32.mrf.mxu0
      %v487 = vpop.f32.mrf.mxu0
      %488 = vdwg.mxu0
      %v489 = vadd.f32 %v434, %v484
      %s490 = scalar_lea.vmem %s0, 20
      %v491 = vld [vmem:[%s490] sm:$0xf]
      %492 = vrot.lane.b32.xlu0 %v218, 116
      %v493 = vpop.permute.xlu0 %492
      %494 = vrot.lane.b32.xlu0 %v219, 116
      %v495 = vpop.permute.xlu0 %494
      %vm496 = vcmask 949248
      %v497 = vsel %vm496, %v493, %v495
      %v499 = vsel %vm231, %v491, 0
      %v502 = vsel %vm235, %v497, 0
      %504 = vmatprep.subr.bf16.mxu0 0
      %505 = vmatpush1.bf16.msra.mxu0 0
      %506 = vmatprep.subr.bf16.mxu0 0
      %507 = vmatpush1.bf16.msra.mxu0 0
      %508 = vmatprep.subr.bf16.mxu0 0
      %509 = vmatpush1.bf16.msra.mxu0 0
      %510 = vmatprep.subr.bf16.mxu0 0
      %511 = vmatpush1.bf16.msra.mxu0 0
      %512 = vmatprep.subr.bf16.mxu0 0
      %513 = vmatpush1.bf16.msra.mxu0 0
      %514 = vmatprep.subr.bf16.mxu0 0
      %515 = vmatpush1.bf16.msra.mxu0 0
      %516 = vmatprep.subr.bf16.mxu0 0
      %517 = vmatpush1.bf16.msra.mxu0 0
      %518 = vmatprep.subr.bf16.mxu0 0
      %519 = vmatpush1.bf16.msra.mxu0 %v502
      %520 = vmatprep.subr.bf16.mxu0 0
      %521 = vmatpush2.bf16.msra.mxu0 0
      %522 = vmatprep.subr.bf16.mxu0 0
      %523 = vmatpush2.bf16.msra.mxu0 0
      %524 = vmatprep.subr.bf16.mxu0 0
      %525 = vmatpush2.bf16.msra.mxu0 0
      %526 = vmatprep.subr.bf16.mxu0 0
      %527 = vmatpush2.bf16.msra.mxu0 0
      %528 = vmatprep.subr.bf16.mxu0 0
      %529 = vmatpush2.bf16.msra.mxu0 0
      %530 = vmatprep.subr.bf16.mxu0 0
      %531 = vmatpush2.bf16.msra.mxu0 0
      %532 = vmatprep.subr.bf16.mxu0 0
      %533 = vmatpush2.bf16.msra.mxu0 0
      %534 = vmatprep.subr.bf16.mxu0 0
      %535 = vmatpush2.bf16.msra.mxu0 0
      %536 = vmatprep.mubr.bf16.mxu0 0
      %537 = vmatmul.mubr.bf16.gmra.mxu0 %v499
      %v538 = vpop.f32.mrf.mxu0
      %v539 = vadd.f32 0.0, %v538
      %v540 = vpop.f32.mrf.mxu0
      %v541 = vpop.f32.mrf.mxu0
      %v542 = vpop.f32.mrf.mxu0
      %543 = vdwg.mxu0
      %v544 = vadd.f32 %v489, %v539
      %s545 = scalar_lea.vmem %s0, 24
      %v546 = vld [vmem:[%s545] sm:$0xf]
      %547 = vrot.lane.b32.xlu0 %v218, 108
      %v548 = vpop.permute.xlu0 %547
      %549 = vrot.lane.b32.xlu0 %v219, 108
      %v550 = vpop.permute.xlu0 %549
      %vm551 = vcmask 883712
      %v552 = vsel %vm551, %v548, %v550
      %v554 = vsel %vm231, %v546, 0
      %v557 = vsel %vm235, %v552, 0
      %559 = vmatprep.subr.bf16.mxu0 0
      %560 = vmatpush1.bf16.msra.mxu0 0
      %561 = vmatprep.subr.bf16.mxu0 0
      %562 = vmatpush1.bf16.msra.mxu0 0
      %563 = vmatprep.subr.bf16.mxu0 0
      %564 = vmatpush1.bf16.msra.mxu0 0
      %565 = vmatprep.subr.bf16.mxu0 0
      %566 = vmatpush1.bf16.msra.mxu0 0
      %567 = vmatprep.subr.bf16.mxu0 0
      %568 = vmatpush1.bf16.msra.mxu0 0
      %569 = vmatprep.subr.bf16.mxu0 0
      %570 = vmatpush1.bf16.msra.mxu0 0
      %571 = vmatprep.subr.bf16.mxu0 0
      %572 = vmatpush1.bf16.msra.mxu0 0
      %573 = vmatprep.subr.bf16.mxu0 0
      %574 = vmatpush1.bf16.msra.mxu0 %v557
      %575 = vmatprep.subr.bf16.mxu0 0
      %576 = vmatpush2.bf16.msra.mxu0 0
      %577 = vmatprep.subr.bf16.mxu0 0
      %578 = vmatpush2.bf16.msra.mxu0 0
      %579 = vmatprep.subr.bf16.mxu0 0
      %580 = vmatpush2.bf16.msra.mxu0 0
      %581 = vmatprep.subr.bf16.mxu0 0
      %582 = vmatpush2.bf16.msra.mxu0 0
      %583 = vmatprep.subr.bf16.mxu0 0
      %584 = vmatpush2.bf16.msra.mxu0 0
      %585 = vmatprep.subr.bf16.mxu0 0
      %586 = vmatpush2.bf16.msra.mxu0 0
      %587 = vmatprep.subr.bf16.mxu0 0
      %588 = vmatpush2.bf16.msra.mxu0 0
      %589 = vmatprep.subr.bf16.mxu0 0
      %590 = vmatpush2.bf16.msra.mxu0 0
      %591 = vmatprep.mubr.bf16.mxu0 0
      %592 = vmatmul.mubr.bf16.gmra.mxu0 %v554
      %v593 = vpop.f32.mrf.mxu0
      %v594 = vadd.f32 0.0, %v593
      %v595 = vpop.f32.mrf.mxu0
      %v596 = vpop.f32.mrf.mxu0
      %v597 = vpop.f32.mrf.mxu0
      %598 = vdwg.mxu0
      %v599 = vadd.f32 %v544, %v594
      %s600 = scalar_lea.vmem %s0, 28
      %v601 = vld [vmem:[%s600] sm:$0xf]
      %602 = vrot.lane.b32.xlu0 %v218, 107
      %v603 = vpop.permute.xlu0 %602
      %604 = vrot.lane.b32.xlu0 %v219, 107
      %v605 = vpop.permute.xlu0 %604
      %vm606 = vcmask 875520
      %v607 = vsel %vm606, %v603, %v605
      %v609 = vsel %vm231, %v601, 0
      %v612 = vsel %vm235, %v607, 0
      %614 = vmatprep.subr.bf16.mxu0 0
      %615 = vmatpush1.bf16.msra.mxu0 0
      %616 = vmatprep.subr.bf16.mxu0 0
      %617 = vmatpush1.bf16.msra.mxu0 0
      %618 = vmatprep.subr.bf16.mxu0 0
      %619 = vmatpush1.bf16.msra.mxu0 0
      %620 = vmatprep.subr.bf16.mxu0 0
      %621 = vmatpush1.bf16.msra.mxu0 0
      %622 = vmatprep.subr.bf16.mxu0 0
      %623 = vmatpush1.bf16.msra.mxu0 0
      %624 = vmatprep.subr.bf16.mxu0 0
      %625 = vmatpush1.bf16.msra.mxu0 0
      %626 = vmatprep.subr.bf16.mxu0 0
      %627 = vmatpush1.bf16.msra.mxu0 0
      %628 = vmatprep.subr.bf16.mxu0 0
      %629 = vmatpush1.bf16.msra.mxu0 %v612
      %630 = vmatprep.subr.bf16.mxu0 0
      %631 = vmatpush2.bf16.msra.mxu0 0
      %632 = vmatprep.subr.bf16.mxu0 0
      %633 = vmatpush2.bf16.msra.mxu0 0
      %634 = vmatprep.subr.bf16.mxu0 0
      %635 = vmatpush2.bf16.msra.mxu0 0
      %636 = vmatprep.subr.bf16.mxu0 0
      %637 = vmatpush2.bf16.msra.mxu0 0
      %638 = vmatprep.subr.bf16.mxu0 0
      %639 = vmatpush2.bf16.msra.mxu0 0
      %640 = vmatprep.subr.bf16.mxu0 0
      %641 = vmatpush2.bf16.msra.mxu0 0
      %642 = vmatprep.subr.bf16.mxu0 0
      %643 = vmatpush2.bf16.msra.mxu0 0
      %644 = vmatprep.subr.bf16.mxu0 0
      %645 = vmatpush2.bf16.msra.mxu0 0
      %646 = vmatprep.mubr.bf16.mxu0 0
      %647 = vmatmul.mubr.bf16.gmra.mxu0 %v609
      %v648 = vpop.f32.mrf.mxu0
      %v649 = vadd.f32 0.0, %v648
      %v650 = vpop.f32.mrf.mxu0
      %v651 = vpop.f32.mrf.mxu0
      %v652 = vpop.f32.mrf.mxu0
      %653 = vdwg.mxu0
      %v654 = vadd.f32 %v599, %v649
      %s655 = scalar_lea.vmem %s0, 32
      %v656 = vld [vmem:[%s655] sm:$0xf]
      %657 = vrot.lane.b32.xlu0 %v218, 106
      %v658 = vpop.permute.xlu0 %657
      %659 = vrot.lane.b32.xlu0 %v219, 106
      %v660 = vpop.permute.xlu0 %659
      %vm661 = vcmask 867328
      %v662 = vsel %vm661, %v658, %v660
      %v664 = vsel %vm231, %v656, 0
      %v667 = vsel %vm235, %v662, 0
      %669 = vmatprep.subr.bf16.mxu0 0
      %670 = vmatpush1.bf16.msra.mxu0 0
      %671 = vmatprep.subr.bf16.mxu0 0
      %672 = vmatpush1.bf16.msra.mxu0 0
      %673 = vmatprep.subr.bf16.mxu0 0
      %674 = vmatpush1.bf16.msra.mxu0 0
      %675 = vmatprep.subr.bf16.mxu0 0
      %676 = vmatpush1.bf16.msra.mxu0 0
      %677 = vmatprep.subr.bf16.mxu0 0
      %678 = vmatpush1.bf16.msra.mxu0 0
      %679 = vmatprep.subr.bf16.mxu0 0
      %680 = vmatpush1.bf16.msra.mxu0 0
      %681 = vmatprep.subr.bf16.mxu0 0
      %682 = vmatpush1.bf16.msra.mxu0 0
      %683 = vmatprep.subr.bf16.mxu0 0
      %684 = vmatpush1.bf16.msra.mxu0 %v667
      %685 = vmatprep.subr.bf16.mxu0 0
      %686 = vmatpush2.bf16.msra.mxu0 0
      %687 = vmatprep.subr.bf16.mxu0 0
      %688 = vmatpush2.bf16.msra.mxu0 0
      %689 = vmatprep.subr.bf16.mxu0 0
      %690 = vmatpush2.bf16.msra.mxu0 0
      %691 = vmatprep.subr.bf16.mxu0 0
      %692 = vmatpush2.bf16.msra.mxu0 0
      %693 = vmatprep.subr.bf16.mxu0 0
      %694 = vmatpush2.bf16.msra.mxu0 0
      %695 = vmatprep.subr.bf16.mxu0 0
      %696 = vmatpush2.bf16.msra.mxu0 0
      %697 = vmatprep.subr.bf16.mxu0 0
      %698 = vmatpush2.bf16.msra.mxu0 0
      %699 = vmatprep.subr.bf16.mxu0 0
      %700 = vmatpush2.bf16.msra.mxu0 0
      %701 = vmatprep.mubr.bf16.mxu0 0
      %702 = vmatmul.mubr.bf16.gmra.mxu0 %v664
      %v703 = vpop.f32.mrf.mxu0
      %v704 = vadd.f32 0.0, %v703
      %v705 = vpop.f32.mrf.mxu0
      %v706 = vpop.f32.mrf.mxu0
      %v707 = vpop.f32.mrf.mxu0
      %708 = vdwg.mxu0
      %v709 = vadd.f32 %v654, %v704
      %v710 = vld [vmem:[%s1] sm:$0xff]
      %712 = vset.pattern.permute.xlu0 0
      %713 = vperm.xlu0 %712, %v710
      %v714 = vpop.permute.xlu0 %713
      %v716 = vadd.f32 %v709, %v714
      %717 = vst [vmem:[%s216] sm:$0xff] %v716
      %p718 = scmp.lt.s32.totalorder %s15, 1
      %s719 = scalar_select %p718, %s15, 1
      %s720 = smul.addr %s719, 8
      %s721 = scalar_lea.vmem %s4, %s720
      // Predicated region
      $region37: #{backbone_fpn_forward.17} parent=35 // pred_check
        %p722 = pneg %p129
      $region38: #{backbone_fpn_forward.17} parent=35 // pred_check_branch
        %724 = sbr.rel (%p722) target = $region40
      $region39: #{backbone_fpn_forward.17} parent=35 // pred_region
        _
      $region40: #{backbone_fpn_forward.17} parent=35 // pred_fallthru
        _
    $region36: #{backbone_fpn_forward.17} parent=5 // pred_fallthru
      _
    %p725 = scmp.le.s32.totalorder 2, %s10
    // Predicated region
    $region41: #{backbone_fpn_forward.17} parent=5 // pred_check
      %p726 = pneg %p725
    $region42: #{backbone_fpn_forward.17} parent=5 // pred_check_branch
      %728 = sbr.rel (%p726) target = $region44
    $region43: #{backbone_fpn_forward.17} parent=5 // pred_region
      %s729 = ssub.s32 %s10, 2
      // Predicated region
      $region45: #{backbone_fpn_forward.17} parent=43 // pred_check
        %p730 = pneg %p135
      $region46: #{backbone_fpn_forward.17} parent=43 // pred_check_branch
        %732 = sbr.rel (%p730) target = $region48
      $region47: #{backbone_fpn_forward.17} parent=43 // pred_region
        %p733 = scmp.lt.s32.totalorder %s16, 1
        %s734 = scalar_select %p733, %s16, 1
        %s735 = smul.addr %s734, 8
        %s736 = scalar_lea.vmem %s4, %s735
      $region48: #{backbone_fpn_forward.17} parent=43 // pred_fallthru
        _
    $region44: #{backbone_fpn_forward.17} parent=5 // pred_fallthru
      _
  $region6: #{backbone_fpn_forward.17} parent=0 // loop_footer
    %s14 = sadd.s32 1, %s10
  $region7: #{backbone_fpn_forward.17} parent=0 // loop_footer_branch
    %9 = sbr.rel target = $region3
  $region8: #{backbone_fpn_forward.17} parent=0 // loop_exit
    _

// kernel: backbone_fpn_forward.15
$region0: #{backbone_fpn_forward.15}
  #allocation0 [shape = 'u32[]', space=smem, size = 0x4, offset = 0x4, fixed_abs, tag = 'smem constant byte address 0x4 - core index']
  #allocation1 [shape = 'u32[144,128]{1,0:T(1,128)}', space=vmem, size = 0x12000, scoped, tag = 'internal scratch']
  %s0 = inlined_call_operand.vmem [shape: bf16[9,8,8], index: 0, kind: input, shape index: {}]
  %s1 = inlined_call_operand.vmem [shape: f32[8,1], index: 1, kind: input, shape index: {}]
  %s2 = inlined_call_operand.vmem [shape: bf16[1,8,256], index: 2, kind: input, shape index: {}, may-alias: {2,3}]
  %s3 = inlined_call_operand.vmem [shape: bf16[1,8,256], index: 3, kind: input, shape index: {}, may-alias: {2,3}]
  %s4 = inlined_call_operand.vmem [shape: f32[8,128], index: 4, kind: output, shape index: {}]
  %s5 = sld [smem:[#allocation0]]
  $region26: #{backbone_fpn_forward.15} parent=0
    _
  %s7 = ssub.s32 1, %s5
  %s8 = scalar_select 0, %s7, %s5
  // Predicated region
  $region2: #{backbone_fpn_forward.15} parent=0 // pred_check
    _
  $region3: #{backbone_fpn_forward.15} parent=0 // pred_check_branch
    %10 = sbr.rel (0) target = $region5
  $region4: #{backbone_fpn_forward.15} parent=0 // pred_region
    _
  $region5: #{backbone_fpn_forward.15} parent=0 // pred_fallthru
    _
  // Predicated region
  $region6: #{backbone_fpn_forward.15} parent=0 // pred_check
    _
  $region7: #{backbone_fpn_forward.15} parent=0 // pred_check_branch
    %12 = sbr.rel (0) target = $region9
  $region8: #{backbone_fpn_forward.15} parent=0 // pred_region
    _
  $region9: #{backbone_fpn_forward.15} parent=0 // pred_fallthru
    _
  // Predicated region
  $region10: #{backbone_fpn_forward.15} parent=0 // pred_check
    _
  $region11: #{backbone_fpn_forward.15} parent=0 // pred_check_branch
    %14 = sbr.rel (0) target = $region13
  $region12: #{backbone_fpn_forward.15} parent=0 // pred_region
    _
  $region13: #{backbone_fpn_forward.15} parent=0 // pred_fallthru
    _
  // Predicated region
  $region14: #{backbone_fpn_forward.15} parent=0 // pred_check
    _
  $region15: #{backbone_fpn_forward.15} parent=0 // pred_check_branch
    %16 = sbr.rel (0) target = $region17
  $region16: #{backbone_fpn_forward.15} parent=0 // pred_region
    %s17 = sadd.s32 0, 1
    %p18 = scmp.lt.s32.totalorder %s17, 1
    %s19 = scalar_select %p18, %s17, 1
    %s20 = smul.addr %s19, 4
    %s21 = scalar_lea.vmem %s3, %s20
    %s22 = sadd.s32 0, 1
  $region17: #{backbone_fpn_forward.15} parent=0 // pred_fallthru
    _
  %s23 = sadd.s32 0, 1
  %p24 = scmp.lt.s32.totalorder %s23, 1
  %s25 = scalar_select %p24, %s23, 1
  %s26 = smul.addr %s25, 4
  %s27 = scalar_lea.vmem %s3, %s26
  %s28 = sadd.s32 0, 1
  %p29 = scmp.lt.s32.totalorder %s28, 1
  %s30 = scalar_select %p29, %s28, 1
  %s31 = smul.addr %s30, 4
  %s32 = scalar_lea.vmem %s3, %s31
  %s33 = sadd.s32 0, 1
  %v35 = vld [vmem:[%s2] sm:$0xf]
  %v36 = vld [vmem:[%s32] sm:$0xf]
  %v37 = vld [vmem:[%s0] sm:$0xf]
  %s38 = scalar_lea.vmem %s0, 4
  %v39 = vld [vmem:[%s38] sm:$0xf]
  %42 = vrot.lane.b32.xlu0 %v35, 127
  %v43 = vpop.permute.xlu0 %42
  %44 = vrot.lane.b32.xlu0 %v36, 127
  %v45 = vpop.permute.xlu0 %44
  %vm46 = vcmask 1039360
  %v47 = vsel %vm46, %v43, %v45
  %vm48 = vcmask 64512
  %v50 = vsel %vm48, %v39, 0
  %vm52 = vcmask 1043456
  %v54 = vsel %vm52, %v47, 0
  %56 = vmatprep.subr.bf16.mxu0 0
  %57 = vmatpush1.bf16.msra.mxu0 0
  %58 = vmatprep.subr.bf16.mxu0 0
  %59 = vmatpush1.bf16.msra.mxu0 0
  %60 = vmatprep.subr.bf16.mxu0 0
  %61 = vmatpush1.bf16.msra.mxu0 0
  %62 = vmatprep.subr.bf16.mxu0 0
  %63 = vmatpush1.bf16.msra.mxu0 0
  %64 = vmatprep.subr.bf16.mxu0 0
  %65 = vmatpush1.bf16.msra.mxu0 0
  %66 = vmatprep.subr.bf16.mxu0 0
  %67 = vmatpush1.bf16.msra.mxu0 0
  %68 = vmatprep.subr.bf16.mxu0 0
  %69 = vmatpush1.bf16.msra.mxu0 0
  %70 = vmatprep.subr.bf16.mxu0 0
  %71 = vmatpush1.bf16.msra.mxu0 %v54
  %72 = vmatprep.subr.bf16.mxu0 0
  %73 = vmatpush2.bf16.msra.mxu0 0
  %74 = vmatprep.subr.bf16.mxu0 0
  %75 = vmatpush2.bf16.msra.mxu0 0
  %76 = vmatprep.subr.bf16.mxu0 0
  %77 = vmatpush2.bf16.msra.mxu0 0
  %78 = vmatprep.subr.bf16.mxu0 0
  %79 = vmatpush2.bf16.msra.mxu0 0
  %80 = vmatprep.subr.bf16.mxu0 0
  %81 = vmatpush2.bf16.msra.mxu0 0
  %82 = vmatprep.subr.bf16.mxu0 0
  %83 = vmatpush2.bf16.msra.mxu0 0
  %84 = vmatprep.subr.bf16.mxu0 0
  %85 = vmatpush2.bf16.msra.mxu0 0
  %86 = vmatprep.subr.bf16.mxu0 0
  %87 = vmatpush2.bf16.msra.mxu0 0
  %88 = vmatprep.mubr.bf16.mxu0 0
  %89 = vmatmul.mubr.bf16.gmra.mxu0 %v50
  %v90 = vpop.f32.mrf.mxu0
  %v91 = vadd.f32 0.0, %v90
  %v92 = vpop.f32.mrf.mxu0
  %v93 = vpop.f32.mrf.mxu0
  %v94 = vpop.f32.mrf.mxu0
  %95 = vdwg.mxu0
  %v97 = vsel %vm48, %v37, 0
  %v100 = vsel %vm52, %v35, 0
  %102 = vmatprep.subr.bf16.mxu0 0
  %103 = vmatpush1.bf16.msra.mxu0 0
  %104 = vmatprep.subr.bf16.mxu0 0
  %105 = vmatpush1.bf16.msra.mxu0 0
  %106 = vmatprep.subr.bf16.mxu0 0
  %107 = vmatpush1.bf16.msra.mxu0 0
  %108 = vmatprep.subr.bf16.mxu0 0
  %109 = vmatpush1.bf16.msra.mxu0 0
  %110 = vmatprep.subr.bf16.mxu0 0
  %111 = vmatpush1.bf16.msra.mxu0 0
  %112 = vmatprep.subr.bf16.mxu0 0
  %113 = vmatpush1.bf16.msra.mxu0 0
  %114 = vmatprep.subr.bf16.mxu0 0
  %115 = vmatpush1.bf16.msra.mxu0 0
  %116 = vmatprep.subr.bf16.mxu0 0
  %117 = vmatpush1.bf16.msra.mxu0 %v100
  %118 = vmatprep.subr.bf16.mxu0 0
  %119 = vmatpush2.bf16.msra.mxu0 0
  %120 = vmatprep.subr.bf16.mxu0 0
  %121 = vmatpush2.bf16.msra.mxu0 0
  %122 = vmatprep.subr.bf16.mxu0 0
  %123 = vmatpush2.bf16.msra.mxu0 0
  %124 = vmatprep.subr.bf16.mxu0 0
  %125 = vmatpush2.bf16.msra.mxu0 0
  %126 = vmatprep.subr.bf16.mxu0 0
  %127 = vmatpush2.bf16.msra.mxu0 0
  %128 = vmatprep.subr.bf16.mxu0 0
  %129 = vmatpush2.bf16.msra.mxu0 0
  %130 = vmatprep.subr.bf16.mxu0 0
  %131 = vmatpush2.bf16.msra.mxu0 0
  %132 = vmatprep.subr.bf16.mxu0 0
  %133 = vmatpush2.bf16.msra.mxu0 0
  %134 = vmatprep.mubr.bf16.mxu0 0
  %135 = vmatmul.mubr.bf16.gmra.mxu0 %v97
  %v136 = vpop.f32.mrf.mxu0
  %v137 = vadd.f32 %v91, %v136
  %v138 = vpop.f32.mrf.mxu0
  %v139 = vpop.f32.mrf.mxu0
  %v140 = vpop.f32.mrf.mxu0
  %141 = vdwg.mxu0
  %s142 = scalar_lea.vmem %s0, 8
  %v143 = vld [vmem:[%s142] sm:$0xf]
  %144 = vrot.lane.b32.xlu0 %v35, 126
  %v145 = vpop.permute.xlu0 %144
  %146 = vrot.lane.b32.xlu0 %v36, 126
  %v147 = vpop.permute.xlu0 %146
  %vm148 = vcmask 1031168
  %v149 = vsel %vm148, %v145, %v147
  %v151 = vsel %vm48, %v143, 0
  %v154 = vsel %vm52, %v149, 0
  %156 = vmatprep.subr.bf16.mxu0 0
  %157 = vmatpush1.bf16.msra.mxu0 0
  %158 = vmatprep.subr.bf16.mxu0 0
  %159 = vmatpush1.bf16.msra.mxu0 0
  %160 = vmatprep.subr.bf16.mxu0 0
  %161 = vmatpush1.bf16.msra.mxu0 0
  %162 = vmatprep.subr.bf16.mxu0 0
  %163 = vmatpush1.bf16.msra.mxu0 0
  %164 = vmatprep.subr.bf16.mxu0 0
  %165 = vmatpush1.bf16.msra.mxu0 0
  %166 = vmatprep.subr.bf16.mxu0 0
  %167 = vmatpush1.bf16.msra.mxu0 0
  %168 = vmatprep.subr.bf16.mxu0 0
  %169 = vmatpush1.bf16.msra.mxu0 0
  %170 = vmatprep.subr.bf16.mxu0 0
  %171 = vmatpush1.bf16.msra.mxu0 %v154
  %172 = vmatprep.subr.bf16.mxu0 0
  %173 = vmatpush2.bf16.msra.mxu0 0
  %174 = vmatprep.subr.bf16.mxu0 0
  %175 = vmatpush2.bf16.msra.mxu0 0
  %176 = vmatprep.subr.bf16.mxu0 0
  %177 = vmatpush2.bf16.msra.mxu0 0
  %178 = vmatprep.subr.bf16.mxu0 0
  %179 = vmatpush2.bf16.msra.mxu0 0
  %180 = vmatprep.subr.bf16.mxu0 0
  %181 = vmatpush2.bf16.msra.mxu0 0
  %182 = vmatprep.subr.bf16.mxu0 0
  %183 = vmatpush2.bf16.msra.mxu0 0
  %184 = vmatprep.subr.bf16.mxu0 0
  %185 = vmatpush2.bf16.msra.mxu0 0
  %186 = vmatprep.subr.bf16.mxu0 0
  %187 = vmatpush2.bf16.msra.mxu0 0
  %188 = vmatprep.mubr.bf16.mxu0 0
  %189 = vmatmul.mubr.bf16.gmra.mxu0 %v151
  %v190 = vpop.f32.mrf.mxu0
  %v191 = vadd.f32 0.0, %v190
  %v192 = vpop.f32.mrf.mxu0
  %v193 = vpop.f32.mrf.mxu0
  %v194 = vpop.f32.mrf.mxu0
  %195 = vdwg.mxu0
  %v196 = vadd.f32 %v137, %v191
  %s197 = scalar_lea.vmem %s0, 12
  %v198 = vld [vmem:[%s197] sm:$0xf]
  %199 = vrot.lane.b32.xlu0 %v35, 122
  %v200 = vpop.permute.xlu0 %199
  %201 = vrot.lane.b32.xlu0 %v36, 122
  %v202 = vpop.permute.xlu0 %201
  %vm203 = vcmask 998400
  %v204 = vsel %vm203, %v200, %v202
  %v206 = vsel %vm48, %v198, 0
  %v209 = vsel %vm52, %v204, 0
  %211 = vmatprep.subr.bf16.mxu0 0
  %212 = vmatpush1.bf16.msra.mxu0 0
  %213 = vmatprep.subr.bf16.mxu0 0
  %214 = vmatpush1.bf16.msra.mxu0 0
  %215 = vmatprep.subr.bf16.mxu0 0
  %216 = vmatpush1.bf16.msra.mxu0 0
  %217 = vmatprep.subr.bf16.mxu0 0
  %218 = vmatpush1.bf16.msra.mxu0 0
  %219 = vmatprep.subr.bf16.mxu0 0
  %220 = vmatpush1.bf16.msra.mxu0 0
  %221 = vmatprep.subr.bf16.mxu0 0
  %222 = vmatpush1.bf16.msra.mxu0 0
  %223 = vmatprep.subr.bf16.mxu0 0
  %224 = vmatpush1.bf16.msra.mxu0 0
  %225 = vmatprep.subr.bf16.mxu0 0
  %226 = vmatpush1.bf16.msra.mxu0 %v209
  %227 = vmatprep.subr.bf16.mxu0 0
  %228 = vmatpush2.bf16.msra.mxu0 0
  %229 = vmatprep.subr.bf16.mxu0 0
  %230 = vmatpush2.bf16.msra.mxu0 0
  %231 = vmatprep.subr.bf16.mxu0 0
  %232 = vmatpush2.bf16.msra.mxu0 0
  %233 = vmatprep.subr.bf16.mxu0 0
  %234 = vmatpush2.bf16.msra.mxu0 0
  %235 = vmatprep.subr.bf16.mxu0 0
  %236 = vmatpush2.bf16.msra.mxu0 0
  %237 = vmatprep.subr.bf16.mxu0 0
  %238 = vmatpush2.bf16.msra.mxu0 0
  %239 = vmatprep.subr.bf16.mxu0 0
  %240 = vmatpush2.bf16.msra.mxu0 0
  %241 = vmatprep.subr.bf16.mxu0 0
  %242 = vmatpush2.bf16.msra.mxu0 0
  %243 = vmatprep.mubr.bf16.mxu0 0
  %244 = vmatmul.mubr.bf16.gmra.mxu0 %v206
  %v245 = vpop.f32.mrf.mxu0
  %v246 = vadd.f32 0.0, %v245
  %v247 = vpop.f32.mrf.mxu0
  %v248 = vpop.f32.mrf.mxu0
  %v249 = vpop.f32.mrf.mxu0
  %250 = vdwg.mxu0
  %v251 = vadd.f32 %v196, %v246
  %s252 = scalar_lea.vmem %s0, 16
  %v253 = vld [vmem:[%s252] sm:$0xf]
  %254 = vrot.lane.b32.xlu0 %v35, 121
  %v255 = vpop.permute.xlu0 %254
  %256 = vrot.lane.b32.xlu0 %v36, 121
  %v257 = vpop.permute.xlu0 %256
  %vm258 = vcmask 990208
  %v259 = vsel %vm258, %v255, %v257
  %v261 = vsel %vm48, %v253, 0
  %v264 = vsel %vm52, %v259, 0
  %266 = vmatprep.subr.bf16.mxu0 0
  %267 = vmatpush1.bf16.msra.mxu0 0
  %268 = vmatprep.subr.bf16.mxu0 0
  %269 = vmatpush1.bf16.msra.mxu0 0
  %270 = vmatprep.subr.bf16.mxu0 0
  %271 = vmatpush1.bf16.msra.mxu0 0
  %272 = vmatprep.subr.bf16.mxu0 0
  %273 = vmatpush1.bf16.msra.mxu0 0
  %274 = vmatprep.subr.bf16.mxu0 0
  %275 = vmatpush1.bf16.msra.mxu0 0
  %276 = vmatprep.subr.bf16.mxu0 0
  %277 = vmatpush1.bf16.msra.mxu0 0
  %278 = vmatprep.subr.bf16.mxu0 0
  %279 = vmatpush1.bf16.msra.mxu0 0
  %280 = vmatprep.subr.bf16.mxu0 0
  %281 = vmatpush1.bf16.msra.mxu0 %v264
  %282 = vmatprep.subr.bf16.mxu0 0
  %283 = vmatpush2.bf16.msra.mxu0 0
  %284 = vmatprep.subr.bf16.mxu0 0
  %285 = vmatpush2.bf16.msra.mxu0 0
  %286 = vmatprep.subr.bf16.mxu0 0
  %287 = vmatpush2.bf16.msra.mxu0 0
  %288 = vmatprep.subr.bf16.mxu0 0
  %289 = vmatpush2.bf16.msra.mxu0 0
  %290 = vmatprep.subr.bf16.mxu0 0
  %291 = vmatpush2.bf16.msra.mxu0 0
  %292 = vmatprep.subr.bf16.mxu0 0
  %293 = vmatpush2.bf16.msra.mxu0 0
  %294 = vmatprep.subr.bf16.mxu0 0
  %295 = vmatpush2.bf16.msra.mxu0 0
  %296 = vmatprep.subr.bf16.mxu0 0
  %297 = vmatpush2.bf16.msra.mxu0 0
  %298 = vmatprep.mubr.bf16.mxu0 0
  %299 = vmatmul.mubr.bf16.gmra.mxu0 %v261
  %v300 = vpop.f32.mrf.mxu0
  %v301 = vadd.f32 0.0, %v300
  %v302 = vpop.f32.mrf.mxu0
  %v303 = vpop.f32.mrf.mxu0
  %v304 = vpop.f32.mrf.mxu0
  %305 = vdwg.mxu0
  %v306 = vadd.f32 %v251, %v301
  %s307 = scalar_lea.vmem %s0, 20
  %v308 = vld [vmem:[%s307] sm:$0xf]
  %309 = vrot.lane.b32.xlu0 %v35, 120
  %v310 = vpop.permute.xlu0 %309
  %311 = vrot.lane.b32.xlu0 %v36, 120
  %v312 = vpop.permute.xlu0 %311
  %vm313 = vcmask 982016
  %v314 = vsel %vm313, %v310, %v312
  %v316 = vsel %vm48, %v308, 0
  %v319 = vsel %vm52, %v314, 0
  %321 = vmatprep.subr.bf16.mxu0 0
  %322 = vmatpush1.bf16.msra.mxu0 0
  %323 = vmatprep.subr.bf16.mxu0 0
  %324 = vmatpush1.bf16.msra.mxu0 0
  %325 = vmatprep.subr.bf16.mxu0 0
  %326 = vmatpush1.bf16.msra.mxu0 0
  %327 = vmatprep.subr.bf16.mxu0 0
  %328 = vmatpush1.bf16.msra.mxu0 0
  %329 = vmatprep.subr.bf16.mxu0 0
  %330 = vmatpush1.bf16.msra.mxu0 0
  %331 = vmatprep.subr.bf16.mxu0 0
  %332 = vmatpush1.bf16.msra.mxu0 0
  %333 = vmatprep.subr.bf16.mxu0 0
  %334 = vmatpush1.bf16.msra.mxu0 0
  %335 = vmatprep.subr.bf16.mxu0 0
  %336 = vmatpush1.bf16.msra.mxu0 %v319
  %337 = vmatprep.subr.bf16.mxu0 0
  %338 = vmatpush2.bf16.msra.mxu0 0
  %339 = vmatprep.subr.bf16.mxu0 0
  %340 = vmatpush2.bf16.msra.mxu0 0
  %341 = vmatprep.subr.bf16.mxu0 0
  %342 = vmatpush2.bf16.msra.mxu0 0
  %343 = vmatprep.subr.bf16.mxu0 0
  %344 = vmatpush2.bf16.msra.mxu0 0
  %345 = vmatprep.subr.bf16.mxu0 0
  %346 = vmatpush2.bf16.msra.mxu0 0
  %347 = vmatprep.subr.bf16.mxu0 0
  %348 = vmatpush2.bf16.msra.mxu0 0
  %349 = vmatprep.subr.bf16.mxu0 0
  %350 = vmatpush2.bf16.msra.mxu0 0
  %351 = vmatprep.subr.bf16.mxu0 0
  %352 = vmatpush2.bf16.msra.mxu0 0
  %353 = vmatprep.mubr.bf16.mxu0 0
  %354 = vmatmul.mubr.bf16.gmra.mxu0 %v316
  %v355 = vpop.f32.mrf.mxu0
  %v356 = vadd.f32 0.0, %v355
  %v357 = vpop.f32.mrf.mxu0
  %v358 = vpop.f32.mrf.mxu0
  %v359 = vpop.f32.mrf.mxu0
  %360 = vdwg.mxu0
  %v361 = vadd.f32 %v306, %v356
  %s362 = scalar_lea.vmem %s0, 24
  %v363 = vld [vmem:[%s362] sm:$0xf]
  %364 = vrot.lane.b32.xlu0 %v35, 116
  %v365 = vpop.permute.xlu0 %364
  %366 = vrot.lane.b32.xlu0 %v36, 116
  %v367 = vpop.permute.xlu0 %366
  %vm368 = vcmask 949248
  %v369 = vsel %vm368, %v365, %v367
  %v371 = vsel %vm48, %v363, 0
  %v374 = vsel %vm52, %v369, 0
  %376 = vmatprep.subr.bf16.mxu0 0
  %377 = vmatpush1.bf16.msra.mxu0 0
  %378 = vmatprep.subr.bf16.mxu0 0
  %379 = vmatpush1.bf16.msra.mxu0 0
  %380 = vmatprep.subr.bf16.mxu0 0
  %381 = vmatpush1.bf16.msra.mxu0 0
  %382 = vmatprep.subr.bf16.mxu0 0
  %383 = vmatpush1.bf16.msra.mxu0 0
  %384 = vmatprep.subr.bf16.mxu0 0
  %385 = vmatpush1.bf16.msra.mxu0 0
  %386 = vmatprep.subr.bf16.mxu0 0
  %387 = vmatpush1.bf16.msra.mxu0 0
  %388 = vmatprep.subr.bf16.mxu0 0
  %389 = vmatpush1.bf16.msra.mxu0 0
  %390 = vmatprep.subr.bf16.mxu0 0
  %391 = vmatpush1.bf16.msra.mxu0 %v374
  %392 = vmatprep.subr.bf16.mxu0 0
  %393 = vmatpush2.bf16.msra.mxu0 0
  %394 = vmatprep.subr.bf16.mxu0 0
  %395 = vmatpush2.bf16.msra.mxu0 0
  %396 = vmatprep.subr.bf16.mxu0 0
  %397 = vmatpush2.bf16.msra.mxu0 0
  %398 = vmatprep.subr.bf16.mxu0 0
  %399 = vmatpush2.bf16.msra.mxu0 0
  %400 = vmatprep.subr.bf16.mxu0 0
  %401 = vmatpush2.bf16.msra.mxu0 0
  %402 = vmatprep.subr.bf16.mxu0 0
  %403 = vmatpush2.bf16.msra.mxu0 0
  %404 = vmatprep.subr.bf16.mxu0 0
  %405 = vmatpush2.bf16.msra.mxu0 0
  %406 = vmatprep.subr.bf16.mxu0 0
  %407 = vmatpush2.bf16.msra.mxu0 0
  %408 = vmatprep.mubr.bf16.mxu0 0
  %409 = vmatmul.mubr.bf16.gmra.mxu0 %v371
  %v410 = vpop.f32.mrf.mxu0
  %v411 = vadd.f32 0.0, %v410
  %v412 = vpop.f32.mrf.mxu0
  %v413 = vpop.f32.mrf.mxu0
  %v414 = vpop.f32.mrf.mxu0
  %415 = vdwg.mxu0
  %v416 = vadd.f32 %v361, %v411
  %s417 = scalar_lea.vmem %s0, 28
  %v418 = vld [vmem:[%s417] sm:$0xf]
  %419 = vrot.lane.b32.xlu0 %v35, 115
  %v420 = vpop.permute.xlu0 %419
  %421 = vrot.lane.b32.xlu0 %v36, 115
  %v422 = vpop.permute.xlu0 %421
  %vm423 = vcmask 941056
  %v424 = vsel %vm423, %v420, %v422
  %v426 = vsel %vm48, %v418, 0
  %v429 = vsel %vm52, %v424, 0
  %431 = vmatprep.subr.bf16.mxu0 0
  %432 = vmatpush1.bf16.msra.mxu0 0
  %433 = vmatprep.subr.bf16.mxu0 0
  %434 = vmatpush1.bf16.msra.mxu0 0
  %435 = vmatprep.subr.bf16.mxu0 0
  %436 = vmatpush1.bf16.msra.mxu0 0
  %437 = vmatprep.subr.bf16.mxu0 0
  %438 = vmatpush1.bf16.msra.mxu0 0
  %439 = vmatprep.subr.bf16.mxu0 0
  %440 = vmatpush1.bf16.msra.mxu0 0
  %441 = vmatprep.subr.bf16.mxu0 0
  %442 = vmatpush1.bf16.msra.mxu0 0
  %443 = vmatprep.subr.bf16.mxu0 0
  %444 = vmatpush1.bf16.msra.mxu0 0
  %445 = vmatprep.subr.bf16.mxu0 0
  %446 = vmatpush1.bf16.msra.mxu0 %v429
  %447 = vmatprep.subr.bf16.mxu0 0
  %448 = vmatpush2.bf16.msra.mxu0 0
  %449 = vmatprep.subr.bf16.mxu0 0
  %450 = vmatpush2.bf16.msra.mxu0 0
  %451 = vmatprep.subr.bf16.mxu0 0
  %452 = vmatpush2.bf16.msra.mxu0 0
  %453 = vmatprep.subr.bf16.mxu0 0
  %454 = vmatpush2.bf16.msra.mxu0 0
  %455 = vmatprep.subr.bf16.mxu0 0
  %456 = vmatpush2.bf16.msra.mxu0 0
  %457 = vmatprep.subr.bf16.mxu0 0
  %458 = vmatpush2.bf16.msra.mxu0 0
  %459 = vmatprep.subr.bf16.mxu0 0
  %460 = vmatpush2.bf16.msra.mxu0 0
  %461 = vmatprep.subr.bf16.mxu0 0
  %462 = vmatpush2.bf16.msra.mxu0 0
  %463 = vmatprep.mubr.bf16.mxu0 0
  %464 = vmatmul.mubr.bf16.gmra.mxu0 %v426
  %v465 = vpop.f32.mrf.mxu0
  %v466 = vadd.f32 0.0, %v465
  %v467 = vpop.f32.mrf.mxu0
  %v468 = vpop.f32.mrf.mxu0
  %v469 = vpop.f32.mrf.mxu0
  %470 = vdwg.mxu0
  %v471 = vadd.f32 %v416, %v466
  %s472 = scalar_lea.vmem %s0, 32
  %v473 = vld [vmem:[%s472] sm:$0xf]
  %474 = vrot.lane.b32.xlu0 %v35, 114
  %v475 = vpop.permute.xlu0 %474
  %476 = vrot.lane.b32.xlu0 %v36, 114
  %v477 = vpop.permute.xlu0 %476
  %vm478 = vcmask 932864
  %v479 = vsel %vm478, %v475, %v477
  %v481 = vsel %vm48, %v473, 0
  %v484 = vsel %vm52, %v479, 0
  %486 = vmatprep.subr.bf16.mxu0 0
  %487 = vmatpush1.bf16.msra.mxu0 0
  %488 = vmatprep.subr.bf16.mxu0 0
  %489 = vmatpush1.bf16.msra.mxu0 0
  %490 = vmatprep.subr.bf16.mxu0 0
  %491 = vmatpush1.bf16.msra.mxu0 0
  %492 = vmatprep.subr.bf16.mxu0 0
  %493 = vmatpush1.bf16.msra.mxu0 0
  %494 = vmatprep.subr.bf16.mxu0 0
  %495 = vmatpush1.bf16.msra.mxu0 0
  %496 = vmatprep.subr.bf16.mxu0 0
  %497 = vmatpush1.bf16.msra.mxu0 0
  %498 = vmatprep.subr.bf16.mxu0 0
  %499 = vmatpush1.bf16.msra.mxu0 0
  %500 = vmatprep.subr.bf16.mxu0 0
  %501 = vmatpush1.bf16.msra.mxu0 %v484
  %502 = vmatprep.subr.bf16.mxu0 0
  %503 = vmatpush2.bf16.msra.mxu0 0
  %504 = vmatprep.subr.bf16.mxu0 0
  %505 = vmatpush2.bf16.msra.mxu0 0
  %506 = vmatprep.subr.bf16.mxu0 0
  %507 = vmatpush2.bf16.msra.mxu0 0
  %508 = vmatprep.subr.bf16.mxu0 0
  %509 = vmatpush2.bf16.msra.mxu0 0
  %510 = vmatprep.subr.bf16.mxu0 0
  %511 = vmatpush2.bf16.msra.mxu0 0
  %512 = vmatprep.subr.bf16.mxu0 0
  %513 = vmatpush2.bf16.msra.mxu0 0
  %514 = vmatprep.subr.bf16.mxu0 0
  %515 = vmatpush2.bf16.msra.mxu0 0
  %516 = vmatprep.subr.bf16.mxu0 0
  %517 = vmatpush2.bf16.msra.mxu0 0
  %518 = vmatprep.mubr.bf16.mxu0 0
  %519 = vmatmul.mubr.bf16.gmra.mxu0 %v481
  %v520 = vpop.f32.mrf.mxu0
  %v521 = vadd.f32 0.0, %v520
  %v522 = vpop.f32.mrf.mxu0
  %v523 = vpop.f32.mrf.mxu0
  %v524 = vpop.f32.mrf.mxu0
  %525 = vdwg.mxu0
  %v526 = vadd.f32 %v471, %v521
  %v527 = vld [vmem:[%s1] sm:$0xff]
  %529 = vset.pattern.permute.xlu0 0
  %530 = vperm.xlu0 %529, %v527
  %v531 = vpop.permute.xlu0 %530
  %v533 = vadd.f32 %v526, %v531
  %534 = vst [vmem:[%s4] sm:$0xff] %v533
  // Predicated region
  $region18: #{backbone_fpn_forward.15} parent=0 // pred_check
    _
  $region19: #{backbone_fpn_forward.15} parent=0 // pred_check_branch
    %536 = sbr.rel (0) target = $region21
  $region20: #{backbone_fpn_forward.15} parent=0 // pred_region
    _
  $region21: #{backbone_fpn_forward.15} parent=0 // pred_fallthru
    _
  // Predicated region
  $region22: #{backbone_fpn_forward.15} parent=0 // pred_check
    _
  $region23: #{backbone_fpn_forward.15} parent=0 // pred_check_branch
    %538 = sbr.rel (0) target = $region25
  $region24: #{backbone_fpn_forward.15} parent=0 // pred_region
    _
  $region25: #{backbone_fpn_forward.15} parent=0 // pred_fallthru
    _

// kernel: backbone_fpn_forward.13
$region0: #{backbone_fpn_forward.13}
  #allocation0 [shape = 'u32[]', space=smem, size = 0x4, offset = 0x4, fixed_abs, tag = 'smem constant byte address 0x4 - core index']
  #allocation1 [shape = 'u32[144,128]{1,0:T(1,128)}', space=vmem, size = 0x12000, scoped, tag = 'internal scratch']
  %s0 = inlined_call_operand.vmem [shape: bf16[9,8,8], index: 0, kind: input, shape index: {}]
  %s1 = inlined_call_operand.vmem [shape: f32[8,1], index: 1, kind: input, shape index: {}]
  %s2 = inlined_call_operand.vmem [shape: bf16[1,8,256], index: 2, kind: input, shape index: {}, may-alias: {2,3}]
  %s3 = inlined_call_operand.vmem [shape: bf16[1,8,256], index: 3, kind: input, shape index: {}, may-alias: {2,3}]
  %s4 = inlined_call_operand.vmem [shape: f32[8,128], index: 4, kind: output, shape index: {}]
  %s5 = sld [smem:[#allocation0]]
  $region26: #{backbone_fpn_forward.13} parent=0
    _
  %s7 = ssub.s32 1, %s5
  %s8 = scalar_select 0, %s7, %s5
  // Predicated region
  $region2: #{backbone_fpn_forward.13} parent=0 // pred_check
    _
  $region3: #{backbone_fpn_forward.13} parent=0 // pred_check_branch
    %10 = sbr.rel (0) target = $region5
  $region4: #{backbone_fpn_forward.13} parent=0 // pred_region
    _
  $region5: #{backbone_fpn_forward.13} parent=0 // pred_fallthru
    _
  // Predicated region
  $region6: #{backbone_fpn_forward.13} parent=0 // pred_check
    _
  $region7: #{backbone_fpn_forward.13} parent=0 // pred_check_branch
    %12 = sbr.rel (0) target = $region9
  $region8: #{backbone_fpn_forward.13} parent=0 // pred_region
    _
  $region9: #{backbone_fpn_forward.13} parent=0 // pred_fallthru
    _
  // Predicated region
  $region10: #{backbone_fpn_forward.13} parent=0 // pred_check
    _
  $region11: #{backbone_fpn_forward.13} parent=0 // pred_check_branch
    %14 = sbr.rel (0) target = $region13
  $region12: #{backbone_fpn_forward.13} parent=0 // pred_region
    _
  $region13: #{backbone_fpn_forward.13} parent=0 // pred_fallthru
    _
  // Predicated region
  $region14: #{backbone_fpn_forward.13} parent=0 // pred_check
    _
  $region15: #{backbone_fpn_forward.13} parent=0 // pred_check_branch
    %16 = sbr.rel (0) target = $region17
  $region16: #{backbone_fpn_forward.13} parent=0 // pred_region
    %s17 = sadd.s32 0, 1
    %p18 = scmp.lt.s32.totalorder %s17, 1
    %s19 = scalar_select %p18, %s17, 1
    %s20 = smul.addr %s19, 4
    %s21 = scalar_lea.vmem %s3, %s20
    %s22 = sadd.s32 0, 1
  $region17: #{backbone_fpn_forward.13} parent=0 // pred_fallthru
    _
  %s23 = sadd.s32 0, 1
  %p24 = scmp.lt.s32.totalorder %s23, 1
  %s25 = scalar_select %p24, %s23, 1
  %s26 = smul.addr %s25, 4
  %s27 = scalar_lea.vmem %s3, %s26
  %s28 = sadd.s32 0, 1
  %p29 = scmp.lt.s32.totalorder %s28, 1
  %s30 = scalar_select %p29, %s28, 1
  %s31 = smul.addr %s30, 4
  %s32 = scalar_lea.vmem %s3, %s31
  %s33 = sadd.s32 0, 1
  %v35 = vld [vmem:[%s2] sm:$0xf]
  %v36 = vld [vmem:[%s32] sm:$0xf]
  %v37 = vld [vmem:[%s0] sm:$0xf]
  %s38 = scalar_lea.vmem %s0, 4
  %v39 = vld [vmem:[%s38] sm:$0xf]
  %42 = vrot.lane.b32.xlu0 %v35, 127
  %v43 = vpop.permute.xlu0 %42
  %44 = vrot.lane.b32.xlu0 %v36, 127
  %v45 = vpop.permute.xlu0 %44
  %vm46 = vcmask 1039360
  %v47 = vsel %vm46, %v43, %v45
  %vm48 = vcmask 64512
  %v50 = vsel %vm48, %v39, 0
  %vm52 = vcmask 1043456
  %v54 = vsel %vm52, %v47, 0
  %56 = vmatprep.subr.bf16.mxu0 0
  %57 = vmatpush1.bf16.msra.mxu0 0
  %58 = vmatprep.subr.bf16.mxu0 0
  %59 = vmatpush1.bf16.msra.mxu0 0
  %60 = vmatprep.subr.bf16.mxu0 0
  %61 = vmatpush1.bf16.msra.mxu0 0
  %62 = vmatprep.subr.bf16.mxu0 0
  %63 = vmatpush1.bf16.msra.mxu0 0
  %64 = vmatprep.subr.bf16.mxu0 0
  %65 = vmatpush1.bf16.msra.mxu0 0
  %66 = vmatprep.subr.bf16.mxu0 0
  %67 = vmatpush1.bf16.msra.mxu0 0
  %68 = vmatprep.subr.bf16.mxu0 0
  %69 = vmatpush1.bf16.msra.mxu0 0
  %70 = vmatprep.subr.bf16.mxu0 0
  %71 = vmatpush1.bf16.msra.mxu0 %v54
  %72 = vmatprep.subr.bf16.mxu0 0
  %73 = vmatpush2.bf16.msra.mxu0 0
  %74 = vmatprep.subr.bf16.mxu0 0
  %75 = vmatpush2.bf16.msra.mxu0 0
  %76 = vmatprep.subr.bf16.mxu0 0
  %77 = vmatpush2.bf16.msra.mxu0 0
  %78 = vmatprep.subr.bf16.mxu0 0
  %79 = vmatpush2.bf16.msra.mxu0 0
  %80 = vmatprep.subr.bf16.mxu0 0
  %81 = vmatpush2.bf16.msra.mxu0 0
  %82 = vmatprep.subr.bf16.mxu0 0
  %83 = vmatpush2.bf16.msra.mxu0 0
  %84 = vmatprep.subr.bf16.mxu0 0
  %85 = vmatpush2.bf16.msra.mxu0 0
  %86 = vmatprep.subr.bf16.mxu0 0
  %87 = vmatpush2.bf16.msra.mxu0 0
  %88 = vmatprep.mubr.bf16.mxu0 0
  %89 = vmatmul.mubr.bf16.gmra.mxu0 %v50
  %v90 = vpop.f32.mrf.mxu0
  %v91 = vadd.f32 0.0, %v90
  %v92 = vpop.f32.mrf.mxu0
  %v93 = vpop.f32.mrf.mxu0
  %v94 = vpop.f32.mrf.mxu0
  %95 = vdwg.mxu0
  %v97 = vsel %vm48, %v37, 0
  %v100 = vsel %vm52, %v35, 0
  %102 = vmatprep.subr.bf16.mxu0 0
  %103 = vmatpush1.bf16.msra.mxu0 0
  %104 = vmatprep.subr.bf16.mxu0 0
  %105 = vmatpush1.bf16.msra.mxu0 0
  %106 = vmatprep.subr.bf16.mxu0 0
  %107 = vmatpush1.bf16.msra.mxu0 0
  %108 = vmatprep.subr.bf16.mxu0 0
  %109 = vmatpush1.bf16.msra.mxu0 0
  %110 = vmatprep.subr.bf16.mxu0 0
  %111 = vmatpush1.bf16.msra.mxu0 0
  %112 = vmatprep.subr.bf16.mxu0 0
  %113 = vmatpush1.bf16.msra.mxu0 0
  %114 = vmatprep.subr.bf16.mxu0 0
  %115 = vmatpush1.bf16.msra.mxu0 0
  %116 = vmatprep.subr.bf16.mxu0 0
  %117 = vmatpush1.bf16.msra.mxu0 %v100
  %118 = vmatprep.subr.bf16.mxu0 0
  %119 = vmatpush2.bf16.msra.mxu0 0
  %120 = vmatprep.subr.bf16.mxu0 0
  %121 = vmatpush2.bf16.msra.mxu0 0
  %122 = vmatprep.subr.bf16.mxu0 0
  %123 = vmatpush2.bf16.msra.mxu0 0
  %124 = vmatprep.subr.bf16.mxu0 0
  %125 = vmatpush2.bf16.msra.mxu0 0
  %126 = vmatprep.subr.bf16.mxu0 0
  %127 = vmatpush2.bf16.msra.mxu0 0
  %128 = vmatprep.subr.bf16.mxu0 0
  %129 = vmatpush2.bf16.msra.mxu0 0
  %130 = vmatprep.subr.bf16.mxu0 0
  %131 = vmatpush2.bf16.msra.mxu0 0
  %132 = vmatprep.subr.bf16.mxu0 0
  %133 = vmatpush2.bf16.msra.mxu0 0
  %134 = vmatprep.mubr.bf16.mxu0 0
  %135 = vmatmul.mubr.bf16.gmra.mxu0 %v97
  %v136 = vpop.f32.mrf.mxu0
  %v137 = vadd.f32 %v91, %v136
  %v138 = vpop.f32.mrf.mxu0
  %v139 = vpop.f32.mrf.mxu0
  %v140 = vpop.f32.mrf.mxu0
  %141 = vdwg.mxu0
  %s142 = scalar_lea.vmem %s0, 8
  %v143 = vld [vmem:[%s142] sm:$0xf]
  %144 = vrot.lane.b32.xlu0 %v35, 126
  %v145 = vpop.permute.xlu0 %144
  %146 = vrot.lane.b32.xlu0 %v36, 126
  %v147 = vpop.permute.xlu0 %146
  %vm148 = vcmask 1031168
  %v149 = vsel %vm148, %v145, %v147
  %v151 = vsel %vm48, %v143, 0
  %v154 = vsel %vm52, %v149, 0
  %156 = vmatprep.subr.bf16.mxu0 0
  %157 = vmatpush1.bf16.msra.mxu0 0
  %158 = vmatprep.subr.bf16.mxu0 0
  %159 = vmatpush1.bf16.msra.mxu0 0
  %160 = vmatprep.subr.bf16.mxu0 0
  %161 = vmatpush1.bf16.msra.mxu0 0
  %162 = vmatprep.subr.bf16.mxu0 0
  %163 = vmatpush1.bf16.msra.mxu0 0
  %164 = vmatprep.subr.bf16.mxu0 0
  %165 = vmatpush1.bf16.msra.mxu0 0
  %166 = vmatprep.subr.bf16.mxu0 0
  %167 = vmatpush1.bf16.msra.mxu0 0
  %168 = vmatprep.subr.bf16.mxu0 0
  %169 = vmatpush1.bf16.msra.mxu0 0
  %170 = vmatprep.subr.bf16.mxu0 0
  %171 = vmatpush1.bf16.msra.mxu0 %v154
  %172 = vmatprep.subr.bf16.mxu0 0
  %173 = vmatpush2.bf16.msra.mxu0 0
  %174 = vmatprep.subr.bf16.mxu0 0
  %175 = vmatpush2.bf16.msra.mxu0 0
  %176 = vmatprep.subr.bf16.mxu0 0
  %177 = vmatpush2.bf16.msra.mxu0 0
  %178 = vmatprep.subr.bf16.mxu0 0
  %179 = vmatpush2.bf16.msra.mxu0 0
  %180 = vmatprep.subr.bf16.mxu0 0
  %181 = vmatpush2.bf16.msra.mxu0 0
  %182 = vmatprep.subr.bf16.mxu0 0
  %183 = vmatpush2.bf16.msra.mxu0 0
  %184 = vmatprep.subr.bf16.mxu0 0
  %185 = vmatpush2.bf16.msra.mxu0 0
  %186 = vmatprep.subr.bf16.mxu0 0
  %187 = vmatpush2.bf16.msra.mxu0 0
  %188 = vmatprep.mubr.bf16.mxu0 0
  %189 = vmatmul.mubr.bf16.gmra.mxu0 %v151
  %v190 = vpop.f32.mrf.mxu0
  %v191 = vadd.f32 0.0, %v190
  %v192 = vpop.f32.mrf.mxu0
  %v193 = vpop.f32.mrf.mxu0
  %v194 = vpop.f32.mrf.mxu0
  %195 = vdwg.mxu0
  %v196 = vadd.f32 %v137, %v191
  %s197 = scalar_lea.vmem %s0, 12
  %v198 = vld [vmem:[%s197] sm:$0xf]
  %199 = vrot.lane.b32.xlu0 %v35, 124
  %v200 = vpop.permute.xlu0 %199
  %201 = vrot.lane.b32.xlu0 %v36, 124
  %v202 = vpop.permute.xlu0 %201
  %vm203 = vcmask 1014784
  %v204 = vsel %vm203, %v200, %v202
  %v206 = vsel %vm48, %v198, 0
  %v209 = vsel %vm52, %v204, 0
  %211 = vmatprep.subr.bf16.mxu0 0
  %212 = vmatpush1.bf16.msra.mxu0 0
  %213 = vmatprep.subr.bf16.mxu0 0
  %214 = vmatpush1.bf16.msra.mxu0 0
  %215 = vmatprep.subr.bf16.mxu0 0
  %216 = vmatpush1.bf16.msra.mxu0 0
  %217 = vmatprep.subr.bf16.mxu0 0
  %218 = vmatpush1.bf16.msra.mxu0 0
  %219 = vmatprep.subr.bf16.mxu0 0
  %220 = vmatpush1.bf16.msra.mxu0 0
  %221 = vmatprep.subr.bf16.mxu0 0
  %222 = vmatpush1.bf16.msra.mxu0 0
  %223 = vmatprep.subr.bf16.mxu0 0
  %224 = vmatpush1.bf16.msra.mxu0 0
  %225 = vmatprep.subr.bf16.mxu0 0
  %226 = vmatpush1.bf16.msra.mxu0 %v209
  %227 = vmatprep.subr.bf16.mxu0 0
  %228 = vmatpush2.bf16.msra.mxu0 0
  %229 = vmatprep.subr.bf16.mxu0 0
  %230 = vmatpush2.bf16.msra.mxu0 0
  %231 = vmatprep.subr.bf16.mxu0 0
  %232 = vmatpush2.bf16.msra.mxu0 0
  %233 = vmatprep.subr.bf16.mxu0 0
  %234 = vmatpush2.bf16.msra.mxu0 0
  %235 = vmatprep.subr.bf16.mxu0 0
  %236 = vmatpush2.bf16.msra.mxu0 0
  %237 = vmatprep.subr.bf16.mxu0 0
  %238 = vmatpush2.bf16.msra.mxu0 0
  %239 = vmatprep.subr.bf16.mxu0 0
  %240 = vmatpush2.bf16.msra.mxu0 0
  %241 = vmatprep.subr.bf16.mxu0 0
  %242 = vmatpush2.bf16.msra.mxu0 0
  %243 = vmatprep.mubr.bf16.mxu0 0
  %244 = vmatmul.mubr.bf16.gmra.mxu0 %v206
  %v245 = vpop.f32.mrf.mxu0
  %v246 = vadd.f32 0.0, %v245
  %v247 = vpop.f32.mrf.mxu0
  %v248 = vpop.f32.mrf.mxu0
  %v249 = vpop.f32.mrf.mxu0
  %250 = vdwg.mxu0
  %v251 = vadd.f32 %v196, %v246
  %s252 = scalar_lea.vmem %s0, 16
  %v253 = vld [vmem:[%s252] sm:$0xf]
  %254 = vrot.lane.b32.xlu0 %v35, 123
  %v255 = vpop.permute.xlu0 %254
  %256 = vrot.lane.b32.xlu0 %v36, 123
  %v257 = vpop.permute.xlu0 %256
  %vm258 = vcmask 1006592
  %v259 = vsel %vm258, %v255, %v257
  %v261 = vsel %vm48, %v253, 0
  %v264 = vsel %vm52, %v259, 0
  %266 = vmatprep.subr.bf16.mxu0 0
  %267 = vmatpush1.bf16.msra.mxu0 0
  %268 = vmatprep.subr.bf16.mxu0 0
  %269 = vmatpush1.bf16.msra.mxu0 0
  %270 = vmatprep.subr.bf16.mxu0 0
  %271 = vmatpush1.bf16.msra.mxu0 0
  %272 = vmatprep.subr.bf16.mxu0 0
  %273 = vmatpush1.bf16.msra.mxu0 0
  %274 = vmatprep.subr.bf16.mxu0 0
  %275 = vmatpush1.bf16.msra.mxu0 0
  %276 = vmatprep.subr.bf16.mxu0 0
  %277 = vmatpush1.bf16.msra.mxu0 0
  %278 = vmatprep.subr.bf16.mxu0 0
  %279 = vmatpush1.bf16.msra.mxu0 0
  %280 = vmatprep.subr.bf16.mxu0 0
  %281 = vmatpush1.bf16.msra.mxu0 %v264
  %282 = vmatprep.subr.bf16.mxu0 0
  %283 = vmatpush2.bf16.msra.mxu0 0
  %284 = vmatprep.subr.bf16.mxu0 0
  %285 = vmatpush2.bf16.msra.mxu0 0
  %286 = vmatprep.subr.bf16.mxu0 0
  %287 = vmatpush2.bf16.msra.mxu0 0
  %288 = vmatprep.subr.bf16.mxu0 0
  %289 = vmatpush2.bf16.msra.mxu0 0
  %290 = vmatprep.subr.bf16.mxu0 0
  %291 = vmatpush2.bf16.msra.mxu0 0
  %292 = vmatprep.subr.bf16.mxu0 0
  %293 = vmatpush2.bf16.msra.mxu0 0
  %294 = vmatprep.subr.bf16.mxu0 0
  %295 = vmatpush2.bf16.msra.mxu0 0
  %296 = vmatprep.subr.bf16.mxu0 0
  %297 = vmatpush2.bf16.msra.mxu0 0
  %298 = vmatprep.mubr.bf16.mxu0 0
  %299 = vmatmul.mubr.bf16.gmra.mxu0 %v261
  %v300 = vpop.f32.mrf.mxu0
  %v301 = vadd.f32 0.0, %v300
  %v302 = vpop.f32.mrf.mxu0
  %v303 = vpop.f32.mrf.mxu0
  %v304 = vpop.f32.mrf.mxu0
  %305 = vdwg.mxu0
  %v306 = vadd.f32 %v251, %v301
  %s307 = scalar_lea.vmem %s0, 20
  %v308 = vld [vmem:[%s307] sm:$0xf]
  %309 = vrot.lane.b32.xlu0 %v35, 122
  %v310 = vpop.permute.xlu0 %309
  %311 = vrot.lane.b32.xlu0 %v36, 122
  %v312 = vpop.permute.xlu0 %311
  %vm313 = vcmask 998400
  %v314 = vsel %vm313, %v310, %v312
  %v316 = vsel %vm48, %v308, 0
  %v319 = vsel %vm52, %v314, 0
  %321 = vmatprep.subr.bf16.mxu0 0
  %322 = vmatpush1.bf16.msra.mxu0 0
  %323 = vmatprep.subr.bf16.mxu0 0
  %324 = vmatpush1.bf16.msra.mxu0 0
  %325 = vmatprep.subr.bf16.mxu0 0
  %326 = vmatpush1.bf16.msra.mxu0 0
  %327 = vmatprep.subr.bf16.mxu0 0
  %328 = vmatpush1.bf16.msra.mxu0 0
  %329 = vmatprep.subr.bf16.mxu0 0
  %330 = vmatpush1.bf16.msra.mxu0 0
  %331 = vmatprep.subr.bf16.mxu0 0
  %332 = vmatpush1.bf16.msra.mxu0 0
  %333 = vmatprep.subr.bf16.mxu0 0
  %334 = vmatpush1.bf16.msra.mxu0 0
  %335 = vmatprep.subr.bf16.mxu0 0
  %336 = vmatpush1.bf16.msra.mxu0 %v319
  %337 = vmatprep.subr.bf16.mxu0 0
  %338 = vmatpush2.bf16.msra.mxu0 0
  %339 = vmatprep.subr.bf16.mxu0 0
  %340 = vmatpush2.bf16.msra.mxu0 0
  %341 = vmatprep.subr.bf16.mxu0 0
  %342 = vmatpush2.bf16.msra.mxu0 0
  %343 = vmatprep.subr.bf16.mxu0 0
  %344 = vmatpush2.bf16.msra.mxu0 0
  %345 = vmatprep.subr.bf16.mxu0 0
  %346 = vmatpush2.bf16.msra.mxu0 0
  %347 = vmatprep.subr.bf16.mxu0 0
  %348 = vmatpush2.bf16.msra.mxu0 0
  %349 = vmatprep.subr.bf16.mxu0 0
  %350 = vmatpush2.bf16.msra.mxu0 0
  %351 = vmatprep.subr.bf16.mxu0 0
  %352 = vmatpush2.bf16.msra.mxu0 0
  %353 = vmatprep.mubr.bf16.mxu0 0
  %354 = vmatmul.mubr.bf16.gmra.mxu0 %v316
  %v355 = vpop.f32.mrf.mxu0
  %v356 = vadd.f32 0.0, %v355
  %v357 = vpop.f32.mrf.mxu0
  %v358 = vpop.f32.mrf.mxu0
  %v359 = vpop.f32.mrf.mxu0
  %360 = vdwg.mxu0
  %v361 = vadd.f32 %v306, %v356
  %s362 = scalar_lea.vmem %s0, 24
  %v363 = vld [vmem:[%s362] sm:$0xf]
  %364 = vrot.lane.b32.xlu0 %v35, 120
  %v365 = vpop.permute.xlu0 %364
  %366 = vrot.lane.b32.xlu0 %v36, 120
  %v367 = vpop.permute.xlu0 %366
  %vm368 = vcmask 982016
  %v369 = vsel %vm368, %v365, %v367
  %v371 = vsel %vm48, %v363, 0
  %v374 = vsel %vm52, %v369, 0
  %376 = vmatprep.subr.bf16.mxu0 0
  %377 = vmatpush1.bf16.msra.mxu0 0
  %378 = vmatprep.subr.bf16.mxu0 0
  %379 = vmatpush1.bf16.msra.mxu0 0
  %380 = vmatprep.subr.bf16.mxu0 0
  %381 = vmatpush1.bf16.msra.mxu0 0
  %382 = vmatprep.subr.bf16.mxu0 0
  %383 = vmatpush1.bf16.msra.mxu0 0
  %384 = vmatprep.subr.bf16.mxu0 0
  %385 = vmatpush1.bf16.msra.mxu0 0
  %386 = vmatprep.subr.bf16.mxu0 0
  %387 = vmatpush1.bf16.msra.mxu0 0
  %388 = vmatprep.subr.bf16.mxu0 0
  %389 = vmatpush1.bf16.msra.mxu0 0
  %390 = vmatprep.subr.bf16.mxu0 0
  %391 = vmatpush1.bf16.msra.mxu0 %v374
  %392 = vmatprep.subr.bf16.mxu0 0
  %393 = vmatpush2.bf16.msra.mxu0 0
  %394 = vmatprep.subr.bf16.mxu0 0
  %395 = vmatpush2.bf16.msra.mxu0 0
  %396 = vmatprep.subr.bf16.mxu0 0
  %397 = vmatpush2.bf16.msra.mxu0 0
  %398 = vmatprep.subr.bf16.mxu0 0
  %399 = vmatpush2.bf16.msra.mxu0 0
  %400 = vmatprep.subr.bf16.mxu0 0
  %401 = vmatpush2.bf16.msra.mxu0 0
  %402 = vmatprep.subr.bf16.mxu0 0
  %403 = vmatpush2.bf16.msra.mxu0 0
  %404 = vmatprep.subr.bf16.mxu0 0
  %405 = vmatpush2.bf16.msra.mxu0 0
  %406 = vmatprep.subr.bf16.mxu0 0
  %407 = vmatpush2.bf16.msra.mxu0 0
  %408 = vmatprep.mubr.bf16.mxu0 0
  %409 = vmatmul.mubr.bf16.gmra.mxu0 %v371
  %v410 = vpop.f32.mrf.mxu0
  %v411 = vadd.f32 0.0, %v410
  %v412 = vpop.f32.mrf.mxu0
  %v413 = vpop.f32.mrf.mxu0
  %v414 = vpop.f32.mrf.mxu0
  %415 = vdwg.mxu0
  %v416 = vadd.f32 %v361, %v411
  %s417 = scalar_lea.vmem %s0, 28
  %v418 = vld [vmem:[%s417] sm:$0xf]
  %419 = vrot.lane.b32.xlu0 %v35, 119
  %v420 = vpop.permute.xlu0 %419
  %421 = vrot.lane.b32.xlu0 %v36, 119
  %v422 = vpop.permute.xlu0 %421
  %vm423 = vcmask 973824
  %v424 = vsel %vm423, %v420, %v422
  %v426 = vsel %vm48, %v418, 0
  %v429 = vsel %vm52, %v424, 0
  %431 = vmatprep.subr.bf16.mxu0 0
  %432 = vmatpush1.bf16.msra.mxu0 0
  %433 = vmatprep.subr.bf16.mxu0 0
  %434 = vmatpush1.bf16.msra.mxu0 0
  %435 = vmatprep.subr.bf16.mxu0 0
  %436 = vmatpush1.bf16.msra.mxu0 0
  %437 = vmatprep.subr.bf16.mxu0 0
  %438 = vmatpush1.bf16.msra.mxu0 0
  %439 = vmatprep.subr.bf16.mxu0 0
  %440 = vmatpush1.bf16.msra.mxu0 0
  %441 = vmatprep.subr.bf16.mxu0 0
  %442 = vmatpush1.bf16.msra.mxu0 0
  %443 = vmatprep.subr.bf16.mxu0 0
  %444 = vmatpush1.bf16.msra.mxu0 0
  %445 = vmatprep.subr.bf16.mxu0 0
  %446 = vmatpush1.bf16.msra.mxu0 %v429
  %447 = vmatprep.subr.bf16.mxu0 0
  %448 = vmatpush2.bf16.msra.mxu0 0
  %449 = vmatprep.subr.bf16.mxu0 0
  %450 = vmatpush2.bf16.msra.mxu0 0
  %451 = vmatprep.subr.bf16.mxu0 0
  %452 = vmatpush2.bf16.msra.mxu0 0
  %453 = vmatprep.subr.bf16.mxu0 0
  %454 = vmatpush2.bf16.msra.mxu0 0
  %455 = vmatprep.subr.bf16.mxu0 0
  %456 = vmatpush2.bf16.msra.mxu0 0
  %457 = vmatprep.subr.bf16.mxu0 0
  %458 = vmatpush2.bf16.msra.mxu0 0
  %459 = vmatprep.subr.bf16.mxu0 0
  %460 = vmatpush2.bf16.msra.mxu0 0
  %461 = vmatprep.subr.bf16.mxu0 0
  %462 = vmatpush2.bf16.msra.mxu0 0
  %463 = vmatprep.mubr.bf16.mxu0 0
  %464 = vmatmul.mubr.bf16.gmra.mxu0 %v426
  %v465 = vpop.f32.mrf.mxu0
  %v466 = vadd.f32 0.0, %v465
  %v467 = vpop.f32.mrf.mxu0
  %v468 = vpop.f32.mrf.mxu0
  %v469 = vpop.f32.mrf.mxu0
  %470 = vdwg.mxu0
  %v471 = vadd.f32 %v416, %v466
  %s472 = scalar_lea.vmem %s0, 32
  %v473 = vld [vmem:[%s472] sm:$0xf]
  %474 = vrot.lane.b32.xlu0 %v35, 118
  %v475 = vpop.permute.xlu0 %474
  %476 = vrot.lane.b32.xlu0 %v36, 118
  %v477 = vpop.permute.xlu0 %476
  %vm478 = vcmask 965632
  %v479 = vsel %vm478, %v475, %v477
  %v481 = vsel %vm48, %v473, 0
  %v484 = vsel %vm52, %v479, 0
  %486 = vmatprep.subr.bf16.mxu0 0
  %487 = vmatpush1.bf16.msra.mxu0 0
  %488 = vmatprep.subr.bf16.mxu0 0
  %489 = vmatpush1.bf16.msra.mxu0 0
  %490 = vmatprep.subr.bf16.mxu0 0
  %491 = vmatpush1.bf16.msra.mxu0 0
  %492 = vmatprep.subr.bf16.mxu0 0
  %493 = vmatpush1.bf16.msra.mxu0 0
  %494 = vmatprep.subr.bf16.mxu0 0
  %495 = vmatpush1.bf16.msra.mxu0 0
  %496 = vmatprep.subr.bf16.mxu0 0
  %497 = vmatpush1.bf16.msra.mxu0 0
  %498 = vmatprep.subr.bf16.mxu0 0
  %499 = vmatpush1.bf16.msra.mxu0 0
  %500 = vmatprep.subr.bf16.mxu0 0
  %501 = vmatpush1.bf16.msra.mxu0 %v484
  %502 = vmatprep.subr.bf16.mxu0 0
  %503 = vmatpush2.bf16.msra.mxu0 0
  %504 = vmatprep.subr.bf16.mxu0 0
  %505 = vmatpush2.bf16.msra.mxu0 0
  %506 = vmatprep.subr.bf16.mxu0 0
  %507 = vmatpush2.bf16.msra.mxu0 0
  %508 = vmatprep.subr.bf16.mxu0 0
  %509 = vmatpush2.bf16.msra.mxu0 0
  %510 = vmatprep.subr.bf16.mxu0 0
  %511 = vmatpush2.bf16.msra.mxu0 0
  %512 = vmatprep.subr.bf16.mxu0 0
  %513 = vmatpush2.bf16.msra.mxu0 0
  %514 = vmatprep.subr.bf16.mxu0 0
  %515 = vmatpush2.bf16.msra.mxu0 0
  %516 = vmatprep.subr.bf16.mxu0 0
  %517 = vmatpush2.bf16.msra.mxu0 0
  %518 = vmatprep.mubr.bf16.mxu0 0
  %519 = vmatmul.mubr.bf16.gmra.mxu0 %v481
  %v520 = vpop.f32.mrf.mxu0
  %v521 = vadd.f32 0.0, %v520
  %v522 = vpop.f32.mrf.mxu0
  %v523 = vpop.f32.mrf.mxu0
  %v524 = vpop.f32.mrf.mxu0
  %525 = vdwg.mxu0
  %v526 = vadd.f32 %v471, %v521
  %v527 = vld [vmem:[%s1] sm:$0xff]
  %529 = vset.pattern.permute.xlu0 0
  %530 = vperm.xlu0 %529, %v527
  %v531 = vpop.permute.xlu0 %530
  %v533 = vadd.f32 %v526, %v531
  %534 = vst [vmem:[%s4] sm:$0xff] %v533
  // Predicated region
  $region18: #{backbone_fpn_forward.13} parent=0 // pred_check
    _
  $region19: #{backbone_fpn_forward.13} parent=0 // pred_check_branch
    %536 = sbr.rel (0) target = $region21
  $region20: #{backbone_fpn_forward.13} parent=0 // pred_region
    _
  $region21: #{backbone_fpn_forward.13} parent=0 // pred_fallthru
    _
  // Predicated region
  $region22: #{backbone_fpn_forward.13} parent=0 // pred_check
    _
  $region23: #{backbone_fpn_forward.13} parent=0 // pred_check_branch
    %538 = sbr.rel (0) target = $region25
  $region24: #{backbone_fpn_forward.13} parent=0 // pred_region
    _
  $region25: #{backbone_fpn_forward.13} parent=0 // pred_fallthru
    _

</llo_original>
